<compile_context>
chip_gen: v5e
topology: v5e:2x2
jax: 0.10.0
libtpu: 0.0.40
codegen_flags: <defaults>
</compile_context>

<pallas_src>
import functools

import jax
import jax.numpy as jnp
from jax.experimental import pallas as pl
from jax.experimental.pallas import tpu as pltpu


CH = 128  # physical (lane-aligned) channel count for the surrogate UNet


def _round_up(x, m):
    return (x + m - 1) // m * m


def _silu(v):
    return v * (1.0 / (1.0 + jnp.exp(-v)))


# ----------------------------------------------------------------------------
# Fused kernel: mix -> temb MLP -> 3x(3x3 conv) -> loss partial sum
# Grid = (B,), one batch element per step; SMEM scalar accumulator for the loss.
# ----------------------------------------------------------------------------
def _bbdm_fused_kernel(
        m_ref, s_ref,                       # SMEM (B,) f32 : m_t, sigma_t
        xp_ref, yp_ref, noise_ref,          # (1, Pp, C) f32 padded, row-flattened
        emb_ref,                            # (1, 1, CH) f32 sinusoidal embedding
        tw1_ref, tb1_ref, tw2_ref, tb2_ref,  # temb MLP weights
        win_ref, bin_ref,                   # conv_in  (9, C,  CH) bf16 / (1, CH) f32
        wmid_ref, bmid_ref,                 # conv_mid (9, CH, CH) bf16 / (1, CH) f32
        wout_ref, bout_ref,                 # conv_out (9, CH, CH) bf16 / (1, CH) f32
        loss_ref,                           # output (1,1) f32 in SMEM
        acc_ref,                            # scratch (1,1) f32 in SMEM
        *, H, W, C, loss_type, inv_n):
    b = pl.program_id(0)
    Wp = W + 2
    Lout = H * Wp
    Pp = xp_ref.shape[1]

    @pl.when(b == 0)
    def _():
        acc_ref[0, 0] = 0.0

    m = m_ref[b]
    s = s_ref[b]

    # --- bridge mixing (pad rows of x/y/noise are zero => stay zero) ----------
    xp = xp_ref[0]                                   # (Pp, C) f32
    yp = yp_ref[0]
    nz = noise_ref[0]
    sn = s * nz
    noisy = (1.0 - m) * xp + m * yp + sn             # padded noisy image
    added = m * (yp - xp) + sn                       # padded noise target

    # --- time-embedding MLP (per batch element, bf16 MXU, f32 bias/SiLU) ------
    e = emb_ref[0].astype(jnp.bfloat16)              # (1, CH)
    h = jnp.dot(e, tw1_ref[...], preferred_element_type=jnp.float32) + tb1_ref[...]
    h = _silu(h)
    temb = jnp.dot(h.astype(jnp.bfloat16), tw2_ref[...],
                   preferred_element_type=jnp.float32) + tb2_ref[...]   # (1, CH)

    # mask for the garbage width-pad output columns (j >= W)
    col = jax.lax.broadcasted_iota(jnp.int32, (Lout, 1), 0) % Wp
    valid = (col < W).astype(jnp.float32)            # (Lout, 1)

    def conv3x3(xpad, w_ref, bias, extra=None, silu=False):
        n_out = w_ref.shape[-1]
        acc = jnp.zeros((Lout, n_out), jnp.float32)
        for tap in range(9):                         # unrolled: 9 in-VMEM tap matmuls
            di, dj = divmod(tap, 3)
            off = di * Wp + dj
            xs = xpad[off:off + Lout, :].astype(jnp.bfloat16)
            acc = acc + jnp.dot(xs, w_ref[tap], preferred_element_type=jnp.float32)
        out = acc + bias
        if extra is not None:
            out = out + extra
        if silu:
            out = _silu(out)
        return out                                   # (Lout, n_out) f32

    def repad(out):
        # zero the garbage columns, then shift by Wp+1 rows with zero fill so the
        # buffer is exactly the zero-padded, row-flattened input of the next conv.
        om = (out * valid).astype(jnp.bfloat16)
        top = jnp.zeros((Wp + 1, out.shape[-1]), jnp.bfloat16)
        bot = jnp.zeros((Pp - (Wp + 1) - Lout, out.shape[-1]), jnp.bfloat16)
        return jnp.concatenate([top, om, bot], axis=0)   # (Pp, n_out) bf16

    # --- surrogate UNet -------------------------------------------------------
    h1 = conv3x3(noisy, win_ref, bin_ref[...], extra=temb, silu=True)
    h2 = conv3x3(repad(h1), wmid_ref, bmid_ref[...], silu=True)
    pred = conv3x3(repad(h2), wout_ref, bout_ref[...])        # (Lout, CH)

    # --- fused loss partial (interior positions, first C channels) ------------
    added_i = added[Wp + 1:Wp + 1 + Lout, :]                  # (Lout, C)
    d = (added_i - pred[:, :C]) * valid
    if loss_type == "l1":
        part = jnp.sum(jnp.abs(d))
    else:  # 'l2' == mse
        part = jnp.sum(d * d)
    acc_ref[0, 0] += part

    @pl.when(b == pl.num_programs(0) - 1)
    def _():
        loss_ref[0, 0] = acc_ref[0, 0] * inv_n


def bbdm_fused_forward(params, m_b, s_b, x_nhwc, y_nhwc, noise, timestep, loss_type):
    B, H, W, C = x_nhwc.shape
    Hp, Wp = H + 2, W + 2
    Pp = _round_up(Hp * Wp + 2, 16)      # padded-flat row count (covers max tap offset)

    def padflat(a):
        a = jnp.pad(a, ((0, 0), (1, 1), (1, 1), (0, 0)))     # zero spatial pad
        a = a.reshape(B, Hp * Wp, C)
        return jnp.pad(a, ((0, 0), (0, Pp - Hp * Wp), (0, 0))).astype(jnp.float32)

    xp, yp, nzp = padflat(x_nhwc), padflat(y_nhwc), padflat(noise)

    hidden = params["hidden"]
    emb = timestep_embedding(timestep, hidden)                # (B, hidden)
    emb = jnp.pad(emb, ((0, 0), (0, CH - hidden))).reshape(B, 1, CH)

    kern = functools.partial(_bbdm_fused_kernel, H=H, W=W, C=C,
                             loss_type=loss_type,
                             inv_n=1.0 / float(B * H * W * C))

    smem = pl.BlockSpec(memory_space=pltpu.MemorySpace.SMEM)
    per_b = lambda shp: pl.BlockSpec((1,) + shp, lambda b: (b, 0, 0))
    w2d = lambda shp: pl.BlockSpec(shp, lambda b: (0, 0))
    w3d = lambda shp: pl.BlockSpec(shp, lambda b: (0, 0, 0))

    out = pl.pallas_call(
        kern,
        grid=(B,),
        in_specs=[
            smem, smem,
            per_b((Pp, C)), per_b((Pp, C)), per_b((Pp, C)),
            per_b((1, CH)),
            w2d((CH, CH)), w2d((1, CH)), w2d((CH, CH)), w2d((1, CH)),
            w3d((9, C, CH)), w2d((1, CH)),
            w3d((9, CH, CH)), w2d((1, CH)),
            w3d((9, CH, CH)), w2d((1, CH)),
        ],
        out_specs=pl.BlockSpec(memory_space=pltpu.MemorySpace.SMEM),
        out_shape=jax.ShapeDtypeStruct((1, 1), jnp.float32),
        scratch_shapes=[pltpu.SMEM((1, 1), jnp.float32)],
        compiler_params=pltpu.CompilerParams(dimension_semantics=("arbitrary",)),
    )(
        m_b.astype(jnp.float32), s_b.astype(jnp.float32),
        xp, yp, nzp, emb,
        params["temb_w1"], params["temb_b1"].reshape(1, CH),
        params["temb_w2"], params["temb_b2"].reshape(1, CH),
        params["conv_in_w"], params["conv_in_b"].reshape(1, CH),
        params["conv_mid_w"], params["conv_mid_b"].reshape(1, CH),
        params["conv_out_w"], params["conv_out_b"].reshape(1, CH),
    )
    return out[0, 0]


# ----------------------------------------------------------------------------
# Surrogate UNet2DModel parameters (logical `hidden`, zero-padded to CH=128)
# ----------------------------------------------------------------------------
def timestep_embedding(t, dim):
    half = dim // 2
    freqs = jnp.exp(-jnp.log(10000.0) * jnp.arange(half, dtype=jnp.float32) / float(half))
    args = t.astype(jnp.float32)[:, None] * freqs[None, :]
    return jnp.concatenate([jnp.sin(args), jnp.cos(args)], axis=-1)


def init_unet_params(key, in_ch, hidden):
    """Weights at logical size `hidden`, zero-padded to CH=128 physical channels.
    Padded channels stay exactly zero end-to-end, so results match the unpadded model."""
    ks = jax.random.split(key, 5)
    nrm = lambda k, shp, s: jax.random.normal(k, shp, jnp.float32) * s
    conv_in = nrm(ks[0], (9, in_ch, hidden), 0.10)
    temb_w1 = nrm(ks[1], (hidden, hidden), 0.10)
    temb_w2 = nrm(ks[2], (hidden, hidden), 0.10)
    conv_mid = nrm(ks[3], (9, hidden, hidden), 0.05)
    conv_out = nrm(ks[4], (9, hidden, in_ch), 0.05)

    pad2 = lambda w, r, c: jnp.pad(w, ((0, r - w.shape[0]), (0, c - w.shape[1])))
    pad3 = lambda w, r, c: jnp.pad(w, ((0, 0), (0, r - w.shape[1]), (0, c - w.shape[2])))
    return {
        "hidden": hidden,
        "conv_in_w": pad3(conv_in, in_ch, CH).astype(jnp.bfloat16),   # (9, in_ch, CH)
        "conv_in_b": jnp.zeros((CH,), jnp.float32),
        "temb_w1": pad2(temb_w1, CH, CH).astype(jnp.bfloat16),
        "temb_b1": jnp.zeros((CH,), jnp.float32),
        "temb_w2": pad2(temb_w2, CH, CH).astype(jnp.bfloat16),
        "temb_b2": jnp.zeros((CH,), jnp.float32),
        "conv_mid_w": pad3(conv_mid, CH, CH).astype(jnp.bfloat16),    # (9, CH, CH)
        "conv_mid_b": jnp.zeros((CH,), jnp.float32),
        "conv_out_w": pad3(conv_out, CH, CH).astype(jnp.bfloat16),    # (9, CH, CH)
        "conv_out_b": jnp.zeros((CH,), jnp.float32),
    }


# ----------------------------------------------------------------------------
# BBDM module (matches the PyTorch forward semantics)
# ----------------------------------------------------------------------------
class BBDMPallas:
    def __init__(self, timesteps=8, in_ch=4, hidden=32, loss_type="l2", seed=0):
        self.timesteps = timesteps
        self.max_var = 1.0
        self.m_t = jnp.sin(jnp.linspace(0.01, 0.99, timesteps + 1, dtype=jnp.float32))
        self.variance = 2.0 * (self.m_t - self.m_t ** 2) * self.max_var
        self.eta = 1
        self.loss_type = loss_type
        self.in_ch = in_ch
        self.params = init_unet_params(jax.random.PRNGKey(seed), in_ch, hidden)

    def forward(self, noise_key, timestep, x_nchw, y_nchw):
        # x, y: (B, C, H, W) (PyTorch NCHW) ; timestep: (B,) int32
        B, C, H, W = x_nchw.shape
        x = jnp.transpose(x_nchw, (0, 2, 3, 1)).astype(jnp.float32)   # NHWC
        y = jnp.transpose(y_nchw, (0, 2, 3, 1)).astype(jnp.float32)
        # reference uses torch.rand_like -> uniform noise
        noise = jax.random.uniform(noise_key, x.shape, jnp.float32)
        m_b = self.m_t[timestep].astype(jnp.float32)                  # (B,)
        s_b = jnp.sqrt(self.variance[timestep]).astype(jnp.float32)   # (B,)
        return bbdm_fused_forward(self.params, m_b, s_b, x, y, noise,
                                  timestep, self.loss_type)


if __name__ == "__main__":
    B, C, H, W = 2, 4, 16, 16
    TIMESTEPS = 8

    key = jax.random.PRNGKey(0)
    kx, ky, kt, kn = jax.random.split(key, 4)
    x = jax.random.normal(kx, (B, C, H, W), jnp.float32)
    y = jax.random.normal(ky, (B, C, H, W), jnp.float32)
    t = jax.random.randint(kt, (B,), 0, TIMESTEPS)

    model = BBDMPallas(timesteps=TIMESTEPS, in_ch=C, hidden=32, loss_type="l2")
    loss = jax.jit(model.forward)(kn, t, x, y)
    jax.block_until_ready(loss)
    assert loss.shape == () and bool(jnp.isfinite(loss))
    print("KERNEL_OK")
</pallas_src>

<mosaic_0001>
module attributes {stable_mosaic.version = 11 : i64} {
  func.func @_bbdm_fused_kernel(%arg0: i32, %arg1: memref<2xf32, #tpu.memory_space<smem>>, %arg2: memref<2xf32, #tpu.memory_space<smem>>, %arg3: memref<1x336x4xf32, #tpu.memory_space<vmem>>, %arg4: memref<1x336x4xf32, #tpu.memory_space<vmem>>, %arg5: memref<1x336x4xf32, #tpu.memory_space<vmem>>, %arg6: memref<1x1x128xf32, #tpu.memory_space<vmem>>, %arg7: memref<128x128xbf16, #tpu.memory_space<vmem>>, %arg8: memref<1x128xf32, #tpu.memory_space<vmem>>, %arg9: memref<128x128xbf16, #tpu.memory_space<vmem>>, %arg10: memref<1x128xf32, #tpu.memory_space<vmem>>, %arg11: memref<9x4x128xbf16, #tpu.memory_space<vmem>>, %arg12: memref<1x128xf32, #tpu.memory_space<vmem>>, %arg13: memref<9x128x128xbf16, #tpu.memory_space<vmem>>, %arg14: memref<1x128xf32, #tpu.memory_space<vmem>>, %arg15: memref<9x128x128xbf16, #tpu.memory_space<vmem>>, %arg16: memref<1x128xf32, #tpu.memory_space<vmem>>, %arg17: memref<1x1xf32, #tpu.memory_space<smem>>, %arg18: memref<1x1xf32, #tpu.memory_space<smem>>) attributes {dimension_semantics = [#tpu.dimension_semantics<arbitrary>], iteration_bounds = array<i64: 2>, scalar_prefetch = 0 : i64, scratch_operands = 1 : i64, tpu.core_type = #tpu.core_type<tc>, window_params = [{transform_indices = @transform_0, window_bounds = array<i64: 2>}, {transform_indices = @transform_1, window_bounds = array<i64: 2>}, {transform_indices = @transform_2, window_bounds = array<i64: 1, 336, 4>}, {transform_indices = @transform_3, window_bounds = array<i64: 1, 336, 4>}, {transform_indices = @transform_4, window_bounds = array<i64: 1, 336, 4>}, {transform_indices = @transform_5, window_bounds = array<i64: 1, 1, 128>}, {pipeline_mode = #tpu.pipeline_mode<synchronous>, transform_indices = @transform_6, window_bounds = array<i64: 128, 128>}, {pipeline_mode = #tpu.pipeline_mode<synchronous>, transform_indices = @transform_7, window_bounds = array<i64: 1, 128>}, {pipeline_mode = #tpu.pipeline_mode<synchronous>, transform_indices = @transform_8, window_bounds = array<i64: 128, 128>}, {pipeline_mode = #tpu.pipeline_mode<synchronous>, transform_indices = @transform_9, window_bounds = array<i64: 1, 128>}, {pipeline_mode = #tpu.pipeline_mode<synchronous>, transform_indices = @transform_10, window_bounds = array<i64: 9, 4, 128>}, {pipeline_mode = #tpu.pipeline_mode<synchronous>, transform_indices = @transform_11, window_bounds = array<i64: 1, 128>}, {pipeline_mode = #tpu.pipeline_mode<synchronous>, transform_indices = @transform_12, window_bounds = array<i64: 9, 128, 128>}, {pipeline_mode = #tpu.pipeline_mode<synchronous>, transform_indices = @transform_13, window_bounds = array<i64: 1, 128>}, {pipeline_mode = #tpu.pipeline_mode<synchronous>, transform_indices = @transform_14, window_bounds = array<i64: 9, 128, 128>}, {pipeline_mode = #tpu.pipeline_mode<synchronous>, transform_indices = @transform_15, window_bounds = array<i64: 1, 128>}, {transform_indices = @transform_16, window_bounds = array<i64: 1, 1>}]} {
    %c0_i32 = arith.constant 0 : i32
    %0 = arith.cmpi eq, %arg0, %c0_i32 : i32
    %1 = arith.extui %0 : i1 to i32
    %c0_i32_0 = arith.constant 0 : i32
    %2 = arith.cmpi ne, %1, %c0_i32_0 : i32
    scf.if %2 {
      %cst_155 = arith.constant 0.000000e+00 : f32
      %c0_156 = arith.constant 0 : index
      %c0_157 = arith.constant 0 : index
      %269 = memref.load %arg18[%c0_156, %c0_157] : memref<1x1xf32, #tpu.memory_space<smem>>
      memref.store %cst_155, %arg18[%c0_156, %c0_157] : memref<1x1xf32, #tpu.memory_space<smem>>
    } else {
    }
    %3 = arith.index_cast %arg0 : i32 to index
    %4 = memref.load %arg1[%3] : memref<2xf32, #tpu.memory_space<smem>>
    %5 = arith.index_cast %arg0 : i32 to index
    %6 = memref.load %arg2[%5] : memref<2xf32, #tpu.memory_space<smem>>
    %c0 = arith.constant 0 : index
    %c0_1 = arith.constant 0 : index
    %c0_2 = arith.constant 0 : index
    %7 = vector.load %arg3[%c0, %c0_1, %c0_2] : memref<1x336x4xf32, #tpu.memory_space<vmem>>, vector<1x336x4xf32>
    %8 = vector.shape_cast %7 : vector<1x336x4xf32> to vector<336x4xf32>
    %c0_3 = arith.constant 0 : index
    %c0_4 = arith.constant 0 : index
    %c0_5 = arith.constant 0 : index
    %9 = vector.load %arg4[%c0_3, %c0_4, %c0_5] : memref<1x336x4xf32, #tpu.memory_space<vmem>>, vector<1x336x4xf32>
    %10 = vector.shape_cast %9 : vector<1x336x4xf32> to vector<336x4xf32>
    %c0_6 = arith.constant 0 : index
    %c0_7 = arith.constant 0 : index
    %c0_8 = arith.constant 0 : index
    %11 = vector.load %arg5[%c0_6, %c0_7, %c0_8] : memref<1x336x4xf32, #tpu.memory_space<vmem>>, vector<1x336x4xf32>
    %12 = vector.shape_cast %11 : vector<1x336x4xf32> to vector<336x4xf32>
    %13 = vector.broadcast %6 : f32 to vector<336x4xf32>
    %14 = arith.mulf %13, %12 : vector<336x4xf32>
    %cst = arith.constant 1.000000e+00 : f32
    %15 = arith.subf %cst, %4 : f32
    %16 = vector.broadcast %15 : f32 to vector<336x4xf32>
    %17 = arith.mulf %16, %8 : vector<336x4xf32>
    %18 = vector.broadcast %4 : f32 to vector<336x4xf32>
    %19 = arith.mulf %18, %10 : vector<336x4xf32>
    %20 = arith.addf %17, %19 : vector<336x4xf32>
    %21 = arith.addf %20, %14 : vector<336x4xf32>
    %22 = arith.subf %10, %8 : vector<336x4xf32>
    %23 = vector.broadcast %4 : f32 to vector<336x4xf32>
    %24 = arith.mulf %23, %22 : vector<336x4xf32>
    %25 = arith.addf %24, %14 : vector<336x4xf32>
    %c0_9 = arith.constant 0 : index
    %c0_10 = arith.constant 0 : index
    %c0_11 = arith.constant 0 : index
    %26 = vector.load %arg6[%c0_9, %c0_10, %c0_11] : memref<1x1x128xf32, #tpu.memory_space<vmem>>, vector<1x1x128xf32>
    %27 = vector.shape_cast %26 : vector<1x1x128xf32> to vector<1x128xf32>
    %28 = arith.truncf %27 : vector<1x128xf32> to vector<1x128xbf16>
    %c0_12 = arith.constant 0 : index
    %c0_13 = arith.constant 0 : index
    %29 = vector.load %arg7[%c0_12, %c0_13] : memref<128x128xbf16, #tpu.memory_space<vmem>>, vector<128x128xbf16>
    %cst_14 = arith.constant dense<0.000000e+00> : vector<1x128xf32>
    %30 = tpu.matmul %28, %29, %cst_14 {dimension_numbers = #tpu.dot_dimension_numbers<[1], [0], [0], [1], [0, 0, 1, 1], [], []>} : vector<1x128xbf16>, vector<128x128xbf16>, vector<1x128xf32> -> vector<1x128xf32>
    %c0_15 = arith.constant 0 : index
    %c0_16 = arith.constant 0 : index
    %31 = vector.load %arg8[%c0_15, %c0_16] : memref<1x128xf32, #tpu.memory_space<vmem>>, vector<1x128xf32>
    %32 = arith.addf %30, %31 : vector<1x128xf32>
    %cst_17 = arith.constant 0.000000e+00 : f32
    %33 = vector.broadcast %cst_17 : f32 to vector<1x128xf32>
    %34 = arith.subf %33, %32 : vector<1x128xf32>
    %35 = math.exp %34 : vector<1x128xf32>
    %cst_18 = arith.constant 1.000000e+00 : f32
    %36 = vector.broadcast %cst_18 : f32 to vector<1x128xf32>
    %37 = arith.addf %36, %35 : vector<1x128xf32>
    %cst_19 = arith.constant 1.000000e+00 : f32
    %38 = vector.broadcast %cst_19 : f32 to vector<1x128xf32>
    %39 = arith.divf %38, %37 : vector<1x128xf32>
    %40 = arith.mulf %32, %39 : vector<1x128xf32>
    %41 = arith.truncf %40 : vector<1x128xf32> to vector<1x128xbf16>
    %c0_20 = arith.constant 0 : index
    %c0_21 = arith.constant 0 : index
    %42 = vector.load %arg9[%c0_20, %c0_21] : memref<128x128xbf16, #tpu.memory_space<vmem>>, vector<128x128xbf16>
    %cst_22 = arith.constant dense<0.000000e+00> : vector<1x128xf32>
    %43 = tpu.matmul %41, %42, %cst_22 {dimension_numbers = #tpu.dot_dimension_numbers<[1], [0], [0], [1], [0, 0, 1, 1], [], []>} : vector<1x128xbf16>, vector<128x128xbf16>, vector<1x128xf32> -> vector<1x128xf32>
    %c0_23 = arith.constant 0 : index
    %c0_24 = arith.constant 0 : index
    %44 = vector.load %arg10[%c0_23, %c0_24] : memref<1x128xf32, #tpu.memory_space<vmem>>, vector<1x128xf32>
    %45 = arith.addf %43, %44 : vector<1x128xf32>
    %46 = tpu.iota {dimensions = array<i32: 0>} : vector<288x1xi32>
    %c18_i32 = arith.constant 18 : i32
    %c0_i32_25 = arith.constant 0 : i32
    %47 = arith.cmpi eq, %c18_i32, %c0_i32_25 : i32
    %c1_i32 = arith.constant 1 : i32
    %48 = arith.select %47, %c1_i32, %c18_i32 : i32
    %49 = vector.broadcast %48 : i32 to vector<288x1xi32>
    %50 = arith.remsi %46, %49 : vector<288x1xi32>
    %c0_i32_26 = arith.constant 0 : i32
    %51 = vector.broadcast %c0_i32_26 : i32 to vector<288x1xi32>
    %52 = arith.cmpi ne, %50, %51 : vector<288x1xi32>
    %c0_i32_27 = arith.constant 0 : i32
    %53 = vector.broadcast %c0_i32_27 : i32 to vector<288x1xi32>
    %54 = arith.cmpi slt, %50, %53 : vector<288x1xi32>
    %c0_i32_28 = arith.constant 0 : i32
    %55 = arith.cmpi slt, %48, %c0_i32_28 : i32
    %56 = vector.broadcast %55 : i1 to vector<288x1xi1>
    %57 = vector.broadcast %56 : vector<288x1xi1> to vector<288x1xi1>
    %58 = arith.xori %54, %57 : vector<288x1xi1>
    %59 = arith.andi %58, %52 : vector<288x1xi1>
    %60 = vector.broadcast %48 : i32 to vector<288x1xi32>
    %61 = arith.addi %50, %60 : vector<288x1xi32>
    %62 = arith.select %59, %61, %50 : vector<288x1xi1>, vector<288x1xi32>
    %c16_i32 = arith.constant 16 : i32
    %63 = vector.broadcast %c16_i32 : i32 to vector<288x1xi32>
    %64 = arith.cmpi slt, %62, %63 : vector<288x1xi32>
    %65 = arith.extui %64 : vector<288x1xi1> to vector<288x1xi32>
    %66 = arith.sitofp %65 : vector<288x1xi32> to vector<288x1xf32>
    %c0_29 = arith.constant 0 : index
    %c0_30 = arith.constant 0 : index
    %67 = vector.load %arg12[%c0_29, %c0_30] : memref<1x128xf32, #tpu.memory_space<vmem>>, vector<1x128xf32>
    %cst_31 = arith.constant 0.000000e+00 : f32
    %68 = vector.broadcast %cst_31 : f32 to vector<288x128xf32>
    %69 = vector.extract_strided_slice %21 {offsets = [0, 0], sizes = [288, 4], strides = [1, 1]} : vector<336x4xf32> to vector<288x4xf32>
    %70 = arith.truncf %69 : vector<288x4xf32> to vector<288x4xbf16>
    %c0_32 = arith.constant 0 : index
    %c0_33 = arith.constant 0 : index
    %c0_34 = arith.constant 0 : index
    %71 = vector.load %arg11[%c0_32, %c0_33, %c0_34] : memref<9x4x128xbf16, #tpu.memory_space<vmem>>, vector<1x4x128xbf16>
    %72 = vector.shape_cast %71 : vector<1x4x128xbf16> to vector<4x128xbf16>
    %cst_35 = arith.constant dense<0.000000e+00> : vector<288x128xf32>
    %73 = tpu.matmul %70, %72, %cst_35 {dimension_numbers = #tpu.dot_dimension_numbers<[1], [0], [0], [1], [0, 0, 1, 1], [], []>} : vector<288x4xbf16>, vector<4x128xbf16>, vector<288x128xf32> -> vector<288x128xf32>
    %74 = arith.addf %68, %73 : vector<288x128xf32>
    %75 = vector.extract_strided_slice %21 {offsets = [1, 0], sizes = [288, 4], strides = [1, 1]} : vector<336x4xf32> to vector<288x4xf32>
    %76 = arith.truncf %75 : vector<288x4xf32> to vector<288x4xbf16>
    %c1 = arith.constant 1 : index
    %c0_36 = arith.constant 0 : index
    %c0_37 = arith.constant 0 : index
    %77 = vector.load %arg11[%c1, %c0_36, %c0_37] : memref<9x4x128xbf16, #tpu.memory_space<vmem>>, vector<1x4x128xbf16>
    %78 = vector.shape_cast %77 : vector<1x4x128xbf16> to vector<4x128xbf16>
    %cst_38 = arith.constant dense<0.000000e+00> : vector<288x128xf32>
    %79 = tpu.matmul %76, %78, %cst_38 {dimension_numbers = #tpu.dot_dimension_numbers<[1], [0], [0], [1], [0, 0, 1, 1], [], []>} : vector<288x4xbf16>, vector<4x128xbf16>, vector<288x128xf32> -> vector<288x128xf32>
    %80 = arith.addf %74, %79 : vector<288x128xf32>
    %81 = vector.extract_strided_slice %21 {offsets = [2, 0], sizes = [288, 4], strides = [1, 1]} : vector<336x4xf32> to vector<288x4xf32>
    %82 = arith.truncf %81 : vector<288x4xf32> to vector<288x4xbf16>
    %c2 = arith.constant 2 : index
    %c0_39 = arith.constant 0 : index
    %c0_40 = arith.constant 0 : index
    %83 = vector.load %arg11[%c2, %c0_39, %c0_40] : memref<9x4x128xbf16, #tpu.memory_space<vmem>>, vector<1x4x128xbf16>
    %84 = vector.shape_cast %83 : vector<1x4x128xbf16> to vector<4x128xbf16>
    %cst_41 = arith.constant dense<0.000000e+00> : vector<288x128xf32>
    %85 = tpu.matmul %82, %84, %cst_41 {dimension_numbers = #tpu.dot_dimension_numbers<[1], [0], [0], [1], [0, 0, 1, 1], [], []>} : vector<288x4xbf16>, vector<4x128xbf16>, vector<288x128xf32> -> vector<288x128xf32>
    %86 = arith.addf %80, %85 : vector<288x128xf32>
    %87 = vector.extract_strided_slice %21 {offsets = [18, 0], sizes = [288, 4], strides = [1, 1]} : vector<336x4xf32> to vector<288x4xf32>
    %88 = arith.truncf %87 : vector<288x4xf32> to vector<288x4xbf16>
    %c3 = arith.constant 3 : index
    %c0_42 = arith.constant 0 : index
    %c0_43 = arith.constant 0 : index
    %89 = vector.load %arg11[%c3, %c0_42, %c0_43] : memref<9x4x128xbf16, #tpu.memory_space<vmem>>, vector<1x4x128xbf16>
    %90 = vector.shape_cast %89 : vector<1x4x128xbf16> to vector<4x128xbf16>
    %cst_44 = arith.constant dense<0.000000e+00> : vector<288x128xf32>
    %91 = tpu.matmul %88, %90, %cst_44 {dimension_numbers = #tpu.dot_dimension_numbers<[1], [0], [0], [1], [0, 0, 1, 1], [], []>} : vector<288x4xbf16>, vector<4x128xbf16>, vector<288x128xf32> -> vector<288x128xf32>
    %92 = arith.addf %86, %91 : vector<288x128xf32>
    %93 = vector.extract_strided_slice %21 {offsets = [19, 0], sizes = [288, 4], strides = [1, 1]} : vector<336x4xf32> to vector<288x4xf32>
    %94 = arith.truncf %93 : vector<288x4xf32> to vector<288x4xbf16>
    %c4 = arith.constant 4 : index
    %c0_45 = arith.constant 0 : index
    %c0_46 = arith.constant 0 : index
    %95 = vector.load %arg11[%c4, %c0_45, %c0_46] : memref<9x4x128xbf16, #tpu.memory_space<vmem>>, vector<1x4x128xbf16>
    %96 = vector.shape_cast %95 : vector<1x4x128xbf16> to vector<4x128xbf16>
    %cst_47 = arith.constant dense<0.000000e+00> : vector<288x128xf32>
    %97 = tpu.matmul %94, %96, %cst_47 {dimension_numbers = #tpu.dot_dimension_numbers<[1], [0], [0], [1], [0, 0, 1, 1], [], []>} : vector<288x4xbf16>, vector<4x128xbf16>, vector<288x128xf32> -> vector<288x128xf32>
    %98 = arith.addf %92, %97 : vector<288x128xf32>
    %99 = vector.extract_strided_slice %21 {offsets = [20, 0], sizes = [288, 4], strides = [1, 1]} : vector<336x4xf32> to vector<288x4xf32>
    %100 = arith.truncf %99 : vector<288x4xf32> to vector<288x4xbf16>
    %c5 = arith.constant 5 : index
    %c0_48 = arith.constant 0 : index
    %c0_49 = arith.constant 0 : index
    %101 = vector.load %arg11[%c5, %c0_48, %c0_49] : memref<9x4x128xbf16, #tpu.memory_space<vmem>>, vector<1x4x128xbf16>
    %102 = vector.shape_cast %101 : vector<1x4x128xbf16> to vector<4x128xbf16>
    %cst_50 = arith.constant dense<0.000000e+00> : vector<288x128xf32>
    %103 = tpu.matmul %100, %102, %cst_50 {dimension_numbers = #tpu.dot_dimension_numbers<[1], [0], [0], [1], [0, 0, 1, 1], [], []>} : vector<288x4xbf16>, vector<4x128xbf16>, vector<288x128xf32> -> vector<288x128xf32>
    %104 = arith.addf %98, %103 : vector<288x128xf32>
    %105 = vector.extract_strided_slice %21 {offsets = [36, 0], sizes = [288, 4], strides = [1, 1]} : vector<336x4xf32> to vector<288x4xf32>
    %106 = arith.truncf %105 : vector<288x4xf32> to vector<288x4xbf16>
    %c6 = arith.constant 6 : index
    %c0_51 = arith.constant 0 : index
    %c0_52 = arith.constant 0 : index
    %107 = vector.load %arg11[%c6, %c0_51, %c0_52] : memref<9x4x128xbf16, #tpu.memory_space<vmem>>, vector<1x4x128xbf16>
    %108 = vector.shape_cast %107 : vector<1x4x128xbf16> to vector<4x128xbf16>
    %cst_53 = arith.constant dense<0.000000e+00> : vector<288x128xf32>
    %109 = tpu.matmul %106, %108, %cst_53 {dimension_numbers = #tpu.dot_dimension_numbers<[1], [0], [0], [1], [0, 0, 1, 1], [], []>} : vector<288x4xbf16>, vector<4x128xbf16>, vector<288x128xf32> -> vector<288x128xf32>
    %110 = arith.addf %104, %109 : vector<288x128xf32>
    %111 = vector.extract_strided_slice %21 {offsets = [37, 0], sizes = [288, 4], strides = [1, 1]} : vector<336x4xf32> to vector<288x4xf32>
    %112 = arith.truncf %111 : vector<288x4xf32> to vector<288x4xbf16>
    %c7 = arith.constant 7 : index
    %c0_54 = arith.constant 0 : index
    %c0_55 = arith.constant 0 : index
    %113 = vector.load %arg11[%c7, %c0_54, %c0_55] : memref<9x4x128xbf16, #tpu.memory_space<vmem>>, vector<1x4x128xbf16>
    %114 = vector.shape_cast %113 : vector<1x4x128xbf16> to vector<4x128xbf16>
    %cst_56 = arith.constant dense<0.000000e+00> : vector<288x128xf32>
    %115 = tpu.matmul %112, %114, %cst_56 {dimension_numbers = #tpu.dot_dimension_numbers<[1], [0], [0], [1], [0, 0, 1, 1], [], []>} : vector<288x4xbf16>, vector<4x128xbf16>, vector<288x128xf32> -> vector<288x128xf32>
    %116 = arith.addf %110, %115 : vector<288x128xf32>
    %117 = vector.extract_strided_slice %21 {offsets = [38, 0], sizes = [288, 4], strides = [1, 1]} : vector<336x4xf32> to vector<288x4xf32>
    %118 = arith.truncf %117 : vector<288x4xf32> to vector<288x4xbf16>
    %c8 = arith.constant 8 : index
    %c0_57 = arith.constant 0 : index
    %c0_58 = arith.constant 0 : index
    %119 = vector.load %arg11[%c8, %c0_57, %c0_58] : memref<9x4x128xbf16, #tpu.memory_space<vmem>>, vector<1x4x128xbf16>
    %120 = vector.shape_cast %119 : vector<1x4x128xbf16> to vector<4x128xbf16>
    %cst_59 = arith.constant dense<0.000000e+00> : vector<288x128xf32>
    %121 = tpu.matmul %118, %120, %cst_59 {dimension_numbers = #tpu.dot_dimension_numbers<[1], [0], [0], [1], [0, 0, 1, 1], [], []>} : vector<288x4xbf16>, vector<4x128xbf16>, vector<288x128xf32> -> vector<288x128xf32>
    %122 = arith.addf %116, %121 : vector<288x128xf32>
    %123 = vector.broadcast %67 : vector<1x128xf32> to vector<288x128xf32>
    %124 = arith.addf %122, %123 : vector<288x128xf32>
    %125 = vector.broadcast %45 : vector<1x128xf32> to vector<288x128xf32>
    %126 = arith.addf %124, %125 : vector<288x128xf32>
    %cst_60 = arith.constant 0.000000e+00 : f32
    %127 = vector.broadcast %cst_60 : f32 to vector<288x128xf32>
    %128 = arith.subf %127, %126 : vector<288x128xf32>
    %129 = math.exp %128 : vector<288x128xf32>
    %cst_61 = arith.constant 1.000000e+00 : f32
    %130 = vector.broadcast %cst_61 : f32 to vector<288x128xf32>
    %131 = arith.addf %130, %129 : vector<288x128xf32>
    %cst_62 = arith.constant 1.000000e+00 : f32
    %132 = vector.broadcast %cst_62 : f32 to vector<288x128xf32>
    %133 = arith.divf %132, %131 : vector<288x128xf32>
    %134 = arith.mulf %126, %133 : vector<288x128xf32>
    %135 = vector.broadcast %66 : vector<288x1xf32> to vector<288x128xf32>
    %136 = arith.mulf %134, %135 : vector<288x128xf32>
    %137 = arith.truncf %136 : vector<288x128xf32> to vector<288x128xbf16>
    %cst_63 = arith.constant 0.000000e+00 : bf16
    %138 = vector.broadcast %cst_63 : bf16 to vector<19x128xbf16>
    %cst_64 = arith.constant 0.000000e+00 : bf16
    %139 = vector.broadcast %cst_64 : bf16 to vector<29x128xbf16>
    %140 = tpu.concatenate %138, %137, %139 in 0 : vector<19x128xbf16>, vector<288x128xbf16>, vector<29x128xbf16> -> vector<336x128xbf16>
    %c0_65 = arith.constant 0 : index
    %c0_66 = arith.constant 0 : index
    %141 = vector.load %arg14[%c0_65, %c0_66] : memref<1x128xf32, #tpu.memory_space<vmem>>, vector<1x128xf32>
    %cst_67 = arith.constant 0.000000e+00 : f32
    %142 = vector.broadcast %cst_67 : f32 to vector<288x128xf32>
    %143 = vector.extract_strided_slice %140 {offsets = [0, 0], sizes = [288, 128], strides = [1, 1]} : vector<336x128xbf16> to vector<288x128xbf16>
    %c0_68 = arith.constant 0 : index
    %c0_69 = arith.constant 0 : index
    %c0_70 = arith.constant 0 : index
    %144 = vector.load %arg13[%c0_68, %c0_69, %c0_70] : memref<9x128x128xbf16, #tpu.memory_space<vmem>>, vector<1x128x128xbf16>
    %145 = vector.shape_cast %144 : vector<1x128x128xbf16> to vector<128x128xbf16>
    %cst_71 = arith.constant dense<0.000000e+00> : vector<288x128xf32>
    %146 = tpu.matmul %143, %145, %cst_71 {dimension_numbers = #tpu.dot_dimension_numbers<[1], [0], [0], [1], [0, 0, 1, 1], [], []>} : vector<288x128xbf16>, vector<128x128xbf16>, vector<288x128xf32> -> vector<288x128xf32>
    %147 = arith.addf %142, %146 : vector<288x128xf32>
    %148 = vector.extract_strided_slice %140 {offsets = [1, 0], sizes = [288, 128], strides = [1, 1]} : vector<336x128xbf16> to vector<288x128xbf16>
    %c1_72 = arith.constant 1 : index
    %c0_73 = arith.constant 0 : index
    %c0_74 = arith.constant 0 : index
    %149 = vector.load %arg13[%c1_72, %c0_73, %c0_74] : memref<9x128x128xbf16, #tpu.memory_space<vmem>>, vector<1x128x128xbf16>
    %150 = vector.shape_cast %149 : vector<1x128x128xbf16> to vector<128x128xbf16>
    %cst_75 = arith.constant dense<0.000000e+00> : vector<288x128xf32>
    %151 = tpu.matmul %148, %150, %cst_75 {dimension_numbers = #tpu.dot_dimension_numbers<[1], [0], [0], [1], [0, 0, 1, 1], [], []>} : vector<288x128xbf16>, vector<128x128xbf16>, vector<288x128xf32> -> vector<288x128xf32>
    %152 = arith.addf %147, %151 : vector<288x128xf32>
    %153 = vector.extract_strided_slice %140 {offsets = [2, 0], sizes = [288, 128], strides = [1, 1]} : vector<336x128xbf16> to vector<288x128xbf16>
    %c2_76 = arith.constant 2 : index
    %c0_77 = arith.constant 0 : index
    %c0_78 = arith.constant 0 : index
    %154 = vector.load %arg13[%c2_76, %c0_77, %c0_78] : memref<9x128x128xbf16, #tpu.memory_space<vmem>>, vector<1x128x128xbf16>
    %155 = vector.shape_cast %154 : vector<1x128x128xbf16> to vector<128x128xbf16>
    %cst_79 = arith.constant dense<0.000000e+00> : vector<288x128xf32>
    %156 = tpu.matmul %153, %155, %cst_79 {dimension_numbers = #tpu.dot_dimension_numbers<[1], [0], [0], [1], [0, 0, 1, 1], [], []>} : vector<288x128xbf16>, vector<128x128xbf16>, vector<288x128xf32> -> vector<288x128xf32>
    %157 = arith.addf %152, %156 : vector<288x128xf32>
    %158 = vector.extract_strided_slice %140 {offsets = [18, 0], sizes = [288, 128], strides = [1, 1]} : vector<336x128xbf16> to vector<288x128xbf16>
    %c3_80 = arith.constant 3 : index
    %c0_81 = arith.constant 0 : index
    %c0_82 = arith.constant 0 : index
    %159 = vector.load %arg13[%c3_80, %c0_81, %c0_82] : memref<9x128x128xbf16, #tpu.memory_space<vmem>>, vector<1x128x128xbf16>
    %160 = vector.shape_cast %159 : vector<1x128x128xbf16> to vector<128x128xbf16>
    %cst_83 = arith.constant dense<0.000000e+00> : vector<288x128xf32>
    %161 = tpu.matmul %158, %160, %cst_83 {dimension_numbers = #tpu.dot_dimension_numbers<[1], [0], [0], [1], [0, 0, 1, 1], [], []>} : vector<288x128xbf16>, vector<128x128xbf16>, vector<288x128xf32> -> vector<288x128xf32>
    %162 = arith.addf %157, %161 : vector<288x128xf32>
    %163 = vector.extract_strided_slice %140 {offsets = [19, 0], sizes = [288, 128], strides = [1, 1]} : vector<336x128xbf16> to vector<288x128xbf16>
    %c4_84 = arith.constant 4 : index
    %c0_85 = arith.constant 0 : index
    %c0_86 = arith.constant 0 : index
    %164 = vector.load %arg13[%c4_84, %c0_85, %c0_86] : memref<9x128x128xbf16, #tpu.memory_space<vmem>>, vector<1x128x128xbf16>
    %165 = vector.shape_cast %164 : vector<1x128x128xbf16> to vector<128x128xbf16>
    %cst_87 = arith.constant dense<0.000000e+00> : vector<288x128xf32>
    %166 = tpu.matmul %163, %165, %cst_87 {dimension_numbers = #tpu.dot_dimension_numbers<[1], [0], [0], [1], [0, 0, 1, 1], [], []>} : vector<288x128xbf16>, vector<128x128xbf16>, vector<288x128xf32> -> vector<288x128xf32>
    %167 = arith.addf %162, %166 : vector<288x128xf32>
    %168 = vector.extract_strided_slice %140 {offsets = [20, 0], sizes = [288, 128], strides = [1, 1]} : vector<336x128xbf16> to vector<288x128xbf16>
    %c5_88 = arith.constant 5 : index
    %c0_89 = arith.constant 0 : index
    %c0_90 = arith.constant 0 : index
    %169 = vector.load %arg13[%c5_88, %c0_89, %c0_90] : memref<9x128x128xbf16, #tpu.memory_space<vmem>>, vector<1x128x128xbf16>
    %170 = vector.shape_cast %169 : vector<1x128x128xbf16> to vector<128x128xbf16>
    %cst_91 = arith.constant dense<0.000000e+00> : vector<288x128xf32>
    %171 = tpu.matmul %168, %170, %cst_91 {dimension_numbers = #tpu.dot_dimension_numbers<[1], [0], [0], [1], [0, 0, 1, 1], [], []>} : vector<288x128xbf16>, vector<128x128xbf16>, vector<288x128xf32> -> vector<288x128xf32>
    %172 = arith.addf %167, %171 : vector<288x128xf32>
    %173 = vector.extract_strided_slice %140 {offsets = [36, 0], sizes = [288, 128], strides = [1, 1]} : vector<336x128xbf16> to vector<288x128xbf16>
    %c6_92 = arith.constant 6 : index
    %c0_93 = arith.constant 0 : index
    %c0_94 = arith.constant 0 : index
    %174 = vector.load %arg13[%c6_92, %c0_93, %c0_94] : memref<9x128x128xbf16, #tpu.memory_space<vmem>>, vector<1x128x128xbf16>
    %175 = vector.shape_cast %174 : vector<1x128x128xbf16> to vector<128x128xbf16>
    %cst_95 = arith.constant dense<0.000000e+00> : vector<288x128xf32>
    %176 = tpu.matmul %173, %175, %cst_95 {dimension_numbers = #tpu.dot_dimension_numbers<[1], [0], [0], [1], [0, 0, 1, 1], [], []>} : vector<288x128xbf16>, vector<128x128xbf16>, vector<288x128xf32> -> vector<288x128xf32>
    %177 = arith.addf %172, %176 : vector<288x128xf32>
    %178 = vector.extract_strided_slice %140 {offsets = [37, 0], sizes = [288, 128], strides = [1, 1]} : vector<336x128xbf16> to vector<288x128xbf16>
    %c7_96 = arith.constant 7 : index
    %c0_97 = arith.constant 0 : index
    %c0_98 = arith.constant 0 : index
    %179 = vector.load %arg13[%c7_96, %c0_97, %c0_98] : memref<9x128x128xbf16, #tpu.memory_space<vmem>>, vector<1x128x128xbf16>
    %180 = vector.shape_cast %179 : vector<1x128x128xbf16> to vector<128x128xbf16>
    %cst_99 = arith.constant dense<0.000000e+00> : vector<288x128xf32>
    %181 = tpu.matmul %178, %180, %cst_99 {dimension_numbers = #tpu.dot_dimension_numbers<[1], [0], [0], [1], [0, 0, 1, 1], [], []>} : vector<288x128xbf16>, vector<128x128xbf16>, vector<288x128xf32> -> vector<288x128xf32>
    %182 = arith.addf %177, %181 : vector<288x128xf32>
    %183 = vector.extract_strided_slice %140 {offsets = [38, 0], sizes = [288, 128], strides = [1, 1]} : vector<336x128xbf16> to vector<288x128xbf16>
    %c8_100 = arith.constant 8 : index
    %c0_101 = arith.constant 0 : index
    %c0_102 = arith.constant 0 : index
    %184 = vector.load %arg13[%c8_100, %c0_101, %c0_102] : memref<9x128x128xbf16, #tpu.memory_space<vmem>>, vector<1x128x128xbf16>
    %185 = vector.shape_cast %184 : vector<1x128x128xbf16> to vector<128x128xbf16>
    %cst_103 = arith.constant dense<0.000000e+00> : vector<288x128xf32>
    %186 = tpu.matmul %183, %185, %cst_103 {dimension_numbers = #tpu.dot_dimension_numbers<[1], [0], [0], [1], [0, 0, 1, 1], [], []>} : vector<288x128xbf16>, vector<128x128xbf16>, vector<288x128xf32> -> vector<288x128xf32>
    %187 = arith.addf %182, %186 : vector<288x128xf32>
    %188 = vector.broadcast %141 : vector<1x128xf32> to vector<288x128xf32>
    %189 = arith.addf %187, %188 : vector<288x128xf32>
    %cst_104 = arith.constant 0.000000e+00 : f32
    %190 = vector.broadcast %cst_104 : f32 to vector<288x128xf32>
    %191 = arith.subf %190, %189 : vector<288x128xf32>
    %192 = math.exp %191 : vector<288x128xf32>
    %cst_105 = arith.constant 1.000000e+00 : f32
    %193 = vector.broadcast %cst_105 : f32 to vector<288x128xf32>
    %194 = arith.addf %193, %192 : vector<288x128xf32>
    %cst_106 = arith.constant 1.000000e+00 : f32
    %195 = vector.broadcast %cst_106 : f32 to vector<288x128xf32>
    %196 = arith.divf %195, %194 : vector<288x128xf32>
    %197 = arith.mulf %189, %196 : vector<288x128xf32>
    %198 = vector.broadcast %66 : vector<288x1xf32> to vector<288x128xf32>
    %199 = arith.mulf %197, %198 : vector<288x128xf32>
    %200 = arith.truncf %199 : vector<288x128xf32> to vector<288x128xbf16>
    %cst_107 = arith.constant 0.000000e+00 : bf16
    %201 = vector.broadcast %cst_107 : bf16 to vector<19x128xbf16>
    %cst_108 = arith.constant 0.000000e+00 : bf16
    %202 = vector.broadcast %cst_108 : bf16 to vector<29x128xbf16>
    %203 = tpu.concatenate %201, %200, %202 in 0 : vector<19x128xbf16>, vector<288x128xbf16>, vector<29x128xbf16> -> vector<336x128xbf16>
    %c0_109 = arith.constant 0 : index
    %c0_110 = arith.constant 0 : index
    %204 = vector.load %arg16[%c0_109, %c0_110] : memref<1x128xf32, #tpu.memory_space<vmem>>, vector<1x128xf32>
    %cst_111 = arith.constant 0.000000e+00 : f32
    %205 = vector.broadcast %cst_111 : f32 to vector<288x128xf32>
    %206 = vector.extract_strided_slice %203 {offsets = [0, 0], sizes = [288, 128], strides = [1, 1]} : vector<336x128xbf16> to vector<288x128xbf16>
    %c0_112 = arith.constant 0 : index
    %c0_113 = arith.constant 0 : index
    %c0_114 = arith.constant 0 : index
    %207 = vector.load %arg15[%c0_112, %c0_113, %c0_114] : memref<9x128x128xbf16, #tpu.memory_space<vmem>>, vector<1x128x128xbf16>
    %208 = vector.shape_cast %207 : vector<1x128x128xbf16> to vector<128x128xbf16>
    %cst_115 = arith.constant dense<0.000000e+00> : vector<288x128xf32>
    %209 = tpu.matmul %206, %208, %cst_115 {dimension_numbers = #tpu.dot_dimension_numbers<[1], [0], [0], [1], [0, 0, 1, 1], [], []>} : vector<288x128xbf16>, vector<128x128xbf16>, vector<288x128xf32> -> vector<288x128xf32>
    %210 = arith.addf %205, %209 : vector<288x128xf32>
    %211 = vector.extract_strided_slice %203 {offsets = [1, 0], sizes = [288, 128], strides = [1, 1]} : vector<336x128xbf16> to vector<288x128xbf16>
    %c1_116 = arith.constant 1 : index
    %c0_117 = arith.constant 0 : index
    %c0_118 = arith.constant 0 : index
    %212 = vector.load %arg15[%c1_116, %c0_117, %c0_118] : memref<9x128x128xbf16, #tpu.memory_space<vmem>>, vector<1x128x128xbf16>
    %213 = vector.shape_cast %212 : vector<1x128x128xbf16> to vector<128x128xbf16>
    %cst_119 = arith.constant dense<0.000000e+00> : vector<288x128xf32>
    %214 = tpu.matmul %211, %213, %cst_119 {dimension_numbers = #tpu.dot_dimension_numbers<[1], [0], [0], [1], [0, 0, 1, 1], [], []>} : vector<288x128xbf16>, vector<128x128xbf16>, vector<288x128xf32> -> vector<288x128xf32>
    %215 = arith.addf %210, %214 : vector<288x128xf32>
    %216 = vector.extract_strided_slice %203 {offsets = [2, 0], sizes = [288, 128], strides = [1, 1]} : vector<336x128xbf16> to vector<288x128xbf16>
    %c2_120 = arith.constant 2 : index
    %c0_121 = arith.constant 0 : index
    %c0_122 = arith.constant 0 : index
    %217 = vector.load %arg15[%c2_120, %c0_121, %c0_122] : memref<9x128x128xbf16, #tpu.memory_space<vmem>>, vector<1x128x128xbf16>
    %218 = vector.shape_cast %217 : vector<1x128x128xbf16> to vector<128x128xbf16>
    %cst_123 = arith.constant dense<0.000000e+00> : vector<288x128xf32>
    %219 = tpu.matmul %216, %218, %cst_123 {dimension_numbers = #tpu.dot_dimension_numbers<[1], [0], [0], [1], [0, 0, 1, 1], [], []>} : vector<288x128xbf16>, vector<128x128xbf16>, vector<288x128xf32> -> vector<288x128xf32>
    %220 = arith.addf %215, %219 : vector<288x128xf32>
    %221 = vector.extract_strided_slice %203 {offsets = [18, 0], sizes = [288, 128], strides = [1, 1]} : vector<336x128xbf16> to vector<288x128xbf16>
    %c3_124 = arith.constant 3 : index
    %c0_125 = arith.constant 0 : index
    %c0_126 = arith.constant 0 : index
    %222 = vector.load %arg15[%c3_124, %c0_125, %c0_126] : memref<9x128x128xbf16, #tpu.memory_space<vmem>>, vector<1x128x128xbf16>
    %223 = vector.shape_cast %222 : vector<1x128x128xbf16> to vector<128x128xbf16>
    %cst_127 = arith.constant dense<0.000000e+00> : vector<288x128xf32>
    %224 = tpu.matmul %221, %223, %cst_127 {dimension_numbers = #tpu.dot_dimension_numbers<[1], [0], [0], [1], [0, 0, 1, 1], [], []>} : vector<288x128xbf16>, vector<128x128xbf16>, vector<288x128xf32> -> vector<288x128xf32>
    %225 = arith.addf %220, %224 : vector<288x128xf32>
    %226 = vector.extract_strided_slice %203 {offsets = [19, 0], sizes = [288, 128], strides = [1, 1]} : vector<336x128xbf16> to vector<288x128xbf16>
    %c4_128 = arith.constant 4 : index
    %c0_129 = arith.constant 0 : index
    %c0_130 = arith.constant 0 : index
    %227 = vector.load %arg15[%c4_128, %c0_129, %c0_130] : memref<9x128x128xbf16, #tpu.memory_space<vmem>>, vector<1x128x128xbf16>
    %228 = vector.shape_cast %227 : vector<1x128x128xbf16> to vector<128x128xbf16>
    %cst_131 = arith.constant dense<0.000000e+00> : vector<288x128xf32>
    %229 = tpu.matmul %226, %228, %cst_131 {dimension_numbers = #tpu.dot_dimension_numbers<[1], [0], [0], [1], [0, 0, 1, 1], [], []>} : vector<288x128xbf16>, vector<128x128xbf16>, vector<288x128xf32> -> vector<288x128xf32>
    %230 = arith.addf %225, %229 : vector<288x128xf32>
    %231 = vector.extract_strided_slice %203 {offsets = [20, 0], sizes = [288, 128], strides = [1, 1]} : vector<336x128xbf16> to vector<288x128xbf16>
    %c5_132 = arith.constant 5 : index
    %c0_133 = arith.constant 0 : index
    %c0_134 = arith.constant 0 : index
    %232 = vector.load %arg15[%c5_132, %c0_133, %c0_134] : memref<9x128x128xbf16, #tpu.memory_space<vmem>>, vector<1x128x128xbf16>
    %233 = vector.shape_cast %232 : vector<1x128x128xbf16> to vector<128x128xbf16>
    %cst_135 = arith.constant dense<0.000000e+00> : vector<288x128xf32>
    %234 = tpu.matmul %231, %233, %cst_135 {dimension_numbers = #tpu.dot_dimension_numbers<[1], [0], [0], [1], [0, 0, 1, 1], [], []>} : vector<288x128xbf16>, vector<128x128xbf16>, vector<288x128xf32> -> vector<288x128xf32>
    %235 = arith.addf %230, %234 : vector<288x128xf32>
    %236 = vector.extract_strided_slice %203 {offsets = [36, 0], sizes = [288, 128], strides = [1, 1]} : vector<336x128xbf16> to vector<288x128xbf16>
    %c6_136 = arith.constant 6 : index
    %c0_137 = arith.constant 0 : index
    %c0_138 = arith.constant 0 : index
    %237 = vector.load %arg15[%c6_136, %c0_137, %c0_138] : memref<9x128x128xbf16, #tpu.memory_space<vmem>>, vector<1x128x128xbf16>
    %238 = vector.shape_cast %237 : vector<1x128x128xbf16> to vector<128x128xbf16>
    %cst_139 = arith.constant dense<0.000000e+00> : vector<288x128xf32>
    %239 = tpu.matmul %236, %238, %cst_139 {dimension_numbers = #tpu.dot_dimension_numbers<[1], [0], [0], [1], [0, 0, 1, 1], [], []>} : vector<288x128xbf16>, vector<128x128xbf16>, vector<288x128xf32> -> vector<288x128xf32>
    %240 = arith.addf %235, %239 : vector<288x128xf32>
    %241 = vector.extract_strided_slice %203 {offsets = [37, 0], sizes = [288, 128], strides = [1, 1]} : vector<336x128xbf16> to vector<288x128xbf16>
    %c7_140 = arith.constant 7 : index
    %c0_141 = arith.constant 0 : index
    %c0_142 = arith.constant 0 : index
    %242 = vector.load %arg15[%c7_140, %c0_141, %c0_142] : memref<9x128x128xbf16, #tpu.memory_space<vmem>>, vector<1x128x128xbf16>
    %243 = vector.shape_cast %242 : vector<1x128x128xbf16> to vector<128x128xbf16>
    %cst_143 = arith.constant dense<0.000000e+00> : vector<288x128xf32>
    %244 = tpu.matmul %241, %243, %cst_143 {dimension_numbers = #tpu.dot_dimension_numbers<[1], [0], [0], [1], [0, 0, 1, 1], [], []>} : vector<288x128xbf16>, vector<128x128xbf16>, vector<288x128xf32> -> vector<288x128xf32>
    %245 = arith.addf %240, %244 : vector<288x128xf32>
    %246 = vector.extract_strided_slice %203 {offsets = [38, 0], sizes = [288, 128], strides = [1, 1]} : vector<336x128xbf16> to vector<288x128xbf16>
    %c8_144 = arith.constant 8 : index
    %c0_145 = arith.constant 0 : index
    %c0_146 = arith.constant 0 : index
    %247 = vector.load %arg15[%c8_144, %c0_145, %c0_146] : memref<9x128x128xbf16, #tpu.memory_space<vmem>>, vector<1x128x128xbf16>
    %248 = vector.shape_cast %247 : vector<1x128x128xbf16> to vector<128x128xbf16>
    %cst_147 = arith.constant dense<0.000000e+00> : vector<288x128xf32>
    %249 = tpu.matmul %246, %248, %cst_147 {dimension_numbers = #tpu.dot_dimension_numbers<[1], [0], [0], [1], [0, 0, 1, 1], [], []>} : vector<288x128xbf16>, vector<128x128xbf16>, vector<288x128xf32> -> vector<288x128xf32>
    %250 = arith.addf %245, %249 : vector<288x128xf32>
    %251 = vector.broadcast %204 : vector<1x128xf32> to vector<288x128xf32>
    %252 = arith.addf %250, %251 : vector<288x128xf32>
    %253 = vector.extract_strided_slice %25 {offsets = [19, 0], sizes = [288, 4], strides = [1, 1]} : vector<336x4xf32> to vector<288x4xf32>
    %254 = vector.extract_strided_slice %252 {offsets = [0, 0], sizes = [288, 4], strides = [1, 1]} : vector<288x128xf32> to vector<288x4xf32>
    %255 = arith.subf %253, %254 : vector<288x4xf32>
    %256 = vector.broadcast %66 : vector<288x1xf32> to vector<288x4xf32>
    %257 = arith.mulf %255, %256 : vector<288x4xf32>
    %258 = arith.mulf %257, %257 : vector<288x4xf32>
    %259 = vector.shape_cast %258 : vector<288x4xf32> to vector<1x288x4xf32>
    %cst_148 = arith.constant dense<0.000000e+00> : vector<1xf32>
    %260 = vector.multi_reduction <add>, %259, %cst_148 [1, 2] : vector<1x288x4xf32> to vector<1xf32>
    %261 = vector.shape_cast %260 : vector<1xf32> to vector<1x1x1xf32>
    %262 = vector.extract %261[0, 0, 0] : f32 from vector<1x1x1xf32>
    %c0_149 = arith.constant 0 : index
    %c0_150 = arith.constant 0 : index
    %263 = memref.load %arg18[%c0_149, %c0_150] : memref<1x1xf32, #tpu.memory_space<smem>>
    %264 = arith.addf %263, %262 : f32
    %c0_151 = arith.constant 0 : index
    %c0_152 = arith.constant 0 : index
    %265 = memref.load %arg18[%c0_151, %c0_152] : memref<1x1xf32, #tpu.memory_space<smem>>
    memref.store %264, %arg18[%c0_151, %c0_152] : memref<1x1xf32, #tpu.memory_space<smem>>
    %c1_i32_153 = arith.constant 1 : i32
    %266 = arith.cmpi eq, %arg0, %c1_i32_153 : i32
    %267 = arith.extui %266 : i1 to i32
    %c0_i32_154 = arith.constant 0 : i32
    %268 = arith.cmpi ne, %267, %c0_i32_154 : i32
    scf.if %268 {
      %c0_155 = arith.constant 0 : index
      %c0_156 = arith.constant 0 : index
      %269 = memref.load %arg18[%c0_155, %c0_156] : memref<1x1xf32, #tpu.memory_space<smem>>
      %cst_157 = arith.constant 4.8828125E-4 : f32
      %270 = arith.mulf %269, %cst_157 : f32
      %c0_158 = arith.constant 0 : index
      %c0_159 = arith.constant 0 : index
      %271 = memref.load %arg17[%c0_158, %c0_159] : memref<1x1xf32, #tpu.memory_space<smem>>
      memref.store %270, %arg17[%c0_158, %c0_159] : memref<1x1xf32, #tpu.memory_space<smem>>
    } else {
    }
    return
  }
  func.func @transform_0(%arg0: i32) -> i32 {
    %c0_i32 = arith.constant 0 : i32
    %c0_i32_0 = arith.constant 0 : i32
    return %c0_i32 : i32
  }
  func.func @transform_1(%arg0: i32) -> i32 {
    %c0_i32 = arith.constant 0 : i32
    %c0_i32_0 = arith.constant 0 : i32
    return %c0_i32 : i32
  }
  func.func @transform_2(%arg0: i32) -> (i32, i32, i32) {
    %c0_i32 = arith.constant 0 : i32
    %c0_i32_0 = arith.constant 0 : i32
    %c0_i32_1 = arith.constant 0 : i32
    return %arg0, %c0_i32, %c0_i32_0 : i32, i32, i32
  }
  func.func @transform_3(%arg0: i32) -> (i32, i32, i32) {
    %c0_i32 = arith.constant 0 : i32
    %c0_i32_0 = arith.constant 0 : i32
    %c0_i32_1 = arith.constant 0 : i32
    return %arg0, %c0_i32, %c0_i32_0 : i32, i32, i32
  }
  func.func @transform_4(%arg0: i32) -> (i32, i32, i32) {
    %c0_i32 = arith.constant 0 : i32
    %c0_i32_0 = arith.constant 0 : i32
    %c0_i32_1 = arith.constant 0 : i32
    return %arg0, %c0_i32, %c0_i32_0 : i32, i32, i32
  }
  func.func @transform_5(%arg0: i32) -> (i32, i32, i32) {
    %c0_i32 = arith.constant 0 : i32
    %c0_i32_0 = arith.constant 0 : i32
    %c0_i32_1 = arith.constant 0 : i32
    return %arg0, %c0_i32, %c0_i32_0 : i32, i32, i32
  }
  func.func @transform_6(%arg0: i32) -> (i32, i32) {
    %c0_i32 = arith.constant 0 : i32
    %c0_i32_0 = arith.constant 0 : i32
    %c0_i32_1 = arith.constant 0 : i32
    return %c0_i32, %c0_i32_0 : i32, i32
  }
  func.func @transform_7(%arg0: i32) -> (i32, i32) {
    %c0_i32 = arith.constant 0 : i32
    %c0_i32_0 = arith.constant 0 : i32
    %c0_i32_1 = arith.constant 0 : i32
    return %c0_i32, %c0_i32_0 : i32, i32
  }
  func.func @transform_8(%arg0: i32) -> (i32, i32) {
    %c0_i32 = arith.constant 0 : i32
    %c0_i32_0 = arith.constant 0 : i32
    %c0_i32_1 = arith.constant 0 : i32
    return %c0_i32, %c0_i32_0 : i32, i32
  }
  func.func @transform_9(%arg0: i32) -> (i32, i32) {
    %c0_i32 = arith.constant 0 : i32
    %c0_i32_0 = arith.constant 0 : i32
    %c0_i32_1 = arith.constant 0 : i32
    return %c0_i32, %c0_i32_0 : i32, i32
  }
  func.func @transform_10(%arg0: i32) -> (i32, i32, i32) {
    %c0_i32 = arith.constant 0 : i32
    %c0_i32_0 = arith.constant 0 : i32
    %c0_i32_1 = arith.constant 0 : i32
    %c0_i32_2 = arith.constant 0 : i32
    return %c0_i32, %c0_i32_0, %c0_i32_1 : i32, i32, i32
  }
  func.func @transform_11(%arg0: i32) -> (i32, i32) {
    %c0_i32 = arith.constant 0 : i32
    %c0_i32_0 = arith.constant 0 : i32
    %c0_i32_1 = arith.constant 0 : i32
    return %c0_i32, %c0_i32_0 : i32, i32
  }
  func.func @transform_12(%arg0: i32) -> (i32, i32, i32) {
    %c0_i32 = arith.constant 0 : i32
    %c0_i32_0 = arith.constant 0 : i32
    %c0_i32_1 = arith.constant 0 : i32
    %c0_i32_2 = arith.constant 0 : i32
    return %c0_i32, %c0_i32_0, %c0_i32_1 : i32, i32, i32
  }
  func.func @transform_13(%arg0: i32) -> (i32, i32) {
    %c0_i32 = arith.constant 0 : i32
    %c0_i32_0 = arith.constant 0 : i32
    %c0_i32_1 = arith.constant 0 : i32
    return %c0_i32, %c0_i32_0 : i32, i32
  }
  func.func @transform_14(%arg0: i32) -> (i32, i32, i32) {
    %c0_i32 = arith.constant 0 : i32
    %c0_i32_0 = arith.constant 0 : i32
    %c0_i32_1 = arith.constant 0 : i32
    %c0_i32_2 = arith.constant 0 : i32
    return %c0_i32, %c0_i32_0, %c0_i32_1 : i32, i32, i32
  }
  func.func @transform_15(%arg0: i32) -> (i32, i32) {
    %c0_i32 = arith.constant 0 : i32
    %c0_i32_0 = arith.constant 0 : i32
    %c0_i32_1 = arith.constant 0 : i32
    return %c0_i32, %c0_i32_0 : i32, i32
  }
  func.func @transform_16(%arg0: i32) -> (i32, i32) {
    %c0_i32 = arith.constant 0 : i32
    %c0_i32_0 = arith.constant 0 : i32
    %c0_i32_1 = arith.constant 0 : i32
    return %c0_i32, %c0_i32_0 : i32, i32
  }
}

</mosaic_0001>

<llo_original>
// kernel: forward.1
$region0: #{forward.1}
  #allocation0 [shape = 'u32[]', space=smem, size = 0x4, offset = 0x4, fixed_abs, tag = 'smem constant byte address 0x4 - core index']
  #allocation1 [shape = 'u32[72,128]{1,0:T(1,128)}', space=vmem, size = 0x9000, scoped, tag = 'internal scratch']
  #allocation2 [shape = 'f32[1,1]{1,0:T(1,128)}', space=smem, size = 0x200, scoped, tag = 'scratch operand']
  %s0 = inlined_call_operand.vmem [shape: f32[2], index: 0, kind: input, shape index: {}]
  %s1 = inlined_call_operand.vmem [shape: f32[2], index: 1, kind: input, shape index: {}]
  %s2 = inlined_call_operand.vmem [shape: f32[2,336,4], index: 2, kind: input, shape index: {}]
  %s3 = inlined_call_operand.vmem [shape: f32[2,336,4], index: 3, kind: input, shape index: {}]
  %s4 = inlined_call_operand.vmem [shape: f32[2,336,4], index: 4, kind: input, shape index: {}]
  %s5 = inlined_call_operand.vmem [shape: f32[2,1,128], index: 5, kind: input, shape index: {}]
  %s6 = inlined_call_operand.vmem [shape: bf16[128,128], index: 6, kind: input, shape index: {}]
  %s7 = inlined_call_operand.vmem [shape: f32[1,128], index: 7, kind: input, shape index: {}, may-alias: {7,9,11,13,15}]
  %s8 = inlined_call_operand.vmem [shape: bf16[128,128], index: 8, kind: input, shape index: {}]
  %s9 = inlined_call_operand.vmem [shape: f32[1,128], index: 9, kind: input, shape index: {}, may-alias: {7,9,11,13,15}]
  %s10 = inlined_call_operand.vmem [shape: bf16[9,4,128], index: 10, kind: input, shape index: {}]
  %s11 = inlined_call_operand.vmem [shape: f32[1,128], index: 11, kind: input, shape index: {}, may-alias: {7,9,11,13,15}]
  %s12 = inlined_call_operand.vmem [shape: bf16[9,128,128], index: 12, kind: input, shape index: {}]
  %s13 = inlined_call_operand.vmem [shape: f32[1,128], index: 13, kind: input, shape index: {}, may-alias: {7,9,11,13,15}]
  %s14 = inlined_call_operand.vmem [shape: bf16[9,128,128], index: 14, kind: input, shape index: {}]
  %s15 = inlined_call_operand.vmem [shape: f32[1,128], index: 15, kind: input, shape index: {}, may-alias: {7,9,11,13,15}]
  %s16 = inlined_call_operand.hbm [shape: f32[1,1], index: 16, kind: output, shape index: {}]
  %s17 = sld [smem:[#allocation0]]
  $region113: #{forward.1} parent=0
    _
  %s19 = ssub.s32 1, %s17
  %s20 = scalar_select 0, %s19, %s17
  $region1: #{forward.1} parent=0
    #allocation3 [shape = 'u8[512]{0}', space=smem, size = 0x200, scoped, tag = 'input window, operand 0, single buffered']
    #allocation4 [shape = 's32[2]{0}', space=sflag, size = 0x8, scoped, tag = 'scoped memory for forward.1']
    #allocation5 [shape = 's32[2]{0}', space=sflag, size = 0x8, scoped, tag = 'scoped memory for forward.1']
    #allocation6 [shape = 'u8[512]{0}', space=smem, size = 0x200, scoped, tag = 'input window, operand 1, single buffered']
    #allocation7 [shape = 's32[1]{0}', space=sflag, size = 0x4, scoped, tag = 'scoped memory for forward.1']
    #allocation8 [shape = 'u8[512]{0}', space=smem, size = 0x200, scoped, tag = 'output window, operand 0, single buffered']
    %21 = vsyncpa [#allocation5], 0
    %22 = vsyncpa [#allocation7], 0
    %23 = vsyncpa [#allocation4], 0
    loop: start=0, step=1, limit=4
    $region2: #{forward.1} parent=1 // loop_pre_header
      _
    $region3: #{forward.1} parent=1 // loop_header
      %s25 = sphi 0, %s29
      %p26 = scmp.ge.s32.totalorder %s25, 4
      %s33 = sphi 0, %s33
      %s35 = sphi 0, %s33
      %s36 = sphi 0, %s35
      %s50 = sphi 0, %s36
      %s54 = sphi 0, %s54
      %s56 = sphi 0, %s54
      %s57 = sphi 0, %s56
      %s71 = sphi 0, %s57
      %s77 = sphi 0, %s79
      %s80 = sphi 0, %s77
      %s81 = sphi 0, %s80
      %s97 = sphi 0, %s81
      %s103 = sphi 0, %s105
      %s106 = sphi 0, %s103
      %s107 = sphi 0, %s106
      %s123 = sphi 0, %s107
      %s129 = sphi 0, %s131
      %s132 = sphi 0, %s129
      %s133 = sphi 0, %s132
      %s149 = sphi 0, %s133
      %s155 = sphi 0, %s157
      %s158 = sphi 0, %s155
      %s159 = sphi 0, %s158
      %s175 = sphi 0, %s159
      %s179 = sphi 0, %s179
      %s181 = sphi 0, %s179
      %s182 = sphi 0, %s181
      %s196 = sphi 0, %s182
      %s200 = sphi 0, %s200
      %s202 = sphi 0, %s200
      %s203 = sphi 0, %s202
      %s217 = sphi 0, %s203
      %s221 = sphi 0, %s221
      %s223 = sphi 0, %s221
      %s224 = sphi 0, %s223
      %s238 = sphi 0, %s224
      %s242 = sphi 0, %s242
      %s244 = sphi 0, %s242
      %s245 = sphi 0, %s244
      %s259 = sphi 0, %s245
      %s263 = sphi 0, %s263
      %s265 = sphi 0, %s263
      %s266 = sphi 0, %s265
      %s280 = sphi 0, %s266
      %s284 = sphi 0, %s284
      %s286 = sphi 0, %s284
      %s287 = sphi 0, %s286
      %s301 = sphi 0, %s287
      %s305 = sphi 0, %s305
      %s307 = sphi 0, %s305
      %s308 = sphi 0, %s307
      %s322 = sphi 0, %s308
      %s326 = sphi 0, %s326
      %s328 = sphi 0, %s326
      %s329 = sphi 0, %s328
      %s343 = sphi 0, %s329
      %s347 = sphi 0, %s347
      %s349 = sphi 0, %s347
      %s350 = sphi 0, %s349
      %s364 = sphi 0, %s350
      %s368 = sphi 0, %s368
      %s370 = sphi 0, %s368
      %s371 = sphi 0, %s370
      %s385 = sphi 0, %s371
      %s389 = sphi 0, %s389
      %s391 = sphi 0, %s389
      %s392 = sphi 0, %s391
      %s406 = sphi 0, %s392
    $region4: #{forward.1} parent=1 // loop_header_branch
      %28 = sbr.rel (%p26) target = $region8
    $region5: #{forward.1} parent=1 // loop_body
      %s30 = ssub.s32 %s25, 1
      %s31 = ssub.s32 %s25, 2
      %s32 = sadd.s32 %s25, 1
      %s34 = sadd.s32 %s33, 1
      %p37 = scmp.eq.s32.totalorder %s25, 1
      %p38 = scmp.ne.s32.totalorder %s33, %s35
      %p39 = scmp.eq.s32.totalorder %s25, 0
      %p40 = por %p38, %p39
      %p41 = scmp.ne.s32.totalorder %s33, %s35
      %p42 = scmp.eq.s32.totalorder %s30, 1
      %p43 = por %p41, %p42
      %p44 = scmp.ne.s32.totalorder %s35, %s36
      %p45 = scmp.eq.s32.totalorder %s30, 0
      %p46 = por %p44, %p45
      %p47 = scmp.ne.s32.totalorder %s35, %s36
      %p48 = scmp.eq.s32.totalorder %s31, 1
      %p49 = por %p47, %p48
      %p51 = scmp.ne.s32.totalorder %s36, %s50
      %p52 = scmp.eq.s32.totalorder %s31, 0
      %p53 = por %p51, %p52
      %s55 = sadd.s32 %s54, 1
      %p58 = scmp.eq.s32.totalorder %s25, 1
      %p59 = scmp.ne.s32.totalorder %s54, %s56
      %p60 = scmp.eq.s32.totalorder %s25, 0
      %p61 = por %p59, %p60
      %p62 = scmp.ne.s32.totalorder %s54, %s56
      %p63 = scmp.eq.s32.totalorder %s30, 1
      %p64 = por %p62, %p63
      %p65 = scmp.ne.s32.totalorder %s56, %s57
      %p66 = scmp.eq.s32.totalorder %s30, 0
      %p67 = por %p65, %p66
      %p68 = scmp.ne.s32.totalorder %s56, %s57
      %p69 = scmp.eq.s32.totalorder %s31, 1
      %p70 = por %p68, %p69
      %p72 = scmp.ne.s32.totalorder %s57, %s71
      %p73 = scmp.eq.s32.totalorder %s31, 0
      %p74 = por %p72, %p73
      %s75 = ssub.s32 %s25, %s32
      %p76 = scmp.eq.s32.totalorder %s75, 0
      %s78 = sadd.s32 %s77, 1
      %s79 = scalar_select %p76, %s77, %s78
      %p82 = pneg %p76
      %p83 = scmp.eq.s32.totalorder %s25, 1
      %p84 = por %p82, %p83
      %p85 = scmp.ne.s32.totalorder %s77, %s80
      %p86 = scmp.eq.s32.totalorder %s25, 0
      %p87 = por %p85, %p86
      %p88 = scmp.ne.s32.totalorder %s77, %s80
      %p89 = scmp.eq.s32.totalorder %s30, 1
      %p90 = por %p88, %p89
      %p91 = scmp.ne.s32.totalorder %s80, %s81
      %p92 = scmp.eq.s32.totalorder %s30, 0
      %p93 = por %p91, %p92
      %p94 = scmp.ne.s32.totalorder %s80, %s81
      %p95 = scmp.eq.s32.totalorder %s31, 1
      %p96 = por %p94, %p95
      %p98 = scmp.ne.s32.totalorder %s81, %s97
      %p99 = scmp.eq.s32.totalorder %s31, 0
      %p100 = por %p98, %p99
      %s101 = ssub.s32 %s25, %s32
      %p102 = scmp.eq.s32.totalorder %s101, 0
      %s104 = sadd.s32 %s103, 1
      %s105 = scalar_select %p102, %s103, %s104
      %p108 = pneg %p102
      %p109 = scmp.eq.s32.totalorder %s25, 1
      %p110 = por %p108, %p109
      %p111 = scmp.ne.s32.totalorder %s103, %s106
      %p112 = scmp.eq.s32.totalorder %s25, 0
      %p113 = por %p111, %p112
      %p114 = scmp.ne.s32.totalorder %s103, %s106
      %p115 = scmp.eq.s32.totalorder %s30, 1
      %p116 = por %p114, %p115
      %p117 = scmp.ne.s32.totalorder %s106, %s107
      %p118 = scmp.eq.s32.totalorder %s30, 0
      %p119 = por %p117, %p118
      %p120 = scmp.ne.s32.totalorder %s106, %s107
      %p121 = scmp.eq.s32.totalorder %s31, 1
      %p122 = por %p120, %p121
      %p124 = scmp.ne.s32.totalorder %s107, %s123
      %p125 = scmp.eq.s32.totalorder %s31, 0
      %p126 = por %p124, %p125
      %s127 = ssub.s32 %s25, %s32
      %p128 = scmp.eq.s32.totalorder %s127, 0
      %s130 = sadd.s32 %s129, 1
      %s131 = scalar_select %p128, %s129, %s130
      %p134 = pneg %p128
      %p135 = scmp.eq.s32.totalorder %s25, 1
      %p136 = por %p134, %p135
      %p137 = scmp.ne.s32.totalorder %s129, %s132
      %p138 = scmp.eq.s32.totalorder %s25, 0
      %p139 = por %p137, %p138
      %p140 = scmp.ne.s32.totalorder %s129, %s132
      %p141 = scmp.eq.s32.totalorder %s30, 1
      %p142 = por %p140, %p141
      %p143 = scmp.ne.s32.totalorder %s132, %s133
      %p144 = scmp.eq.s32.totalorder %s30, 0
      %p145 = por %p143, %p144
      %p146 = scmp.ne.s32.totalorder %s132, %s133
      %p147 = scmp.eq.s32.totalorder %s31, 1
      %p148 = por %p146, %p147
      %p150 = scmp.ne.s32.totalorder %s133, %s149
      %p151 = scmp.eq.s32.totalorder %s31, 0
      %p152 = por %p150, %p151
      %s153 = ssub.s32 %s25, %s32
      %p154 = scmp.eq.s32.totalorder %s153, 0
      %s156 = sadd.s32 %s155, 1
      %s157 = scalar_select %p154, %s155, %s156
      %p160 = pneg %p154
      %p161 = scmp.eq.s32.totalorder %s25, 1
      %p162 = por %p160, %p161
      %p163 = scmp.ne.s32.totalorder %s155, %s158
      %p164 = scmp.eq.s32.totalorder %s25, 0
      %p165 = por %p163, %p164
      %p166 = scmp.ne.s32.totalorder %s155, %s158
      %p167 = scmp.eq.s32.totalorder %s30, 1
      %p168 = por %p166, %p167
      %p169 = scmp.ne.s32.totalorder %s158, %s159
      %p170 = scmp.eq.s32.totalorder %s30, 0
      %p171 = por %p169, %p170
      %p172 = scmp.ne.s32.totalorder %s158, %s159
      %p173 = scmp.eq.s32.totalorder %s31, 1
      %p174 = por %p172, %p173
      %p176 = scmp.ne.s32.totalorder %s159, %s175
      %p177 = scmp.eq.s32.totalorder %s31, 0
      %p178 = por %p176, %p177
      %s180 = sadd.s32 %s179, 1
      %p183 = scmp.eq.s32.totalorder %s25, 1
      %p184 = scmp.ne.s32.totalorder %s179, %s181
      %p185 = scmp.eq.s32.totalorder %s25, 0
      %p186 = por %p184, %p185
      %p187 = scmp.ne.s32.totalorder %s179, %s181
      %p188 = scmp.eq.s32.totalorder %s30, 1
      %p189 = por %p187, %p188
      %p190 = scmp.ne.s32.totalorder %s181, %s182
      %p191 = scmp.eq.s32.totalorder %s30, 0
      %p192 = por %p190, %p191
      %p193 = scmp.ne.s32.totalorder %s181, %s182
      %p194 = scmp.eq.s32.totalorder %s31, 1
      %p195 = por %p193, %p194
      %p197 = scmp.ne.s32.totalorder %s182, %s196
      %p198 = scmp.eq.s32.totalorder %s31, 0
      %p199 = por %p197, %p198
      %s201 = sadd.s32 %s200, 1
      %p204 = scmp.eq.s32.totalorder %s25, 1
      %p205 = scmp.ne.s32.totalorder %s200, %s202
      %p206 = scmp.eq.s32.totalorder %s25, 0
      %p207 = por %p205, %p206
      %p208 = scmp.ne.s32.totalorder %s200, %s202
      %p209 = scmp.eq.s32.totalorder %s30, 1
      %p210 = por %p208, %p209
      %p211 = scmp.ne.s32.totalorder %s202, %s203
      %p212 = scmp.eq.s32.totalorder %s30, 0
      %p213 = por %p211, %p212
      %p214 = scmp.ne.s32.totalorder %s202, %s203
      %p215 = scmp.eq.s32.totalorder %s31, 1
      %p216 = por %p214, %p215
      %p218 = scmp.ne.s32.totalorder %s203, %s217
      %p219 = scmp.eq.s32.totalorder %s31, 0
      %p220 = por %p218, %p219
      %s222 = sadd.s32 %s221, 1
      %p225 = scmp.eq.s32.totalorder %s25, 1
      %p226 = scmp.ne.s32.totalorder %s221, %s223
      %p227 = scmp.eq.s32.totalorder %s25, 0
      %p228 = por %p226, %p227
      %p229 = scmp.ne.s32.totalorder %s221, %s223
      %p230 = scmp.eq.s32.totalorder %s30, 1
      %p231 = por %p229, %p230
      %p232 = scmp.ne.s32.totalorder %s223, %s224
      %p233 = scmp.eq.s32.totalorder %s30, 0
      %p234 = por %p232, %p233
      %p235 = scmp.ne.s32.totalorder %s223, %s224
      %p236 = scmp.eq.s32.totalorder %s31, 1
      %p237 = por %p235, %p236
      %p239 = scmp.ne.s32.totalorder %s224, %s238
      %p240 = scmp.eq.s32.totalorder %s31, 0
      %p241 = por %p239, %p240
      %s243 = sadd.s32 %s242, 1
      %p246 = scmp.eq.s32.totalorder %s25, 1
      %p247 = scmp.ne.s32.totalorder %s242, %s244
      %p248 = scmp.eq.s32.totalorder %s25, 0
      %p249 = por %p247, %p248
      %p250 = scmp.ne.s32.totalorder %s242, %s244
      %p251 = scmp.eq.s32.totalorder %s30, 1
      %p252 = por %p250, %p251
      %p253 = scmp.ne.s32.totalorder %s244, %s245
      %p254 = scmp.eq.s32.totalorder %s30, 0
      %p255 = por %p253, %p254
      %p256 = scmp.ne.s32.totalorder %s244, %s245
      %p257 = scmp.eq.s32.totalorder %s31, 1
      %p258 = por %p256, %p257
      %p260 = scmp.ne.s32.totalorder %s245, %s259
      %p261 = scmp.eq.s32.totalorder %s31, 0
      %p262 = por %p260, %p261
      %s264 = sadd.s32 %s263, 1
      %p267 = scmp.eq.s32.totalorder %s25, 1
      %p268 = scmp.ne.s32.totalorder %s263, %s265
      %p269 = scmp.eq.s32.totalorder %s25, 0
      %p270 = por %p268, %p269
      %p271 = scmp.ne.s32.totalorder %s263, %s265
      %p272 = scmp.eq.s32.totalorder %s30, 1
      %p273 = por %p271, %p272
      %p274 = scmp.ne.s32.totalorder %s265, %s266
      %p275 = scmp.eq.s32.totalorder %s30, 0
      %p276 = por %p274, %p275
      %p277 = scmp.ne.s32.totalorder %s265, %s266
      %p278 = scmp.eq.s32.totalorder %s31, 1
      %p279 = por %p277, %p278
      %p281 = scmp.ne.s32.totalorder %s266, %s280
      %p282 = scmp.eq.s32.totalorder %s31, 0
      %p283 = por %p281, %p282
      %s285 = sadd.s32 %s284, 1
      %p288 = scmp.eq.s32.totalorder %s25, 1
      %p289 = scmp.ne.s32.totalorder %s284, %s286
      %p290 = scmp.eq.s32.totalorder %s25, 0
      %p291 = por %p289, %p290
      %p292 = scmp.ne.s32.totalorder %s284, %s286
      %p293 = scmp.eq.s32.totalorder %s30, 1
      %p294 = por %p292, %p293
      %p295 = scmp.ne.s32.totalorder %s286, %s287
      %p296 = scmp.eq.s32.totalorder %s30, 0
      %p297 = por %p295, %p296
      %p298 = scmp.ne.s32.totalorder %s286, %s287
      %p299 = scmp.eq.s32.totalorder %s31, 1
      %p300 = por %p298, %p299
      %p302 = scmp.ne.s32.totalorder %s287, %s301
      %p303 = scmp.eq.s32.totalorder %s31, 0
      %p304 = por %p302, %p303
      %s306 = sadd.s32 %s305, 1
      %p309 = scmp.eq.s32.totalorder %s25, 1
      %p310 = scmp.ne.s32.totalorder %s305, %s307
      %p311 = scmp.eq.s32.totalorder %s25, 0
      %p312 = por %p310, %p311
      %p313 = scmp.ne.s32.totalorder %s305, %s307
      %p314 = scmp.eq.s32.totalorder %s30, 1
      %p315 = por %p313, %p314
      %p316 = scmp.ne.s32.totalorder %s307, %s308
      %p317 = scmp.eq.s32.totalorder %s30, 0
      %p318 = por %p316, %p317
      %p319 = scmp.ne.s32.totalorder %s307, %s308
      %p320 = scmp.eq.s32.totalorder %s31, 1
      %p321 = por %p319, %p320
      %p323 = scmp.ne.s32.totalorder %s308, %s322
      %p324 = scmp.eq.s32.totalorder %s31, 0
      %p325 = por %p323, %p324
      %s327 = sadd.s32 %s326, 1
      %p330 = scmp.eq.s32.totalorder %s25, 1
      %p331 = scmp.ne.s32.totalorder %s326, %s328
      %p332 = scmp.eq.s32.totalorder %s25, 0
      %p333 = por %p331, %p332
      %p334 = scmp.ne.s32.totalorder %s326, %s328
      %p335 = scmp.eq.s32.totalorder %s30, 1
      %p336 = por %p334, %p335
      %p337 = scmp.ne.s32.totalorder %s328, %s329
      %p338 = scmp.eq.s32.totalorder %s30, 0
      %p339 = por %p337, %p338
      %p340 = scmp.ne.s32.totalorder %s328, %s329
      %p341 = scmp.eq.s32.totalorder %s31, 1
      %p342 = por %p340, %p341
      %p344 = scmp.ne.s32.totalorder %s329, %s343
      %p345 = scmp.eq.s32.totalorder %s31, 0
      %p346 = por %p344, %p345
      %s348 = sadd.s32 %s347, 1
      %p351 = scmp.eq.s32.totalorder %s25, 1
      %p352 = scmp.ne.s32.totalorder %s347, %s349
      %p353 = scmp.eq.s32.totalorder %s25, 0
      %p354 = por %p352, %p353
      %p355 = scmp.ne.s32.totalorder %s347, %s349
      %p356 = scmp.eq.s32.totalorder %s30, 1
      %p357 = por %p355, %p356
      %p358 = scmp.ne.s32.totalorder %s349, %s350
      %p359 = scmp.eq.s32.totalorder %s30, 0
      %p360 = por %p358, %p359
      %p361 = scmp.ne.s32.totalorder %s349, %s350
      %p362 = scmp.eq.s32.totalorder %s31, 1
      %p363 = por %p361, %p362
      %p365 = scmp.ne.s32.totalorder %s350, %s364
      %p366 = scmp.eq.s32.totalorder %s31, 0
      %p367 = por %p365, %p366
      %s369 = sadd.s32 %s368, 1
      %p372 = scmp.eq.s32.totalorder %s25, 1
      %p373 = scmp.ne.s32.totalorder %s368, %s370
      %p374 = scmp.eq.s32.totalorder %s25, 0
      %p375 = por %p373, %p374
      %p376 = scmp.ne.s32.totalorder %s368, %s370
      %p377 = scmp.eq.s32.totalorder %s30, 1
      %p378 = por %p376, %p377
      %p379 = scmp.ne.s32.totalorder %s370, %s371
      %p380 = scmp.eq.s32.totalorder %s30, 0
      %p381 = por %p379, %p380
      %p382 = scmp.ne.s32.totalorder %s370, %s371
      %p383 = scmp.eq.s32.totalorder %s31, 1
      %p384 = por %p382, %p383
      %p386 = scmp.ne.s32.totalorder %s371, %s385
      %p387 = scmp.eq.s32.totalorder %s31, 0
      %p388 = por %p386, %p387
      %s390 = sadd.s32 %s389, 1
      %p393 = scmp.eq.s32.totalorder %s25, 1
      %p394 = scmp.ne.s32.totalorder %s389, %s391
      %p395 = scmp.eq.s32.totalorder %s25, 0
      %p396 = por %p394, %p395
      %p397 = scmp.ne.s32.totalorder %s389, %s391
      %p398 = scmp.eq.s32.totalorder %s30, 1
      %p399 = por %p397, %p398
      %p400 = scmp.ne.s32.totalorder %s391, %s392
      %p401 = scmp.eq.s32.totalorder %s30, 0
      %p402 = por %p400, %p401
      %p403 = scmp.ne.s32.totalorder %s391, %s392
      %p404 = scmp.eq.s32.totalorder %s31, 1
      %p405 = por %p403, %p404
      %p407 = scmp.ne.s32.totalorder %s392, %s406
      %p408 = scmp.eq.s32.totalorder %s31, 0
      %p409 = por %p407, %p408
      %p410 = scmp.le.s32.totalorder 1, %s25
      %p411 = scmp.lt.s32.totalorder %s25, 3
      %p412 = pnand %p410, %p411
      %p413 = pneg %p412
      // Predicated region
      $region9: #{forward.1} parent=5 // pred_check
        _
      $region10: #{forward.1} parent=5 // pred_check_branch
        %415 = sbr.rel (%p412) target = $region12
      $region11: #{forward.1} parent=5 // pred_region
        %s416 = ssub.s32 %s25, 1
        // Predicated region
        $region13: #{forward.1} parent=11 // pred_check
          %p417 = pneg %p46
        $region14: #{forward.1} parent=11 // pred_check_branch
          %419 = sbr.rel (%p417) target = $region16
        $region15: #{forward.1} parent=11 // pred_region
          %421 = vsyncadd [#allocation5], 0
          %s423 = sshll.u32 %s0, 4
          %s424 = int_to_ptr.vmem [resolvable:$true] %s423
          %426 = dma.vmem_to_smem %s424, 16, [#allocation3], [#allocation5]
        $region16: #{forward.1} parent=11 // pred_fallthru
          _
        // Predicated region
        $region17: #{forward.1} parent=11 // pred_check
          %p427 = pneg %p67
        $region18: #{forward.1} parent=11 // pred_check_branch
          %429 = sbr.rel (%p427) target = $region20
        $region19: #{forward.1} parent=11 // pred_region
          %431 = vsyncadd [#allocation7], 0
          %s433 = sshll.u32 %s1, 4
          %s434 = int_to_ptr.vmem [resolvable:$true] %s433
          %436 = dma.vmem_to_smem %s434, 16, [#allocation6], [#allocation7]
        $region20: #{forward.1} parent=11 // pred_fallthru
          _
        // Predicated region
        $region21: #{forward.1} parent=11 // pred_check
          %p437 = pneg %p192
        $region22: #{forward.1} parent=11 // pred_check_branch
          %439 = sbr.rel (%p437) target = $region24
        $region23: #{forward.1} parent=11 // pred_region
          _
        $region24: #{forward.1} parent=11 // pred_fallthru
          _
        // Predicated region
        $region25: #{forward.1} parent=11 // pred_check
          %p440 = pneg %p213
        $region26: #{forward.1} parent=11 // pred_check_branch
          %442 = sbr.rel (%p440) target = $region28
        $region27: #{forward.1} parent=11 // pred_region
          _
        $region28: #{forward.1} parent=11 // pred_fallthru
          _
        // Predicated region
        $region29: #{forward.1} parent=11 // pred_check
          %p443 = pneg %p234
        $region30: #{forward.1} parent=11 // pred_check_branch
          %445 = sbr.rel (%p443) target = $region32
        $region31: #{forward.1} parent=11 // pred_region
          _
        $region32: #{forward.1} parent=11 // pred_fallthru
          _
        // Predicated region
        $region33: #{forward.1} parent=11 // pred_check
          %p446 = pneg %p255
        $region34: #{forward.1} parent=11 // pred_check_branch
          %448 = sbr.rel (%p446) target = $region36
        $region35: #{forward.1} parent=11 // pred_region
          _
        $region36: #{forward.1} parent=11 // pred_fallthru
          _
        // Predicated region
        $region37: #{forward.1} parent=11 // pred_check
          %p449 = pneg %p276
        $region38: #{forward.1} parent=11 // pred_check_branch
          %451 = sbr.rel (%p449) target = $region40
        $region39: #{forward.1} parent=11 // pred_region
          _
        $region40: #{forward.1} parent=11 // pred_fallthru
          _
        // Predicated region
        $region41: #{forward.1} parent=11 // pred_check
          %p452 = pneg %p297
        $region42: #{forward.1} parent=11 // pred_check_branch
          %454 = sbr.rel (%p452) target = $region44
        $region43: #{forward.1} parent=11 // pred_region
          _
        $region44: #{forward.1} parent=11 // pred_fallthru
          _
        // Predicated region
        $region45: #{forward.1} parent=11 // pred_check
          %p455 = pneg %p318
        $region46: #{forward.1} parent=11 // pred_check_branch
          %457 = sbr.rel (%p455) target = $region48
        $region47: #{forward.1} parent=11 // pred_region
          _
        $region48: #{forward.1} parent=11 // pred_fallthru
          _
        // Predicated region
        $region49: #{forward.1} parent=11 // pred_check
          %p458 = pneg %p339
        $region50: #{forward.1} parent=11 // pred_check_branch
          %460 = sbr.rel (%p458) target = $region52
        $region51: #{forward.1} parent=11 // pred_region
          _
        $region52: #{forward.1} parent=11 // pred_fallthru
          _
        // Predicated region
        $region53: #{forward.1} parent=11 // pred_check
          %p461 = pneg %p360
        $region54: #{forward.1} parent=11 // pred_check_branch
          %463 = sbr.rel (%p461) target = $region56
        $region55: #{forward.1} parent=11 // pred_region
          _
        $region56: #{forward.1} parent=11 // pred_fallthru
          _
        // Predicated region
        $region57: #{forward.1} parent=11 // pred_check
          %p464 = pneg %p381
        $region58: #{forward.1} parent=11 // pred_check_branch
          %466 = sbr.rel (%p464) target = $region60
        $region59: #{forward.1} parent=11 // pred_region
          _
        $region60: #{forward.1} parent=11 // pred_fallthru
          _
      $region12: #{forward.1} parent=5 // pred_fallthru
        _
      %p467 = scmp.lt.s32.totalorder %s25, 2
      // Predicated region
      $region61: #{forward.1} parent=5 // pred_check
        %p468 = pneg %p467
      $region62: #{forward.1} parent=5 // pred_check_branch
        %470 = sbr.rel (%p468) target = $region64
      $region63: #{forward.1} parent=5 // pred_region
        // Predicated region
        $region65: #{forward.1} parent=63 // pred_check
          %p471 = pneg %p87
        $region66: #{forward.1} parent=63 // pred_check_branch
          %473 = sbr.rel (%p471) target = $region68
        $region67: #{forward.1} parent=63 // pred_region
          %p474 = scmp.lt.s32.totalorder %s25, 1
          %s475 = scalar_select %p474, %s25, 1
          %s476 = smul.addr %s475, 42
          %s477 = smul.addr %s476, 8
          %s478 = scalar_lea.vmem %s2, %s477
        $region68: #{forward.1} parent=63 // pred_fallthru
          _
        // Predicated region
        $region69: #{forward.1} parent=63 // pred_check
          %p479 = pneg %p113
        $region70: #{forward.1} parent=63 // pred_check_branch
          %481 = sbr.rel (%p479) target = $region72
        $region71: #{forward.1} parent=63 // pred_region
          %p482 = scmp.lt.s32.totalorder %s25, 1
          %s483 = scalar_select %p482, %s25, 1
          %s484 = smul.addr %s483, 42
          %s485 = smul.addr %s484, 8
          %s486 = scalar_lea.vmem %s3, %s485
        $region72: #{forward.1} parent=63 // pred_fallthru
          _
        // Predicated region
        $region73: #{forward.1} parent=63 // pred_check
          %p487 = pneg %p139
        $region74: #{forward.1} parent=63 // pred_check_branch
          %489 = sbr.rel (%p487) target = $region76
        $region75: #{forward.1} parent=63 // pred_region
          %p490 = scmp.lt.s32.totalorder %s25, 1
          %s491 = scalar_select %p490, %s25, 1
          %s492 = smul.addr %s491, 42
          %s493 = smul.addr %s492, 8
          %s494 = scalar_lea.vmem %s4, %s493
        $region76: #{forward.1} parent=63 // pred_fallthru
          _
        // Predicated region
        $region77: #{forward.1} parent=63 // pred_check
          %p495 = pneg %p165
        $region78: #{forward.1} parent=63 // pred_check_branch
          %497 = sbr.rel (%p495) target = $region80
        $region79: #{forward.1} parent=63 // pred_region
          %p498 = scmp.lt.s32.totalorder %s25, 1
          %s499 = scalar_select %p498, %s25, 1
          %s500 = scalar_lea.vmem %s5, %s499
        $region80: #{forward.1} parent=63 // pred_fallthru
          _
      $region64: #{forward.1} parent=5 // pred_fallthru
        _
      %p501 = scmp.le.s32.totalorder 1, %s25
      %p502 = scmp.lt.s32.totalorder %s25, 3
      %p503 = pnand %p501, %p502
      %p504 = pneg %p503
      // Predicated region
      $region81: #{forward.1} parent=5 // pred_check
        _
      $region82: #{forward.1} parent=5 // pred_check_branch
        %506 = sbr.rel (%p503) target = $region84
      $region83: #{forward.1} parent=5 // pred_region
        %s507 = ssub.s32 %s25, 1
        // Predicated region
        $region85: #{forward.1} parent=83 // pred_check
          %p508 = pneg %p46
        $region86: #{forward.1} parent=83 // pred_check_branch
          %510 = sbr.rel (%p508) target = $region88
        $region87: #{forward.1} parent=83 // pred_region
          %512 = dma.done [#allocation5], 16
        $region88: #{forward.1} parent=83 // pred_fallthru
          _
        // Predicated region
        $region89: #{forward.1} parent=83 // pred_check
          %p513 = pneg %p67
        $region90: #{forward.1} parent=83 // pred_check_branch
          %515 = sbr.rel (%p513) target = $region92
        $region91: #{forward.1} parent=83 // pred_region
          %517 = dma.done [#allocation7], 16
        $region92: #{forward.1} parent=83 // pred_fallthru
          _
        %518 = sfence
        %p519 = pneg %p46
        %p520 = pneg %p43
        %p521 = pneg %p67
        %p522 = pneg %p64
        %p523 = scmp.lt.s32.totalorder %s30, 1
        %s524 = scalar_select %p523, %s30, 1
        %s525 = smul.addr %s524, 42
        %s526 = smul.addr %s525, 8
        %s527 = scalar_lea.vmem %s2, %s526
        %p528 = pneg %p93
        %p529 = pneg %p90
        %p530 = scmp.lt.s32.totalorder %s30, 1
        %s531 = scalar_select %p530, %s30, 1
        %s532 = smul.addr %s531, 42
        %s533 = smul.addr %s532, 8
        %s534 = scalar_lea.vmem %s3, %s533
        %p535 = pneg %p119
        %p536 = pneg %p116
        %p537 = scmp.lt.s32.totalorder %s30, 1
        %s538 = scalar_select %p537, %s30, 1
        %s539 = smul.addr %s538, 42
        %s540 = smul.addr %s539, 8
        %s541 = scalar_lea.vmem %s4, %s540
        %p542 = pneg %p145
        %p543 = pneg %p142
        %p544 = scmp.lt.s32.totalorder %s30, 1
        %s545 = scalar_select %p544, %s30, 1
        %s546 = scalar_lea.vmem %s5, %s545
        %p547 = pneg %p171
        %p548 = pneg %p168
        %p549 = pneg %p192
        %p550 = pneg %p189
        %p551 = pneg %p213
        %p552 = pneg %p210
        %p553 = pneg %p234
        %p554 = pneg %p231
        %p555 = pneg %p255
        %p556 = pneg %p252
        %p557 = pneg %p276
        %p558 = pneg %p273
        %p559 = pneg %p297
        %p560 = pneg %p294
        %p561 = pneg %p318
        %p562 = pneg %p315
        %p563 = pneg %p339
        %p564 = pneg %p336
        %p565 = pneg %p360
        %p566 = pneg %p357
        %p567 = pneg %p381
        %p568 = pneg %p378
        %p569 = pneg %p402
        %p570 = pneg %p399
        %p571 = scmp.lt.s32.totalorder %s30, 1
        %s572 = scalar_select %p571, %s30, 1
        %s573 = smul.addr %s572, 42
        %s574 = smul.addr %s573, 8
        %s575 = scalar_lea.vmem %s2, %s574
        %p576 = scmp.lt.s32.totalorder %s30, 1
        %s577 = scalar_select %p576, %s30, 1
        %s578 = smul.addr %s577, 42
        %s579 = smul.addr %s578, 8
        %s580 = scalar_lea.vmem %s3, %s579
        %p581 = scmp.lt.s32.totalorder %s30, 1
        %s582 = scalar_select %p581, %s30, 1
        %s583 = smul.addr %s582, 42
        %s584 = smul.addr %s583, 8
        %s585 = scalar_lea.vmem %s4, %s584
        %p586 = scmp.lt.s32.totalorder %s30, 1
        %s587 = scalar_select %p586, %s30, 1
        %s588 = scalar_lea.vmem %s5, %s587
        %p590 = scmp.eq.s32.totalorder %s30, 0
        // Predicated region
        $region93: #{forward.1} parent=83 // pred_check
          %p591 = pneg %p590
        $region94: #{forward.1} parent=83 // pred_check_branch
          %593 = sbr.rel (%p591) target = $region96
        $region95: #{forward.1} parent=83 // pred_region
          %s594 = scalar_lea.smem [#allocation2], 0
          %595 = sst [smem:[%s594]] 0.0
        $region96: #{forward.1} parent=83 // pred_fallthru
          _
        %s596 = sld [smem:[#allocation3 + %s30]]
        %s597 = sld [smem:[#allocation6 + %s30]]
        %v598 = vld [vmem:[%s575] sm:$0xff]
        %v599 = vld [vmem:[%s575 + $0x8] sm:$0xff]
        %v600 = vld [vmem:[%s575 + $0x10] sm:$0xff]
        %v601 = vld [vmem:[%s575 + $0x18] sm:$0xff]
        %v602 = vld [vmem:[%s575 + $0x20] sm:$0xff]
        %v603 = vld [vmem:[%s575 + $0x28] sm:$0xff]
        %v604 = vld [vmem:[%s575 + $0x30] sm:$0xff]
        %v605 = vld [vmem:[%s575 + $0x38] sm:$0xff]
        %v606 = vld [vmem:[%s575 + $0x40] sm:$0xff]
        %v607 = vld [vmem:[%s575 + $0x48] sm:$0xff]
        %v608 = vld [vmem:[%s575 + $0x50] sm:$0xff]
        %v609 = vld [vmem:[%s575 + $0x58] sm:$0xff]
        %v610 = vld [vmem:[%s575 + $0x60] sm:$0xff]
        %v611 = vld [vmem:[%s575 + $0x68] sm:$0xff]
        %v612 = vld [vmem:[%s575 + $0x70] sm:$0xff]
        %v613 = vld [vmem:[%s575 + $0x78] sm:$0xff]
        %v614 = vld [vmem:[%s575 + $0x80] sm:$0xff]
        %v615 = vld [vmem:[%s575 + $0x88] sm:$0xff]
        %v616 = vld [vmem:[%s575 + $0x90] sm:$0xff]
        %v617 = vld [vmem:[%s575 + $0x98] sm:$0xff]
        %v618 = vld [vmem:[%s575 + $0xa0] sm:$0xff]
        %v619 = vld [vmem:[%s575 + $0xa8] sm:$0xff]
        %v620 = vld [vmem:[%s575 + $0xb0] sm:$0xff]
        %v621 = vld [vmem:[%s575 + $0xb8] sm:$0xff]
        %v622 = vld [vmem:[%s575 + $0xc0] sm:$0xff]
        %v623 = vld [vmem:[%s575 + $0xc8] sm:$0xff]
        %v624 = vld [vmem:[%s575 + $0xd0] sm:$0xff]
        %v625 = vld [vmem:[%s575 + $0xd8] sm:$0xff]
        %v626 = vld [vmem:[%s575 + $0xe0] sm:$0xff]
        %v627 = vld [vmem:[%s575 + $0xe8] sm:$0xff]
        %v628 = vld [vmem:[%s575 + $0xf0] sm:$0xff]
        %v629 = vld [vmem:[%s575 + $0xf8] sm:$0xff]
        %v630 = vld [vmem:[%s575 + $0x100] sm:$0xff]
        %v631 = vld [vmem:[%s575 + $0x108] sm:$0xff]
        %v632 = vld [vmem:[%s575 + $0x110] sm:$0xff]
        %v633 = vld [vmem:[%s575 + $0x118] sm:$0xff]
        %v634 = vld [vmem:[%s575 + $0x120] sm:$0xff]
        %v635 = vld [vmem:[%s575 + $0x128] sm:$0xff]
        %v636 = vld [vmem:[%s575 + $0x130] sm:$0xff]
        %v637 = vld [vmem:[%s575 + $0x138] sm:$0xff]
        %v638 = vld [vmem:[%s575 + $0x140] sm:$0xff]
        %v639 = vld [vmem:[%s580] sm:$0xff]
        %v640 = vld [vmem:[%s580 + $0x8] sm:$0xff]
        %v641 = vld [vmem:[%s580 + $0x10] sm:$0xff]
        %v642 = vld [vmem:[%s580 + $0x18] sm:$0xff]
        %v643 = vld [vmem:[%s580 + $0x20] sm:$0xff]
        %v644 = vld [vmem:[%s580 + $0x28] sm:$0xff]
        %v645 = vld [vmem:[%s580 + $0x30] sm:$0xff]
        %v646 = vld [vmem:[%s580 + $0x38] sm:$0xff]
        %v647 = vld [vmem:[%s580 + $0x40] sm:$0xff]
        %v648 = vld [vmem:[%s580 + $0x48] sm:$0xff]
        %v649 = vld [vmem:[%s580 + $0x50] sm:$0xff]
        %v650 = vld [vmem:[%s580 + $0x58] sm:$0xff]
        %v651 = vld [vmem:[%s580 + $0x60] sm:$0xff]
        %v652 = vld [vmem:[%s580 + $0x68] sm:$0xff]
        %v653 = vld [vmem:[%s580 + $0x70] sm:$0xff]
        %v654 = vld [vmem:[%s580 + $0x78] sm:$0xff]
        %v655 = vld [vmem:[%s580 + $0x80] sm:$0xff]
        %v656 = vld [vmem:[%s580 + $0x88] sm:$0xff]
        %v657 = vld [vmem:[%s580 + $0x90] sm:$0xff]
        %v658 = vld [vmem:[%s580 + $0x98] sm:$0xff]
        %v659 = vld [vmem:[%s580 + $0xa0] sm:$0xff]
        %v660 = vld [vmem:[%s580 + $0xa8] sm:$0xff]
        %v661 = vld [vmem:[%s580 + $0xb0] sm:$0xff]
        %v662 = vld [vmem:[%s580 + $0xb8] sm:$0xff]
        %v663 = vld [vmem:[%s580 + $0xc0] sm:$0xff]
        %v664 = vld [vmem:[%s580 + $0xc8] sm:$0xff]
        %v665 = vld [vmem:[%s580 + $0xd0] sm:$0xff]
        %v666 = vld [vmem:[%s580 + $0xd8] sm:$0xff]
        %v667 = vld [vmem:[%s580 + $0xe0] sm:$0xff]
        %v668 = vld [vmem:[%s580 + $0xe8] sm:$0xff]
        %v669 = vld [vmem:[%s580 + $0xf0] sm:$0xff]
        %v670 = vld [vmem:[%s580 + $0xf8] sm:$0xff]
        %v671 = vld [vmem:[%s580 + $0x100] sm:$0xff]
        %v672 = vld [vmem:[%s580 + $0x108] sm:$0xff]
        %v673 = vld [vmem:[%s580 + $0x110] sm:$0xff]
        %v674 = vld [vmem:[%s580 + $0x118] sm:$0xff]
        %v675 = vld [vmem:[%s580 + $0x120] sm:$0xff]
        %v676 = vld [vmem:[%s580 + $0x128] sm:$0xff]
        %v677 = vld [vmem:[%s580 + $0x130] sm:$0xff]
        %v678 = vld [vmem:[%s580 + $0x138] sm:$0xff]
        %v679 = vld [vmem:[%s580 + $0x140] sm:$0xff]
        %v680 = vld [vmem:[%s585] sm:$0xff]
        %v681 = vld [vmem:[%s585 + $0x8] sm:$0xff]
        %v682 = vld [vmem:[%s585 + $0x10] sm:$0xff]
        %v683 = vld [vmem:[%s585 + $0x18] sm:$0xff]
        %v684 = vld [vmem:[%s585 + $0x20] sm:$0xff]
        %v685 = vld [vmem:[%s585 + $0x28] sm:$0xff]
        %v686 = vld [vmem:[%s585 + $0x30] sm:$0xff]
        %v687 = vld [vmem:[%s585 + $0x38] sm:$0xff]
        %v688 = vld [vmem:[%s585 + $0x40] sm:$0xff]
        %v689 = vld [vmem:[%s585 + $0x48] sm:$0xff]
        %v690 = vld [vmem:[%s585 + $0x50] sm:$0xff]
        %v691 = vld [vmem:[%s585 + $0x58] sm:$0xff]
        %v692 = vld [vmem:[%s585 + $0x60] sm:$0xff]
        %v693 = vld [vmem:[%s585 + $0x68] sm:$0xff]
        %v694 = vld [vmem:[%s585 + $0x70] sm:$0xff]
        %v695 = vld [vmem:[%s585 + $0x78] sm:$0xff]
        %v696 = vld [vmem:[%s585 + $0x80] sm:$0xff]
        %v697 = vld [vmem:[%s585 + $0x88] sm:$0xff]
        %v698 = vld [vmem:[%s585 + $0x90] sm:$0xff]
        %v699 = vld [vmem:[%s585 + $0x98] sm:$0xff]
        %v700 = vld [vmem:[%s585 + $0xa0] sm:$0xff]
        %v701 = vld [vmem:[%s585 + $0xa8] sm:$0xff]
        %v702 = vld [vmem:[%s585 + $0xb0] sm:$0xff]
        %v703 = vld [vmem:[%s585 + $0xb8] sm:$0xff]
        %v704 = vld [vmem:[%s585 + $0xc0] sm:$0xff]
        %v705 = vld [vmem:[%s585 + $0xc8] sm:$0xff]
        %v706 = vld [vmem:[%s585 + $0xd0] sm:$0xff]
        %v707 = vld [vmem:[%s585 + $0xd8] sm:$0xff]
        %v708 = vld [vmem:[%s585 + $0xe0] sm:$0xff]
        %v709 = vld [vmem:[%s585 + $0xe8] sm:$0xff]
        %v710 = vld [vmem:[%s585 + $0xf0] sm:$0xff]
        %v711 = vld [vmem:[%s585 + $0xf8] sm:$0xff]
        %v712 = vld [vmem:[%s585 + $0x100] sm:$0xff]
        %v713 = vld [vmem:[%s585 + $0x108] sm:$0xff]
        %v714 = vld [vmem:[%s585 + $0x110] sm:$0xff]
        %v715 = vld [vmem:[%s585 + $0x118] sm:$0xff]
        %v716 = vld [vmem:[%s585 + $0x120] sm:$0xff]
        %v717 = vld [vmem:[%s585 + $0x128] sm:$0xff]
        %v718 = vld [vmem:[%s585 + $0x130] sm:$0xff]
        %v719 = vld [vmem:[%s585 + $0x138] sm:$0xff]
        %v720 = vld [vmem:[%s585 + $0x140] sm:$0xff]
        %v721 = vstv %s597
        %v722 = vmul.f32 %v721, %v680
        %v723 = vmul.f32 %v721, %v681
        %v724 = vmul.f32 %v721, %v682
        %v725 = vmul.f32 %v721, %v683
        %v726 = vmul.f32 %v721, %v684
        %v727 = vmul.f32 %v721, %v685
        %v728 = vmul.f32 %v721, %v686
        %v729 = vmul.f32 %v721, %v687
        %v730 = vmul.f32 %v721, %v688
        %v731 = vmul.f32 %v721, %v689
        %v732 = vmul.f32 %v721, %v690
        %v733 = vmul.f32 %v721, %v691
        %v734 = vmul.f32 %v721, %v692
        %v735 = vmul.f32 %v721, %v693
        %v736 = vmul.f32 %v721, %v694
        %v737 = vmul.f32 %v721, %v695
        %v738 = vmul.f32 %v721, %v696
        %v739 = vmul.f32 %v721, %v697
        %v740 = vmul.f32 %v721, %v698
        %v741 = vmul.f32 %v721, %v699
        %v742 = vmul.f32 %v721, %v700
        %v743 = vmul.f32 %v721, %v701
        %v744 = vmul.f32 %v721, %v702
        %v745 = vmul.f32 %v721, %v703
        %v746 = vmul.f32 %v721, %v704
        %v747 = vmul.f32 %v721, %v705
        %v748 = vmul.f32 %v721, %v706
        %v749 = vmul.f32 %v721, %v707
        %v750 = vmul.f32 %v721, %v708
        %v751 = vmul.f32 %v721, %v709
        %v752 = vmul.f32 %v721, %v710
        %v753 = vmul.f32 %v721, %v711
        %v754 = vmul.f32 %v721, %v712
        %v755 = vmul.f32 %v721, %v713
        %v756 = vmul.f32 %v721, %v714
        %v757 = vmul.f32 %v721, %v715
        %v758 = vmul.f32 %v721, %v716
        %v759 = vmul.f32 %v721, %v717
        %v760 = vmul.f32 %v721, %v718
        %v761 = vmul.f32 %v721, %v719
        %v762 = vmul.f32 %v721, %v720
        %s763 = ssub.f32 1.0, %s596
        %v764 = vstv %s763
        %v765 = vmul.f32 %v764, %v598
        %v766 = vmul.f32 %v764, %v599
        %v767 = vmul.f32 %v764, %v600
        %v768 = vmul.f32 %v764, %v601
        %v769 = vmul.f32 %v764, %v602
        %v770 = vmul.f32 %v764, %v603
        %v771 = vmul.f32 %v764, %v604
        %v772 = vmul.f32 %v764, %v605
        %v773 = vmul.f32 %v764, %v606
        %v774 = vmul.f32 %v764, %v607
        %v775 = vmul.f32 %v764, %v608
        %v776 = vmul.f32 %v764, %v609
        %v777 = vmul.f32 %v764, %v610
        %v778 = vmul.f32 %v764, %v611
        %v779 = vmul.f32 %v764, %v612
        %v780 = vmul.f32 %v764, %v613
        %v781 = vmul.f32 %v764, %v614
        %v782 = vmul.f32 %v764, %v615
        %v783 = vmul.f32 %v764, %v616
        %v784 = vmul.f32 %v764, %v617
        %v785 = vmul.f32 %v764, %v618
        %v786 = vmul.f32 %v764, %v619
        %v787 = vmul.f32 %v764, %v620
        %v788 = vmul.f32 %v764, %v621
        %v789 = vmul.f32 %v764, %v622
        %v790 = vmul.f32 %v764, %v623
        %v791 = vmul.f32 %v764, %v624
        %v792 = vmul.f32 %v764, %v625
        %v793 = vmul.f32 %v764, %v626
        %v794 = vmul.f32 %v764, %v627
        %v795 = vmul.f32 %v764, %v628
        %v796 = vmul.f32 %v764, %v629
        %v797 = vmul.f32 %v764, %v630
        %v798 = vmul.f32 %v764, %v631
        %v799 = vmul.f32 %v764, %v632
        %v800 = vmul.f32 %v764, %v633
        %v801 = vmul.f32 %v764, %v634
        %v802 = vmul.f32 %v764, %v635
        %v803 = vmul.f32 %v764, %v636
        %v804 = vmul.f32 %v764, %v637
        %v805 = vmul.f32 %v764, %v638
        %v806 = vstv %s596
        %v807 = vmul.f32 %v806, %v639
        %v808 = vmul.f32 %v806, %v640
        %v809 = vmul.f32 %v806, %v641
        %v810 = vmul.f32 %v806, %v642
        %v811 = vmul.f32 %v806, %v643
        %v812 = vmul.f32 %v806, %v644
        %v813 = vmul.f32 %v806, %v645
        %v814 = vmul.f32 %v806, %v646
        %v815 = vmul.f32 %v806, %v647
        %v816 = vmul.f32 %v806, %v648
        %v817 = vmul.f32 %v806, %v649
        %v818 = vmul.f32 %v806, %v650
        %v819 = vmul.f32 %v806, %v651
        %v820 = vmul.f32 %v806, %v652
        %v821 = vmul.f32 %v806, %v653
        %v822 = vmul.f32 %v806, %v654
        %v823 = vmul.f32 %v806, %v655
        %v824 = vmul.f32 %v806, %v656
        %v825 = vmul.f32 %v806, %v657
        %v826 = vmul.f32 %v806, %v658
        %v827 = vmul.f32 %v806, %v659
        %v828 = vmul.f32 %v806, %v660
        %v829 = vmul.f32 %v806, %v661
        %v830 = vmul.f32 %v806, %v662
        %v831 = vmul.f32 %v806, %v663
        %v832 = vmul.f32 %v806, %v664
        %v833 = vmul.f32 %v806, %v665
        %v834 = vmul.f32 %v806, %v666
        %v835 = vmul.f32 %v806, %v667
        %v836 = vmul.f32 %v806, %v668
        %v837 = vmul.f32 %v806, %v669
        %v838 = vmul.f32 %v806, %v670
        %v839 = vmul.f32 %v806, %v671
        %v840 = vmul.f32 %v806, %v672
        %v841 = vmul.f32 %v806, %v673
        %v842 = vmul.f32 %v806, %v674
        %v843 = vmul.f32 %v806, %v675
        %v844 = vmul.f32 %v806, %v676
        %v845 = vmul.f32 %v806, %v677
        %v846 = vmul.f32 %v806, %v678
        %v847 = vmul.f32 %v806, %v679
        %v848 = vadd.f32 %v765, %v807
        %v849 = vadd.f32 %v766, %v808
        %v850 = vadd.f32 %v767, %v809
        %v851 = vadd.f32 %v768, %v810
        %v852 = vadd.f32 %v769, %v811
        %v853 = vadd.f32 %v770, %v812
        %v854 = vadd.f32 %v771, %v813
        %v855 = vadd.f32 %v772, %v814
        %v856 = vadd.f32 %v773, %v815
        %v857 = vadd.f32 %v774, %v816
        %v858 = vadd.f32 %v775, %v817
        %v859 = vadd.f32 %v776, %v818
        %v860 = vadd.f32 %v777, %v819
        %v861 = vadd.f32 %v778, %v820
        %v862 = vadd.f32 %v779, %v821
        %v863 = vadd.f32 %v780, %v822
        %v864 = vadd.f32 %v781, %v823
        %v865 = vadd.f32 %v782, %v824
        %v866 = vadd.f32 %v783, %v825
        %v867 = vadd.f32 %v784, %v826
        %v868 = vadd.f32 %v785, %v827
        %v869 = vadd.f32 %v786, %v828
        %v870 = vadd.f32 %v787, %v829
        %v871 = vadd.f32 %v788, %v830
        %v872 = vadd.f32 %v789, %v831
        %v873 = vadd.f32 %v790, %v832
        %v874 = vadd.f32 %v791, %v833
        %v875 = vadd.f32 %v792, %v834
        %v876 = vadd.f32 %v793, %v835
        %v877 = vadd.f32 %v794, %v836
        %v878 = vadd.f32 %v795, %v837
        %v879 = vadd.f32 %v796, %v838
        %v880 = vadd.f32 %v797, %v839
        %v881 = vadd.f32 %v798, %v840
        %v882 = vadd.f32 %v799, %v841
        %v883 = vadd.f32 %v800, %v842
        %v884 = vadd.f32 %v801, %v843
        %v885 = vadd.f32 %v802, %v844
        %v886 = vadd.f32 %v803, %v845
        %v887 = vadd.f32 %v804, %v846
        %v888 = vadd.f32 %v805, %v847
        %v889 = vadd.f32 %v848, %v722
        %v890 = vadd.f32 %v849, %v723
        %v891 = vadd.f32 %v850, %v724
        %v892 = vadd.f32 %v851, %v725
        %v893 = vadd.f32 %v852, %v726
        %v894 = vadd.f32 %v853, %v727
        %v895 = vadd.f32 %v854, %v728
        %v896 = vadd.f32 %v855, %v729
        %v897 = vadd.f32 %v856, %v730
        %v898 = vadd.f32 %v857, %v731
        %v899 = vadd.f32 %v858, %v732
        %v900 = vadd.f32 %v859, %v733
        %v901 = vadd.f32 %v860, %v734
        %v902 = vadd.f32 %v861, %v735
        %v903 = vadd.f32 %v862, %v736
        %v904 = vadd.f32 %v863, %v737
        %v905 = vadd.f32 %v864, %v738
        %v906 = vadd.f32 %v865, %v739
        %v907 = vadd.f32 %v866, %v740
        %v908 = vadd.f32 %v867, %v741
        %v909 = vadd.f32 %v868, %v742
        %v910 = vadd.f32 %v869, %v743
        %v911 = vadd.f32 %v870, %v744
        %v912 = vadd.f32 %v871, %v745
        %v913 = vadd.f32 %v872, %v746
        %v914 = vadd.f32 %v873, %v747
        %v915 = vadd.f32 %v874, %v748
        %v916 = vadd.f32 %v875, %v749
        %v917 = vadd.f32 %v876, %v750
        %v918 = vadd.f32 %v877, %v751
        %v919 = vadd.f32 %v878, %v752
        %v920 = vadd.f32 %v879, %v753
        %v921 = vadd.f32 %v880, %v754
        %v922 = vadd.f32 %v881, %v755
        %v923 = vadd.f32 %v882, %v756
        %v924 = vadd.f32 %v883, %v757
        %v925 = vadd.f32 %v884, %v758
        %v926 = vadd.f32 %v885, %v759
        %v927 = vadd.f32 %v886, %v760
        %v928 = vadd.f32 %v887, %v761
        %v929 = vadd.f32 %v888, %v762
        %v930 = vsub.f32 %v641, %v600
        %v931 = vsub.f32 %v642, %v601
        %v932 = vsub.f32 %v643, %v602
        %v933 = vsub.f32 %v644, %v603
        %v934 = vsub.f32 %v645, %v604
        %v935 = vsub.f32 %v646, %v605
        %v936 = vsub.f32 %v647, %v606
        %v937 = vsub.f32 %v648, %v607
        %v938 = vsub.f32 %v649, %v608
        %v939 = vsub.f32 %v650, %v609
        %v940 = vsub.f32 %v651, %v610
        %v941 = vsub.f32 %v652, %v611
        %v942 = vsub.f32 %v653, %v612
        %v943 = vsub.f32 %v654, %v613
        %v944 = vsub.f32 %v655, %v614
        %v945 = vsub.f32 %v656, %v615
        %v946 = vsub.f32 %v657, %v616
        %v947 = vsub.f32 %v658, %v617
        %v948 = vsub.f32 %v659, %v618
        %v949 = vsub.f32 %v660, %v619
        %v950 = vsub.f32 %v661, %v620
        %v951 = vsub.f32 %v662, %v621
        %v952 = vsub.f32 %v663, %v622
        %v953 = vsub.f32 %v664, %v623
        %v954 = vsub.f32 %v665, %v624
        %v955 = vsub.f32 %v666, %v625
        %v956 = vsub.f32 %v667, %v626
        %v957 = vsub.f32 %v668, %v627
        %v958 = vsub.f32 %v669, %v628
        %v959 = vsub.f32 %v670, %v629
        %v960 = vsub.f32 %v671, %v630
        %v961 = vsub.f32 %v672, %v631
        %v962 = vsub.f32 %v673, %v632
        %v963 = vsub.f32 %v674, %v633
        %v964 = vsub.f32 %v675, %v634
        %v965 = vsub.f32 %v676, %v635
        %v966 = vsub.f32 %v677, %v636
        %v967 = vmul.f32 %v806, %v930
        %v968 = vmul.f32 %v806, %v931
        %v969 = vmul.f32 %v806, %v932
        %v970 = vmul.f32 %v806, %v933
        %v971 = vmul.f32 %v806, %v934
        %v972 = vmul.f32 %v806, %v935
        %v973 = vmul.f32 %v806, %v936
        %v974 = vmul.f32 %v806, %v937
        %v975 = vmul.f32 %v806, %v938
        %v976 = vmul.f32 %v806, %v939
        %v977 = vmul.f32 %v806, %v940
        %v978 = vmul.f32 %v806, %v941
        %v979 = vmul.f32 %v806, %v942
        %v980 = vmul.f32 %v806, %v943
        %v981 = vmul.f32 %v806, %v944
        %v982 = vmul.f32 %v806, %v945
        %v983 = vmul.f32 %v806, %v946
        %v984 = vmul.f32 %v806, %v947
        %v985 = vmul.f32 %v806, %v948
        %v986 = vmul.f32 %v806, %v949
        %v987 = vmul.f32 %v806, %v950
        %v988 = vmul.f32 %v806, %v951
        %v989 = vmul.f32 %v806, %v952
        %v990 = vmul.f32 %v806, %v953
        %v991 = vmul.f32 %v806, %v954
        %v992 = vmul.f32 %v806, %v955
        %v993 = vmul.f32 %v806, %v956
        %v994 = vmul.f32 %v806, %v957
        %v995 = vmul.f32 %v806, %v958
        %v996 = vmul.f32 %v806, %v959
        %v997 = vmul.f32 %v806, %v960
        %v998 = vmul.f32 %v806, %v961
        %v999 = vmul.f32 %v806, %v962
        %v1000 = vmul.f32 %v806, %v963
        %v1001 = vmul.f32 %v806, %v964
        %v1002 = vmul.f32 %v806, %v965
        %v1003 = vmul.f32 %v806, %v966
        %v1004 = vadd.f32 %v967, %v724
        %v1005 = vadd.f32 %v968, %v725
        %v1006 = vadd.f32 %v969, %v726
        %v1007 = vadd.f32 %v970, %v727
        %v1008 = vadd.f32 %v971, %v728
        %v1009 = vadd.f32 %v972, %v729
        %v1010 = vadd.f32 %v973, %v730
        %v1011 = vadd.f32 %v974, %v731
        %v1012 = vadd.f32 %v975, %v732
        %v1013 = vadd.f32 %v976, %v733
        %v1014 = vadd.f32 %v977, %v734
        %v1015 = vadd.f32 %v978, %v735
        %v1016 = vadd.f32 %v979, %v736
        %v1017 = vadd.f32 %v980, %v737
        %v1018 = vadd.f32 %v981, %v738
        %v1019 = vadd.f32 %v982, %v739
        %v1020 = vadd.f32 %v983, %v740
        %v1021 = vadd.f32 %v984, %v741
        %v1022 = vadd.f32 %v985, %v742
        %v1023 = vadd.f32 %v986, %v743
        %v1024 = vadd.f32 %v987, %v744
        %v1025 = vadd.f32 %v988, %v745
        %v1026 = vadd.f32 %v989, %v746
        %v1027 = vadd.f32 %v990, %v747
        %v1028 = vadd.f32 %v991, %v748
        %v1029 = vadd.f32 %v992, %v749
        %v1030 = vadd.f32 %v993, %v750
        %v1031 = vadd.f32 %v994, %v751
        %v1032 = vadd.f32 %v995, %v752
        %v1033 = vadd.f32 %v996, %v753
        %v1034 = vadd.f32 %v997, %v754
        %v1035 = vadd.f32 %v998, %v755
        %v1036 = vadd.f32 %v999, %v756
        %v1037 = vadd.f32 %v1000, %v757
        %v1038 = vadd.f32 %v1001, %v758
        %v1039 = vadd.f32 %v1002, %v759
        %v1040 = vadd.f32 %v1003, %v760
        %v1041 = vld [vmem:[%s588] sm:$0x1]
        %v1042 = vpack.c.bf16 %v1041, %v1041
        %v1043 = vld [vmem:[%s6] sm:$0xf]
        %v1044 = vld [vmem:[%s6 + $0x4] sm:$0xf]
        %v1045 = vld [vmem:[%s6 + $0x8] sm:$0xf]
        %v1046 = vld [vmem:[%s6 + $0xc] sm:$0xf]
        %v1047 = vld [vmem:[%s6 + $0x10] sm:$0xf]
        %v1048 = vld [vmem:[%s6 + $0x14] sm:$0xf]
        %v1049 = vld [vmem:[%s6 + $0x18] sm:$0xf]
        %v1050 = vld [vmem:[%s6 + $0x1c] sm:$0xf]
        %v1051 = vld [vmem:[%s6 + $0x20] sm:$0xf]
        %v1052 = vld [vmem:[%s6 + $0x24] sm:$0xf]
        %v1053 = vld [vmem:[%s6 + $0x28] sm:$0xf]
        %v1054 = vld [vmem:[%s6 + $0x2c] sm:$0xf]
        %v1055 = vld [vmem:[%s6 + $0x30] sm:$0xf]
        %v1056 = vld [vmem:[%s6 + $0x34] sm:$0xf]
        %v1057 = vld [vmem:[%s6 + $0x38] sm:$0xf]
        %v1058 = vld [vmem:[%s6 + $0x3c] sm:$0xf]
        %v1059 = vld [vmem:[%s7] sm:$0x1]
        %v1076 = vunpack.c.l.b16 %v1043
        %v1077 = vunpack.c.l.b16 %v1044
        %v1078 = vunpack.c.l.b16 %v1045
        %v1079 = vunpack.c.l.b16 %v1046
        %v1080 = vunpack.c.l.b16 %v1047
        %v1081 = vunpack.c.l.b16 %v1048
        %v1082 = vunpack.c.l.b16 %v1049
        %v1083 = vunpack.c.l.b16 %v1050
        %v1084 = vunpack.c.l.b16 %v1051
        %v1085 = vunpack.c.l.b16 %v1052
        %v1086 = vunpack.c.l.b16 %v1053
        %v1087 = vunpack.c.l.b16 %v1054
        %v1088 = vunpack.c.l.b16 %v1055
        %v1089 = vunpack.c.l.b16 %v1056
        %v1090 = vunpack.c.l.b16 %v1057
        %v1091 = vunpack.c.l.b16 %v1058
        %v1092 = vpack.c.b16 %v1077, %v1076
        %v1093 = vpack.c.b16 %v1079, %v1078
        %v1094 = vpack.c.b16 %v1081, %v1080
        %v1095 = vpack.c.b16 %v1083, %v1082
        %v1096 = vpack.c.b16 %v1085, %v1084
        %v1097 = vpack.c.b16 %v1087, %v1086
        %v1098 = vpack.c.b16 %v1089, %v1088
        %v1099 = vpack.c.b16 %v1091, %v1090
        %1108 = vmatpush.bf16.msra.mxu0 %v1099
        %1109 = vmatpush.bf16.msra.mxu0 %v1098
        %1110 = vmatpush.bf16.msra.mxu0 %v1097
        %1111 = vmatpush.bf16.msra.mxu0 %v1096
        %1112 = vmatpush.bf16.msra.mxu0 %v1095
        %1113 = vmatpush.bf16.msra.mxu0 %v1094
        %1114 = vmatpush.bf16.msra.mxu0 %v1093
        %1115 = vmatpush.bf16.msra.mxu0 %v1092
        %1116 = vmatmul.bf16.gmra.mxu0 %v1042
        %v1117 = vpop.f32.mrf.mxu0
        %v1118 = vadd.f32 %v1059, %v1117
        %v1119 = vpop.f32.mrf.mxu0
        %1120 = vdwg.mxu0
        %v1121 = vsub.f32 0.0, %v1118
        %v1122 = vmul.f32 %v1121, 1.442695
        %v1123 = vpow.pop %v1122
        %v1124 = vadd.f32 %v1123, 1.0
        %v1125 = vrcp.pop %v1124
        %v1126 = vmul.f32 %v1124, %v1125
        %v1127 = vsub.f32 1.0, %v1126
        %v1128 = vmul.f32 %v1125, %v1127
        %v1129 = vadd.f32 %v1125, %v1128
        %vm1130 = vweird.f32 %v1124
        %vm1131 = vweird.f32 %v1125
        %vm1132 = vmor %vm1130, %vm1131
        %v1133 = vsel %vm1132, %v1125, %v1129
        %v1134 = vand.u32 2147483647, %v1124
        %vm1135 = vcmp.eq.f32.partialorder %v1134, 8.507059e+37
        %v1136 = vand.u32 %v1124, 2147483648
        %v1137 = vor.u32 1.1754944e-38, %v1136
        %v1138 = vsel %vm1135, %v1137, %v1133
        %v1139 = vmul.f32 1.0, %v1138
        %v1140 = vmul.f32 %v1118, %v1139
        %v1141 = vpack.c.bf16 %v1140, %v1140
        %v1142 = vld [vmem:[%s8] sm:$0xf]
        %v1143 = vld [vmem:[%s8 + $0x4] sm:$0xf]
        %v1144 = vld [vmem:[%s8 + $0x8] sm:$0xf]
        %v1145 = vld [vmem:[%s8 + $0xc] sm:$0xf]
        %v1146 = vld [vmem:[%s8 + $0x10] sm:$0xf]
        %v1147 = vld [vmem:[%s8 + $0x14] sm:$0xf]
        %v1148 = vld [vmem:[%s8 + $0x18] sm:$0xf]
        %v1149 = vld [vmem:[%s8 + $0x1c] sm:$0xf]
        %v1150 = vld [vmem:[%s8 + $0x20] sm:$0xf]
        %v1151 = vld [vmem:[%s8 + $0x24] sm:$0xf]
        %v1152 = vld [vmem:[%s8 + $0x28] sm:$0xf]
        %v1153 = vld [vmem:[%s8 + $0x2c] sm:$0xf]
        %v1154 = vld [vmem:[%s8 + $0x30] sm:$0xf]
        %v1155 = vld [vmem:[%s8 + $0x34] sm:$0xf]
        %v1156 = vld [vmem:[%s8 + $0x38] sm:$0xf]
        %v1157 = vld [vmem:[%s8 + $0x3c] sm:$0xf]
        %v1158 = vld [vmem:[%s9] sm:$0x1]
        %v1175 = vunpack.c.l.b16 %v1142
        %v1176 = vunpack.c.l.b16 %v1143
        %v1177 = vunpack.c.l.b16 %v1144
        %v1178 = vunpack.c.l.b16 %v1145
        %v1179 = vunpack.c.l.b16 %v1146
        %v1180 = vunpack.c.l.b16 %v1147
        %v1181 = vunpack.c.l.b16 %v1148
        %v1182 = vunpack.c.l.b16 %v1149
        %v1183 = vunpack.c.l.b16 %v1150
        %v1184 = vunpack.c.l.b16 %v1151
        %v1185 = vunpack.c.l.b16 %v1152
        %v1186 = vunpack.c.l.b16 %v1153
        %v1187 = vunpack.c.l.b16 %v1154
        %v1188 = vunpack.c.l.b16 %v1155
        %v1189 = vunpack.c.l.b16 %v1156
        %v1190 = vunpack.c.l.b16 %v1157
        %v1191 = vpack.c.b16 %v1176, %v1175
        %v1192 = vpack.c.b16 %v1178, %v1177
        %v1193 = vpack.c.b16 %v1180, %v1179
        %v1194 = vpack.c.b16 %v1182, %v1181
        %v1195 = vpack.c.b16 %v1184, %v1183
        %v1196 = vpack.c.b16 %v1186, %v1185
        %v1197 = vpack.c.b16 %v1188, %v1187
        %v1198 = vpack.c.b16 %v1190, %v1189
        %1207 = vmatpush.bf16.msra.mxu0 %v1198
        %1208 = vmatpush.bf16.msra.mxu0 %v1197
        %1209 = vmatpush.bf16.msra.mxu0 %v1196
        %1210 = vmatpush.bf16.msra.mxu0 %v1195
        %1211 = vmatpush.bf16.msra.mxu0 %v1194
        %1212 = vmatpush.bf16.msra.mxu0 %v1193
        %1213 = vmatpush.bf16.msra.mxu0 %v1192
        %1214 = vmatpush.bf16.msra.mxu0 %v1191
        %1215 = vmatmul.bf16.gmra.mxu0 %v1141
        %v1216 = vpop.f32.mrf.mxu0
        %v1217 = vadd.f32 %v1158, %v1216
        %v1218 = vpop.f32.mrf.mxu0
        %1219 = vdwg.mxu0
        %v1220 = vlaneseq
        %v1221 = vshrl.u32 %v1220, 7
        %v1222 = vadd.s32 %v1221, 8
        %v1223 = vadd.s32 %v1221, 16
        %v1224 = vadd.s32 %v1221, 24
        %v1225 = vadd.s32 %v1221, 32
        %v1226 = vadd.s32 %v1221, 40
        %v1227 = vadd.s32 %v1221, 48
        %v1228 = vadd.s32 %v1221, 56
        %v1229 = vadd.s32 %v1221, 64
        %v1230 = vadd.s32 %v1221, 72
        %v1231 = vadd.s32 %v1221, 80
        %v1232 = vadd.s32 %v1221, 88
        %v1233 = vadd.s32 %v1221, 96
        %v1234 = vadd.s32 %v1221, 104
        %v1235 = vadd.s32 %v1221, 112
        %v1236 = vadd.s32 %v1221, 120
        %v1237 = vadd.s32 %v1221, 128
        %v1238 = vadd.s32 %v1221, 136
        %v1239 = vadd.s32 %v1221, 144
        %v1240 = vadd.s32 %v1221, 152
        %v1241 = vadd.s32 %v1221, 160
        %v1242 = vadd.s32 %v1221, 168
        %v1243 = vadd.s32 %v1221, 176
        %v1244 = vadd.s32 %v1221, 184
        %v1245 = vadd.s32 %v1221, 192
        %v1246 = vadd.s32 %v1221, 200
        %v1247 = vadd.s32 %v1221, 208
        %v1248 = vadd.s32 %v1221, 216
        %v1249 = vadd.s32 %v1221, 224
        %v1250 = vadd.s32 %v1221, 232
        %v1251 = vadd.s32 %v1221, 240
        %v1252 = vadd.s32 %v1221, 248
        %v1253 = vadd.s32 %v1221, 256
        %v1254 = vadd.s32 %v1221, 264
        %v1255 = vadd.s32 %v1221, 272
        %v1256 = vadd.s32 %v1221, 280
        %vm1257 = vcmp.lt.s32.totalorder %v1221, 0
        %v1258 = vsub.s32 0, %v1221
        %v1259 = vsel %vm1257, %v1258, %v1221
        %v1260 = vand.u32 %v1259, 65535
        %v1261 = vshrl.u32 %v1259, 16
        %v1263 = vmul.u32 %v1260, 14564
        %v1264 = vmul.u32 %v1260, 58254
        %v1265 = vmul.u32 %v1261, 14564
        %v1266 = vmul.u32 %v1261, 58254
        %v1267 = vshll.u32 %v1264, 16
        %v1268 = vshrl.u32 %v1264, 16
        %v1269 = vshll.u32 %v1265, 16
        %v1270 = vshrl.u32 %v1265, 16
        %vm1271 = vc.u32 %v1263, %v1267
        %v1272 = vsel %vm1271, 1, 0
        %v1273 = vadd.s32 %v1263, %v1267
        %v1274 = vadd.s32 %v1266, %v1272
        %vm1275 = vc.u32 %v1273, %v1269
        %v1276 = vsel %vm1275, 1, 0
        %v1277 = vadd.s32 %v1273, %v1269
        %v1278 = vadd.s32 %v1274, %v1276
        %v1279 = vadd.s32 %v1278, %v1268
        %v1280 = vadd.s32 %v1279, %v1270
        %v1281 = vshrl.u32 %v1280, 4
        %v1282 = vmul.u32 %v1281, 18
        %v1283 = vsub.s32 %v1259, %v1282
        %v1284 = vsub.s32 0, %v1283
        %v1285 = vsel %vm1257, %v1284, %v1283
        %vm1286 = vcmp.lt.s32.totalorder %v1222, 0
        %v1287 = vsub.s32 0, %v1222
        %v1288 = vsel %vm1286, %v1287, %v1222
        %v1289 = vand.u32 %v1288, 65535
        %v1290 = vshrl.u32 %v1288, 16
        %v1292 = vmul.u32 %v1289, 14564
        %v1293 = vmul.u32 %v1289, 58254
        %v1294 = vmul.u32 %v1290, 14564
        %v1295 = vmul.u32 %v1290, 58254
        %v1296 = vshll.u32 %v1293, 16
        %v1297 = vshrl.u32 %v1293, 16
        %v1298 = vshll.u32 %v1294, 16
        %v1299 = vshrl.u32 %v1294, 16
        %vm1300 = vc.u32 %v1292, %v1296
        %v1301 = vsel %vm1300, 1, 0
        %v1302 = vadd.s32 %v1292, %v1296
        %v1303 = vadd.s32 %v1295, %v1301
        %vm1304 = vc.u32 %v1302, %v1298
        %v1305 = vsel %vm1304, 1, 0
        %v1306 = vadd.s32 %v1302, %v1298
        %v1307 = vadd.s32 %v1303, %v1305
        %v1308 = vadd.s32 %v1307, %v1297
        %v1309 = vadd.s32 %v1308, %v1299
        %v1310 = vshrl.u32 %v1309, 4
        %v1311 = vmul.u32 %v1310, 18
        %v1312 = vsub.s32 %v1288, %v1311
        %v1313 = vsub.s32 0, %v1312
        %v1314 = vsel %vm1286, %v1313, %v1312
        %vm1315 = vcmp.lt.s32.totalorder %v1223, 0
        %v1316 = vsub.s32 0, %v1223
        %v1317 = vsel %vm1315, %v1316, %v1223
        %v1318 = vand.u32 %v1317, 65535
        %v1319 = vshrl.u32 %v1317, 16
        %v1321 = vmul.u32 %v1318, 14564
        %v1322 = vmul.u32 %v1318, 58254
        %v1323 = vmul.u32 %v1319, 14564
        %v1324 = vmul.u32 %v1319, 58254
        %v1325 = vshll.u32 %v1322, 16
        %v1326 = vshrl.u32 %v1322, 16
        %v1327 = vshll.u32 %v1323, 16
        %v1328 = vshrl.u32 %v1323, 16
        %vm1329 = vc.u32 %v1321, %v1325
        %v1330 = vsel %vm1329, 1, 0
        %v1331 = vadd.s32 %v1321, %v1325
        %v1332 = vadd.s32 %v1324, %v1330
        %vm1333 = vc.u32 %v1331, %v1327
        %v1334 = vsel %vm1333, 1, 0
        %v1335 = vadd.s32 %v1331, %v1327
        %v1336 = vadd.s32 %v1332, %v1334
        %v1337 = vadd.s32 %v1336, %v1326
        %v1338 = vadd.s32 %v1337, %v1328
        %v1339 = vshrl.u32 %v1338, 4
        %v1340 = vmul.u32 %v1339, 18
        %v1341 = vsub.s32 %v1317, %v1340
        %v1342 = vsub.s32 0, %v1341
        %v1343 = vsel %vm1315, %v1342, %v1341
        %vm1344 = vcmp.lt.s32.totalorder %v1224, 0
        %v1345 = vsub.s32 0, %v1224
        %v1346 = vsel %vm1344, %v1345, %v1224
        %v1347 = vand.u32 %v1346, 65535
        %v1348 = vshrl.u32 %v1346, 16
        %v1350 = vmul.u32 %v1347, 14564
        %v1351 = vmul.u32 %v1347, 58254
        %v1352 = vmul.u32 %v1348, 14564
        %v1353 = vmul.u32 %v1348, 58254
        %v1354 = vshll.u32 %v1351, 16
        %v1355 = vshrl.u32 %v1351, 16
        %v1356 = vshll.u32 %v1352, 16
        %v1357 = vshrl.u32 %v1352, 16
        %vm1358 = vc.u32 %v1350, %v1354
        %v1359 = vsel %vm1358, 1, 0
        %v1360 = vadd.s32 %v1350, %v1354
        %v1361 = vadd.s32 %v1353, %v1359
        %vm1362 = vc.u32 %v1360, %v1356
        %v1363 = vsel %vm1362, 1, 0
        %v1364 = vadd.s32 %v1360, %v1356
        %v1365 = vadd.s32 %v1361, %v1363
        %v1366 = vadd.s32 %v1365, %v1355
        %v1367 = vadd.s32 %v1366, %v1357
        %v1368 = vshrl.u32 %v1367, 4
        %v1369 = vmul.u32 %v1368, 18
        %v1370 = vsub.s32 %v1346, %v1369
        %v1371 = vsub.s32 0, %v1370
        %v1372 = vsel %vm1344, %v1371, %v1370
        %vm1373 = vcmp.lt.s32.totalorder %v1225, 0
        %v1374 = vsub.s32 0, %v1225
        %v1375 = vsel %vm1373, %v1374, %v1225
        %v1376 = vand.u32 %v1375, 65535
        %v1377 = vshrl.u32 %v1375, 16
        %v1379 = vmul.u32 %v1376, 14564
        %v1380 = vmul.u32 %v1376, 58254
        %v1381 = vmul.u32 %v1377, 14564
        %v1382 = vmul.u32 %v1377, 58254
        %v1383 = vshll.u32 %v1380, 16
        %v1384 = vshrl.u32 %v1380, 16
        %v1385 = vshll.u32 %v1381, 16
        %v1386 = vshrl.u32 %v1381, 16
        %vm1387 = vc.u32 %v1379, %v1383
        %v1388 = vsel %vm1387, 1, 0
        %v1389 = vadd.s32 %v1379, %v1383
        %v1390 = vadd.s32 %v1382, %v1388
        %vm1391 = vc.u32 %v1389, %v1385
        %v1392 = vsel %vm1391, 1, 0
        %v1393 = vadd.s32 %v1389, %v1385
        %v1394 = vadd.s32 %v1390, %v1392
        %v1395 = vadd.s32 %v1394, %v1384
        %v1396 = vadd.s32 %v1395, %v1386
        %v1397 = vshrl.u32 %v1396, 4
        %v1398 = vmul.u32 %v1397, 18
        %v1399 = vsub.s32 %v1375, %v1398
        %v1400 = vsub.s32 0, %v1399
        %v1401 = vsel %vm1373, %v1400, %v1399
        %vm1402 = vcmp.lt.s32.totalorder %v1226, 0
        %v1403 = vsub.s32 0, %v1226
        %v1404 = vsel %vm1402, %v1403, %v1226
        %v1405 = vand.u32 %v1404, 65535
        %v1406 = vshrl.u32 %v1404, 16
        %v1408 = vmul.u32 %v1405, 14564
        %v1409 = vmul.u32 %v1405, 58254
        %v1410 = vmul.u32 %v1406, 14564
        %v1411 = vmul.u32 %v1406, 58254
        %v1412 = vshll.u32 %v1409, 16
        %v1413 = vshrl.u32 %v1409, 16
        %v1414 = vshll.u32 %v1410, 16
        %v1415 = vshrl.u32 %v1410, 16
        %vm1416 = vc.u32 %v1408, %v1412
        %v1417 = vsel %vm1416, 1, 0
        %v1418 = vadd.s32 %v1408, %v1412
        %v1419 = vadd.s32 %v1411, %v1417
        %vm1420 = vc.u32 %v1418, %v1414
        %v1421 = vsel %vm1420, 1, 0
        %v1422 = vadd.s32 %v1418, %v1414
        %v1423 = vadd.s32 %v1419, %v1421
        %v1424 = vadd.s32 %v1423, %v1413
        %v1425 = vadd.s32 %v1424, %v1415
        %v1426 = vshrl.u32 %v1425, 4
        %v1427 = vmul.u32 %v1426, 18
        %v1428 = vsub.s32 %v1404, %v1427
        %v1429 = vsub.s32 0, %v1428
        %v1430 = vsel %vm1402, %v1429, %v1428
        %vm1431 = vcmp.lt.s32.totalorder %v1227, 0
        %v1432 = vsub.s32 0, %v1227
        %v1433 = vsel %vm1431, %v1432, %v1227
        %v1434 = vand.u32 %v1433, 65535
        %v1435 = vshrl.u32 %v1433, 16
        %v1437 = vmul.u32 %v1434, 14564
        %v1438 = vmul.u32 %v1434, 58254
        %v1439 = vmul.u32 %v1435, 14564
        %v1440 = vmul.u32 %v1435, 58254
        %v1441 = vshll.u32 %v1438, 16
        %v1442 = vshrl.u32 %v1438, 16
        %v1443 = vshll.u32 %v1439, 16
        %v1444 = vshrl.u32 %v1439, 16
        %vm1445 = vc.u32 %v1437, %v1441
        %v1446 = vsel %vm1445, 1, 0
        %v1447 = vadd.s32 %v1437, %v1441
        %v1448 = vadd.s32 %v1440, %v1446
        %vm1449 = vc.u32 %v1447, %v1443
        %v1450 = vsel %vm1449, 1, 0
        %v1451 = vadd.s32 %v1447, %v1443
        %v1452 = vadd.s32 %v1448, %v1450
        %v1453 = vadd.s32 %v1452, %v1442
        %v1454 = vadd.s32 %v1453, %v1444
        %v1455 = vshrl.u32 %v1454, 4
        %v1456 = vmul.u32 %v1455, 18
        %v1457 = vsub.s32 %v1433, %v1456
        %v1458 = vsub.s32 0, %v1457
        %v1459 = vsel %vm1431, %v1458, %v1457
        %vm1460 = vcmp.lt.s32.totalorder %v1228, 0
        %v1461 = vsub.s32 0, %v1228
        %v1462 = vsel %vm1460, %v1461, %v1228
        %v1463 = vand.u32 %v1462, 65535
        %v1464 = vshrl.u32 %v1462, 16
        %v1466 = vmul.u32 %v1463, 14564
        %v1467 = vmul.u32 %v1463, 58254
        %v1468 = vmul.u32 %v1464, 14564
        %v1469 = vmul.u32 %v1464, 58254
        %v1470 = vshll.u32 %v1467, 16
        %v1471 = vshrl.u32 %v1467, 16
        %v1472 = vshll.u32 %v1468, 16
        %v1473 = vshrl.u32 %v1468, 16
        %vm1474 = vc.u32 %v1466, %v1470
        %v1475 = vsel %vm1474, 1, 0
        %v1476 = vadd.s32 %v1466, %v1470
        %v1477 = vadd.s32 %v1469, %v1475
        %vm1478 = vc.u32 %v1476, %v1472
        %v1479 = vsel %vm1478, 1, 0
        %v1480 = vadd.s32 %v1476, %v1472
        %v1481 = vadd.s32 %v1477, %v1479
        %v1482 = vadd.s32 %v1481, %v1471
        %v1483 = vadd.s32 %v1482, %v1473
        %v1484 = vshrl.u32 %v1483, 4
        %v1485 = vmul.u32 %v1484, 18
        %v1486 = vsub.s32 %v1462, %v1485
        %v1487 = vsub.s32 0, %v1486
        %v1488 = vsel %vm1460, %v1487, %v1486
        %vm1489 = vcmp.lt.s32.totalorder %v1229, 0
        %v1490 = vsub.s32 0, %v1229
        %v1491 = vsel %vm1489, %v1490, %v1229
        %v1492 = vand.u32 %v1491, 65535
        %v1493 = vshrl.u32 %v1491, 16
        %v1495 = vmul.u32 %v1492, 14564
        %v1496 = vmul.u32 %v1492, 58254
        %v1497 = vmul.u32 %v1493, 14564
        %v1498 = vmul.u32 %v1493, 58254
        %v1499 = vshll.u32 %v1496, 16
        %v1500 = vshrl.u32 %v1496, 16
        %v1501 = vshll.u32 %v1497, 16
        %v1502 = vshrl.u32 %v1497, 16
        %vm1503 = vc.u32 %v1495, %v1499
        %v1504 = vsel %vm1503, 1, 0
        %v1505 = vadd.s32 %v1495, %v1499
        %v1506 = vadd.s32 %v1498, %v1504
        %vm1507 = vc.u32 %v1505, %v1501
        %v1508 = vsel %vm1507, 1, 0
        %v1509 = vadd.s32 %v1505, %v1501
        %v1510 = vadd.s32 %v1506, %v1508
        %v1511 = vadd.s32 %v1510, %v1500
        %v1512 = vadd.s32 %v1511, %v1502
        %v1513 = vshrl.u32 %v1512, 4
        %v1514 = vmul.u32 %v1513, 18
        %v1515 = vsub.s32 %v1491, %v1514
        %v1516 = vsub.s32 0, %v1515
        %v1517 = vsel %vm1489, %v1516, %v1515
        %vm1518 = vcmp.lt.s32.totalorder %v1230, 0
        %v1519 = vsub.s32 0, %v1230
        %v1520 = vsel %vm1518, %v1519, %v1230
        %v1521 = vand.u32 %v1520, 65535
        %v1522 = vshrl.u32 %v1520, 16
        %v1524 = vmul.u32 %v1521, 14564
        %v1525 = vmul.u32 %v1521, 58254
        %v1526 = vmul.u32 %v1522, 14564
        %v1527 = vmul.u32 %v1522, 58254
        %v1528 = vshll.u32 %v1525, 16
        %v1529 = vshrl.u32 %v1525, 16
        %v1530 = vshll.u32 %v1526, 16
        %v1531 = vshrl.u32 %v1526, 16
        %vm1532 = vc.u32 %v1524, %v1528
        %v1533 = vsel %vm1532, 1, 0
        %v1534 = vadd.s32 %v1524, %v1528
        %v1535 = vadd.s32 %v1527, %v1533
        %vm1536 = vc.u32 %v1534, %v1530
        %v1537 = vsel %vm1536, 1, 0
        %v1538 = vadd.s32 %v1534, %v1530
        %v1539 = vadd.s32 %v1535, %v1537
        %v1540 = vadd.s32 %v1539, %v1529
        %v1541 = vadd.s32 %v1540, %v1531
        %v1542 = vshrl.u32 %v1541, 4
        %v1543 = vmul.u32 %v1542, 18
        %v1544 = vsub.s32 %v1520, %v1543
        %v1545 = vsub.s32 0, %v1544
        %v1546 = vsel %vm1518, %v1545, %v1544
        %vm1547 = vcmp.lt.s32.totalorder %v1231, 0
        %v1548 = vsub.s32 0, %v1231
        %v1549 = vsel %vm1547, %v1548, %v1231
        %v1550 = vand.u32 %v1549, 65535
        %v1551 = vshrl.u32 %v1549, 16
        %v1553 = vmul.u32 %v1550, 14564
        %v1554 = vmul.u32 %v1550, 58254
        %v1555 = vmul.u32 %v1551, 14564
        %v1556 = vmul.u32 %v1551, 58254
        %v1557 = vshll.u32 %v1554, 16
        %v1558 = vshrl.u32 %v1554, 16
        %v1559 = vshll.u32 %v1555, 16
        %v1560 = vshrl.u32 %v1555, 16
        %vm1561 = vc.u32 %v1553, %v1557
        %v1562 = vsel %vm1561, 1, 0
        %v1563 = vadd.s32 %v1553, %v1557
        %v1564 = vadd.s32 %v1556, %v1562
        %vm1565 = vc.u32 %v1563, %v1559
        %v1566 = vsel %vm1565, 1, 0
        %v1567 = vadd.s32 %v1563, %v1559
        %v1568 = vadd.s32 %v1564, %v1566
        %v1569 = vadd.s32 %v1568, %v1558
        %v1570 = vadd.s32 %v1569, %v1560
        %v1571 = vshrl.u32 %v1570, 4
        %v1572 = vmul.u32 %v1571, 18
        %v1573 = vsub.s32 %v1549, %v1572
        %v1574 = vsub.s32 0, %v1573
        %v1575 = vsel %vm1547, %v1574, %v1573
        %vm1576 = vcmp.lt.s32.totalorder %v1232, 0
        %v1577 = vsub.s32 0, %v1232
        %v1578 = vsel %vm1576, %v1577, %v1232
        %v1579 = vand.u32 %v1578, 65535
        %v1580 = vshrl.u32 %v1578, 16
        %v1582 = vmul.u32 %v1579, 14564
        %v1583 = vmul.u32 %v1579, 58254
        %v1584 = vmul.u32 %v1580, 14564
        %v1585 = vmul.u32 %v1580, 58254
        %v1586 = vshll.u32 %v1583, 16
        %v1587 = vshrl.u32 %v1583, 16
        %v1588 = vshll.u32 %v1584, 16
        %v1589 = vshrl.u32 %v1584, 16
        %vm1590 = vc.u32 %v1582, %v1586
        %v1591 = vsel %vm1590, 1, 0
        %v1592 = vadd.s32 %v1582, %v1586
        %v1593 = vadd.s32 %v1585, %v1591
        %vm1594 = vc.u32 %v1592, %v1588
        %v1595 = vsel %vm1594, 1, 0
        %v1596 = vadd.s32 %v1592, %v1588
        %v1597 = vadd.s32 %v1593, %v1595
        %v1598 = vadd.s32 %v1597, %v1587
        %v1599 = vadd.s32 %v1598, %v1589
        %v1600 = vshrl.u32 %v1599, 4
        %v1601 = vmul.u32 %v1600, 18
        %v1602 = vsub.s32 %v1578, %v1601
        %v1603 = vsub.s32 0, %v1602
        %v1604 = vsel %vm1576, %v1603, %v1602
        %vm1605 = vcmp.lt.s32.totalorder %v1233, 0
        %v1606 = vsub.s32 0, %v1233
        %v1607 = vsel %vm1605, %v1606, %v1233
        %v1608 = vand.u32 %v1607, 65535
        %v1609 = vshrl.u32 %v1607, 16
        %v1611 = vmul.u32 %v1608, 14564
        %v1612 = vmul.u32 %v1608, 58254
        %v1613 = vmul.u32 %v1609, 14564
        %v1614 = vmul.u32 %v1609, 58254
        %v1615 = vshll.u32 %v1612, 16
        %v1616 = vshrl.u32 %v1612, 16
        %v1617 = vshll.u32 %v1613, 16
        %v1618 = vshrl.u32 %v1613, 16
        %vm1619 = vc.u32 %v1611, %v1615
        %v1620 = vsel %vm1619, 1, 0
        %v1621 = vadd.s32 %v1611, %v1615
        %v1622 = vadd.s32 %v1614, %v1620
        %vm1623 = vc.u32 %v1621, %v1617
        %v1624 = vsel %vm1623, 1, 0
        %v1625 = vadd.s32 %v1621, %v1617
        %v1626 = vadd.s32 %v1622, %v1624
        %v1627 = vadd.s32 %v1626, %v1616
        %v1628 = vadd.s32 %v1627, %v1618
        %v1629 = vshrl.u32 %v1628, 4
        %v1630 = vmul.u32 %v1629, 18
        %v1631 = vsub.s32 %v1607, %v1630
        %v1632 = vsub.s32 0, %v1631
        %v1633 = vsel %vm1605, %v1632, %v1631
        %vm1634 = vcmp.lt.s32.totalorder %v1234, 0
        %v1635 = vsub.s32 0, %v1234
        %v1636 = vsel %vm1634, %v1635, %v1234
        %v1637 = vand.u32 %v1636, 65535
        %v1638 = vshrl.u32 %v1636, 16
        %v1640 = vmul.u32 %v1637, 14564
        %v1641 = vmul.u32 %v1637, 58254
        %v1642 = vmul.u32 %v1638, 14564
        %v1643 = vmul.u32 %v1638, 58254
        %v1644 = vshll.u32 %v1641, 16
        %v1645 = vshrl.u32 %v1641, 16
        %v1646 = vshll.u32 %v1642, 16
        %v1647 = vshrl.u32 %v1642, 16
        %vm1648 = vc.u32 %v1640, %v1644
        %v1649 = vsel %vm1648, 1, 0
        %v1650 = vadd.s32 %v1640, %v1644
        %v1651 = vadd.s32 %v1643, %v1649
        %vm1652 = vc.u32 %v1650, %v1646
        %v1653 = vsel %vm1652, 1, 0
        %v1654 = vadd.s32 %v1650, %v1646
        %v1655 = vadd.s32 %v1651, %v1653
        %v1656 = vadd.s32 %v1655, %v1645
        %v1657 = vadd.s32 %v1656, %v1647
        %v1658 = vshrl.u32 %v1657, 4
        %v1659 = vmul.u32 %v1658, 18
        %v1660 = vsub.s32 %v1636, %v1659
        %v1661 = vsub.s32 0, %v1660
        %v1662 = vsel %vm1634, %v1661, %v1660
        %vm1663 = vcmp.lt.s32.totalorder %v1235, 0
        %v1664 = vsub.s32 0, %v1235
        %v1665 = vsel %vm1663, %v1664, %v1235
        %v1666 = vand.u32 %v1665, 65535
        %v1667 = vshrl.u32 %v1665, 16
        %v1669 = vmul.u32 %v1666, 14564
        %v1670 = vmul.u32 %v1666, 58254
        %v1671 = vmul.u32 %v1667, 14564
        %v1672 = vmul.u32 %v1667, 58254
        %v1673 = vshll.u32 %v1670, 16
        %v1674 = vshrl.u32 %v1670, 16
        %v1675 = vshll.u32 %v1671, 16
        %v1676 = vshrl.u32 %v1671, 16
        %vm1677 = vc.u32 %v1669, %v1673
        %v1678 = vsel %vm1677, 1, 0
        %v1679 = vadd.s32 %v1669, %v1673
        %v1680 = vadd.s32 %v1672, %v1678
        %vm1681 = vc.u32 %v1679, %v1675
        %v1682 = vsel %vm1681, 1, 0
        %v1683 = vadd.s32 %v1679, %v1675
        %v1684 = vadd.s32 %v1680, %v1682
        %v1685 = vadd.s32 %v1684, %v1674
        %v1686 = vadd.s32 %v1685, %v1676
        %v1687 = vshrl.u32 %v1686, 4
        %v1688 = vmul.u32 %v1687, 18
        %v1689 = vsub.s32 %v1665, %v1688
        %v1690 = vsub.s32 0, %v1689
        %v1691 = vsel %vm1663, %v1690, %v1689
        %vm1692 = vcmp.lt.s32.totalorder %v1236, 0
        %v1693 = vsub.s32 0, %v1236
        %v1694 = vsel %vm1692, %v1693, %v1236
        %v1695 = vand.u32 %v1694, 65535
        %v1696 = vshrl.u32 %v1694, 16
        %v1698 = vmul.u32 %v1695, 14564
        %v1699 = vmul.u32 %v1695, 58254
        %v1700 = vmul.u32 %v1696, 14564
        %v1701 = vmul.u32 %v1696, 58254
        %v1702 = vshll.u32 %v1699, 16
        %v1703 = vshrl.u32 %v1699, 16
        %v1704 = vshll.u32 %v1700, 16
        %v1705 = vshrl.u32 %v1700, 16
        %vm1706 = vc.u32 %v1698, %v1702
        %v1707 = vsel %vm1706, 1, 0
        %v1708 = vadd.s32 %v1698, %v1702
        %v1709 = vadd.s32 %v1701, %v1707
        %vm1710 = vc.u32 %v1708, %v1704
        %v1711 = vsel %vm1710, 1, 0
        %v1712 = vadd.s32 %v1708, %v1704
        %v1713 = vadd.s32 %v1709, %v1711
        %v1714 = vadd.s32 %v1713, %v1703
        %v1715 = vadd.s32 %v1714, %v1705
        %v1716 = vshrl.u32 %v1715, 4
        %v1717 = vmul.u32 %v1716, 18
        %v1718 = vsub.s32 %v1694, %v1717
        %v1719 = vsub.s32 0, %v1718
        %v1720 = vsel %vm1692, %v1719, %v1718
        %vm1721 = vcmp.lt.s32.totalorder %v1237, 0
        %v1722 = vsub.s32 0, %v1237
        %v1723 = vsel %vm1721, %v1722, %v1237
        %v1724 = vand.u32 %v1723, 65535
        %v1725 = vshrl.u32 %v1723, 16
        %v1727 = vmul.u32 %v1724, 14564
        %v1728 = vmul.u32 %v1724, 58254
        %v1729 = vmul.u32 %v1725, 14564
        %v1730 = vmul.u32 %v1725, 58254
        %v1731 = vshll.u32 %v1728, 16
        %v1732 = vshrl.u32 %v1728, 16
        %v1733 = vshll.u32 %v1729, 16
        %v1734 = vshrl.u32 %v1729, 16
        %vm1735 = vc.u32 %v1727, %v1731
        %v1736 = vsel %vm1735, 1, 0
        %v1737 = vadd.s32 %v1727, %v1731
        %v1738 = vadd.s32 %v1730, %v1736
        %vm1739 = vc.u32 %v1737, %v1733
        %v1740 = vsel %vm1739, 1, 0
        %v1741 = vadd.s32 %v1737, %v1733
        %v1742 = vadd.s32 %v1738, %v1740
        %v1743 = vadd.s32 %v1742, %v1732
        %v1744 = vadd.s32 %v1743, %v1734
        %v1745 = vshrl.u32 %v1744, 4
        %v1746 = vmul.u32 %v1745, 18
        %v1747 = vsub.s32 %v1723, %v1746
        %v1748 = vsub.s32 0, %v1747
        %v1749 = vsel %vm1721, %v1748, %v1747
        %vm1750 = vcmp.lt.s32.totalorder %v1238, 0
        %v1751 = vsub.s32 0, %v1238
        %v1752 = vsel %vm1750, %v1751, %v1238
        %v1753 = vand.u32 %v1752, 65535
        %v1754 = vshrl.u32 %v1752, 16
        %v1756 = vmul.u32 %v1753, 14564
        %v1757 = vmul.u32 %v1753, 58254
        %v1758 = vmul.u32 %v1754, 14564
        %v1759 = vmul.u32 %v1754, 58254
        %v1760 = vshll.u32 %v1757, 16
        %v1761 = vshrl.u32 %v1757, 16
        %v1762 = vshll.u32 %v1758, 16
        %v1763 = vshrl.u32 %v1758, 16
        %vm1764 = vc.u32 %v1756, %v1760
        %v1765 = vsel %vm1764, 1, 0
        %v1766 = vadd.s32 %v1756, %v1760
        %v1767 = vadd.s32 %v1759, %v1765
        %vm1768 = vc.u32 %v1766, %v1762
        %v1769 = vsel %vm1768, 1, 0
        %v1770 = vadd.s32 %v1766, %v1762
        %v1771 = vadd.s32 %v1767, %v1769
        %v1772 = vadd.s32 %v1771, %v1761
        %v1773 = vadd.s32 %v1772, %v1763
        %v1774 = vshrl.u32 %v1773, 4
        %v1775 = vmul.u32 %v1774, 18
        %v1776 = vsub.s32 %v1752, %v1775
        %v1777 = vsub.s32 0, %v1776
        %v1778 = vsel %vm1750, %v1777, %v1776
        %vm1779 = vcmp.lt.s32.totalorder %v1239, 0
        %v1780 = vsub.s32 0, %v1239
        %v1781 = vsel %vm1779, %v1780, %v1239
        %v1782 = vand.u32 %v1781, 65535
        %v1783 = vshrl.u32 %v1781, 16
        %v1785 = vmul.u32 %v1782, 14564
        %v1786 = vmul.u32 %v1782, 58254
        %v1787 = vmul.u32 %v1783, 14564
        %v1788 = vmul.u32 %v1783, 58254
        %v1789 = vshll.u32 %v1786, 16
        %v1790 = vshrl.u32 %v1786, 16
        %v1791 = vshll.u32 %v1787, 16
        %v1792 = vshrl.u32 %v1787, 16
        %vm1793 = vc.u32 %v1785, %v1789
        %v1794 = vsel %vm1793, 1, 0
        %v1795 = vadd.s32 %v1785, %v1789
        %v1796 = vadd.s32 %v1788, %v1794
        %vm1797 = vc.u32 %v1795, %v1791
        %v1798 = vsel %vm1797, 1, 0
        %v1799 = vadd.s32 %v1795, %v1791
        %v1800 = vadd.s32 %v1796, %v1798
        %v1801 = vadd.s32 %v1800, %v1790
        %v1802 = vadd.s32 %v1801, %v1792
        %v1803 = vshrl.u32 %v1802, 4
        %v1804 = vmul.u32 %v1803, 18
        %v1805 = vsub.s32 %v1781, %v1804
        %v1806 = vsub.s32 0, %v1805
        %v1807 = vsel %vm1779, %v1806, %v1805
        %vm1808 = vcmp.lt.s32.totalorder %v1240, 0
        %v1809 = vsub.s32 0, %v1240
        %v1810 = vsel %vm1808, %v1809, %v1240
        %v1811 = vand.u32 %v1810, 65535
        %v1812 = vshrl.u32 %v1810, 16
        %v1814 = vmul.u32 %v1811, 14564
        %v1815 = vmul.u32 %v1811, 58254
        %v1816 = vmul.u32 %v1812, 14564
        %v1817 = vmul.u32 %v1812, 58254
        %v1818 = vshll.u32 %v1815, 16
        %v1819 = vshrl.u32 %v1815, 16
        %v1820 = vshll.u32 %v1816, 16
        %v1821 = vshrl.u32 %v1816, 16
        %vm1822 = vc.u32 %v1814, %v1818
        %v1823 = vsel %vm1822, 1, 0
        %v1824 = vadd.s32 %v1814, %v1818
        %v1825 = vadd.s32 %v1817, %v1823
        %vm1826 = vc.u32 %v1824, %v1820
        %v1827 = vsel %vm1826, 1, 0
        %v1828 = vadd.s32 %v1824, %v1820
        %v1829 = vadd.s32 %v1825, %v1827
        %v1830 = vadd.s32 %v1829, %v1819
        %v1831 = vadd.s32 %v1830, %v1821
        %v1832 = vshrl.u32 %v1831, 4
        %v1833 = vmul.u32 %v1832, 18
        %v1834 = vsub.s32 %v1810, %v1833
        %v1835 = vsub.s32 0, %v1834
        %v1836 = vsel %vm1808, %v1835, %v1834
        %vm1837 = vcmp.lt.s32.totalorder %v1241, 0
        %v1838 = vsub.s32 0, %v1241
        %v1839 = vsel %vm1837, %v1838, %v1241
        %v1840 = vand.u32 %v1839, 65535
        %v1841 = vshrl.u32 %v1839, 16
        %v1843 = vmul.u32 %v1840, 14564
        %v1844 = vmul.u32 %v1840, 58254
        %v1845 = vmul.u32 %v1841, 14564
        %v1846 = vmul.u32 %v1841, 58254
        %v1847 = vshll.u32 %v1844, 16
        %v1848 = vshrl.u32 %v1844, 16
        %v1849 = vshll.u32 %v1845, 16
        %v1850 = vshrl.u32 %v1845, 16
        %vm1851 = vc.u32 %v1843, %v1847
        %v1852 = vsel %vm1851, 1, 0
        %v1853 = vadd.s32 %v1843, %v1847
        %v1854 = vadd.s32 %v1846, %v1852
        %vm1855 = vc.u32 %v1853, %v1849
        %v1856 = vsel %vm1855, 1, 0
        %v1857 = vadd.s32 %v1853, %v1849
        %v1858 = vadd.s32 %v1854, %v1856
        %v1859 = vadd.s32 %v1858, %v1848
        %v1860 = vadd.s32 %v1859, %v1850
        %v1861 = vshrl.u32 %v1860, 4
        %v1862 = vmul.u32 %v1861, 18
        %v1863 = vsub.s32 %v1839, %v1862
        %v1864 = vsub.s32 0, %v1863
        %v1865 = vsel %vm1837, %v1864, %v1863
        %vm1866 = vcmp.lt.s32.totalorder %v1242, 0
        %v1867 = vsub.s32 0, %v1242
        %v1868 = vsel %vm1866, %v1867, %v1242
        %v1869 = vand.u32 %v1868, 65535
        %v1870 = vshrl.u32 %v1868, 16
        %v1872 = vmul.u32 %v1869, 14564
        %v1873 = vmul.u32 %v1869, 58254
        %v1874 = vmul.u32 %v1870, 14564
        %v1875 = vmul.u32 %v1870, 58254
        %v1876 = vshll.u32 %v1873, 16
        %v1877 = vshrl.u32 %v1873, 16
        %v1878 = vshll.u32 %v1874, 16
        %v1879 = vshrl.u32 %v1874, 16
        %vm1880 = vc.u32 %v1872, %v1876
        %v1881 = vsel %vm1880, 1, 0
        %v1882 = vadd.s32 %v1872, %v1876
        %v1883 = vadd.s32 %v1875, %v1881
        %vm1884 = vc.u32 %v1882, %v1878
        %v1885 = vsel %vm1884, 1, 0
        %v1886 = vadd.s32 %v1882, %v1878
        %v1887 = vadd.s32 %v1883, %v1885
        %v1888 = vadd.s32 %v1887, %v1877
        %v1889 = vadd.s32 %v1888, %v1879
        %v1890 = vshrl.u32 %v1889, 4
        %v1891 = vmul.u32 %v1890, 18
        %v1892 = vsub.s32 %v1868, %v1891
        %v1893 = vsub.s32 0, %v1892
        %v1894 = vsel %vm1866, %v1893, %v1892
        %vm1895 = vcmp.lt.s32.totalorder %v1243, 0
        %v1896 = vsub.s32 0, %v1243
        %v1897 = vsel %vm1895, %v1896, %v1243
        %v1898 = vand.u32 %v1897, 65535
        %v1899 = vshrl.u32 %v1897, 16
        %v1901 = vmul.u32 %v1898, 14564
        %v1902 = vmul.u32 %v1898, 58254
        %v1903 = vmul.u32 %v1899, 14564
        %v1904 = vmul.u32 %v1899, 58254
        %v1905 = vshll.u32 %v1902, 16
        %v1906 = vshrl.u32 %v1902, 16
        %v1907 = vshll.u32 %v1903, 16
        %v1908 = vshrl.u32 %v1903, 16
        %vm1909 = vc.u32 %v1901, %v1905
        %v1910 = vsel %vm1909, 1, 0
        %v1911 = vadd.s32 %v1901, %v1905
        %v1912 = vadd.s32 %v1904, %v1910
        %vm1913 = vc.u32 %v1911, %v1907
        %v1914 = vsel %vm1913, 1, 0
        %v1915 = vadd.s32 %v1911, %v1907
        %v1916 = vadd.s32 %v1912, %v1914
        %v1917 = vadd.s32 %v1916, %v1906
        %v1918 = vadd.s32 %v1917, %v1908
        %v1919 = vshrl.u32 %v1918, 4
        %v1920 = vmul.u32 %v1919, 18
        %v1921 = vsub.s32 %v1897, %v1920
        %v1922 = vsub.s32 0, %v1921
        %v1923 = vsel %vm1895, %v1922, %v1921
        %vm1924 = vcmp.lt.s32.totalorder %v1244, 0
        %v1925 = vsub.s32 0, %v1244
        %v1926 = vsel %vm1924, %v1925, %v1244
        %v1927 = vand.u32 %v1926, 65535
        %v1928 = vshrl.u32 %v1926, 16
        %v1930 = vmul.u32 %v1927, 14564
        %v1931 = vmul.u32 %v1927, 58254
        %v1932 = vmul.u32 %v1928, 14564
        %v1933 = vmul.u32 %v1928, 58254
        %v1934 = vshll.u32 %v1931, 16
        %v1935 = vshrl.u32 %v1931, 16
        %v1936 = vshll.u32 %v1932, 16
        %v1937 = vshrl.u32 %v1932, 16
        %vm1938 = vc.u32 %v1930, %v1934
        %v1939 = vsel %vm1938, 1, 0
        %v1940 = vadd.s32 %v1930, %v1934
        %v1941 = vadd.s32 %v1933, %v1939
        %vm1942 = vc.u32 %v1940, %v1936
        %v1943 = vsel %vm1942, 1, 0
        %v1944 = vadd.s32 %v1940, %v1936
        %v1945 = vadd.s32 %v1941, %v1943
        %v1946 = vadd.s32 %v1945, %v1935
        %v1947 = vadd.s32 %v1946, %v1937
        %v1948 = vshrl.u32 %v1947, 4
        %v1949 = vmul.u32 %v1948, 18
        %v1950 = vsub.s32 %v1926, %v1949
        %v1951 = vsub.s32 0, %v1950
        %v1952 = vsel %vm1924, %v1951, %v1950
        %vm1953 = vcmp.lt.s32.totalorder %v1245, 0
        %v1954 = vsub.s32 0, %v1245
        %v1955 = vsel %vm1953, %v1954, %v1245
        %v1956 = vand.u32 %v1955, 65535
        %v1957 = vshrl.u32 %v1955, 16
        %v1959 = vmul.u32 %v1956, 14564
        %v1960 = vmul.u32 %v1956, 58254
        %v1961 = vmul.u32 %v1957, 14564
        %v1962 = vmul.u32 %v1957, 58254
        %v1963 = vshll.u32 %v1960, 16
        %v1964 = vshrl.u32 %v1960, 16
        %v1965 = vshll.u32 %v1961, 16
        %v1966 = vshrl.u32 %v1961, 16
        %vm1967 = vc.u32 %v1959, %v1963
        %v1968 = vsel %vm1967, 1, 0
        %v1969 = vadd.s32 %v1959, %v1963
        %v1970 = vadd.s32 %v1962, %v1968
        %vm1971 = vc.u32 %v1969, %v1965
        %v1972 = vsel %vm1971, 1, 0
        %v1973 = vadd.s32 %v1969, %v1965
        %v1974 = vadd.s32 %v1970, %v1972
        %v1975 = vadd.s32 %v1974, %v1964
        %v1976 = vadd.s32 %v1975, %v1966
        %v1977 = vshrl.u32 %v1976, 4
        %v1978 = vmul.u32 %v1977, 18
        %v1979 = vsub.s32 %v1955, %v1978
        %v1980 = vsub.s32 0, %v1979
        %v1981 = vsel %vm1953, %v1980, %v1979
        %vm1982 = vcmp.lt.s32.totalorder %v1246, 0
        %v1983 = vsub.s32 0, %v1246
        %v1984 = vsel %vm1982, %v1983, %v1246
        %v1985 = vand.u32 %v1984, 65535
        %v1986 = vshrl.u32 %v1984, 16
        %v1988 = vmul.u32 %v1985, 14564
        %v1989 = vmul.u32 %v1985, 58254
        %v1990 = vmul.u32 %v1986, 14564
        %v1991 = vmul.u32 %v1986, 58254
        %v1992 = vshll.u32 %v1989, 16
        %v1993 = vshrl.u32 %v1989, 16
        %v1994 = vshll.u32 %v1990, 16
        %v1995 = vshrl.u32 %v1990, 16
        %vm1996 = vc.u32 %v1988, %v1992
        %v1997 = vsel %vm1996, 1, 0
        %v1998 = vadd.s32 %v1988, %v1992
        %v1999 = vadd.s32 %v1991, %v1997
        %vm2000 = vc.u32 %v1998, %v1994
        %v2001 = vsel %vm2000, 1, 0
        %v2002 = vadd.s32 %v1998, %v1994
        %v2003 = vadd.s32 %v1999, %v2001
        %v2004 = vadd.s32 %v2003, %v1993
        %v2005 = vadd.s32 %v2004, %v1995
        %v2006 = vshrl.u32 %v2005, 4
        %v2007 = vmul.u32 %v2006, 18
        %v2008 = vsub.s32 %v1984, %v2007
        %v2009 = vsub.s32 0, %v2008
        %v2010 = vsel %vm1982, %v2009, %v2008
        %vm2011 = vcmp.lt.s32.totalorder %v1247, 0
        %v2012 = vsub.s32 0, %v1247
        %v2013 = vsel %vm2011, %v2012, %v1247
        %v2014 = vand.u32 %v2013, 65535
        %v2015 = vshrl.u32 %v2013, 16
        %v2017 = vmul.u32 %v2014, 14564
        %v2018 = vmul.u32 %v2014, 58254
        %v2019 = vmul.u32 %v2015, 14564
        %v2020 = vmul.u32 %v2015, 58254
        %v2021 = vshll.u32 %v2018, 16
        %v2022 = vshrl.u32 %v2018, 16
        %v2023 = vshll.u32 %v2019, 16
        %v2024 = vshrl.u32 %v2019, 16
        %vm2025 = vc.u32 %v2017, %v2021
        %v2026 = vsel %vm2025, 1, 0
        %v2027 = vadd.s32 %v2017, %v2021
        %v2028 = vadd.s32 %v2020, %v2026
        %vm2029 = vc.u32 %v2027, %v2023
        %v2030 = vsel %vm2029, 1, 0
        %v2031 = vadd.s32 %v2027, %v2023
        %v2032 = vadd.s32 %v2028, %v2030
        %v2033 = vadd.s32 %v2032, %v2022
        %v2034 = vadd.s32 %v2033, %v2024
        %v2035 = vshrl.u32 %v2034, 4
        %v2036 = vmul.u32 %v2035, 18
        %v2037 = vsub.s32 %v2013, %v2036
        %v2038 = vsub.s32 0, %v2037
        %v2039 = vsel %vm2011, %v2038, %v2037
        %vm2040 = vcmp.lt.s32.totalorder %v1248, 0
        %v2041 = vsub.s32 0, %v1248
        %v2042 = vsel %vm2040, %v2041, %v1248
        %v2043 = vand.u32 %v2042, 65535
        %v2044 = vshrl.u32 %v2042, 16
        %v2046 = vmul.u32 %v2043, 14564
        %v2047 = vmul.u32 %v2043, 58254
        %v2048 = vmul.u32 %v2044, 14564
        %v2049 = vmul.u32 %v2044, 58254
        %v2050 = vshll.u32 %v2047, 16
        %v2051 = vshrl.u32 %v2047, 16
        %v2052 = vshll.u32 %v2048, 16
        %v2053 = vshrl.u32 %v2048, 16
        %vm2054 = vc.u32 %v2046, %v2050
        %v2055 = vsel %vm2054, 1, 0
        %v2056 = vadd.s32 %v2046, %v2050
        %v2057 = vadd.s32 %v2049, %v2055
        %vm2058 = vc.u32 %v2056, %v2052
        %v2059 = vsel %vm2058, 1, 0
        %v2060 = vadd.s32 %v2056, %v2052
        %v2061 = vadd.s32 %v2057, %v2059
        %v2062 = vadd.s32 %v2061, %v2051
        %v2063 = vadd.s32 %v2062, %v2053
        %v2064 = vshrl.u32 %v2063, 4
        %v2065 = vmul.u32 %v2064, 18
        %v2066 = vsub.s32 %v2042, %v2065
        %v2067 = vsub.s32 0, %v2066
        %v2068 = vsel %vm2040, %v2067, %v2066
        %vm2069 = vcmp.lt.s32.totalorder %v1249, 0
        %v2070 = vsub.s32 0, %v1249
        %v2071 = vsel %vm2069, %v2070, %v1249
        %v2072 = vand.u32 %v2071, 65535
        %v2073 = vshrl.u32 %v2071, 16
        %v2075 = vmul.u32 %v2072, 14564
        %v2076 = vmul.u32 %v2072, 58254
        %v2077 = vmul.u32 %v2073, 14564
        %v2078 = vmul.u32 %v2073, 58254
        %v2079 = vshll.u32 %v2076, 16
        %v2080 = vshrl.u32 %v2076, 16
        %v2081 = vshll.u32 %v2077, 16
        %v2082 = vshrl.u32 %v2077, 16
        %vm2083 = vc.u32 %v2075, %v2079
        %v2084 = vsel %vm2083, 1, 0
        %v2085 = vadd.s32 %v2075, %v2079
        %v2086 = vadd.s32 %v2078, %v2084
        %vm2087 = vc.u32 %v2085, %v2081
        %v2088 = vsel %vm2087, 1, 0
        %v2089 = vadd.s32 %v2085, %v2081
        %v2090 = vadd.s32 %v2086, %v2088
        %v2091 = vadd.s32 %v2090, %v2080
        %v2092 = vadd.s32 %v2091, %v2082
        %v2093 = vshrl.u32 %v2092, 4
        %v2094 = vmul.u32 %v2093, 18
        %v2095 = vsub.s32 %v2071, %v2094
        %v2096 = vsub.s32 0, %v2095
        %v2097 = vsel %vm2069, %v2096, %v2095
        %vm2098 = vcmp.lt.s32.totalorder %v1250, 0
        %v2099 = vsub.s32 0, %v1250
        %v2100 = vsel %vm2098, %v2099, %v1250
        %v2101 = vand.u32 %v2100, 65535
        %v2102 = vshrl.u32 %v2100, 16
        %v2104 = vmul.u32 %v2101, 14564
        %v2105 = vmul.u32 %v2101, 58254
        %v2106 = vmul.u32 %v2102, 14564
        %v2107 = vmul.u32 %v2102, 58254
        %v2108 = vshll.u32 %v2105, 16
        %v2109 = vshrl.u32 %v2105, 16
        %v2110 = vshll.u32 %v2106, 16
        %v2111 = vshrl.u32 %v2106, 16
        %vm2112 = vc.u32 %v2104, %v2108
        %v2113 = vsel %vm2112, 1, 0
        %v2114 = vadd.s32 %v2104, %v2108
        %v2115 = vadd.s32 %v2107, %v2113
        %vm2116 = vc.u32 %v2114, %v2110
        %v2117 = vsel %vm2116, 1, 0
        %v2118 = vadd.s32 %v2114, %v2110
        %v2119 = vadd.s32 %v2115, %v2117
        %v2120 = vadd.s32 %v2119, %v2109
        %v2121 = vadd.s32 %v2120, %v2111
        %v2122 = vshrl.u32 %v2121, 4
        %v2123 = vmul.u32 %v2122, 18
        %v2124 = vsub.s32 %v2100, %v2123
        %v2125 = vsub.s32 0, %v2124
        %v2126 = vsel %vm2098, %v2125, %v2124
        %vm2127 = vcmp.lt.s32.totalorder %v1251, 0
        %v2128 = vsub.s32 0, %v1251
        %v2129 = vsel %vm2127, %v2128, %v1251
        %v2130 = vand.u32 %v2129, 65535
        %v2131 = vshrl.u32 %v2129, 16
        %v2133 = vmul.u32 %v2130, 14564
        %v2134 = vmul.u32 %v2130, 58254
        %v2135 = vmul.u32 %v2131, 14564
        %v2136 = vmul.u32 %v2131, 58254
        %v2137 = vshll.u32 %v2134, 16
        %v2138 = vshrl.u32 %v2134, 16
        %v2139 = vshll.u32 %v2135, 16
        %v2140 = vshrl.u32 %v2135, 16
        %vm2141 = vc.u32 %v2133, %v2137
        %v2142 = vsel %vm2141, 1, 0
        %v2143 = vadd.s32 %v2133, %v2137
        %v2144 = vadd.s32 %v2136, %v2142
        %vm2145 = vc.u32 %v2143, %v2139
        %v2146 = vsel %vm2145, 1, 0
        %v2147 = vadd.s32 %v2143, %v2139
        %v2148 = vadd.s32 %v2144, %v2146
        %v2149 = vadd.s32 %v2148, %v2138
        %v2150 = vadd.s32 %v2149, %v2140
        %v2151 = vshrl.u32 %v2150, 4
        %v2152 = vmul.u32 %v2151, 18
        %v2153 = vsub.s32 %v2129, %v2152
        %v2154 = vsub.s32 0, %v2153
        %v2155 = vsel %vm2127, %v2154, %v2153
        %vm2156 = vcmp.lt.s32.totalorder %v1252, 0
        %v2157 = vsub.s32 0, %v1252
        %v2158 = vsel %vm2156, %v2157, %v1252
        %v2159 = vand.u32 %v2158, 65535
        %v2160 = vshrl.u32 %v2158, 16
        %v2162 = vmul.u32 %v2159, 14564
        %v2163 = vmul.u32 %v2159, 58254
        %v2164 = vmul.u32 %v2160, 14564
        %v2165 = vmul.u32 %v2160, 58254
        %v2166 = vshll.u32 %v2163, 16
        %v2167 = vshrl.u32 %v2163, 16
        %v2168 = vshll.u32 %v2164, 16
        %v2169 = vshrl.u32 %v2164, 16
        %vm2170 = vc.u32 %v2162, %v2166
        %v2171 = vsel %vm2170, 1, 0
        %v2172 = vadd.s32 %v2162, %v2166
        %v2173 = vadd.s32 %v2165, %v2171
        %vm2174 = vc.u32 %v2172, %v2168
        %v2175 = vsel %vm2174, 1, 0
        %v2176 = vadd.s32 %v2172, %v2168
        %v2177 = vadd.s32 %v2173, %v2175
        %v2178 = vadd.s32 %v2177, %v2167
        %v2179 = vadd.s32 %v2178, %v2169
        %v2180 = vshrl.u32 %v2179, 4
        %v2181 = vmul.u32 %v2180, 18
        %v2182 = vsub.s32 %v2158, %v2181
        %v2183 = vsub.s32 0, %v2182
        %v2184 = vsel %vm2156, %v2183, %v2182
        %vm2185 = vcmp.lt.s32.totalorder %v1253, 0
        %v2186 = vsub.s32 0, %v1253
        %v2187 = vsel %vm2185, %v2186, %v1253
        %v2188 = vand.u32 %v2187, 65535
        %v2189 = vshrl.u32 %v2187, 16
        %v2191 = vmul.u32 %v2188, 14564
        %v2192 = vmul.u32 %v2188, 58254
        %v2193 = vmul.u32 %v2189, 14564
        %v2194 = vmul.u32 %v2189, 58254
        %v2195 = vshll.u32 %v2192, 16
        %v2196 = vshrl.u32 %v2192, 16
        %v2197 = vshll.u32 %v2193, 16
        %v2198 = vshrl.u32 %v2193, 16
        %vm2199 = vc.u32 %v2191, %v2195
        %v2200 = vsel %vm2199, 1, 0
        %v2201 = vadd.s32 %v2191, %v2195
        %v2202 = vadd.s32 %v2194, %v2200
        %vm2203 = vc.u32 %v2201, %v2197
        %v2204 = vsel %vm2203, 1, 0
        %v2205 = vadd.s32 %v2201, %v2197
        %v2206 = vadd.s32 %v2202, %v2204
        %v2207 = vadd.s32 %v2206, %v2196
        %v2208 = vadd.s32 %v2207, %v2198
        %v2209 = vshrl.u32 %v2208, 4
        %v2210 = vmul.u32 %v2209, 18
        %v2211 = vsub.s32 %v2187, %v2210
        %v2212 = vsub.s32 0, %v2211
        %v2213 = vsel %vm2185, %v2212, %v2211
        %vm2214 = vcmp.lt.s32.totalorder %v1254, 0
        %v2215 = vsub.s32 0, %v1254
        %v2216 = vsel %vm2214, %v2215, %v1254
        %v2217 = vand.u32 %v2216, 65535
        %v2218 = vshrl.u32 %v2216, 16
        %v2220 = vmul.u32 %v2217, 14564
        %v2221 = vmul.u32 %v2217, 58254
        %v2222 = vmul.u32 %v2218, 14564
        %v2223 = vmul.u32 %v2218, 58254
        %v2224 = vshll.u32 %v2221, 16
        %v2225 = vshrl.u32 %v2221, 16
        %v2226 = vshll.u32 %v2222, 16
        %v2227 = vshrl.u32 %v2222, 16
        %vm2228 = vc.u32 %v2220, %v2224
        %v2229 = vsel %vm2228, 1, 0
        %v2230 = vadd.s32 %v2220, %v2224
        %v2231 = vadd.s32 %v2223, %v2229
        %vm2232 = vc.u32 %v2230, %v2226
        %v2233 = vsel %vm2232, 1, 0
        %v2234 = vadd.s32 %v2230, %v2226
        %v2235 = vadd.s32 %v2231, %v2233
        %v2236 = vadd.s32 %v2235, %v2225
        %v2237 = vadd.s32 %v2236, %v2227
        %v2238 = vshrl.u32 %v2237, 4
        %v2239 = vmul.u32 %v2238, 18
        %v2240 = vsub.s32 %v2216, %v2239
        %v2241 = vsub.s32 0, %v2240
        %v2242 = vsel %vm2214, %v2241, %v2240
        %vm2243 = vcmp.lt.s32.totalorder %v1255, 0
        %v2244 = vsub.s32 0, %v1255
        %v2245 = vsel %vm2243, %v2244, %v1255
        %v2246 = vand.u32 %v2245, 65535
        %v2247 = vshrl.u32 %v2245, 16
        %v2249 = vmul.u32 %v2246, 14564
        %v2250 = vmul.u32 %v2246, 58254
        %v2251 = vmul.u32 %v2247, 14564
        %v2252 = vmul.u32 %v2247, 58254
        %v2253 = vshll.u32 %v2250, 16
        %v2254 = vshrl.u32 %v2250, 16
        %v2255 = vshll.u32 %v2251, 16
        %v2256 = vshrl.u32 %v2251, 16
        %vm2257 = vc.u32 %v2249, %v2253
        %v2258 = vsel %vm2257, 1, 0
        %v2259 = vadd.s32 %v2249, %v2253
        %v2260 = vadd.s32 %v2252, %v2258
        %vm2261 = vc.u32 %v2259, %v2255
        %v2262 = vsel %vm2261, 1, 0
        %v2263 = vadd.s32 %v2259, %v2255
        %v2264 = vadd.s32 %v2260, %v2262
        %v2265 = vadd.s32 %v2264, %v2254
        %v2266 = vadd.s32 %v2265, %v2256
        %v2267 = vshrl.u32 %v2266, 4
        %v2268 = vmul.u32 %v2267, 18
        %v2269 = vsub.s32 %v2245, %v2268
        %v2270 = vsub.s32 0, %v2269
        %v2271 = vsel %vm2243, %v2270, %v2269
        %vm2272 = vcmp.lt.s32.totalorder %v1256, 0
        %v2273 = vsub.s32 0, %v1256
        %v2274 = vsel %vm2272, %v2273, %v1256
        %v2275 = vand.u32 %v2274, 65535
        %v2276 = vshrl.u32 %v2274, 16
        %v2278 = vmul.u32 %v2275, 14564
        %v2279 = vmul.u32 %v2275, 58254
        %v2280 = vmul.u32 %v2276, 14564
        %v2281 = vmul.u32 %v2276, 58254
        %v2282 = vshll.u32 %v2279, 16
        %v2283 = vshrl.u32 %v2279, 16
        %v2284 = vshll.u32 %v2280, 16
        %v2285 = vshrl.u32 %v2280, 16
        %vm2286 = vc.u32 %v2278, %v2282
        %v2287 = vsel %vm2286, 1, 0
        %v2288 = vadd.s32 %v2278, %v2282
        %v2289 = vadd.s32 %v2281, %v2287
        %vm2290 = vc.u32 %v2288, %v2284
        %v2291 = vsel %vm2290, 1, 0
        %v2292 = vadd.s32 %v2288, %v2284
        %v2293 = vadd.s32 %v2289, %v2291
        %v2294 = vadd.s32 %v2293, %v2283
        %v2295 = vadd.s32 %v2294, %v2285
        %v2296 = vshrl.u32 %v2295, 4
        %v2297 = vmul.u32 %v2296, 18
        %v2298 = vsub.s32 %v2274, %v2297
        %v2299 = vsub.s32 0, %v2298
        %v2300 = vsel %vm2272, %v2299, %v2298
        %vm2301 = vcmp.ne.s32.totalorder %v1285, 0
        %vm2302 = vcmp.ne.s32.totalorder %v1314, 0
        %vm2303 = vcmp.ne.s32.totalorder %v1343, 0
        %vm2304 = vcmp.ne.s32.totalorder %v1372, 0
        %vm2305 = vcmp.ne.s32.totalorder %v1401, 0
        %vm2306 = vcmp.ne.s32.totalorder %v1430, 0
        %vm2307 = vcmp.ne.s32.totalorder %v1459, 0
        %vm2308 = vcmp.ne.s32.totalorder %v1488, 0
        %vm2309 = vcmp.ne.s32.totalorder %v1517, 0
        %vm2310 = vcmp.ne.s32.totalorder %v1546, 0
        %vm2311 = vcmp.ne.s32.totalorder %v1575, 0
        %vm2312 = vcmp.ne.s32.totalorder %v1604, 0
        %vm2313 = vcmp.ne.s32.totalorder %v1633, 0
        %vm2314 = vcmp.ne.s32.totalorder %v1662, 0
        %vm2315 = vcmp.ne.s32.totalorder %v1691, 0
        %vm2316 = vcmp.ne.s32.totalorder %v1720, 0
        %vm2317 = vcmp.ne.s32.totalorder %v1749, 0
        %vm2318 = vcmp.ne.s32.totalorder %v1778, 0
        %vm2319 = vcmp.ne.s32.totalorder %v1807, 0
        %vm2320 = vcmp.ne.s32.totalorder %v1836, 0
        %vm2321 = vcmp.ne.s32.totalorder %v1865, 0
        %vm2322 = vcmp.ne.s32.totalorder %v1894, 0
        %vm2323 = vcmp.ne.s32.totalorder %v1923, 0
        %vm2324 = vcmp.ne.s32.totalorder %v1952, 0
        %vm2325 = vcmp.ne.s32.totalorder %v1981, 0
        %vm2326 = vcmp.ne.s32.totalorder %v2010, 0
        %vm2327 = vcmp.ne.s32.totalorder %v2039, 0
        %vm2328 = vcmp.ne.s32.totalorder %v2068, 0
        %vm2329 = vcmp.ne.s32.totalorder %v2097, 0
        %vm2330 = vcmp.ne.s32.totalorder %v2126, 0
        %vm2331 = vcmp.ne.s32.totalorder %v2155, 0
        %vm2332 = vcmp.ne.s32.totalorder %v2184, 0
        %vm2333 = vcmp.ne.s32.totalorder %v2213, 0
        %vm2334 = vcmp.ne.s32.totalorder %v2242, 0
        %vm2335 = vcmp.ne.s32.totalorder %v2271, 0
        %vm2336 = vcmp.ne.s32.totalorder %v2300, 0
        %vm2337 = vcmp.lt.s32.totalorder %v1285, 0
        %vm2338 = vcmp.lt.s32.totalorder %v1314, 0
        %vm2339 = vcmp.lt.s32.totalorder %v1343, 0
        %vm2340 = vcmp.lt.s32.totalorder %v1372, 0
        %vm2341 = vcmp.lt.s32.totalorder %v1401, 0
        %vm2342 = vcmp.lt.s32.totalorder %v1430, 0
        %vm2343 = vcmp.lt.s32.totalorder %v1459, 0
        %vm2344 = vcmp.lt.s32.totalorder %v1488, 0
        %vm2345 = vcmp.lt.s32.totalorder %v1517, 0
        %vm2346 = vcmp.lt.s32.totalorder %v1546, 0
        %vm2347 = vcmp.lt.s32.totalorder %v1575, 0
        %vm2348 = vcmp.lt.s32.totalorder %v1604, 0
        %vm2349 = vcmp.lt.s32.totalorder %v1633, 0
        %vm2350 = vcmp.lt.s32.totalorder %v1662, 0
        %vm2351 = vcmp.lt.s32.totalorder %v1691, 0
        %vm2352 = vcmp.lt.s32.totalorder %v1720, 0
        %vm2353 = vcmp.lt.s32.totalorder %v1749, 0
        %vm2354 = vcmp.lt.s32.totalorder %v1778, 0
        %vm2355 = vcmp.lt.s32.totalorder %v1807, 0
        %vm2356 = vcmp.lt.s32.totalorder %v1836, 0
        %vm2357 = vcmp.lt.s32.totalorder %v1865, 0
        %vm2358 = vcmp.lt.s32.totalorder %v1894, 0
        %vm2359 = vcmp.lt.s32.totalorder %v1923, 0
        %vm2360 = vcmp.lt.s32.totalorder %v1952, 0
        %vm2361 = vcmp.lt.s32.totalorder %v1981, 0
        %vm2362 = vcmp.lt.s32.totalorder %v2010, 0
        %vm2363 = vcmp.lt.s32.totalorder %v2039, 0
        %vm2364 = vcmp.lt.s32.totalorder %v2068, 0
        %vm2365 = vcmp.lt.s32.totalorder %v2097, 0
        %vm2366 = vcmp.lt.s32.totalorder %v2126, 0
        %vm2367 = vcmp.lt.s32.totalorder %v2155, 0
        %vm2368 = vcmp.lt.s32.totalorder %v2184, 0
        %vm2369 = vcmp.lt.s32.totalorder %v2213, 0
        %vm2370 = vcmp.lt.s32.totalorder %v2242, 0
        %vm2371 = vcmp.lt.s32.totalorder %v2271, 0
        %vm2372 = vcmp.lt.s32.totalorder %v2300, 0
        %vm2373 = vmand %vm2337, %vm2301
        %vm2374 = vmand %vm2338, %vm2302
        %vm2375 = vmand %vm2339, %vm2303
        %vm2376 = vmand %vm2340, %vm2304
        %vm2377 = vmand %vm2341, %vm2305
        %vm2378 = vmand %vm2342, %vm2306
        %vm2379 = vmand %vm2343, %vm2307
        %vm2380 = vmand %vm2344, %vm2308
        %vm2381 = vmand %vm2345, %vm2309
        %vm2382 = vmand %vm2346, %vm2310
        %vm2383 = vmand %vm2347, %vm2311
        %vm2384 = vmand %vm2348, %vm2312
        %vm2385 = vmand %vm2349, %vm2313
        %vm2386 = vmand %vm2350, %vm2314
        %vm2387 = vmand %vm2351, %vm2315
        %vm2388 = vmand %vm2352, %vm2316
        %vm2389 = vmand %vm2353, %vm2317
        %vm2390 = vmand %vm2354, %vm2318
        %vm2391 = vmand %vm2355, %vm2319
        %vm2392 = vmand %vm2356, %vm2320
        %vm2393 = vmand %vm2357, %vm2321
        %vm2394 = vmand %vm2358, %vm2322
        %vm2395 = vmand %vm2359, %vm2323
        %vm2396 = vmand %vm2360, %vm2324
        %vm2397 = vmand %vm2361, %vm2325
        %vm2398 = vmand %vm2362, %vm2326
        %vm2399 = vmand %vm2363, %vm2327
        %vm2400 = vmand %vm2364, %vm2328
        %vm2401 = vmand %vm2365, %vm2329
        %vm2402 = vmand %vm2366, %vm2330
        %vm2403 = vmand %vm2367, %vm2331
        %vm2404 = vmand %vm2368, %vm2332
        %vm2405 = vmand %vm2369, %vm2333
        %vm2406 = vmand %vm2370, %vm2334
        %vm2407 = vmand %vm2371, %vm2335
        %vm2408 = vmand %vm2372, %vm2336
        %v2409 = vadd.s32 %v1285, 18
        %v2410 = vadd.s32 %v1314, 18
        %v2411 = vadd.s32 %v1343, 18
        %v2412 = vadd.s32 %v1372, 18
        %v2413 = vadd.s32 %v1401, 18
        %v2414 = vadd.s32 %v1430, 18
        %v2415 = vadd.s32 %v1459, 18
        %v2416 = vadd.s32 %v1488, 18
        %v2417 = vadd.s32 %v1517, 18
        %v2418 = vadd.s32 %v1546, 18
        %v2419 = vadd.s32 %v1575, 18
        %v2420 = vadd.s32 %v1604, 18
        %v2421 = vadd.s32 %v1633, 18
        %v2422 = vadd.s32 %v1662, 18
        %v2423 = vadd.s32 %v1691, 18
        %v2424 = vadd.s32 %v1720, 18
        %v2425 = vadd.s32 %v1749, 18
        %v2426 = vadd.s32 %v1778, 18
        %v2427 = vadd.s32 %v1807, 18
        %v2428 = vadd.s32 %v1836, 18
        %v2429 = vadd.s32 %v1865, 18
        %v2430 = vadd.s32 %v1894, 18
        %v2431 = vadd.s32 %v1923, 18
        %v2432 = vadd.s32 %v1952, 18
        %v2433 = vadd.s32 %v1981, 18
        %v2434 = vadd.s32 %v2010, 18
        %v2435 = vadd.s32 %v2039, 18
        %v2436 = vadd.s32 %v2068, 18
        %v2437 = vadd.s32 %v2097, 18
        %v2438 = vadd.s32 %v2126, 18
        %v2439 = vadd.s32 %v2155, 18
        %v2440 = vadd.s32 %v2184, 18
        %v2441 = vadd.s32 %v2213, 18
        %v2442 = vadd.s32 %v2242, 18
        %v2443 = vadd.s32 %v2271, 18
        %v2444 = vadd.s32 %v2300, 18
        %v2445 = vsel %vm2373, %v2409, %v1285
        %v2446 = vsel %vm2374, %v2410, %v1314
        %v2447 = vsel %vm2375, %v2411, %v1343
        %v2448 = vsel %vm2376, %v2412, %v1372
        %v2449 = vsel %vm2377, %v2413, %v1401
        %v2450 = vsel %vm2378, %v2414, %v1430
        %v2451 = vsel %vm2379, %v2415, %v1459
        %v2452 = vsel %vm2380, %v2416, %v1488
        %v2453 = vsel %vm2381, %v2417, %v1517
        %v2454 = vsel %vm2382, %v2418, %v1546
        %v2455 = vsel %vm2383, %v2419, %v1575
        %v2456 = vsel %vm2384, %v2420, %v1604
        %v2457 = vsel %vm2385, %v2421, %v1633
        %v2458 = vsel %vm2386, %v2422, %v1662
        %v2459 = vsel %vm2387, %v2423, %v1691
        %v2460 = vsel %vm2388, %v2424, %v1720
        %v2461 = vsel %vm2389, %v2425, %v1749
        %v2462 = vsel %vm2390, %v2426, %v1778
        %v2463 = vsel %vm2391, %v2427, %v1807
        %v2464 = vsel %vm2392, %v2428, %v1836
        %v2465 = vsel %vm2393, %v2429, %v1865
        %v2466 = vsel %vm2394, %v2430, %v1894
        %v2467 = vsel %vm2395, %v2431, %v1923
        %v2468 = vsel %vm2396, %v2432, %v1952
        %v2469 = vsel %vm2397, %v2433, %v1981
        %v2470 = vsel %vm2398, %v2434, %v2010
        %v2471 = vsel %vm2399, %v2435, %v2039
        %v2472 = vsel %vm2400, %v2436, %v2068
        %v2473 = vsel %vm2401, %v2437, %v2097
        %v2474 = vsel %vm2402, %v2438, %v2126
        %v2475 = vsel %vm2403, %v2439, %v2155
        %v2476 = vsel %vm2404, %v2440, %v2184
        %v2477 = vsel %vm2405, %v2441, %v2213
        %v2478 = vsel %vm2406, %v2442, %v2242
        %v2479 = vsel %vm2407, %v2443, %v2271
        %v2480 = vsel %vm2408, %v2444, %v2300
        %vm2481 = vcmp.lt.s32.totalorder %v2445, 16
        %vm2482 = vcmp.lt.s32.totalorder %v2446, 16
        %vm2483 = vcmp.lt.s32.totalorder %v2447, 16
        %vm2484 = vcmp.lt.s32.totalorder %v2448, 16
        %vm2485 = vcmp.lt.s32.totalorder %v2449, 16
        %vm2486 = vcmp.lt.s32.totalorder %v2450, 16
        %vm2487 = vcmp.lt.s32.totalorder %v2451, 16
        %vm2488 = vcmp.lt.s32.totalorder %v2452, 16
        %vm2489 = vcmp.lt.s32.totalorder %v2453, 16
        %vm2490 = vcmp.lt.s32.totalorder %v2454, 16
        %vm2491 = vcmp.lt.s32.totalorder %v2455, 16
        %vm2492 = vcmp.lt.s32.totalorder %v2456, 16
        %vm2493 = vcmp.lt.s32.totalorder %v2457, 16
        %vm2494 = vcmp.lt.s32.totalorder %v2458, 16
        %vm2495 = vcmp.lt.s32.totalorder %v2459, 16
        %vm2496 = vcmp.lt.s32.totalorder %v2460, 16
        %vm2497 = vcmp.lt.s32.totalorder %v2461, 16
        %vm2498 = vcmp.lt.s32.totalorder %v2462, 16
        %vm2499 = vcmp.lt.s32.totalorder %v2463, 16
        %vm2500 = vcmp.lt.s32.totalorder %v2464, 16
        %vm2501 = vcmp.lt.s32.totalorder %v2465, 16
        %vm2502 = vcmp.lt.s32.totalorder %v2466, 16
        %vm2503 = vcmp.lt.s32.totalorder %v2467, 16
        %vm2504 = vcmp.lt.s32.totalorder %v2468, 16
        %vm2505 = vcmp.lt.s32.totalorder %v2469, 16
        %vm2506 = vcmp.lt.s32.totalorder %v2470, 16
        %vm2507 = vcmp.lt.s32.totalorder %v2471, 16
        %vm2508 = vcmp.lt.s32.totalorder %v2472, 16
        %vm2509 = vcmp.lt.s32.totalorder %v2473, 16
        %vm2510 = vcmp.lt.s32.totalorder %v2474, 16
        %vm2511 = vcmp.lt.s32.totalorder %v2475, 16
        %vm2512 = vcmp.lt.s32.totalorder %v2476, 16
        %vm2513 = vcmp.lt.s32.totalorder %v2477, 16
        %vm2514 = vcmp.lt.s32.totalorder %v2478, 16
        %vm2515 = vcmp.lt.s32.totalorder %v2479, 16
        %vm2516 = vcmp.lt.s32.totalorder %v2480, 16
        %v2517 = vsel %vm2481, 1, 0
        %v2518 = vsel %vm2482, 1, 0
        %v2519 = vsel %vm2483, 1, 0
        %v2520 = vsel %vm2484, 1, 0
        %v2521 = vsel %vm2485, 1, 0
        %v2522 = vsel %vm2486, 1, 0
        %v2523 = vsel %vm2487, 1, 0
        %v2524 = vsel %vm2488, 1, 0
        %v2525 = vsel %vm2489, 1, 0
        %v2526 = vsel %vm2490, 1, 0
        %v2527 = vsel %vm2491, 1, 0
        %v2528 = vsel %vm2492, 1, 0
        %v2529 = vsel %vm2493, 1, 0
        %v2530 = vsel %vm2494, 1, 0
        %v2531 = vsel %vm2495, 1, 0
        %v2532 = vsel %vm2496, 1, 0
        %v2533 = vsel %vm2497, 1, 0
        %v2534 = vsel %vm2498, 1, 0
        %v2535 = vsel %vm2499, 1, 0
        %v2536 = vsel %vm2500, 1, 0
        %v2537 = vsel %vm2501, 1, 0
        %v2538 = vsel %vm2502, 1, 0
        %v2539 = vsel %vm2503, 1, 0
        %v2540 = vsel %vm2504, 1, 0
        %v2541 = vsel %vm2505, 1, 0
        %v2542 = vsel %vm2506, 1, 0
        %v2543 = vsel %vm2507, 1, 0
        %v2544 = vsel %vm2508, 1, 0
        %v2545 = vsel %vm2509, 1, 0
        %v2546 = vsel %vm2510, 1, 0
        %v2547 = vsel %vm2511, 1, 0
        %v2548 = vsel %vm2512, 1, 0
        %v2549 = vsel %vm2513, 1, 0
        %v2550 = vsel %vm2514, 1, 0
        %v2551 = vsel %vm2515, 1, 0
        %v2552 = vsel %vm2516, 1, 0
        %v2553 = vcvt.s32.f32 %v2517
        %v2554 = vcvt.s32.f32 %v2518
        %v2555 = vcvt.s32.f32 %v2519
        %v2556 = vcvt.s32.f32 %v2520
        %v2557 = vcvt.s32.f32 %v2521
        %v2558 = vcvt.s32.f32 %v2522
        %v2559 = vcvt.s32.f32 %v2523
        %v2560 = vcvt.s32.f32 %v2524
        %v2561 = vcvt.s32.f32 %v2525
        %v2562 = vcvt.s32.f32 %v2526
        %v2563 = vcvt.s32.f32 %v2527
        %v2564 = vcvt.s32.f32 %v2528
        %v2565 = vcvt.s32.f32 %v2529
        %v2566 = vcvt.s32.f32 %v2530
        %v2567 = vcvt.s32.f32 %v2531
        %v2568 = vcvt.s32.f32 %v2532
        %v2569 = vcvt.s32.f32 %v2533
        %v2570 = vcvt.s32.f32 %v2534
        %v2571 = vcvt.s32.f32 %v2535
        %v2572 = vcvt.s32.f32 %v2536
        %v2573 = vcvt.s32.f32 %v2537
        %v2574 = vcvt.s32.f32 %v2538
        %v2575 = vcvt.s32.f32 %v2539
        %v2576 = vcvt.s32.f32 %v2540
        %v2577 = vcvt.s32.f32 %v2541
        %v2578 = vcvt.s32.f32 %v2542
        %v2579 = vcvt.s32.f32 %v2543
        %v2580 = vcvt.s32.f32 %v2544
        %v2581 = vcvt.s32.f32 %v2545
        %v2582 = vcvt.s32.f32 %v2546
        %v2583 = vcvt.s32.f32 %v2547
        %v2584 = vcvt.s32.f32 %v2548
        %v2585 = vcvt.s32.f32 %v2549
        %v2586 = vcvt.s32.f32 %v2550
        %v2587 = vcvt.s32.f32 %v2551
        %v2588 = vcvt.s32.f32 %v2552
        %v2589 = vld [vmem:[%s11] sm:$0x1]
        %v2590 = vpack.c.bf16 %v890, %v889
        %v2591 = vpack.c.bf16 %v892, %v891
        %v2592 = vpack.c.bf16 %v894, %v893
        %v2593 = vpack.c.bf16 %v896, %v895
        %v2594 = vpack.c.bf16 %v898, %v897
        %v2595 = vpack.c.bf16 %v900, %v899
        %v2596 = vpack.c.bf16 %v902, %v901
        %v2597 = vpack.c.bf16 %v904, %v903
        %v2598 = vpack.c.bf16 %v906, %v905
        %v2599 = vpack.c.bf16 %v908, %v907
        %v2600 = vpack.c.bf16 %v910, %v909
        %v2601 = vpack.c.bf16 %v912, %v911
        %v2602 = vpack.c.bf16 %v914, %v913
        %v2603 = vpack.c.bf16 %v916, %v915
        %v2604 = vpack.c.bf16 %v918, %v917
        %v2605 = vpack.c.bf16 %v920, %v919
        %v2606 = vpack.c.bf16 %v922, %v921
        %v2607 = vpack.c.bf16 %v924, %v923
        %v2608 = vld [vmem:[%s10] sm:$0x3]
        %v2609 = vpack.c.bf16 %v925, %v925
        %s2610 = scalar_lea.vmem %s10, 2
        %v2611 = vld [vmem:[%s2610] sm:$0x3]
        %vm2612 = vsmask.f32 7424
        %v2614 = vshrl.u32 %v2590, 16
        %v2616 = vshll.u32 %v2590, 16
        %v2618 = vrot.slane %v2616, 1
        %v2619 = vor.u32 %v2614, %v2618
        %v2621 = vshll.u32 %v2591, 16
        %v2623 = vrot.slane %v2621, 1
        %v2624 = vsel %vm2612, %v2619, %v2623
        %v2625 = vshrl.u32 %v2591, 16
        %v2627 = vor.u32 %v2625, %v2623
        %v2629 = vshll.u32 %v2592, 16
        %v2631 = vrot.slane %v2629, 1
        %v2632 = vsel %vm2612, %v2627, %v2631
        %v2633 = vshrl.u32 %v2592, 16
        %v2635 = vor.u32 %v2633, %v2631
        %v2637 = vshll.u32 %v2593, 16
        %v2639 = vrot.slane %v2637, 1
        %v2640 = vsel %vm2612, %v2635, %v2639
        %v2641 = vshrl.u32 %v2593, 16
        %v2643 = vor.u32 %v2641, %v2639
        %v2645 = vshll.u32 %v2594, 16
        %v2647 = vrot.slane %v2645, 1
        %v2648 = vsel %vm2612, %v2643, %v2647
        %v2649 = vshrl.u32 %v2594, 16
        %v2651 = vor.u32 %v2649, %v2647
        %v2653 = vshll.u32 %v2595, 16
        %v2655 = vrot.slane %v2653, 1
        %v2656 = vsel %vm2612, %v2651, %v2655
        %v2657 = vshrl.u32 %v2595, 16
        %v2659 = vor.u32 %v2657, %v2655
        %v2661 = vshll.u32 %v2596, 16
        %v2663 = vrot.slane %v2661, 1
        %v2664 = vsel %vm2612, %v2659, %v2663
        %v2665 = vshrl.u32 %v2596, 16
        %v2667 = vor.u32 %v2665, %v2663
        %v2669 = vshll.u32 %v2597, 16
        %v2671 = vrot.slane %v2669, 1
        %v2672 = vsel %vm2612, %v2667, %v2671
        %v2673 = vshrl.u32 %v2597, 16
        %v2675 = vor.u32 %v2673, %v2671
        %v2677 = vshll.u32 %v2598, 16
        %v2679 = vrot.slane %v2677, 1
        %v2680 = vsel %vm2612, %v2675, %v2679
        %v2681 = vshrl.u32 %v2598, 16
        %v2683 = vor.u32 %v2681, %v2679
        %v2685 = vshll.u32 %v2599, 16
        %v2687 = vrot.slane %v2685, 1
        %v2688 = vsel %vm2612, %v2683, %v2687
        %v2689 = vshrl.u32 %v2599, 16
        %v2691 = vor.u32 %v2689, %v2687
        %v2693 = vshll.u32 %v2600, 16
        %v2695 = vrot.slane %v2693, 1
        %v2696 = vsel %vm2612, %v2691, %v2695
        %v2697 = vshrl.u32 %v2600, 16
        %v2699 = vor.u32 %v2697, %v2695
        %v2701 = vshll.u32 %v2601, 16
        %v2703 = vrot.slane %v2701, 1
        %v2704 = vsel %vm2612, %v2699, %v2703
        %v2705 = vshrl.u32 %v2601, 16
        %v2707 = vor.u32 %v2705, %v2703
        %v2709 = vshll.u32 %v2602, 16
        %v2711 = vrot.slane %v2709, 1
        %v2712 = vsel %vm2612, %v2707, %v2711
        %v2713 = vshrl.u32 %v2602, 16
        %v2715 = vor.u32 %v2713, %v2711
        %v2717 = vshll.u32 %v2603, 16
        %v2719 = vrot.slane %v2717, 1
        %v2720 = vsel %vm2612, %v2715, %v2719
        %v2721 = vshrl.u32 %v2603, 16
        %v2723 = vor.u32 %v2721, %v2719
        %v2725 = vshll.u32 %v2604, 16
        %v2727 = vrot.slane %v2725, 1
        %v2728 = vsel %vm2612, %v2723, %v2727
        %v2729 = vshrl.u32 %v2604, 16
        %v2731 = vor.u32 %v2729, %v2727
        %v2733 = vshll.u32 %v2605, 16
        %v2735 = vrot.slane %v2733, 1
        %v2736 = vsel %vm2612, %v2731, %v2735
        %v2737 = vshrl.u32 %v2605, 16
        %v2739 = vor.u32 %v2737, %v2735
        %v2741 = vshll.u32 %v2606, 16
        %v2743 = vrot.slane %v2741, 1
        %v2744 = vsel %vm2612, %v2739, %v2743
        %v2745 = vshrl.u32 %v2606, 16
        %v2747 = vor.u32 %v2745, %v2743
        %v2749 = vshll.u32 %v2607, 16
        %v2751 = vrot.slane %v2749, 1
        %v2752 = vsel %vm2612, %v2747, %v2751
        %v2753 = vshrl.u32 %v2607, 16
        %v2755 = vor.u32 %v2753, %v2751
        %v2757 = vshll.u32 %v2609, 16
        %v2759 = vrot.slane %v2757, 1
        %v2760 = vsel %vm2612, %v2755, %v2759
        %vm2761 = vcmask 31744
        %v2763 = vsel %vm2761, %v2624, 0
        %v2766 = vsel %vm2761, %v2632, 0
        %v2769 = vsel %vm2761, %v2640, 0
        %v2772 = vsel %vm2761, %v2648, 0
        %v2775 = vsel %vm2761, %v2656, 0
        %v2778 = vsel %vm2761, %v2664, 0
        %v2781 = vsel %vm2761, %v2672, 0
        %v2784 = vsel %vm2761, %v2680, 0
        %v2787 = vsel %vm2761, %v2688, 0
        %v2790 = vsel %vm2761, %v2696, 0
        %v2793 = vsel %vm2761, %v2704, 0
        %v2796 = vsel %vm2761, %v2712, 0
        %v2799 = vsel %vm2761, %v2720, 0
        %v2802 = vsel %vm2761, %v2728, 0
        %v2805 = vsel %vm2761, %v2736, 0
        %v2808 = vsel %vm2761, %v2744, 0
        %v2811 = vsel %vm2761, %v2752, 0
        %v2814 = vsel %vm2761, %v2760, 0
        %vm2816 = vcmask 1041408
        %v2818 = vsel %vm2816, %v2611, 0
        %2820 = vmatpush.bf16.msra.mxu0 0
        %2821 = vmatpush.bf16.msra.mxu0 0
        %2822 = vmatpush.bf16.msra.mxu0 0
        %2823 = vmatpush.bf16.msra.mxu0 0
        %2824 = vmatpush.bf16.msra.mxu0 0
        %2825 = vmatpush.bf16.msra.mxu0 0
        %2826 = vmatpush.bf16.msra.mxu0 0
        %2827 = vmatpush.bf16.msra.mxu0 %v2818
        %2828 = vmatmul.bf16.gmra.mxu0 %v2763
        %v2829 = vpop.f32.mrf.mxu0
        %v2830 = vadd.f32 0.0, %v2829
        %v2831 = vpop.f32.mrf.mxu0
        %v2832 = vadd.f32 0.0, %v2831
        %2833 = vmatmul.bf16.gmra.mxu0 %v2766
        %v2834 = vpop.f32.mrf.mxu0
        %v2835 = vadd.f32 0.0, %v2834
        %v2836 = vpop.f32.mrf.mxu0
        %v2837 = vadd.f32 0.0, %v2836
        %2838 = vmatmul.bf16.gmra.mxu0 %v2769
        %v2839 = vpop.f32.mrf.mxu0
        %v2840 = vadd.f32 0.0, %v2839
        %v2841 = vpop.f32.mrf.mxu0
        %v2842 = vadd.f32 0.0, %v2841
        %2843 = vmatmul.bf16.gmra.mxu0 %v2772
        %v2844 = vpop.f32.mrf.mxu0
        %v2845 = vadd.f32 0.0, %v2844
        %v2846 = vpop.f32.mrf.mxu0
        %v2847 = vadd.f32 0.0, %v2846
        %2848 = vmatmul.bf16.gmra.mxu0 %v2775
        %v2849 = vpop.f32.mrf.mxu0
        %v2850 = vadd.f32 0.0, %v2849
        %v2851 = vpop.f32.mrf.mxu0
        %v2852 = vadd.f32 0.0, %v2851
        %2853 = vmatmul.bf16.gmra.mxu0 %v2778
        %v2854 = vpop.f32.mrf.mxu0
        %v2855 = vadd.f32 0.0, %v2854
        %v2856 = vpop.f32.mrf.mxu0
        %v2857 = vadd.f32 0.0, %v2856
        %2858 = vmatmul.bf16.gmra.mxu0 %v2781
        %v2859 = vpop.f32.mrf.mxu0
        %v2860 = vadd.f32 0.0, %v2859
        %v2861 = vpop.f32.mrf.mxu0
        %v2862 = vadd.f32 0.0, %v2861
        %2863 = vmatmul.bf16.gmra.mxu0 %v2784
        %v2864 = vpop.f32.mrf.mxu0
        %v2865 = vadd.f32 0.0, %v2864
        %v2866 = vpop.f32.mrf.mxu0
        %v2867 = vadd.f32 0.0, %v2866
        %2868 = vmatmul.bf16.gmra.mxu0 %v2787
        %v2869 = vpop.f32.mrf.mxu0
        %v2870 = vadd.f32 0.0, %v2869
        %v2871 = vpop.f32.mrf.mxu0
        %v2872 = vadd.f32 0.0, %v2871
        %2873 = vmatmul.bf16.gmra.mxu0 %v2790
        %v2874 = vpop.f32.mrf.mxu0
        %v2875 = vadd.f32 0.0, %v2874
        %v2876 = vpop.f32.mrf.mxu0
        %v2877 = vadd.f32 0.0, %v2876
        %2878 = vmatmul.bf16.gmra.mxu0 %v2793
        %v2879 = vpop.f32.mrf.mxu0
        %v2880 = vadd.f32 0.0, %v2879
        %v2881 = vpop.f32.mrf.mxu0
        %v2882 = vadd.f32 0.0, %v2881
        %2883 = vmatmul.bf16.gmra.mxu0 %v2796
        %v2884 = vpop.f32.mrf.mxu0
        %v2885 = vadd.f32 0.0, %v2884
        %v2886 = vpop.f32.mrf.mxu0
        %v2887 = vadd.f32 0.0, %v2886
        %2888 = vmatmul.bf16.gmra.mxu0 %v2799
        %v2889 = vpop.f32.mrf.mxu0
        %v2890 = vadd.f32 0.0, %v2889
        %v2891 = vpop.f32.mrf.mxu0
        %v2892 = vadd.f32 0.0, %v2891
        %2893 = vmatmul.bf16.gmra.mxu0 %v2802
        %v2894 = vpop.f32.mrf.mxu0
        %v2895 = vadd.f32 0.0, %v2894
        %v2896 = vpop.f32.mrf.mxu0
        %v2897 = vadd.f32 0.0, %v2896
        %2898 = vmatmul.bf16.gmra.mxu0 %v2805
        %v2899 = vpop.f32.mrf.mxu0
        %v2900 = vadd.f32 0.0, %v2899
        %v2901 = vpop.f32.mrf.mxu0
        %v2902 = vadd.f32 0.0, %v2901
        %2903 = vmatmul.bf16.gmra.mxu0 %v2808
        %v2904 = vpop.f32.mrf.mxu0
        %v2905 = vadd.f32 0.0, %v2904
        %v2906 = vpop.f32.mrf.mxu0
        %v2907 = vadd.f32 0.0, %v2906
        %2908 = vmatmul.bf16.gmra.mxu0 %v2811
        %v2909 = vpop.f32.mrf.mxu0
        %v2910 = vadd.f32 0.0, %v2909
        %v2911 = vpop.f32.mrf.mxu0
        %v2912 = vadd.f32 0.0, %v2911
        %2913 = vmatmul.bf16.gmra.mxu0 %v2814
        %v2914 = vpop.f32.mrf.mxu0
        %v2915 = vadd.f32 0.0, %v2914
        %v2916 = vpop.f32.mrf.mxu0
        %v2917 = vadd.f32 0.0, %v2916
        %2918 = vdwg.mxu0
        %v2919 = vsel %vm2761, %v2590, 0
        %v2921 = vsel %vm2761, %v2591, 0
        %v2923 = vsel %vm2761, %v2592, 0
        %v2925 = vsel %vm2761, %v2593, 0
        %v2927 = vsel %vm2761, %v2594, 0
        %v2929 = vsel %vm2761, %v2595, 0
        %v2931 = vsel %vm2761, %v2596, 0
        %v2933 = vsel %vm2761, %v2597, 0
        %v2935 = vsel %vm2761, %v2598, 0
        %v2937 = vsel %vm2761, %v2599, 0
        %v2939 = vsel %vm2761, %v2600, 0
        %v2941 = vsel %vm2761, %v2601, 0
        %v2943 = vsel %vm2761, %v2602, 0
        %v2945 = vsel %vm2761, %v2603, 0
        %v2947 = vsel %vm2761, %v2604, 0
        %v2949 = vsel %vm2761, %v2605, 0
        %v2951 = vsel %vm2761, %v2606, 0
        %v2953 = vsel %vm2761, %v2607, 0
        %v2956 = vsel %vm2816, %v2608, 0
        %2958 = vmatpush.bf16.msra.mxu0 0
        %2959 = vmatpush.bf16.msra.mxu0 0
        %2960 = vmatpush.bf16.msra.mxu0 0
        %2961 = vmatpush.bf16.msra.mxu0 0
        %2962 = vmatpush.bf16.msra.mxu0 0
        %2963 = vmatpush.bf16.msra.mxu0 0
        %2964 = vmatpush.bf16.msra.mxu0 0
        %2965 = vmatpush.bf16.msra.mxu0 %v2956
        %2966 = vmatmul.bf16.gmra.mxu0 %v2919
        %v2967 = vpop.f32.mrf.mxu0
        %v2968 = vadd.f32 %v2830, %v2967
        %v2969 = vpop.f32.mrf.mxu0
        %v2970 = vadd.f32 %v2832, %v2969
        %2971 = vmatmul.bf16.gmra.mxu0 %v2921
        %v2972 = vpop.f32.mrf.mxu0
        %v2973 = vadd.f32 %v2835, %v2972
        %v2974 = vpop.f32.mrf.mxu0
        %v2975 = vadd.f32 %v2837, %v2974
        %2976 = vmatmul.bf16.gmra.mxu0 %v2923
        %v2977 = vpop.f32.mrf.mxu0
        %v2978 = vadd.f32 %v2840, %v2977
        %v2979 = vpop.f32.mrf.mxu0
        %v2980 = vadd.f32 %v2842, %v2979
        %2981 = vmatmul.bf16.gmra.mxu0 %v2925
        %v2982 = vpop.f32.mrf.mxu0
        %v2983 = vadd.f32 %v2845, %v2982
        %v2984 = vpop.f32.mrf.mxu0
        %v2985 = vadd.f32 %v2847, %v2984
        %2986 = vmatmul.bf16.gmra.mxu0 %v2927
        %v2987 = vpop.f32.mrf.mxu0
        %v2988 = vadd.f32 %v2850, %v2987
        %v2989 = vpop.f32.mrf.mxu0
        %v2990 = vadd.f32 %v2852, %v2989
        %2991 = vmatmul.bf16.gmra.mxu0 %v2929
        %v2992 = vpop.f32.mrf.mxu0
        %v2993 = vadd.f32 %v2855, %v2992
        %v2994 = vpop.f32.mrf.mxu0
        %v2995 = vadd.f32 %v2857, %v2994
        %2996 = vmatmul.bf16.gmra.mxu0 %v2931
        %v2997 = vpop.f32.mrf.mxu0
        %v2998 = vadd.f32 %v2860, %v2997
        %v2999 = vpop.f32.mrf.mxu0
        %v3000 = vadd.f32 %v2862, %v2999
        %3001 = vmatmul.bf16.gmra.mxu0 %v2933
        %v3002 = vpop.f32.mrf.mxu0
        %v3003 = vadd.f32 %v2865, %v3002
        %v3004 = vpop.f32.mrf.mxu0
        %v3005 = vadd.f32 %v2867, %v3004
        %3006 = vmatmul.bf16.gmra.mxu0 %v2935
        %v3007 = vpop.f32.mrf.mxu0
        %v3008 = vadd.f32 %v2870, %v3007
        %v3009 = vpop.f32.mrf.mxu0
        %v3010 = vadd.f32 %v2872, %v3009
        %3011 = vmatmul.bf16.gmra.mxu0 %v2937
        %v3012 = vpop.f32.mrf.mxu0
        %v3013 = vadd.f32 %v2875, %v3012
        %v3014 = vpop.f32.mrf.mxu0
        %v3015 = vadd.f32 %v2877, %v3014
        %3016 = vmatmul.bf16.gmra.mxu0 %v2939
        %v3017 = vpop.f32.mrf.mxu0
        %v3018 = vadd.f32 %v2880, %v3017
        %v3019 = vpop.f32.mrf.mxu0
        %v3020 = vadd.f32 %v2882, %v3019
        %3021 = vmatmul.bf16.gmra.mxu0 %v2941
        %v3022 = vpop.f32.mrf.mxu0
        %v3023 = vadd.f32 %v2885, %v3022
        %v3024 = vpop.f32.mrf.mxu0
        %v3025 = vadd.f32 %v2887, %v3024
        %3026 = vmatmul.bf16.gmra.mxu0 %v2943
        %v3027 = vpop.f32.mrf.mxu0
        %v3028 = vadd.f32 %v2890, %v3027
        %v3029 = vpop.f32.mrf.mxu0
        %v3030 = vadd.f32 %v2892, %v3029
        %3031 = vmatmul.bf16.gmra.mxu0 %v2945
        %v3032 = vpop.f32.mrf.mxu0
        %v3033 = vadd.f32 %v2895, %v3032
        %v3034 = vpop.f32.mrf.mxu0
        %v3035 = vadd.f32 %v2897, %v3034
        %3036 = vmatmul.bf16.gmra.mxu0 %v2947
        %v3037 = vpop.f32.mrf.mxu0
        %v3038 = vadd.f32 %v2900, %v3037
        %v3039 = vpop.f32.mrf.mxu0
        %v3040 = vadd.f32 %v2902, %v3039
        %3041 = vmatmul.bf16.gmra.mxu0 %v2949
        %v3042 = vpop.f32.mrf.mxu0
        %v3043 = vadd.f32 %v2905, %v3042
        %v3044 = vpop.f32.mrf.mxu0
        %v3045 = vadd.f32 %v2907, %v3044
        %3046 = vmatmul.bf16.gmra.mxu0 %v2951
        %v3047 = vpop.f32.mrf.mxu0
        %v3048 = vadd.f32 %v2910, %v3047
        %v3049 = vpop.f32.mrf.mxu0
        %v3050 = vadd.f32 %v2912, %v3049
        %3051 = vmatmul.bf16.gmra.mxu0 %v2953
        %v3052 = vpop.f32.mrf.mxu0
        %v3053 = vadd.f32 %v2915, %v3052
        %v3054 = vpop.f32.mrf.mxu0
        %v3055 = vadd.f32 %v2917, %v3054
        %3056 = vdwg.mxu0
        %s3057 = scalar_lea.vmem %s10, 4
        %v3058 = vld [vmem:[%s3057] sm:$0x3]
        %vm3078 = vcmask 1046528
        %v3079 = vrot.slane %v2590, 1
        %v3080 = vrot.slane %v2591, 1
        %v3081 = vsel %vm3078, %v3079, %v3080
        %v3082 = vrot.slane %v2592, 1
        %v3083 = vsel %vm3078, %v3080, %v3082
        %v3084 = vrot.slane %v2593, 1
        %v3085 = vsel %vm3078, %v3082, %v3084
        %v3086 = vrot.slane %v2594, 1
        %v3087 = vsel %vm3078, %v3084, %v3086
        %v3088 = vrot.slane %v2595, 1
        %v3089 = vsel %vm3078, %v3086, %v3088
        %v3090 = vrot.slane %v2596, 1
        %v3091 = vsel %vm3078, %v3088, %v3090
        %v3092 = vrot.slane %v2597, 1
        %v3093 = vsel %vm3078, %v3090, %v3092
        %v3094 = vrot.slane %v2598, 1
        %v3095 = vsel %vm3078, %v3092, %v3094
        %v3096 = vrot.slane %v2599, 1
        %v3097 = vsel %vm3078, %v3094, %v3096
        %v3098 = vrot.slane %v2600, 1
        %v3099 = vsel %vm3078, %v3096, %v3098
        %v3100 = vrot.slane %v2601, 1
        %v3101 = vsel %vm3078, %v3098, %v3100
        %v3102 = vrot.slane %v2602, 1
        %v3103 = vsel %vm3078, %v3100, %v3102
        %v3104 = vrot.slane %v2603, 1
        %v3105 = vsel %vm3078, %v3102, %v3104
        %v3106 = vrot.slane %v2604, 1
        %v3107 = vsel %vm3078, %v3104, %v3106
        %v3108 = vrot.slane %v2605, 1
        %v3109 = vsel %vm3078, %v3106, %v3108
        %v3110 = vrot.slane %v2606, 1
        %v3111 = vsel %vm3078, %v3108, %v3110
        %v3112 = vrot.slane %v2607, 1
        %v3113 = vsel %vm3078, %v3110, %v3112
        %v3114 = vrot.slane %v2609, 1
        %v3115 = vsel %vm3078, %v3112, %v3114
        %v3117 = vsel %vm2761, %v3081, 0
        %v3120 = vsel %vm2761, %v3083, 0
        %v3123 = vsel %vm2761, %v3085, 0
        %v3126 = vsel %vm2761, %v3087, 0
        %v3129 = vsel %vm2761, %v3089, 0
        %v3132 = vsel %vm2761, %v3091, 0
        %v3135 = vsel %vm2761, %v3093, 0
        %v3138 = vsel %vm2761, %v3095, 0
        %v3141 = vsel %vm2761, %v3097, 0
        %v3144 = vsel %vm2761, %v3099, 0
        %v3147 = vsel %vm2761, %v3101, 0
        %v3150 = vsel %vm2761, %v3103, 0
        %v3153 = vsel %vm2761, %v3105, 0
        %v3156 = vsel %vm2761, %v3107, 0
        %v3159 = vsel %vm2761, %v3109, 0
        %v3162 = vsel %vm2761, %v3111, 0
        %v3165 = vsel %vm2761, %v3113, 0
        %v3168 = vsel %vm2761, %v3115, 0
        %v3171 = vsel %vm2816, %v3058, 0
        %3173 = vmatpush.bf16.msra.mxu0 0
        %3174 = vmatpush.bf16.msra.mxu0 0
        %3175 = vmatpush.bf16.msra.mxu0 0
        %3176 = vmatpush.bf16.msra.mxu0 0
        %3177 = vmatpush.bf16.msra.mxu0 0
        %3178 = vmatpush.bf16.msra.mxu0 0
        %3179 = vmatpush.bf16.msra.mxu0 0
        %3180 = vmatpush.bf16.msra.mxu0 %v3171
        %3181 = vmatmul.bf16.gmra.mxu0 %v3117
        %v3182 = vpop.f32.mrf.mxu0
        %v3183 = vadd.f32 0.0, %v3182
        %v3184 = vpop.f32.mrf.mxu0
        %v3185 = vadd.f32 0.0, %v3184
        %3186 = vmatmul.bf16.gmra.mxu0 %v3120
        %v3187 = vpop.f32.mrf.mxu0
        %v3188 = vadd.f32 0.0, %v3187
        %v3189 = vpop.f32.mrf.mxu0
        %v3190 = vadd.f32 0.0, %v3189
        %3191 = vmatmul.bf16.gmra.mxu0 %v3123
        %v3192 = vpop.f32.mrf.mxu0
        %v3193 = vadd.f32 0.0, %v3192
        %v3194 = vpop.f32.mrf.mxu0
        %v3195 = vadd.f32 0.0, %v3194
        %3196 = vmatmul.bf16.gmra.mxu0 %v3126
        %v3197 = vpop.f32.mrf.mxu0
        %v3198 = vadd.f32 0.0, %v3197
        %v3199 = vpop.f32.mrf.mxu0
        %v3200 = vadd.f32 0.0, %v3199
        %3201 = vmatmul.bf16.gmra.mxu0 %v3129
        %v3202 = vpop.f32.mrf.mxu0
        %v3203 = vadd.f32 0.0, %v3202
        %v3204 = vpop.f32.mrf.mxu0
        %v3205 = vadd.f32 0.0, %v3204
        %3206 = vmatmul.bf16.gmra.mxu0 %v3132
        %v3207 = vpop.f32.mrf.mxu0
        %v3208 = vadd.f32 0.0, %v3207
        %v3209 = vpop.f32.mrf.mxu0
        %v3210 = vadd.f32 0.0, %v3209
        %3211 = vmatmul.bf16.gmra.mxu0 %v3135
        %v3212 = vpop.f32.mrf.mxu0
        %v3213 = vadd.f32 0.0, %v3212
        %v3214 = vpop.f32.mrf.mxu0
        %v3215 = vadd.f32 0.0, %v3214
        %3216 = vmatmul.bf16.gmra.mxu0 %v3138
        %v3217 = vpop.f32.mrf.mxu0
        %v3218 = vadd.f32 0.0, %v3217
        %v3219 = vpop.f32.mrf.mxu0
        %v3220 = vadd.f32 0.0, %v3219
        %3221 = vmatmul.bf16.gmra.mxu0 %v3141
        %v3222 = vpop.f32.mrf.mxu0
        %v3223 = vadd.f32 0.0, %v3222
        %v3224 = vpop.f32.mrf.mxu0
        %v3225 = vadd.f32 0.0, %v3224
        %3226 = vmatmul.bf16.gmra.mxu0 %v3144
        %v3227 = vpop.f32.mrf.mxu0
        %v3228 = vadd.f32 0.0, %v3227
        %v3229 = vpop.f32.mrf.mxu0
        %v3230 = vadd.f32 0.0, %v3229
        %3231 = vmatmul.bf16.gmra.mxu0 %v3147
        %v3232 = vpop.f32.mrf.mxu0
        %v3233 = vadd.f32 0.0, %v3232
        %v3234 = vpop.f32.mrf.mxu0
        %v3235 = vadd.f32 0.0, %v3234
        %3236 = vmatmul.bf16.gmra.mxu0 %v3150
        %v3237 = vpop.f32.mrf.mxu0
        %v3238 = vadd.f32 0.0, %v3237
        %v3239 = vpop.f32.mrf.mxu0
        %v3240 = vadd.f32 0.0, %v3239
        %3241 = vmatmul.bf16.gmra.mxu0 %v3153
        %v3242 = vpop.f32.mrf.mxu0
        %v3243 = vadd.f32 0.0, %v3242
        %v3244 = vpop.f32.mrf.mxu0
        %v3245 = vadd.f32 0.0, %v3244
        %3246 = vmatmul.bf16.gmra.mxu0 %v3156
        %v3247 = vpop.f32.mrf.mxu0
        %v3248 = vadd.f32 0.0, %v3247
        %v3249 = vpop.f32.mrf.mxu0
        %v3250 = vadd.f32 0.0, %v3249
        %3251 = vmatmul.bf16.gmra.mxu0 %v3159
        %v3252 = vpop.f32.mrf.mxu0
        %v3253 = vadd.f32 0.0, %v3252
        %v3254 = vpop.f32.mrf.mxu0
        %v3255 = vadd.f32 0.0, %v3254
        %3256 = vmatmul.bf16.gmra.mxu0 %v3162
        %v3257 = vpop.f32.mrf.mxu0
        %v3258 = vadd.f32 0.0, %v3257
        %v3259 = vpop.f32.mrf.mxu0
        %v3260 = vadd.f32 0.0, %v3259
        %3261 = vmatmul.bf16.gmra.mxu0 %v3165
        %v3262 = vpop.f32.mrf.mxu0
        %v3263 = vadd.f32 0.0, %v3262
        %v3264 = vpop.f32.mrf.mxu0
        %v3265 = vadd.f32 0.0, %v3264
        %3266 = vmatmul.bf16.gmra.mxu0 %v3168
        %v3267 = vpop.f32.mrf.mxu0
        %v3268 = vadd.f32 0.0, %v3267
        %v3269 = vpop.f32.mrf.mxu0
        %v3270 = vadd.f32 0.0, %v3269
        %3271 = vdwg.mxu0
        %v3272 = vadd.f32 %v2968, %v3183
        %v3273 = vadd.f32 %v2970, %v3185
        %v3274 = vadd.f32 %v2973, %v3188
        %v3275 = vadd.f32 %v2975, %v3190
        %v3276 = vadd.f32 %v2978, %v3193
        %v3277 = vadd.f32 %v2980, %v3195
        %v3278 = vadd.f32 %v2983, %v3198
        %v3279 = vadd.f32 %v2985, %v3200
        %v3280 = vadd.f32 %v2988, %v3203
        %v3281 = vadd.f32 %v2990, %v3205
        %v3282 = vadd.f32 %v2993, %v3208
        %v3283 = vadd.f32 %v2995, %v3210
        %v3284 = vadd.f32 %v2998, %v3213
        %v3285 = vadd.f32 %v3000, %v3215
        %v3286 = vadd.f32 %v3003, %v3218
        %v3287 = vadd.f32 %v3005, %v3220
        %v3288 = vadd.f32 %v3008, %v3223
        %v3289 = vadd.f32 %v3010, %v3225
        %v3290 = vadd.f32 %v3013, %v3228
        %v3291 = vadd.f32 %v3015, %v3230
        %v3292 = vadd.f32 %v3018, %v3233
        %v3293 = vadd.f32 %v3020, %v3235
        %v3294 = vadd.f32 %v3023, %v3238
        %v3295 = vadd.f32 %v3025, %v3240
        %v3296 = vadd.f32 %v3028, %v3243
        %v3297 = vadd.f32 %v3030, %v3245
        %v3298 = vadd.f32 %v3033, %v3248
        %v3299 = vadd.f32 %v3035, %v3250
        %v3300 = vadd.f32 %v3038, %v3253
        %v3301 = vadd.f32 %v3040, %v3255
        %v3302 = vadd.f32 %v3043, %v3258
        %v3303 = vadd.f32 %v3045, %v3260
        %v3304 = vadd.f32 %v3048, %v3263
        %v3305 = vadd.f32 %v3050, %v3265
        %v3306 = vadd.f32 %v3053, %v3268
        %v3307 = vadd.f32 %v3055, %v3270
        %v3308 = vpack.c.bf16 %v926, %v925
        %v3309 = vpack.c.bf16 %v927, %v927
        %s3310 = scalar_lea.vmem %s10, 6
        %v3311 = vld [vmem:[%s3310] sm:$0x3]
        %v3314 = vrot.slane %v3308, 1
        %v3315 = vsel %vm3078, %v3112, %v3314
        %v3316 = vrot.slane %v3309, 1
        %v3317 = vsel %vm3078, %v3314, %v3316
        %v3319 = vsel %vm2761, %v3315, 0
        %v3322 = vsel %vm2761, %v3317, 0
        %v3325 = vsel %vm2816, %v3311, 0
        %3327 = vmatpush.bf16.msra.mxu0 0
        %3328 = vmatpush.bf16.msra.mxu0 0
        %3329 = vmatpush.bf16.msra.mxu0 0
        %3330 = vmatpush.bf16.msra.mxu0 0
        %3331 = vmatpush.bf16.msra.mxu0 0
        %3332 = vmatpush.bf16.msra.mxu0 0
        %3333 = vmatpush.bf16.msra.mxu0 0
        %3334 = vmatpush.bf16.msra.mxu0 %v3325
        %3335 = vmatmul.bf16.gmra.mxu0 %v3120
        %v3336 = vpop.f32.mrf.mxu0
        %v3337 = vadd.f32 0.0, %v3336
        %v3338 = vpop.f32.mrf.mxu0
        %v3339 = vadd.f32 0.0, %v3338
        %3340 = vmatmul.bf16.gmra.mxu0 %v3123
        %v3341 = vpop.f32.mrf.mxu0
        %v3342 = vadd.f32 0.0, %v3341
        %v3343 = vpop.f32.mrf.mxu0
        %v3344 = vadd.f32 0.0, %v3343
        %3345 = vmatmul.bf16.gmra.mxu0 %v3126
        %v3346 = vpop.f32.mrf.mxu0
        %v3347 = vadd.f32 0.0, %v3346
        %v3348 = vpop.f32.mrf.mxu0
        %v3349 = vadd.f32 0.0, %v3348
        %3350 = vmatmul.bf16.gmra.mxu0 %v3129
        %v3351 = vpop.f32.mrf.mxu0
        %v3352 = vadd.f32 0.0, %v3351
        %v3353 = vpop.f32.mrf.mxu0
        %v3354 = vadd.f32 0.0, %v3353
        %3355 = vmatmul.bf16.gmra.mxu0 %v3132
        %v3356 = vpop.f32.mrf.mxu0
        %v3357 = vadd.f32 0.0, %v3356
        %v3358 = vpop.f32.mrf.mxu0
        %v3359 = vadd.f32 0.0, %v3358
        %3360 = vmatmul.bf16.gmra.mxu0 %v3135
        %v3361 = vpop.f32.mrf.mxu0
        %v3362 = vadd.f32 0.0, %v3361
        %v3363 = vpop.f32.mrf.mxu0
        %v3364 = vadd.f32 0.0, %v3363
        %3365 = vmatmul.bf16.gmra.mxu0 %v3138
        %v3366 = vpop.f32.mrf.mxu0
        %v3367 = vadd.f32 0.0, %v3366
        %v3368 = vpop.f32.mrf.mxu0
        %v3369 = vadd.f32 0.0, %v3368
        %3370 = vmatmul.bf16.gmra.mxu0 %v3141
        %v3371 = vpop.f32.mrf.mxu0
        %v3372 = vadd.f32 0.0, %v3371
        %v3373 = vpop.f32.mrf.mxu0
        %v3374 = vadd.f32 0.0, %v3373
        %3375 = vmatmul.bf16.gmra.mxu0 %v3144
        %v3376 = vpop.f32.mrf.mxu0
        %v3377 = vadd.f32 0.0, %v3376
        %v3378 = vpop.f32.mrf.mxu0
        %v3379 = vadd.f32 0.0, %v3378
        %3380 = vmatmul.bf16.gmra.mxu0 %v3147
        %v3381 = vpop.f32.mrf.mxu0
        %v3382 = vadd.f32 0.0, %v3381
        %v3383 = vpop.f32.mrf.mxu0
        %v3384 = vadd.f32 0.0, %v3383
        %3385 = vmatmul.bf16.gmra.mxu0 %v3150
        %v3386 = vpop.f32.mrf.mxu0
        %v3387 = vadd.f32 0.0, %v3386
        %v3388 = vpop.f32.mrf.mxu0
        %v3389 = vadd.f32 0.0, %v3388
        %3390 = vmatmul.bf16.gmra.mxu0 %v3153
        %v3391 = vpop.f32.mrf.mxu0
        %v3392 = vadd.f32 0.0, %v3391
        %v3393 = vpop.f32.mrf.mxu0
        %v3394 = vadd.f32 0.0, %v3393
        %3395 = vmatmul.bf16.gmra.mxu0 %v3156
        %v3396 = vpop.f32.mrf.mxu0
        %v3397 = vadd.f32 0.0, %v3396
        %v3398 = vpop.f32.mrf.mxu0
        %v3399 = vadd.f32 0.0, %v3398
        %3400 = vmatmul.bf16.gmra.mxu0 %v3159
        %v3401 = vpop.f32.mrf.mxu0
        %v3402 = vadd.f32 0.0, %v3401
        %v3403 = vpop.f32.mrf.mxu0
        %v3404 = vadd.f32 0.0, %v3403
        %3405 = vmatmul.bf16.gmra.mxu0 %v3162
        %v3406 = vpop.f32.mrf.mxu0
        %v3407 = vadd.f32 0.0, %v3406
        %v3408 = vpop.f32.mrf.mxu0
        %v3409 = vadd.f32 0.0, %v3408
        %3410 = vmatmul.bf16.gmra.mxu0 %v3165
        %v3411 = vpop.f32.mrf.mxu0
        %v3412 = vadd.f32 0.0, %v3411
        %v3413 = vpop.f32.mrf.mxu0
        %v3414 = vadd.f32 0.0, %v3413
        %3415 = vmatmul.bf16.gmra.mxu0 %v3319
        %v3416 = vpop.f32.mrf.mxu0
        %v3417 = vadd.f32 0.0, %v3416
        %v3418 = vpop.f32.mrf.mxu0
        %v3419 = vadd.f32 0.0, %v3418
        %3420 = vmatmul.bf16.gmra.mxu0 %v3322
        %v3421 = vpop.f32.mrf.mxu0
        %v3422 = vadd.f32 0.0, %v3421
        %v3423 = vpop.f32.mrf.mxu0
        %v3424 = vadd.f32 0.0, %v3423
        %3425 = vdwg.mxu0
        %v3426 = vadd.f32 %v3272, %v3337
        %v3427 = vadd.f32 %v3273, %v3339
        %v3428 = vadd.f32 %v3274, %v3342
        %v3429 = vadd.f32 %v3275, %v3344
        %v3430 = vadd.f32 %v3276, %v3347
        %v3431 = vadd.f32 %v3277, %v3349
        %v3432 = vadd.f32 %v3278, %v3352
        %v3433 = vadd.f32 %v3279, %v3354
        %v3434 = vadd.f32 %v3280, %v3357
        %v3435 = vadd.f32 %v3281, %v3359
        %v3436 = vadd.f32 %v3282, %v3362
        %v3437 = vadd.f32 %v3283, %v3364
        %v3438 = vadd.f32 %v3284, %v3367
        %v3439 = vadd.f32 %v3285, %v3369
        %v3440 = vadd.f32 %v3286, %v3372
        %v3441 = vadd.f32 %v3287, %v3374
        %v3442 = vadd.f32 %v3288, %v3377
        %v3443 = vadd.f32 %v3289, %v3379
        %v3444 = vadd.f32 %v3290, %v3382
        %v3445 = vadd.f32 %v3291, %v3384
        %v3446 = vadd.f32 %v3292, %v3387
        %v3447 = vadd.f32 %v3293, %v3389
        %v3448 = vadd.f32 %v3294, %v3392
        %v3449 = vadd.f32 %v3295, %v3394
        %v3450 = vadd.f32 %v3296, %v3397
        %v3451 = vadd.f32 %v3297, %v3399
        %v3452 = vadd.f32 %v3298, %v3402
        %v3453 = vadd.f32 %v3299, %v3404
        %v3454 = vadd.f32 %v3300, %v3407
        %v3455 = vadd.f32 %v3301, %v3409
        %v3456 = vadd.f32 %v3302, %v3412
        %v3457 = vadd.f32 %v3303, %v3414
        %v3458 = vadd.f32 %v3304, %v3417
        %v3459 = vadd.f32 %v3305, %v3419
        %v3460 = vadd.f32 %v3306, %v3422
        %v3461 = vadd.f32 %v3307, %v3424
        %s3462 = scalar_lea.vmem %s10, 8
        %v3463 = vld [vmem:[%s3462] sm:$0x3]
        %vm3464 = vsmask.f32 6400
        %v3465 = vrot.slane %v2625, 1
        %v3466 = vrot.slane %v2621, 2
        %v3467 = vor.u32 %v3465, %v3466
        %v3468 = vrot.slane %v2633, 1
        %v3469 = vrot.slane %v2629, 2
        %v3470 = vor.u32 %v3468, %v3469
        %v3471 = vsel %vm3464, %v3467, %v3470
        %v3472 = vrot.slane %v2641, 1
        %v3473 = vrot.slane %v2637, 2
        %v3474 = vor.u32 %v3472, %v3473
        %v3475 = vsel %vm3464, %v3470, %v3474
        %v3476 = vrot.slane %v2649, 1
        %v3477 = vrot.slane %v2645, 2
        %v3478 = vor.u32 %v3476, %v3477
        %v3479 = vsel %vm3464, %v3474, %v3478
        %v3480 = vrot.slane %v2657, 1
        %v3481 = vrot.slane %v2653, 2
        %v3482 = vor.u32 %v3480, %v3481
        %v3483 = vsel %vm3464, %v3478, %v3482
        %v3484 = vrot.slane %v2665, 1
        %v3485 = vrot.slane %v2661, 2
        %v3486 = vor.u32 %v3484, %v3485
        %v3487 = vsel %vm3464, %v3482, %v3486
        %v3488 = vrot.slane %v2673, 1
        %v3489 = vrot.slane %v2669, 2
        %v3490 = vor.u32 %v3488, %v3489
        %v3491 = vsel %vm3464, %v3486, %v3490
        %v3492 = vrot.slane %v2681, 1
        %v3493 = vrot.slane %v2677, 2
        %v3494 = vor.u32 %v3492, %v3493
        %v3495 = vsel %vm3464, %v3490, %v3494
        %v3496 = vrot.slane %v2689, 1
        %v3497 = vrot.slane %v2685, 2
        %v3498 = vor.u32 %v3496, %v3497
        %v3499 = vsel %vm3464, %v3494, %v3498
        %v3500 = vrot.slane %v2697, 1
        %v3501 = vrot.slane %v2693, 2
        %v3502 = vor.u32 %v3500, %v3501
        %v3503 = vsel %vm3464, %v3498, %v3502
        %v3504 = vrot.slane %v2705, 1
        %v3505 = vrot.slane %v2701, 2
        %v3506 = vor.u32 %v3504, %v3505
        %v3507 = vsel %vm3464, %v3502, %v3506
        %v3508 = vrot.slane %v2713, 1
        %v3509 = vrot.slane %v2709, 2
        %v3510 = vor.u32 %v3508, %v3509
        %v3511 = vsel %vm3464, %v3506, %v3510
        %v3512 = vrot.slane %v2721, 1
        %v3513 = vrot.slane %v2717, 2
        %v3514 = vor.u32 %v3512, %v3513
        %v3515 = vsel %vm3464, %v3510, %v3514
        %v3516 = vrot.slane %v2729, 1
        %v3517 = vrot.slane %v2725, 2
        %v3518 = vor.u32 %v3516, %v3517
        %v3519 = vsel %vm3464, %v3514, %v3518
        %v3520 = vrot.slane %v2737, 1
        %v3521 = vrot.slane %v2733, 2
        %v3522 = vor.u32 %v3520, %v3521
        %v3523 = vsel %vm3464, %v3518, %v3522
        %v3524 = vrot.slane %v2745, 1
        %v3525 = vrot.slane %v2741, 2
        %v3526 = vor.u32 %v3524, %v3525
        %v3527 = vsel %vm3464, %v3522, %v3526
        %v3528 = vrot.slane %v2753, 1
        %v3529 = vrot.slane %v2749, 2
        %v3530 = vor.u32 %v3528, %v3529
        %v3531 = vsel %vm3464, %v3526, %v3530
        %v3533 = vshrl.u32 %v3308, 16
        %v3535 = vrot.slane %v3533, 1
        %v3536 = vshll.u32 %v3308, 16
        %v3538 = vrot.slane %v3536, 2
        %v3539 = vor.u32 %v3535, %v3538
        %v3540 = vsel %vm3464, %v3530, %v3539
        %v3542 = vshrl.u32 %v3309, 16
        %v3544 = vrot.slane %v3542, 1
        %v3545 = vshll.u32 %v3309, 16
        %v3547 = vrot.slane %v3545, 2
        %v3548 = vor.u32 %v3544, %v3547
        %v3549 = vsel %vm3464, %v3539, %v3548
        %v3551 = vsel %vm2761, %v3471, 0
        %v3554 = vsel %vm2761, %v3475, 0
        %v3557 = vsel %vm2761, %v3479, 0
        %v3560 = vsel %vm2761, %v3483, 0
        %v3563 = vsel %vm2761, %v3487, 0
        %v3566 = vsel %vm2761, %v3491, 0
        %v3569 = vsel %vm2761, %v3495, 0
        %v3572 = vsel %vm2761, %v3499, 0
        %v3575 = vsel %vm2761, %v3503, 0
        %v3578 = vsel %vm2761, %v3507, 0
        %v3581 = vsel %vm2761, %v3511, 0
        %v3584 = vsel %vm2761, %v3515, 0
        %v3587 = vsel %vm2761, %v3519, 0
        %v3590 = vsel %vm2761, %v3523, 0
        %v3593 = vsel %vm2761, %v3527, 0
        %v3596 = vsel %vm2761, %v3531, 0
        %v3599 = vsel %vm2761, %v3540, 0
        %v3602 = vsel %vm2761, %v3549, 0
        %v3605 = vsel %vm2816, %v3463, 0
        %3607 = vmatpush.bf16.msra.mxu0 0
        %3608 = vmatpush.bf16.msra.mxu0 0
        %3609 = vmatpush.bf16.msra.mxu0 0
        %3610 = vmatpush.bf16.msra.mxu0 0
        %3611 = vmatpush.bf16.msra.mxu0 0
        %3612 = vmatpush.bf16.msra.mxu0 0
        %3613 = vmatpush.bf16.msra.mxu0 0
        %3614 = vmatpush.bf16.msra.mxu0 %v3605
        %3615 = vmatmul.bf16.gmra.mxu0 %v3551
        %v3616 = vpop.f32.mrf.mxu0
        %v3617 = vadd.f32 0.0, %v3616
        %v3618 = vpop.f32.mrf.mxu0
        %v3619 = vadd.f32 0.0, %v3618
        %3620 = vmatmul.bf16.gmra.mxu0 %v3554
        %v3621 = vpop.f32.mrf.mxu0
        %v3622 = vadd.f32 0.0, %v3621
        %v3623 = vpop.f32.mrf.mxu0
        %v3624 = vadd.f32 0.0, %v3623
        %3625 = vmatmul.bf16.gmra.mxu0 %v3557
        %v3626 = vpop.f32.mrf.mxu0
        %v3627 = vadd.f32 0.0, %v3626
        %v3628 = vpop.f32.mrf.mxu0
        %v3629 = vadd.f32 0.0, %v3628
        %3630 = vmatmul.bf16.gmra.mxu0 %v3560
        %v3631 = vpop.f32.mrf.mxu0
        %v3632 = vadd.f32 0.0, %v3631
        %v3633 = vpop.f32.mrf.mxu0
        %v3634 = vadd.f32 0.0, %v3633
        %3635 = vmatmul.bf16.gmra.mxu0 %v3563
        %v3636 = vpop.f32.mrf.mxu0
        %v3637 = vadd.f32 0.0, %v3636
        %v3638 = vpop.f32.mrf.mxu0
        %v3639 = vadd.f32 0.0, %v3638
        %3640 = vmatmul.bf16.gmra.mxu0 %v3566
        %v3641 = vpop.f32.mrf.mxu0
        %v3642 = vadd.f32 0.0, %v3641
        %v3643 = vpop.f32.mrf.mxu0
        %v3644 = vadd.f32 0.0, %v3643
        %3645 = vmatmul.bf16.gmra.mxu0 %v3569
        %v3646 = vpop.f32.mrf.mxu0
        %v3647 = vadd.f32 0.0, %v3646
        %v3648 = vpop.f32.mrf.mxu0
        %v3649 = vadd.f32 0.0, %v3648
        %3650 = vmatmul.bf16.gmra.mxu0 %v3572
        %v3651 = vpop.f32.mrf.mxu0
        %v3652 = vadd.f32 0.0, %v3651
        %v3653 = vpop.f32.mrf.mxu0
        %v3654 = vadd.f32 0.0, %v3653
        %3655 = vmatmul.bf16.gmra.mxu0 %v3575
        %v3656 = vpop.f32.mrf.mxu0
        %v3657 = vadd.f32 0.0, %v3656
        %v3658 = vpop.f32.mrf.mxu0
        %v3659 = vadd.f32 0.0, %v3658
        %3660 = vmatmul.bf16.gmra.mxu0 %v3578
        %v3661 = vpop.f32.mrf.mxu0
        %v3662 = vadd.f32 0.0, %v3661
        %v3663 = vpop.f32.mrf.mxu0
        %v3664 = vadd.f32 0.0, %v3663
        %3665 = vmatmul.bf16.gmra.mxu0 %v3581
        %v3666 = vpop.f32.mrf.mxu0
        %v3667 = vadd.f32 0.0, %v3666
        %v3668 = vpop.f32.mrf.mxu0
        %v3669 = vadd.f32 0.0, %v3668
        %3670 = vmatmul.bf16.gmra.mxu0 %v3584
        %v3671 = vpop.f32.mrf.mxu0
        %v3672 = vadd.f32 0.0, %v3671
        %v3673 = vpop.f32.mrf.mxu0
        %v3674 = vadd.f32 0.0, %v3673
        %3675 = vmatmul.bf16.gmra.mxu0 %v3587
        %v3676 = vpop.f32.mrf.mxu0
        %v3677 = vadd.f32 0.0, %v3676
        %v3678 = vpop.f32.mrf.mxu0
        %v3679 = vadd.f32 0.0, %v3678
        %3680 = vmatmul.bf16.gmra.mxu0 %v3590
        %v3681 = vpop.f32.mrf.mxu0
        %v3682 = vadd.f32 0.0, %v3681
        %v3683 = vpop.f32.mrf.mxu0
        %v3684 = vadd.f32 0.0, %v3683
        %3685 = vmatmul.bf16.gmra.mxu0 %v3593
        %v3686 = vpop.f32.mrf.mxu0
        %v3687 = vadd.f32 0.0, %v3686
        %v3688 = vpop.f32.mrf.mxu0
        %v3689 = vadd.f32 0.0, %v3688
        %3690 = vmatmul.bf16.gmra.mxu0 %v3596
        %v3691 = vpop.f32.mrf.mxu0
        %v3692 = vadd.f32 0.0, %v3691
        %v3693 = vpop.f32.mrf.mxu0
        %v3694 = vadd.f32 0.0, %v3693
        %3695 = vmatmul.bf16.gmra.mxu0 %v3599
        %v3696 = vpop.f32.mrf.mxu0
        %v3697 = vadd.f32 0.0, %v3696
        %v3698 = vpop.f32.mrf.mxu0
        %v3699 = vadd.f32 0.0, %v3698
        %3700 = vmatmul.bf16.gmra.mxu0 %v3602
        %v3701 = vpop.f32.mrf.mxu0
        %v3702 = vadd.f32 0.0, %v3701
        %v3703 = vpop.f32.mrf.mxu0
        %v3704 = vadd.f32 0.0, %v3703
        %3705 = vdwg.mxu0
        %v3706 = vadd.f32 %v3426, %v3617
        %v3707 = vadd.f32 %v3427, %v3619
        %v3708 = vadd.f32 %v3428, %v3622
        %v3709 = vadd.f32 %v3429, %v3624
        %v3710 = vadd.f32 %v3430, %v3627
        %v3711 = vadd.f32 %v3431, %v3629
        %v3712 = vadd.f32 %v3432, %v3632
        %v3713 = vadd.f32 %v3433, %v3634
        %v3714 = vadd.f32 %v3434, %v3637
        %v3715 = vadd.f32 %v3435, %v3639
        %v3716 = vadd.f32 %v3436, %v3642
        %v3717 = vadd.f32 %v3437, %v3644
        %v3718 = vadd.f32 %v3438, %v3647
        %v3719 = vadd.f32 %v3439, %v3649
        %v3720 = vadd.f32 %v3440, %v3652
        %v3721 = vadd.f32 %v3441, %v3654
        %v3722 = vadd.f32 %v3442, %v3657
        %v3723 = vadd.f32 %v3443, %v3659
        %v3724 = vadd.f32 %v3444, %v3662
        %v3725 = vadd.f32 %v3445, %v3664
        %v3726 = vadd.f32 %v3446, %v3667
        %v3727 = vadd.f32 %v3447, %v3669
        %v3728 = vadd.f32 %v3448, %v3672
        %v3729 = vadd.f32 %v3449, %v3674
        %v3730 = vadd.f32 %v3450, %v3677
        %v3731 = vadd.f32 %v3451, %v3679
        %v3732 = vadd.f32 %v3452, %v3682
        %v3733 = vadd.f32 %v3453, %v3684
        %v3734 = vadd.f32 %v3454, %v3687
        %v3735 = vadd.f32 %v3455, %v3689
        %v3736 = vadd.f32 %v3456, %v3692
        %v3737 = vadd.f32 %v3457, %v3694
        %v3738 = vadd.f32 %v3458, %v3697
        %v3739 = vadd.f32 %v3459, %v3699
        %v3740 = vadd.f32 %v3460, %v3702
        %v3741 = vadd.f32 %v3461, %v3704
        %s3742 = scalar_lea.vmem %s10, 10
        %v3743 = vld [vmem:[%s3742] sm:$0x3]
        %vm3744 = vcmask 1045504
        %v3745 = vrot.slane %v2591, 2
        %v3746 = vrot.slane %v2592, 2
        %v3747 = vsel %vm3744, %v3745, %v3746
        %v3748 = vrot.slane %v2593, 2
        %v3749 = vsel %vm3744, %v3746, %v3748
        %v3750 = vrot.slane %v2594, 2
        %v3751 = vsel %vm3744, %v3748, %v3750
        %v3752 = vrot.slane %v2595, 2
        %v3753 = vsel %vm3744, %v3750, %v3752
        %v3754 = vrot.slane %v2596, 2
        %v3755 = vsel %vm3744, %v3752, %v3754
        %v3756 = vrot.slane %v2597, 2
        %v3757 = vsel %vm3744, %v3754, %v3756
        %v3758 = vrot.slane %v2598, 2
        %v3759 = vsel %vm3744, %v3756, %v3758
        %v3760 = vrot.slane %v2599, 2
        %v3761 = vsel %vm3744, %v3758, %v3760
        %v3762 = vrot.slane %v2600, 2
        %v3763 = vsel %vm3744, %v3760, %v3762
        %v3764 = vrot.slane %v2601, 2
        %v3765 = vsel %vm3744, %v3762, %v3764
        %v3766 = vrot.slane %v2602, 2
        %v3767 = vsel %vm3744, %v3764, %v3766
        %v3768 = vrot.slane %v2603, 2
        %v3769 = vsel %vm3744, %v3766, %v3768
        %v3770 = vrot.slane %v2604, 2
        %v3771 = vsel %vm3744, %v3768, %v3770
        %v3772 = vrot.slane %v2605, 2
        %v3773 = vsel %vm3744, %v3770, %v3772
        %v3774 = vrot.slane %v2606, 2
        %v3775 = vsel %vm3744, %v3772, %v3774
        %v3776 = vrot.slane %v2607, 2
        %v3777 = vsel %vm3744, %v3774, %v3776
        %v3778 = vrot.slane %v3308, 2
        %v3779 = vsel %vm3744, %v3776, %v3778
        %v3780 = vrot.slane %v3309, 2
        %v3781 = vsel %vm3744, %v3778, %v3780
        %v3783 = vsel %vm2761, %v3747, 0
        %v3786 = vsel %vm2761, %v3749, 0
        %v3789 = vsel %vm2761, %v3751, 0
        %v3792 = vsel %vm2761, %v3753, 0
        %v3795 = vsel %vm2761, %v3755, 0
        %v3798 = vsel %vm2761, %v3757, 0
        %v3801 = vsel %vm2761, %v3759, 0
        %v3804 = vsel %vm2761, %v3761, 0
        %v3807 = vsel %vm2761, %v3763, 0
        %v3810 = vsel %vm2761, %v3765, 0
        %v3813 = vsel %vm2761, %v3767, 0
        %v3816 = vsel %vm2761, %v3769, 0
        %v3819 = vsel %vm2761, %v3771, 0
        %v3822 = vsel %vm2761, %v3773, 0
        %v3825 = vsel %vm2761, %v3775, 0
        %v3828 = vsel %vm2761, %v3777, 0
        %v3831 = vsel %vm2761, %v3779, 0
        %v3834 = vsel %vm2761, %v3781, 0
        %v3837 = vsel %vm2816, %v3743, 0
        %3839 = vmatpush.bf16.msra.mxu0 0
        %3840 = vmatpush.bf16.msra.mxu0 0
        %3841 = vmatpush.bf16.msra.mxu0 0
        %3842 = vmatpush.bf16.msra.mxu0 0
        %3843 = vmatpush.bf16.msra.mxu0 0
        %3844 = vmatpush.bf16.msra.mxu0 0
        %3845 = vmatpush.bf16.msra.mxu0 0
        %3846 = vmatpush.bf16.msra.mxu0 %v3837
        %3847 = vmatmul.bf16.gmra.mxu0 %v3783
        %v3848 = vpop.f32.mrf.mxu0
        %v3849 = vadd.f32 0.0, %v3848
        %v3850 = vpop.f32.mrf.mxu0
        %v3851 = vadd.f32 0.0, %v3850
        %3852 = vmatmul.bf16.gmra.mxu0 %v3786
        %v3853 = vpop.f32.mrf.mxu0
        %v3854 = vadd.f32 0.0, %v3853
        %v3855 = vpop.f32.mrf.mxu0
        %v3856 = vadd.f32 0.0, %v3855
        %3857 = vmatmul.bf16.gmra.mxu0 %v3789
        %v3858 = vpop.f32.mrf.mxu0
        %v3859 = vadd.f32 0.0, %v3858
        %v3860 = vpop.f32.mrf.mxu0
        %v3861 = vadd.f32 0.0, %v3860
        %3862 = vmatmul.bf16.gmra.mxu0 %v3792
        %v3863 = vpop.f32.mrf.mxu0
        %v3864 = vadd.f32 0.0, %v3863
        %v3865 = vpop.f32.mrf.mxu0
        %v3866 = vadd.f32 0.0, %v3865
        %3867 = vmatmul.bf16.gmra.mxu0 %v3795
        %v3868 = vpop.f32.mrf.mxu0
        %v3869 = vadd.f32 0.0, %v3868
        %v3870 = vpop.f32.mrf.mxu0
        %v3871 = vadd.f32 0.0, %v3870
        %3872 = vmatmul.bf16.gmra.mxu0 %v3798
        %v3873 = vpop.f32.mrf.mxu0
        %v3874 = vadd.f32 0.0, %v3873
        %v3875 = vpop.f32.mrf.mxu0
        %v3876 = vadd.f32 0.0, %v3875
        %3877 = vmatmul.bf16.gmra.mxu0 %v3801
        %v3878 = vpop.f32.mrf.mxu0
        %v3879 = vadd.f32 0.0, %v3878
        %v3880 = vpop.f32.mrf.mxu0
        %v3881 = vadd.f32 0.0, %v3880
        %3882 = vmatmul.bf16.gmra.mxu0 %v3804
        %v3883 = vpop.f32.mrf.mxu0
        %v3884 = vadd.f32 0.0, %v3883
        %v3885 = vpop.f32.mrf.mxu0
        %v3886 = vadd.f32 0.0, %v3885
        %3887 = vmatmul.bf16.gmra.mxu0 %v3807
        %v3888 = vpop.f32.mrf.mxu0
        %v3889 = vadd.f32 0.0, %v3888
        %v3890 = vpop.f32.mrf.mxu0
        %v3891 = vadd.f32 0.0, %v3890
        %3892 = vmatmul.bf16.gmra.mxu0 %v3810
        %v3893 = vpop.f32.mrf.mxu0
        %v3894 = vadd.f32 0.0, %v3893
        %v3895 = vpop.f32.mrf.mxu0
        %v3896 = vadd.f32 0.0, %v3895
        %3897 = vmatmul.bf16.gmra.mxu0 %v3813
        %v3898 = vpop.f32.mrf.mxu0
        %v3899 = vadd.f32 0.0, %v3898
        %v3900 = vpop.f32.mrf.mxu0
        %v3901 = vadd.f32 0.0, %v3900
        %3902 = vmatmul.bf16.gmra.mxu0 %v3816
        %v3903 = vpop.f32.mrf.mxu0
        %v3904 = vadd.f32 0.0, %v3903
        %v3905 = vpop.f32.mrf.mxu0
        %v3906 = vadd.f32 0.0, %v3905
        %3907 = vmatmul.bf16.gmra.mxu0 %v3819
        %v3908 = vpop.f32.mrf.mxu0
        %v3909 = vadd.f32 0.0, %v3908
        %v3910 = vpop.f32.mrf.mxu0
        %v3911 = vadd.f32 0.0, %v3910
        %3912 = vmatmul.bf16.gmra.mxu0 %v3822
        %v3913 = vpop.f32.mrf.mxu0
        %v3914 = vadd.f32 0.0, %v3913
        %v3915 = vpop.f32.mrf.mxu0
        %v3916 = vadd.f32 0.0, %v3915
        %3917 = vmatmul.bf16.gmra.mxu0 %v3825
        %v3918 = vpop.f32.mrf.mxu0
        %v3919 = vadd.f32 0.0, %v3918
        %v3920 = vpop.f32.mrf.mxu0
        %v3921 = vadd.f32 0.0, %v3920
        %3922 = vmatmul.bf16.gmra.mxu0 %v3828
        %v3923 = vpop.f32.mrf.mxu0
        %v3924 = vadd.f32 0.0, %v3923
        %v3925 = vpop.f32.mrf.mxu0
        %v3926 = vadd.f32 0.0, %v3925
        %3927 = vmatmul.bf16.gmra.mxu0 %v3831
        %v3928 = vpop.f32.mrf.mxu0
        %v3929 = vadd.f32 0.0, %v3928
        %v3930 = vpop.f32.mrf.mxu0
        %v3931 = vadd.f32 0.0, %v3930
        %3932 = vmatmul.bf16.gmra.mxu0 %v3834
        %v3933 = vpop.f32.mrf.mxu0
        %v3934 = vadd.f32 0.0, %v3933
        %v3935 = vpop.f32.mrf.mxu0
        %v3936 = vadd.f32 0.0, %v3935
        %3937 = vdwg.mxu0
        %v3938 = vadd.f32 %v3706, %v3849
        %v3939 = vadd.f32 %v3707, %v3851
        %v3940 = vadd.f32 %v3708, %v3854
        %v3941 = vadd.f32 %v3709, %v3856
        %v3942 = vadd.f32 %v3710, %v3859
        %v3943 = vadd.f32 %v3711, %v3861
        %v3944 = vadd.f32 %v3712, %v3864
        %v3945 = vadd.f32 %v3713, %v3866
        %v3946 = vadd.f32 %v3714, %v3869
        %v3947 = vadd.f32 %v3715, %v3871
        %v3948 = vadd.f32 %v3716, %v3874
        %v3949 = vadd.f32 %v3717, %v3876
        %v3950 = vadd.f32 %v3718, %v3879
        %v3951 = vadd.f32 %v3719, %v3881
        %v3952 = vadd.f32 %v3720, %v3884
        %v3953 = vadd.f32 %v3721, %v3886
        %v3954 = vadd.f32 %v3722, %v3889
        %v3955 = vadd.f32 %v3723, %v3891
        %v3956 = vadd.f32 %v3724, %v3894
        %v3957 = vadd.f32 %v3725, %v3896
        %v3958 = vadd.f32 %v3726, %v3899
        %v3959 = vadd.f32 %v3727, %v3901
        %v3960 = vadd.f32 %v3728, %v3904
        %v3961 = vadd.f32 %v3729, %v3906
        %v3962 = vadd.f32 %v3730, %v3909
        %v3963 = vadd.f32 %v3731, %v3911
        %v3964 = vadd.f32 %v3732, %v3914
        %v3965 = vadd.f32 %v3733, %v3916
        %v3966 = vadd.f32 %v3734, %v3919
        %v3967 = vadd.f32 %v3735, %v3921
        %v3968 = vadd.f32 %v3736, %v3924
        %v3969 = vadd.f32 %v3737, %v3926
        %v3970 = vadd.f32 %v3738, %v3929
        %v3971 = vadd.f32 %v3739, %v3931
        %v3972 = vadd.f32 %v3740, %v3934
        %v3973 = vadd.f32 %v3741, %v3936
        %v3974 = vpack.c.bf16 %v928, %v927
        %v3975 = vpack.c.bf16 %v929, %v929
        %s3976 = scalar_lea.vmem %s10, 12
        %v3977 = vld [vmem:[%s3976] sm:$0x3]
        %v3980 = vrot.slane %v3974, 2
        %v3981 = vsel %vm3744, %v3778, %v3980
        %v3982 = vrot.slane %v3975, 2
        %v3983 = vsel %vm3744, %v3980, %v3982
        %v3985 = vsel %vm2761, %v3981, 0
        %v3988 = vsel %vm2761, %v3983, 0
        %v3991 = vsel %vm2816, %v3977, 0
        %3993 = vmatpush.bf16.msra.mxu0 0
        %3994 = vmatpush.bf16.msra.mxu0 0
        %3995 = vmatpush.bf16.msra.mxu0 0
        %3996 = vmatpush.bf16.msra.mxu0 0
        %3997 = vmatpush.bf16.msra.mxu0 0
        %3998 = vmatpush.bf16.msra.mxu0 0
        %3999 = vmatpush.bf16.msra.mxu0 0
        %4000 = vmatpush.bf16.msra.mxu0 %v3991
        %4001 = vmatmul.bf16.gmra.mxu0 %v3786
        %v4002 = vpop.f32.mrf.mxu0
        %v4003 = vadd.f32 0.0, %v4002
        %v4004 = vpop.f32.mrf.mxu0
        %v4005 = vadd.f32 0.0, %v4004
        %4006 = vmatmul.bf16.gmra.mxu0 %v3789
        %v4007 = vpop.f32.mrf.mxu0
        %v4008 = vadd.f32 0.0, %v4007
        %v4009 = vpop.f32.mrf.mxu0
        %v4010 = vadd.f32 0.0, %v4009
        %4011 = vmatmul.bf16.gmra.mxu0 %v3792
        %v4012 = vpop.f32.mrf.mxu0
        %v4013 = vadd.f32 0.0, %v4012
        %v4014 = vpop.f32.mrf.mxu0
        %v4015 = vadd.f32 0.0, %v4014
        %4016 = vmatmul.bf16.gmra.mxu0 %v3795
        %v4017 = vpop.f32.mrf.mxu0
        %v4018 = vadd.f32 0.0, %v4017
        %v4019 = vpop.f32.mrf.mxu0
        %v4020 = vadd.f32 0.0, %v4019
        %4021 = vmatmul.bf16.gmra.mxu0 %v3798
        %v4022 = vpop.f32.mrf.mxu0
        %v4023 = vadd.f32 0.0, %v4022
        %v4024 = vpop.f32.mrf.mxu0
        %v4025 = vadd.f32 0.0, %v4024
        %4026 = vmatmul.bf16.gmra.mxu0 %v3801
        %v4027 = vpop.f32.mrf.mxu0
        %v4028 = vadd.f32 0.0, %v4027
        %v4029 = vpop.f32.mrf.mxu0
        %v4030 = vadd.f32 0.0, %v4029
        %4031 = vmatmul.bf16.gmra.mxu0 %v3804
        %v4032 = vpop.f32.mrf.mxu0
        %v4033 = vadd.f32 0.0, %v4032
        %v4034 = vpop.f32.mrf.mxu0
        %v4035 = vadd.f32 0.0, %v4034
        %4036 = vmatmul.bf16.gmra.mxu0 %v3807
        %v4037 = vpop.f32.mrf.mxu0
        %v4038 = vadd.f32 0.0, %v4037
        %v4039 = vpop.f32.mrf.mxu0
        %v4040 = vadd.f32 0.0, %v4039
        %4041 = vmatmul.bf16.gmra.mxu0 %v3810
        %v4042 = vpop.f32.mrf.mxu0
        %v4043 = vadd.f32 0.0, %v4042
        %v4044 = vpop.f32.mrf.mxu0
        %v4045 = vadd.f32 0.0, %v4044
        %4046 = vmatmul.bf16.gmra.mxu0 %v3813
        %v4047 = vpop.f32.mrf.mxu0
        %v4048 = vadd.f32 0.0, %v4047
        %v4049 = vpop.f32.mrf.mxu0
        %v4050 = vadd.f32 0.0, %v4049
        %4051 = vmatmul.bf16.gmra.mxu0 %v3816
        %v4052 = vpop.f32.mrf.mxu0
        %v4053 = vadd.f32 0.0, %v4052
        %v4054 = vpop.f32.mrf.mxu0
        %v4055 = vadd.f32 0.0, %v4054
        %4056 = vmatmul.bf16.gmra.mxu0 %v3819
        %v4057 = vpop.f32.mrf.mxu0
        %v4058 = vadd.f32 0.0, %v4057
        %v4059 = vpop.f32.mrf.mxu0
        %v4060 = vadd.f32 0.0, %v4059
        %4061 = vmatmul.bf16.gmra.mxu0 %v3822
        %v4062 = vpop.f32.mrf.mxu0
        %v4063 = vadd.f32 0.0, %v4062
        %v4064 = vpop.f32.mrf.mxu0
        %v4065 = vadd.f32 0.0, %v4064
        %4066 = vmatmul.bf16.gmra.mxu0 %v3825
        %v4067 = vpop.f32.mrf.mxu0
        %v4068 = vadd.f32 0.0, %v4067
        %v4069 = vpop.f32.mrf.mxu0
        %v4070 = vadd.f32 0.0, %v4069
        %4071 = vmatmul.bf16.gmra.mxu0 %v3828
        %v4072 = vpop.f32.mrf.mxu0
        %v4073 = vadd.f32 0.0, %v4072
        %v4074 = vpop.f32.mrf.mxu0
        %v4075 = vadd.f32 0.0, %v4074
        %4076 = vmatmul.bf16.gmra.mxu0 %v3831
        %v4077 = vpop.f32.mrf.mxu0
        %v4078 = vadd.f32 0.0, %v4077
        %v4079 = vpop.f32.mrf.mxu0
        %v4080 = vadd.f32 0.0, %v4079
        %4081 = vmatmul.bf16.gmra.mxu0 %v3985
        %v4082 = vpop.f32.mrf.mxu0
        %v4083 = vadd.f32 0.0, %v4082
        %v4084 = vpop.f32.mrf.mxu0
        %v4085 = vadd.f32 0.0, %v4084
        %4086 = vmatmul.bf16.gmra.mxu0 %v3988
        %v4087 = vpop.f32.mrf.mxu0
        %v4088 = vadd.f32 0.0, %v4087
        %v4089 = vpop.f32.mrf.mxu0
        %v4090 = vadd.f32 0.0, %v4089
        %4091 = vdwg.mxu0
        %v4092 = vadd.f32 %v3938, %v4003
        %v4093 = vadd.f32 %v3939, %v4005
        %v4094 = vadd.f32 %v3940, %v4008
        %v4095 = vadd.f32 %v3941, %v4010
        %v4096 = vadd.f32 %v3942, %v4013
        %v4097 = vadd.f32 %v3943, %v4015
        %v4098 = vadd.f32 %v3944, %v4018
        %v4099 = vadd.f32 %v3945, %v4020
        %v4100 = vadd.f32 %v3946, %v4023
        %v4101 = vadd.f32 %v3947, %v4025
        %v4102 = vadd.f32 %v3948, %v4028
        %v4103 = vadd.f32 %v3949, %v4030
        %v4104 = vadd.f32 %v3950, %v4033
        %v4105 = vadd.f32 %v3951, %v4035
        %v4106 = vadd.f32 %v3952, %v4038
        %v4107 = vadd.f32 %v3953, %v4040
        %v4108 = vadd.f32 %v3954, %v4043
        %v4109 = vadd.f32 %v3955, %v4045
        %v4110 = vadd.f32 %v3956, %v4048
        %v4111 = vadd.f32 %v3957, %v4050
        %v4112 = vadd.f32 %v3958, %v4053
        %v4113 = vadd.f32 %v3959, %v4055
        %v4114 = vadd.f32 %v3960, %v4058
        %v4115 = vadd.f32 %v3961, %v4060
        %v4116 = vadd.f32 %v3962, %v4063
        %v4117 = vadd.f32 %v3963, %v4065
        %v4118 = vadd.f32 %v3964, %v4068
        %v4119 = vadd.f32 %v3965, %v4070
        %v4120 = vadd.f32 %v3966, %v4073
        %v4121 = vadd.f32 %v3967, %v4075
        %v4122 = vadd.f32 %v3968, %v4078
        %v4123 = vadd.f32 %v3969, %v4080
        %v4124 = vadd.f32 %v3970, %v4083
        %v4125 = vadd.f32 %v3971, %v4085
        %v4126 = vadd.f32 %v3972, %v4088
        %v4127 = vadd.f32 %v3973, %v4090
        %s4128 = scalar_lea.vmem %s10, 14
        %v4129 = vld [vmem:[%s4128] sm:$0x3]
        %vm4130 = vsmask.f32 5376
        %v4131 = vrot.slane %v2633, 2
        %v4132 = vrot.slane %v2629, 3
        %v4133 = vor.u32 %v4131, %v4132
        %v4134 = vrot.slane %v2641, 2
        %v4135 = vrot.slane %v2637, 3
        %v4136 = vor.u32 %v4134, %v4135
        %v4137 = vsel %vm4130, %v4133, %v4136
        %v4138 = vrot.slane %v2649, 2
        %v4139 = vrot.slane %v2645, 3
        %v4140 = vor.u32 %v4138, %v4139
        %v4141 = vsel %vm4130, %v4136, %v4140
        %v4142 = vrot.slane %v2657, 2
        %v4143 = vrot.slane %v2653, 3
        %v4144 = vor.u32 %v4142, %v4143
        %v4145 = vsel %vm4130, %v4140, %v4144
        %v4146 = vrot.slane %v2665, 2
        %v4147 = vrot.slane %v2661, 3
        %v4148 = vor.u32 %v4146, %v4147
        %v4149 = vsel %vm4130, %v4144, %v4148
        %v4150 = vrot.slane %v2673, 2
        %v4151 = vrot.slane %v2669, 3
        %v4152 = vor.u32 %v4150, %v4151
        %v4153 = vsel %vm4130, %v4148, %v4152
        %v4154 = vrot.slane %v2681, 2
        %v4155 = vrot.slane %v2677, 3
        %v4156 = vor.u32 %v4154, %v4155
        %v4157 = vsel %vm4130, %v4152, %v4156
        %v4158 = vrot.slane %v2689, 2
        %v4159 = vrot.slane %v2685, 3
        %v4160 = vor.u32 %v4158, %v4159
        %v4161 = vsel %vm4130, %v4156, %v4160
        %v4162 = vrot.slane %v2697, 2
        %v4163 = vrot.slane %v2693, 3
        %v4164 = vor.u32 %v4162, %v4163
        %v4165 = vsel %vm4130, %v4160, %v4164
        %v4166 = vrot.slane %v2705, 2
        %v4167 = vrot.slane %v2701, 3
        %v4168 = vor.u32 %v4166, %v4167
        %v4169 = vsel %vm4130, %v4164, %v4168
        %v4170 = vrot.slane %v2713, 2
        %v4171 = vrot.slane %v2709, 3
        %v4172 = vor.u32 %v4170, %v4171
        %v4173 = vsel %vm4130, %v4168, %v4172
        %v4174 = vrot.slane %v2721, 2
        %v4175 = vrot.slane %v2717, 3
        %v4176 = vor.u32 %v4174, %v4175
        %v4177 = vsel %vm4130, %v4172, %v4176
        %v4178 = vrot.slane %v2729, 2
        %v4179 = vrot.slane %v2725, 3
        %v4180 = vor.u32 %v4178, %v4179
        %v4181 = vsel %vm4130, %v4176, %v4180
        %v4182 = vrot.slane %v2737, 2
        %v4183 = vrot.slane %v2733, 3
        %v4184 = vor.u32 %v4182, %v4183
        %v4185 = vsel %vm4130, %v4180, %v4184
        %v4186 = vrot.slane %v2745, 2
        %v4187 = vrot.slane %v2741, 3
        %v4188 = vor.u32 %v4186, %v4187
        %v4189 = vsel %vm4130, %v4184, %v4188
        %v4190 = vrot.slane %v2753, 2
        %v4191 = vrot.slane %v2749, 3
        %v4192 = vor.u32 %v4190, %v4191
        %v4193 = vsel %vm4130, %v4188, %v4192
        %v4194 = vrot.slane %v3533, 2
        %v4195 = vrot.slane %v3536, 3
        %v4196 = vor.u32 %v4194, %v4195
        %v4197 = vsel %vm4130, %v4192, %v4196
        %v4199 = vshrl.u32 %v3974, 16
        %v4201 = vrot.slane %v4199, 2
        %v4202 = vshll.u32 %v3974, 16
        %v4204 = vrot.slane %v4202, 3
        %v4205 = vor.u32 %v4201, %v4204
        %v4206 = vsel %vm4130, %v4196, %v4205
        %v4208 = vshrl.u32 %v3975, 16
        %v4210 = vrot.slane %v4208, 2
        %v4211 = vshll.u32 %v3975, 16
        %v4213 = vrot.slane %v4211, 3
        %v4214 = vor.u32 %v4210, %v4213
        %v4215 = vsel %vm4130, %v4205, %v4214
        %v4217 = vsel %vm2761, %v4137, 0
        %v4220 = vsel %vm2761, %v4141, 0
        %v4223 = vsel %vm2761, %v4145, 0
        %v4226 = vsel %vm2761, %v4149, 0
        %v4229 = vsel %vm2761, %v4153, 0
        %v4232 = vsel %vm2761, %v4157, 0
        %v4235 = vsel %vm2761, %v4161, 0
        %v4238 = vsel %vm2761, %v4165, 0
        %v4241 = vsel %vm2761, %v4169, 0
        %v4244 = vsel %vm2761, %v4173, 0
        %v4247 = vsel %vm2761, %v4177, 0
        %v4250 = vsel %vm2761, %v4181, 0
        %v4253 = vsel %vm2761, %v4185, 0
        %v4256 = vsel %vm2761, %v4189, 0
        %v4259 = vsel %vm2761, %v4193, 0
        %v4262 = vsel %vm2761, %v4197, 0
        %v4265 = vsel %vm2761, %v4206, 0
        %v4268 = vsel %vm2761, %v4215, 0
        %v4271 = vsel %vm2816, %v4129, 0
        %4273 = vmatpush.bf16.msra.mxu0 0
        %4274 = vmatpush.bf16.msra.mxu0 0
        %4275 = vmatpush.bf16.msra.mxu0 0
        %4276 = vmatpush.bf16.msra.mxu0 0
        %4277 = vmatpush.bf16.msra.mxu0 0
        %4278 = vmatpush.bf16.msra.mxu0 0
        %4279 = vmatpush.bf16.msra.mxu0 0
        %4280 = vmatpush.bf16.msra.mxu0 %v4271
        %4281 = vmatmul.bf16.gmra.mxu0 %v4217
        %v4282 = vpop.f32.mrf.mxu0
        %v4283 = vadd.f32 0.0, %v4282
        %v4284 = vpop.f32.mrf.mxu0
        %v4285 = vadd.f32 0.0, %v4284
        %4286 = vmatmul.bf16.gmra.mxu0 %v4220
        %v4287 = vpop.f32.mrf.mxu0
        %v4288 = vadd.f32 0.0, %v4287
        %v4289 = vpop.f32.mrf.mxu0
        %v4290 = vadd.f32 0.0, %v4289
        %4291 = vmatmul.bf16.gmra.mxu0 %v4223
        %v4292 = vpop.f32.mrf.mxu0
        %v4293 = vadd.f32 0.0, %v4292
        %v4294 = vpop.f32.mrf.mxu0
        %v4295 = vadd.f32 0.0, %v4294
        %4296 = vmatmul.bf16.gmra.mxu0 %v4226
        %v4297 = vpop.f32.mrf.mxu0
        %v4298 = vadd.f32 0.0, %v4297
        %v4299 = vpop.f32.mrf.mxu0
        %v4300 = vadd.f32 0.0, %v4299
        %4301 = vmatmul.bf16.gmra.mxu0 %v4229
        %v4302 = vpop.f32.mrf.mxu0
        %v4303 = vadd.f32 0.0, %v4302
        %v4304 = vpop.f32.mrf.mxu0
        %v4305 = vadd.f32 0.0, %v4304
        %4306 = vmatmul.bf16.gmra.mxu0 %v4232
        %v4307 = vpop.f32.mrf.mxu0
        %v4308 = vadd.f32 0.0, %v4307
        %v4309 = vpop.f32.mrf.mxu0
        %v4310 = vadd.f32 0.0, %v4309
        %4311 = vmatmul.bf16.gmra.mxu0 %v4235
        %v4312 = vpop.f32.mrf.mxu0
        %v4313 = vadd.f32 0.0, %v4312
        %v4314 = vpop.f32.mrf.mxu0
        %v4315 = vadd.f32 0.0, %v4314
        %4316 = vmatmul.bf16.gmra.mxu0 %v4238
        %v4317 = vpop.f32.mrf.mxu0
        %v4318 = vadd.f32 0.0, %v4317
        %v4319 = vpop.f32.mrf.mxu0
        %v4320 = vadd.f32 0.0, %v4319
        %4321 = vmatmul.bf16.gmra.mxu0 %v4241
        %v4322 = vpop.f32.mrf.mxu0
        %v4323 = vadd.f32 0.0, %v4322
        %v4324 = vpop.f32.mrf.mxu0
        %v4325 = vadd.f32 0.0, %v4324
        %4326 = vmatmul.bf16.gmra.mxu0 %v4244
        %v4327 = vpop.f32.mrf.mxu0
        %v4328 = vadd.f32 0.0, %v4327
        %v4329 = vpop.f32.mrf.mxu0
        %v4330 = vadd.f32 0.0, %v4329
        %4331 = vmatmul.bf16.gmra.mxu0 %v4247
        %v4332 = vpop.f32.mrf.mxu0
        %v4333 = vadd.f32 0.0, %v4332
        %v4334 = vpop.f32.mrf.mxu0
        %v4335 = vadd.f32 0.0, %v4334
        %4336 = vmatmul.bf16.gmra.mxu0 %v4250
        %v4337 = vpop.f32.mrf.mxu0
        %v4338 = vadd.f32 0.0, %v4337
        %v4339 = vpop.f32.mrf.mxu0
        %v4340 = vadd.f32 0.0, %v4339
        %4341 = vmatmul.bf16.gmra.mxu0 %v4253
        %v4342 = vpop.f32.mrf.mxu0
        %v4343 = vadd.f32 0.0, %v4342
        %v4344 = vpop.f32.mrf.mxu0
        %v4345 = vadd.f32 0.0, %v4344
        %4346 = vmatmul.bf16.gmra.mxu0 %v4256
        %v4347 = vpop.f32.mrf.mxu0
        %v4348 = vadd.f32 0.0, %v4347
        %v4349 = vpop.f32.mrf.mxu0
        %v4350 = vadd.f32 0.0, %v4349
        %4351 = vmatmul.bf16.gmra.mxu0 %v4259
        %v4352 = vpop.f32.mrf.mxu0
        %v4353 = vadd.f32 0.0, %v4352
        %v4354 = vpop.f32.mrf.mxu0
        %v4355 = vadd.f32 0.0, %v4354
        %4356 = vmatmul.bf16.gmra.mxu0 %v4262
        %v4357 = vpop.f32.mrf.mxu0
        %v4358 = vadd.f32 0.0, %v4357
        %v4359 = vpop.f32.mrf.mxu0
        %v4360 = vadd.f32 0.0, %v4359
        %4361 = vmatmul.bf16.gmra.mxu0 %v4265
        %v4362 = vpop.f32.mrf.mxu0
        %v4363 = vadd.f32 0.0, %v4362
        %v4364 = vpop.f32.mrf.mxu0
        %v4365 = vadd.f32 0.0, %v4364
        %4366 = vmatmul.bf16.gmra.mxu0 %v4268
        %v4367 = vpop.f32.mrf.mxu0
        %v4368 = vadd.f32 0.0, %v4367
        %v4369 = vpop.f32.mrf.mxu0
        %v4370 = vadd.f32 0.0, %v4369
        %4371 = vdwg.mxu0
        %v4372 = vadd.f32 %v4092, %v4283
        %v4373 = vadd.f32 %v4093, %v4285
        %v4374 = vadd.f32 %v4094, %v4288
        %v4375 = vadd.f32 %v4095, %v4290
        %v4376 = vadd.f32 %v4096, %v4293
        %v4377 = vadd.f32 %v4097, %v4295
        %v4378 = vadd.f32 %v4098, %v4298
        %v4379 = vadd.f32 %v4099, %v4300
        %v4380 = vadd.f32 %v4100, %v4303
        %v4381 = vadd.f32 %v4101, %v4305
        %v4382 = vadd.f32 %v4102, %v4308
        %v4383 = vadd.f32 %v4103, %v4310
        %v4384 = vadd.f32 %v4104, %v4313
        %v4385 = vadd.f32 %v4105, %v4315
        %v4386 = vadd.f32 %v4106, %v4318
        %v4387 = vadd.f32 %v4107, %v4320
        %v4388 = vadd.f32 %v4108, %v4323
        %v4389 = vadd.f32 %v4109, %v4325
        %v4390 = vadd.f32 %v4110, %v4328
        %v4391 = vadd.f32 %v4111, %v4330
        %v4392 = vadd.f32 %v4112, %v4333
        %v4393 = vadd.f32 %v4113, %v4335
        %v4394 = vadd.f32 %v4114, %v4338
        %v4395 = vadd.f32 %v4115, %v4340
        %v4396 = vadd.f32 %v4116, %v4343
        %v4397 = vadd.f32 %v4117, %v4345
        %v4398 = vadd.f32 %v4118, %v4348
        %v4399 = vadd.f32 %v4119, %v4350
        %v4400 = vadd.f32 %v4120, %v4353
        %v4401 = vadd.f32 %v4121, %v4355
        %v4402 = vadd.f32 %v4122, %v4358
        %v4403 = vadd.f32 %v4123, %v4360
        %v4404 = vadd.f32 %v4124, %v4363
        %v4405 = vadd.f32 %v4125, %v4365
        %v4406 = vadd.f32 %v4126, %v4368
        %v4407 = vadd.f32 %v4127, %v4370
        %s4408 = scalar_lea.vmem %s10, 16
        %v4409 = vld [vmem:[%s4408] sm:$0x3]
        %vm4410 = vcmask 1044480
        %v4411 = vrot.slane %v2592, 3
        %v4412 = vrot.slane %v2593, 3
        %v4413 = vsel %vm4410, %v4411, %v4412
        %v4414 = vrot.slane %v2594, 3
        %v4415 = vsel %vm4410, %v4412, %v4414
        %v4416 = vrot.slane %v2595, 3
        %v4417 = vsel %vm4410, %v4414, %v4416
        %v4418 = vrot.slane %v2596, 3
        %v4419 = vsel %vm4410, %v4416, %v4418
        %v4420 = vrot.slane %v2597, 3
        %v4421 = vsel %vm4410, %v4418, %v4420
        %v4422 = vrot.slane %v2598, 3
        %v4423 = vsel %vm4410, %v4420, %v4422
        %v4424 = vrot.slane %v2599, 3
        %v4425 = vsel %vm4410, %v4422, %v4424
        %v4426 = vrot.slane %v2600, 3
        %v4427 = vsel %vm4410, %v4424, %v4426
        %v4428 = vrot.slane %v2601, 3
        %v4429 = vsel %vm4410, %v4426, %v4428
        %v4430 = vrot.slane %v2602, 3
        %v4431 = vsel %vm4410, %v4428, %v4430
        %v4432 = vrot.slane %v2603, 3
        %v4433 = vsel %vm4410, %v4430, %v4432
        %v4434 = vrot.slane %v2604, 3
        %v4435 = vsel %vm4410, %v4432, %v4434
        %v4436 = vrot.slane %v2605, 3
        %v4437 = vsel %vm4410, %v4434, %v4436
        %v4438 = vrot.slane %v2606, 3
        %v4439 = vsel %vm4410, %v4436, %v4438
        %v4440 = vrot.slane %v2607, 3
        %v4441 = vsel %vm4410, %v4438, %v4440
        %v4442 = vrot.slane %v3308, 3
        %v4443 = vsel %vm4410, %v4440, %v4442
        %v4444 = vrot.slane %v3974, 3
        %v4445 = vsel %vm4410, %v4442, %v4444
        %v4446 = vrot.slane %v3975, 3
        %v4447 = vsel %vm4410, %v4444, %v4446
        %v4449 = vsel %vm2761, %v4413, 0
        %v4452 = vsel %vm2761, %v4415, 0
        %v4455 = vsel %vm2761, %v4417, 0
        %v4458 = vsel %vm2761, %v4419, 0
        %v4461 = vsel %vm2761, %v4421, 0
        %v4464 = vsel %vm2761, %v4423, 0
        %v4467 = vsel %vm2761, %v4425, 0
        %v4470 = vsel %vm2761, %v4427, 0
        %v4473 = vsel %vm2761, %v4429, 0
        %v4476 = vsel %vm2761, %v4431, 0
        %v4479 = vsel %vm2761, %v4433, 0
        %v4482 = vsel %vm2761, %v4435, 0
        %v4485 = vsel %vm2761, %v4437, 0
        %v4488 = vsel %vm2761, %v4439, 0
        %v4491 = vsel %vm2761, %v4441, 0
        %v4494 = vsel %vm2761, %v4443, 0
        %v4497 = vsel %vm2761, %v4445, 0
        %v4500 = vsel %vm2761, %v4447, 0
        %v4503 = vsel %vm2816, %v4409, 0
        %4505 = vmatpush.bf16.msra.mxu0 0
        %4506 = vmatpush.bf16.msra.mxu0 0
        %4507 = vmatpush.bf16.msra.mxu0 0
        %4508 = vmatpush.bf16.msra.mxu0 0
        %4509 = vmatpush.bf16.msra.mxu0 0
        %4510 = vmatpush.bf16.msra.mxu0 0
        %4511 = vmatpush.bf16.msra.mxu0 0
        %4512 = vmatpush.bf16.msra.mxu0 %v4503
        %4513 = vmatmul.bf16.gmra.mxu0 %v4449
        %v4514 = vpop.f32.mrf.mxu0
        %v4515 = vadd.f32 0.0, %v4514
        %v4516 = vpop.f32.mrf.mxu0
        %v4517 = vadd.f32 0.0, %v4516
        %4518 = vmatmul.bf16.gmra.mxu0 %v4452
        %v4519 = vpop.f32.mrf.mxu0
        %v4520 = vadd.f32 0.0, %v4519
        %v4521 = vpop.f32.mrf.mxu0
        %v4522 = vadd.f32 0.0, %v4521
        %4523 = vmatmul.bf16.gmra.mxu0 %v4455
        %v4524 = vpop.f32.mrf.mxu0
        %v4525 = vadd.f32 0.0, %v4524
        %v4526 = vpop.f32.mrf.mxu0
        %v4527 = vadd.f32 0.0, %v4526
        %4528 = vmatmul.bf16.gmra.mxu0 %v4458
        %v4529 = vpop.f32.mrf.mxu0
        %v4530 = vadd.f32 0.0, %v4529
        %v4531 = vpop.f32.mrf.mxu0
        %v4532 = vadd.f32 0.0, %v4531
        %4533 = vmatmul.bf16.gmra.mxu0 %v4461
        %v4534 = vpop.f32.mrf.mxu0
        %v4535 = vadd.f32 0.0, %v4534
        %v4536 = vpop.f32.mrf.mxu0
        %v4537 = vadd.f32 0.0, %v4536
        %4538 = vmatmul.bf16.gmra.mxu0 %v4464
        %v4539 = vpop.f32.mrf.mxu0
        %v4540 = vadd.f32 0.0, %v4539
        %v4541 = vpop.f32.mrf.mxu0
        %v4542 = vadd.f32 0.0, %v4541
        %4543 = vmatmul.bf16.gmra.mxu0 %v4467
        %v4544 = vpop.f32.mrf.mxu0
        %v4545 = vadd.f32 0.0, %v4544
        %v4546 = vpop.f32.mrf.mxu0
        %v4547 = vadd.f32 0.0, %v4546
        %4548 = vmatmul.bf16.gmra.mxu0 %v4470
        %v4549 = vpop.f32.mrf.mxu0
        %v4550 = vadd.f32 0.0, %v4549
        %v4551 = vpop.f32.mrf.mxu0
        %v4552 = vadd.f32 0.0, %v4551
        %4553 = vmatmul.bf16.gmra.mxu0 %v4473
        %v4554 = vpop.f32.mrf.mxu0
        %v4555 = vadd.f32 0.0, %v4554
        %v4556 = vpop.f32.mrf.mxu0
        %v4557 = vadd.f32 0.0, %v4556
        %4558 = vmatmul.bf16.gmra.mxu0 %v4476
        %v4559 = vpop.f32.mrf.mxu0
        %v4560 = vadd.f32 0.0, %v4559
        %v4561 = vpop.f32.mrf.mxu0
        %v4562 = vadd.f32 0.0, %v4561
        %4563 = vmatmul.bf16.gmra.mxu0 %v4479
        %v4564 = vpop.f32.mrf.mxu0
        %v4565 = vadd.f32 0.0, %v4564
        %v4566 = vpop.f32.mrf.mxu0
        %v4567 = vadd.f32 0.0, %v4566
        %4568 = vmatmul.bf16.gmra.mxu0 %v4482
        %v4569 = vpop.f32.mrf.mxu0
        %v4570 = vadd.f32 0.0, %v4569
        %v4571 = vpop.f32.mrf.mxu0
        %v4572 = vadd.f32 0.0, %v4571
        %4573 = vmatmul.bf16.gmra.mxu0 %v4485
        %v4574 = vpop.f32.mrf.mxu0
        %v4575 = vadd.f32 0.0, %v4574
        %v4576 = vpop.f32.mrf.mxu0
        %v4577 = vadd.f32 0.0, %v4576
        %4578 = vmatmul.bf16.gmra.mxu0 %v4488
        %v4579 = vpop.f32.mrf.mxu0
        %v4580 = vadd.f32 0.0, %v4579
        %v4581 = vpop.f32.mrf.mxu0
        %v4582 = vadd.f32 0.0, %v4581
        %4583 = vmatmul.bf16.gmra.mxu0 %v4491
        %v4584 = vpop.f32.mrf.mxu0
        %v4585 = vadd.f32 0.0, %v4584
        %v4586 = vpop.f32.mrf.mxu0
        %v4587 = vadd.f32 0.0, %v4586
        %4588 = vmatmul.bf16.gmra.mxu0 %v4494
        %v4589 = vpop.f32.mrf.mxu0
        %v4590 = vadd.f32 0.0, %v4589
        %v4591 = vpop.f32.mrf.mxu0
        %v4592 = vadd.f32 0.0, %v4591
        %4593 = vmatmul.bf16.gmra.mxu0 %v4497
        %v4594 = vpop.f32.mrf.mxu0
        %v4595 = vadd.f32 0.0, %v4594
        %v4596 = vpop.f32.mrf.mxu0
        %v4597 = vadd.f32 0.0, %v4596
        %4598 = vmatmul.bf16.gmra.mxu0 %v4500
        %v4599 = vpop.f32.mrf.mxu0
        %v4600 = vadd.f32 0.0, %v4599
        %v4601 = vpop.f32.mrf.mxu0
        %v4602 = vadd.f32 0.0, %v4601
        %4603 = vdwg.mxu0
        %v4604 = vadd.f32 %v4372, %v4515
        %v4605 = vadd.f32 %v4373, %v4517
        %v4606 = vadd.f32 %v4374, %v4520
        %v4607 = vadd.f32 %v4375, %v4522
        %v4608 = vadd.f32 %v4376, %v4525
        %v4609 = vadd.f32 %v4377, %v4527
        %v4610 = vadd.f32 %v4378, %v4530
        %v4611 = vadd.f32 %v4379, %v4532
        %v4612 = vadd.f32 %v4380, %v4535
        %v4613 = vadd.f32 %v4381, %v4537
        %v4614 = vadd.f32 %v4382, %v4540
        %v4615 = vadd.f32 %v4383, %v4542
        %v4616 = vadd.f32 %v4384, %v4545
        %v4617 = vadd.f32 %v4385, %v4547
        %v4618 = vadd.f32 %v4386, %v4550
        %v4619 = vadd.f32 %v4387, %v4552
        %v4620 = vadd.f32 %v4388, %v4555
        %v4621 = vadd.f32 %v4389, %v4557
        %v4622 = vadd.f32 %v4390, %v4560
        %v4623 = vadd.f32 %v4391, %v4562
        %v4624 = vadd.f32 %v4392, %v4565
        %v4625 = vadd.f32 %v4393, %v4567
        %v4626 = vadd.f32 %v4394, %v4570
        %v4627 = vadd.f32 %v4395, %v4572
        %v4628 = vadd.f32 %v4396, %v4575
        %v4629 = vadd.f32 %v4397, %v4577
        %v4630 = vadd.f32 %v4398, %v4580
        %v4631 = vadd.f32 %v4399, %v4582
        %v4632 = vadd.f32 %v4400, %v4585
        %v4633 = vadd.f32 %v4401, %v4587
        %v4634 = vadd.f32 %v4402, %v4590
        %v4635 = vadd.f32 %v4403, %v4592
        %v4636 = vadd.f32 %v4404, %v4595
        %v4637 = vadd.f32 %v4405, %v4597
        %v4638 = vadd.f32 %v4406, %v4600
        %v4639 = vadd.f32 %v4407, %v4602
        %v4641 = vperm.slane %v2589, 0
        %v4643 = vadd.f32 %v4604, %v4641
        %v4644 = vadd.f32 %v4605, %v4641
        %v4645 = vadd.f32 %v4606, %v4641
        %v4646 = vadd.f32 %v4607, %v4641
        %v4647 = vadd.f32 %v4608, %v4641
        %v4648 = vadd.f32 %v4609, %v4641
        %v4649 = vadd.f32 %v4610, %v4641
        %v4650 = vadd.f32 %v4611, %v4641
        %v4651 = vadd.f32 %v4612, %v4641
        %v4652 = vadd.f32 %v4613, %v4641
        %v4653 = vadd.f32 %v4614, %v4641
        %v4654 = vadd.f32 %v4615, %v4641
        %v4655 = vadd.f32 %v4616, %v4641
        %v4656 = vadd.f32 %v4617, %v4641
        %v4657 = vadd.f32 %v4618, %v4641
        %v4658 = vadd.f32 %v4619, %v4641
        %v4659 = vadd.f32 %v4620, %v4641
        %v4660 = vadd.f32 %v4621, %v4641
        %v4661 = vadd.f32 %v4622, %v4641
        %v4662 = vadd.f32 %v4623, %v4641
        %v4663 = vadd.f32 %v4624, %v4641
        %v4664 = vadd.f32 %v4625, %v4641
        %v4665 = vadd.f32 %v4626, %v4641
        %v4666 = vadd.f32 %v4627, %v4641
        %v4667 = vadd.f32 %v4628, %v4641
        %v4668 = vadd.f32 %v4629, %v4641
        %v4669 = vadd.f32 %v4630, %v4641
        %v4670 = vadd.f32 %v4631, %v4641
        %v4671 = vadd.f32 %v4632, %v4641
        %v4672 = vadd.f32 %v4633, %v4641
        %v4673 = vadd.f32 %v4634, %v4641
        %v4674 = vadd.f32 %v4635, %v4641
        %v4675 = vadd.f32 %v4636, %v4641
        %v4676 = vadd.f32 %v4637, %v4641
        %v4677 = vadd.f32 %v4638, %v4641
        %v4678 = vadd.f32 %v4639, %v4641
        %v4679 = vperm.slane %v1217, 0
        %v4680 = vadd.f32 %v4643, %v4679
        %v4681 = vadd.f32 %v4644, %v4679
        %v4682 = vadd.f32 %v4645, %v4679
        %v4683 = vadd.f32 %v4646, %v4679
        %v4684 = vadd.f32 %v4647, %v4679
        %v4685 = vadd.f32 %v4648, %v4679
        %v4686 = vadd.f32 %v4649, %v4679
        %v4687 = vadd.f32 %v4650, %v4679
        %v4688 = vadd.f32 %v4651, %v4679
        %v4689 = vadd.f32 %v4652, %v4679
        %v4690 = vadd.f32 %v4653, %v4679
        %v4691 = vadd.f32 %v4654, %v4679
        %v4692 = vadd.f32 %v4655, %v4679
        %v4693 = vadd.f32 %v4656, %v4679
        %v4694 = vadd.f32 %v4657, %v4679
        %v4695 = vadd.f32 %v4658, %v4679
        %v4696 = vadd.f32 %v4659, %v4679
        %v4697 = vadd.f32 %v4660, %v4679
        %v4698 = vadd.f32 %v4661, %v4679
        %v4699 = vadd.f32 %v4662, %v4679
        %v4700 = vadd.f32 %v4663, %v4679
        %v4701 = vadd.f32 %v4664, %v4679
        %v4702 = vadd.f32 %v4665, %v4679
        %v4703 = vadd.f32 %v4666, %v4679
        %v4704 = vadd.f32 %v4667, %v4679
        %v4705 = vadd.f32 %v4668, %v4679
        %v4706 = vadd.f32 %v4669, %v4679
        %v4707 = vadd.f32 %v4670, %v4679
        %v4708 = vadd.f32 %v4671, %v4679
        %v4709 = vadd.f32 %v4672, %v4679
        %v4710 = vadd.f32 %v4673, %v4679
        %v4711 = vadd.f32 %v4674, %v4679
        %v4712 = vadd.f32 %v4675, %v4679
        %v4713 = vadd.f32 %v4676, %v4679
        %v4714 = vadd.f32 %v4677, %v4679
        %v4715 = vadd.f32 %v4678, %v4679
        %v4716 = vsub.f32 0.0, %v4680
        %v4717 = vsub.f32 0.0, %v4681
        %v4718 = vsub.f32 0.0, %v4682
        %v4719 = vsub.f32 0.0, %v4683
        %v4720 = vsub.f32 0.0, %v4684
        %v4721 = vsub.f32 0.0, %v4685
        %v4722 = vsub.f32 0.0, %v4686
        %v4723 = vsub.f32 0.0, %v4687
        %v4724 = vsub.f32 0.0, %v4688
        %v4725 = vsub.f32 0.0, %v4689
        %v4726 = vsub.f32 0.0, %v4690
        %v4727 = vsub.f32 0.0, %v4691
        %v4728 = vsub.f32 0.0, %v4692
        %v4729 = vsub.f32 0.0, %v4693
        %v4730 = vsub.f32 0.0, %v4694
        %v4731 = vsub.f32 0.0, %v4695
        %v4732 = vsub.f32 0.0, %v4696
        %v4733 = vsub.f32 0.0, %v4697
        %v4734 = vsub.f32 0.0, %v4698
        %v4735 = vsub.f32 0.0, %v4699
        %v4736 = vsub.f32 0.0, %v4700
        %v4737 = vsub.f32 0.0, %v4701
        %v4738 = vsub.f32 0.0, %v4702
        %v4739 = vsub.f32 0.0, %v4703
        %v4740 = vsub.f32 0.0, %v4704
        %v4741 = vsub.f32 0.0, %v4705
        %v4742 = vsub.f32 0.0, %v4706
        %v4743 = vsub.f32 0.0, %v4707
        %v4744 = vsub.f32 0.0, %v4708
        %v4745 = vsub.f32 0.0, %v4709
        %v4746 = vsub.f32 0.0, %v4710
        %v4747 = vsub.f32 0.0, %v4711
        %v4748 = vsub.f32 0.0, %v4712
        %v4749 = vsub.f32 0.0, %v4713
        %v4750 = vsub.f32 0.0, %v4714
        %v4751 = vsub.f32 0.0, %v4715
        %v4752 = vmul.f32 %v4716, 1.442695
        %v4753 = vpow.pop %v4752
        %v4754 = vmul.f32 %v4717, 1.442695
        %v4755 = vpow.pop %v4754
        %v4756 = vmul.f32 %v4718, 1.442695
        %v4757 = vpow.pop %v4756
        %v4758 = vmul.f32 %v4719, 1.442695
        %v4759 = vpow.pop %v4758
        %v4760 = vmul.f32 %v4720, 1.442695
        %v4761 = vpow.pop %v4760
        %v4762 = vmul.f32 %v4721, 1.442695
        %v4763 = vpow.pop %v4762
        %v4764 = vmul.f32 %v4722, 1.442695
        %v4765 = vpow.pop %v4764
        %v4766 = vmul.f32 %v4723, 1.442695
        %v4767 = vpow.pop %v4766
        %v4768 = vmul.f32 %v4724, 1.442695
        %v4769 = vpow.pop %v4768
        %v4770 = vmul.f32 %v4725, 1.442695
        %v4771 = vpow.pop %v4770
        %v4772 = vmul.f32 %v4726, 1.442695
        %v4773 = vpow.pop %v4772
        %v4774 = vmul.f32 %v4727, 1.442695
        %v4775 = vpow.pop %v4774
        %v4776 = vmul.f32 %v4728, 1.442695
        %v4777 = vpow.pop %v4776
        %v4778 = vmul.f32 %v4729, 1.442695
        %v4779 = vpow.pop %v4778
        %v4780 = vmul.f32 %v4730, 1.442695
        %v4781 = vpow.pop %v4780
        %v4782 = vmul.f32 %v4731, 1.442695
        %v4783 = vpow.pop %v4782
        %v4784 = vmul.f32 %v4732, 1.442695
        %v4785 = vpow.pop %v4784
        %v4786 = vmul.f32 %v4733, 1.442695
        %v4787 = vpow.pop %v4786
        %v4788 = vmul.f32 %v4734, 1.442695
        %v4789 = vpow.pop %v4788
        %v4790 = vmul.f32 %v4735, 1.442695
        %v4791 = vpow.pop %v4790
        %v4792 = vmul.f32 %v4736, 1.442695
        %v4793 = vpow.pop %v4792
        %v4794 = vmul.f32 %v4737, 1.442695
        %v4795 = vpow.pop %v4794
        %v4796 = vmul.f32 %v4738, 1.442695
        %v4797 = vpow.pop %v4796
        %v4798 = vmul.f32 %v4739, 1.442695
        %v4799 = vpow.pop %v4798
        %v4800 = vmul.f32 %v4740, 1.442695
        %v4801 = vpow.pop %v4800
        %v4802 = vmul.f32 %v4741, 1.442695
        %v4803 = vpow.pop %v4802
        %v4804 = vmul.f32 %v4742, 1.442695
        %v4805 = vpow.pop %v4804
        %v4806 = vmul.f32 %v4743, 1.442695
        %v4807 = vpow.pop %v4806
        %v4808 = vmul.f32 %v4744, 1.442695
        %v4809 = vpow.pop %v4808
        %v4810 = vmul.f32 %v4745, 1.442695
        %v4811 = vpow.pop %v4810
        %v4812 = vmul.f32 %v4746, 1.442695
        %v4813 = vpow.pop %v4812
        %v4814 = vmul.f32 %v4747, 1.442695
        %v4815 = vpow.pop %v4814
        %v4816 = vmul.f32 %v4748, 1.442695
        %v4817 = vpow.pop %v4816
        %v4818 = vmul.f32 %v4749, 1.442695
        %v4819 = vpow.pop %v4818
        %v4820 = vmul.f32 %v4750, 1.442695
        %v4821 = vpow.pop %v4820
        %v4822 = vmul.f32 %v4751, 1.442695
        %v4823 = vpow.pop %v4822
        %v4824 = vadd.f32 %v4753, 1.0
        %v4825 = vadd.f32 %v4755, 1.0
        %v4826 = vadd.f32 %v4757, 1.0
        %v4827 = vadd.f32 %v4759, 1.0
        %v4828 = vadd.f32 %v4761, 1.0
        %v4829 = vadd.f32 %v4763, 1.0
        %v4830 = vadd.f32 %v4765, 1.0
        %v4831 = vadd.f32 %v4767, 1.0
        %v4832 = vadd.f32 %v4769, 1.0
        %v4833 = vadd.f32 %v4771, 1.0
        %v4834 = vadd.f32 %v4773, 1.0
        %v4835 = vadd.f32 %v4775, 1.0
        %v4836 = vadd.f32 %v4777, 1.0
        %v4837 = vadd.f32 %v4779, 1.0
        %v4838 = vadd.f32 %v4781, 1.0
        %v4839 = vadd.f32 %v4783, 1.0
        %v4840 = vadd.f32 %v4785, 1.0
        %v4841 = vadd.f32 %v4787, 1.0
        %v4842 = vadd.f32 %v4789, 1.0
        %v4843 = vadd.f32 %v4791, 1.0
        %v4844 = vadd.f32 %v4793, 1.0
        %v4845 = vadd.f32 %v4795, 1.0
        %v4846 = vadd.f32 %v4797, 1.0
        %v4847 = vadd.f32 %v4799, 1.0
        %v4848 = vadd.f32 %v4801, 1.0
        %v4849 = vadd.f32 %v4803, 1.0
        %v4850 = vadd.f32 %v4805, 1.0
        %v4851 = vadd.f32 %v4807, 1.0
        %v4852 = vadd.f32 %v4809, 1.0
        %v4853 = vadd.f32 %v4811, 1.0
        %v4854 = vadd.f32 %v4813, 1.0
        %v4855 = vadd.f32 %v4815, 1.0
        %v4856 = vadd.f32 %v4817, 1.0
        %v4857 = vadd.f32 %v4819, 1.0
        %v4858 = vadd.f32 %v4821, 1.0
        %v4859 = vadd.f32 %v4823, 1.0
        %v4860 = vrcp.pop %v4824
        %v4861 = vmul.f32 %v4824, %v4860
        %v4862 = vsub.f32 1.0, %v4861
        %v4863 = vmul.f32 %v4860, %v4862
        %v4864 = vadd.f32 %v4860, %v4863
        %vm4865 = vweird.f32 %v4824
        %vm4866 = vweird.f32 %v4860
        %vm4867 = vmor %vm4865, %vm4866
        %v4868 = vsel %vm4867, %v4860, %v4864
        %v4869 = vand.u32 2147483647, %v4824
        %vm4870 = vcmp.eq.f32.partialorder %v4869, 8.507059e+37
        %v4871 = vand.u32 %v4824, 2147483648
        %v4872 = vor.u32 1.1754944e-38, %v4871
        %v4873 = vsel %vm4870, %v4872, %v4868
        %v4874 = vmul.f32 1.0, %v4873
        %v4875 = vrcp.pop %v4825
        %v4876 = vmul.f32 %v4825, %v4875
        %v4877 = vsub.f32 1.0, %v4876
        %v4878 = vmul.f32 %v4875, %v4877
        %v4879 = vadd.f32 %v4875, %v4878
        %vm4880 = vweird.f32 %v4825
        %vm4881 = vweird.f32 %v4875
        %vm4882 = vmor %vm4880, %vm4881
        %v4883 = vsel %vm4882, %v4875, %v4879
        %v4884 = vand.u32 2147483647, %v4825
        %vm4885 = vcmp.eq.f32.partialorder %v4884, 8.507059e+37
        %v4886 = vand.u32 %v4825, 2147483648
        %v4887 = vor.u32 1.1754944e-38, %v4886
        %v4888 = vsel %vm4885, %v4887, %v4883
        %v4889 = vmul.f32 1.0, %v4888
        %v4890 = vrcp.pop %v4826
        %v4891 = vmul.f32 %v4826, %v4890
        %v4892 = vsub.f32 1.0, %v4891
        %v4893 = vmul.f32 %v4890, %v4892
        %v4894 = vadd.f32 %v4890, %v4893
        %vm4895 = vweird.f32 %v4826
        %vm4896 = vweird.f32 %v4890
        %vm4897 = vmor %vm4895, %vm4896
        %v4898 = vsel %vm4897, %v4890, %v4894
        %v4899 = vand.u32 2147483647, %v4826
        %vm4900 = vcmp.eq.f32.partialorder %v4899, 8.507059e+37
        %v4901 = vand.u32 %v4826, 2147483648
        %v4902 = vor.u32 1.1754944e-38, %v4901
        %v4903 = vsel %vm4900, %v4902, %v4898
        %v4904 = vmul.f32 1.0, %v4903
        %v4905 = vrcp.pop %v4827
        %v4906 = vmul.f32 %v4827, %v4905
        %v4907 = vsub.f32 1.0, %v4906
        %v4908 = vmul.f32 %v4905, %v4907
        %v4909 = vadd.f32 %v4905, %v4908
        %vm4910 = vweird.f32 %v4827
        %vm4911 = vweird.f32 %v4905
        %vm4912 = vmor %vm4910, %vm4911
        %v4913 = vsel %vm4912, %v4905, %v4909
        %v4914 = vand.u32 2147483647, %v4827
        %vm4915 = vcmp.eq.f32.partialorder %v4914, 8.507059e+37
        %v4916 = vand.u32 %v4827, 2147483648
        %v4917 = vor.u32 1.1754944e-38, %v4916
        %v4918 = vsel %vm4915, %v4917, %v4913
        %v4919 = vmul.f32 1.0, %v4918
        %v4920 = vrcp.pop %v4828
        %v4921 = vmul.f32 %v4828, %v4920
        %v4922 = vsub.f32 1.0, %v4921
        %v4923 = vmul.f32 %v4920, %v4922
        %v4924 = vadd.f32 %v4920, %v4923
        %vm4925 = vweird.f32 %v4828
        %vm4926 = vweird.f32 %v4920
        %vm4927 = vmor %vm4925, %vm4926
        %v4928 = vsel %vm4927, %v4920, %v4924
        %v4929 = vand.u32 2147483647, %v4828
        %vm4930 = vcmp.eq.f32.partialorder %v4929, 8.507059e+37
        %v4931 = vand.u32 %v4828, 2147483648
        %v4932 = vor.u32 1.1754944e-38, %v4931
        %v4933 = vsel %vm4930, %v4932, %v4928
        %v4934 = vmul.f32 1.0, %v4933
        %v4935 = vrcp.pop %v4829
        %v4936 = vmul.f32 %v4829, %v4935
        %v4937 = vsub.f32 1.0, %v4936
        %v4938 = vmul.f32 %v4935, %v4937
        %v4939 = vadd.f32 %v4935, %v4938
        %vm4940 = vweird.f32 %v4829
        %vm4941 = vweird.f32 %v4935
        %vm4942 = vmor %vm4940, %vm4941
        %v4943 = vsel %vm4942, %v4935, %v4939
        %v4944 = vand.u32 2147483647, %v4829
        %vm4945 = vcmp.eq.f32.partialorder %v4944, 8.507059e+37
        %v4946 = vand.u32 %v4829, 2147483648
        %v4947 = vor.u32 1.1754944e-38, %v4946
        %v4948 = vsel %vm4945, %v4947, %v4943
        %v4949 = vmul.f32 1.0, %v4948
        %v4950 = vrcp.pop %v4830
        %v4951 = vmul.f32 %v4830, %v4950
        %v4952 = vsub.f32 1.0, %v4951
        %v4953 = vmul.f32 %v4950, %v4952
        %v4954 = vadd.f32 %v4950, %v4953
        %vm4955 = vweird.f32 %v4830
        %vm4956 = vweird.f32 %v4950
        %vm4957 = vmor %vm4955, %vm4956
        %v4958 = vsel %vm4957, %v4950, %v4954
        %v4959 = vand.u32 2147483647, %v4830
        %vm4960 = vcmp.eq.f32.partialorder %v4959, 8.507059e+37
        %v4961 = vand.u32 %v4830, 2147483648
        %v4962 = vor.u32 1.1754944e-38, %v4961
        %v4963 = vsel %vm4960, %v4962, %v4958
        %v4964 = vmul.f32 1.0, %v4963
        %v4965 = vrcp.pop %v4831
        %v4966 = vmul.f32 %v4831, %v4965
        %v4967 = vsub.f32 1.0, %v4966
        %v4968 = vmul.f32 %v4965, %v4967
        %v4969 = vadd.f32 %v4965, %v4968
        %vm4970 = vweird.f32 %v4831
        %vm4971 = vweird.f32 %v4965
        %vm4972 = vmor %vm4970, %vm4971
        %v4973 = vsel %vm4972, %v4965, %v4969
        %v4974 = vand.u32 2147483647, %v4831
        %vm4975 = vcmp.eq.f32.partialorder %v4974, 8.507059e+37
        %v4976 = vand.u32 %v4831, 2147483648
        %v4977 = vor.u32 1.1754944e-38, %v4976
        %v4978 = vsel %vm4975, %v4977, %v4973
        %v4979 = vmul.f32 1.0, %v4978
        %v4980 = vrcp.pop %v4832
        %v4981 = vmul.f32 %v4832, %v4980
        %v4982 = vsub.f32 1.0, %v4981
        %v4983 = vmul.f32 %v4980, %v4982
        %v4984 = vadd.f32 %v4980, %v4983
        %vm4985 = vweird.f32 %v4832
        %vm4986 = vweird.f32 %v4980
        %vm4987 = vmor %vm4985, %vm4986
        %v4988 = vsel %vm4987, %v4980, %v4984
        %v4989 = vand.u32 2147483647, %v4832
        %vm4990 = vcmp.eq.f32.partialorder %v4989, 8.507059e+37
        %v4991 = vand.u32 %v4832, 2147483648
        %v4992 = vor.u32 1.1754944e-38, %v4991
        %v4993 = vsel %vm4990, %v4992, %v4988
        %v4994 = vmul.f32 1.0, %v4993
        %v4995 = vrcp.pop %v4833
        %v4996 = vmul.f32 %v4833, %v4995
        %v4997 = vsub.f32 1.0, %v4996
        %v4998 = vmul.f32 %v4995, %v4997
        %v4999 = vadd.f32 %v4995, %v4998
        %vm5000 = vweird.f32 %v4833
        %vm5001 = vweird.f32 %v4995
        %vm5002 = vmor %vm5000, %vm5001
        %v5003 = vsel %vm5002, %v4995, %v4999
        %v5004 = vand.u32 2147483647, %v4833
        %vm5005 = vcmp.eq.f32.partialorder %v5004, 8.507059e+37
        %v5006 = vand.u32 %v4833, 2147483648
        %v5007 = vor.u32 1.1754944e-38, %v5006
        %v5008 = vsel %vm5005, %v5007, %v5003
        %v5009 = vmul.f32 1.0, %v5008
        %v5010 = vrcp.pop %v4834
        %v5011 = vmul.f32 %v4834, %v5010
        %v5012 = vsub.f32 1.0, %v5011
        %v5013 = vmul.f32 %v5010, %v5012
        %v5014 = vadd.f32 %v5010, %v5013
        %vm5015 = vweird.f32 %v4834
        %vm5016 = vweird.f32 %v5010
        %vm5017 = vmor %vm5015, %vm5016
        %v5018 = vsel %vm5017, %v5010, %v5014
        %v5019 = vand.u32 2147483647, %v4834
        %vm5020 = vcmp.eq.f32.partialorder %v5019, 8.507059e+37
        %v5021 = vand.u32 %v4834, 2147483648
        %v5022 = vor.u32 1.1754944e-38, %v5021
        %v5023 = vsel %vm5020, %v5022, %v5018
        %v5024 = vmul.f32 1.0, %v5023
        %v5025 = vrcp.pop %v4835
        %v5026 = vmul.f32 %v4835, %v5025
        %v5027 = vsub.f32 1.0, %v5026
        %v5028 = vmul.f32 %v5025, %v5027
        %v5029 = vadd.f32 %v5025, %v5028
        %vm5030 = vweird.f32 %v4835
        %vm5031 = vweird.f32 %v5025
        %vm5032 = vmor %vm5030, %vm5031
        %v5033 = vsel %vm5032, %v5025, %v5029
        %v5034 = vand.u32 2147483647, %v4835
        %vm5035 = vcmp.eq.f32.partialorder %v5034, 8.507059e+37
        %v5036 = vand.u32 %v4835, 2147483648
        %v5037 = vor.u32 1.1754944e-38, %v5036
        %v5038 = vsel %vm5035, %v5037, %v5033
        %v5039 = vmul.f32 1.0, %v5038
        %v5040 = vrcp.pop %v4836
        %v5041 = vmul.f32 %v4836, %v5040
        %v5042 = vsub.f32 1.0, %v5041
        %v5043 = vmul.f32 %v5040, %v5042
        %v5044 = vadd.f32 %v5040, %v5043
        %vm5045 = vweird.f32 %v4836
        %vm5046 = vweird.f32 %v5040
        %vm5047 = vmor %vm5045, %vm5046
        %v5048 = vsel %vm5047, %v5040, %v5044
        %v5049 = vand.u32 2147483647, %v4836
        %vm5050 = vcmp.eq.f32.partialorder %v5049, 8.507059e+37
        %v5051 = vand.u32 %v4836, 2147483648
        %v5052 = vor.u32 1.1754944e-38, %v5051
        %v5053 = vsel %vm5050, %v5052, %v5048
        %v5054 = vmul.f32 1.0, %v5053
        %v5055 = vrcp.pop %v4837
        %v5056 = vmul.f32 %v4837, %v5055
        %v5057 = vsub.f32 1.0, %v5056
        %v5058 = vmul.f32 %v5055, %v5057
        %v5059 = vadd.f32 %v5055, %v5058
        %vm5060 = vweird.f32 %v4837
        %vm5061 = vweird.f32 %v5055
        %vm5062 = vmor %vm5060, %vm5061
        %v5063 = vsel %vm5062, %v5055, %v5059
        %v5064 = vand.u32 2147483647, %v4837
        %vm5065 = vcmp.eq.f32.partialorder %v5064, 8.507059e+37
        %v5066 = vand.u32 %v4837, 2147483648
        %v5067 = vor.u32 1.1754944e-38, %v5066
        %v5068 = vsel %vm5065, %v5067, %v5063
        %v5069 = vmul.f32 1.0, %v5068
        %v5070 = vrcp.pop %v4838
        %v5071 = vmul.f32 %v4838, %v5070
        %v5072 = vsub.f32 1.0, %v5071
        %v5073 = vmul.f32 %v5070, %v5072
        %v5074 = vadd.f32 %v5070, %v5073
        %vm5075 = vweird.f32 %v4838
        %vm5076 = vweird.f32 %v5070
        %vm5077 = vmor %vm5075, %vm5076
        %v5078 = vsel %vm5077, %v5070, %v5074
        %v5079 = vand.u32 2147483647, %v4838
        %vm5080 = vcmp.eq.f32.partialorder %v5079, 8.507059e+37
        %v5081 = vand.u32 %v4838, 2147483648
        %v5082 = vor.u32 1.1754944e-38, %v5081
        %v5083 = vsel %vm5080, %v5082, %v5078
        %v5084 = vmul.f32 1.0, %v5083
        %v5085 = vrcp.pop %v4839
        %v5086 = vmul.f32 %v4839, %v5085
        %v5087 = vsub.f32 1.0, %v5086
        %v5088 = vmul.f32 %v5085, %v5087
        %v5089 = vadd.f32 %v5085, %v5088
        %vm5090 = vweird.f32 %v4839
        %vm5091 = vweird.f32 %v5085
        %vm5092 = vmor %vm5090, %vm5091
        %v5093 = vsel %vm5092, %v5085, %v5089
        %v5094 = vand.u32 2147483647, %v4839
        %vm5095 = vcmp.eq.f32.partialorder %v5094, 8.507059e+37
        %v5096 = vand.u32 %v4839, 2147483648
        %v5097 = vor.u32 1.1754944e-38, %v5096
        %v5098 = vsel %vm5095, %v5097, %v5093
        %v5099 = vmul.f32 1.0, %v5098
        %v5100 = vrcp.pop %v4840
        %v5101 = vmul.f32 %v4840, %v5100
        %v5102 = vsub.f32 1.0, %v5101
        %v5103 = vmul.f32 %v5100, %v5102
        %v5104 = vadd.f32 %v5100, %v5103
        %vm5105 = vweird.f32 %v4840
        %vm5106 = vweird.f32 %v5100
        %vm5107 = vmor %vm5105, %vm5106
        %v5108 = vsel %vm5107, %v5100, %v5104
        %v5109 = vand.u32 2147483647, %v4840
        %vm5110 = vcmp.eq.f32.partialorder %v5109, 8.507059e+37
        %v5111 = vand.u32 %v4840, 2147483648
        %v5112 = vor.u32 1.1754944e-38, %v5111
        %v5113 = vsel %vm5110, %v5112, %v5108
        %v5114 = vmul.f32 1.0, %v5113
        %v5115 = vrcp.pop %v4841
        %v5116 = vmul.f32 %v4841, %v5115
        %v5117 = vsub.f32 1.0, %v5116
        %v5118 = vmul.f32 %v5115, %v5117
        %v5119 = vadd.f32 %v5115, %v5118
        %vm5120 = vweird.f32 %v4841
        %vm5121 = vweird.f32 %v5115
        %vm5122 = vmor %vm5120, %vm5121
        %v5123 = vsel %vm5122, %v5115, %v5119
        %v5124 = vand.u32 2147483647, %v4841
        %vm5125 = vcmp.eq.f32.partialorder %v5124, 8.507059e+37
        %v5126 = vand.u32 %v4841, 2147483648
        %v5127 = vor.u32 1.1754944e-38, %v5126
        %v5128 = vsel %vm5125, %v5127, %v5123
        %v5129 = vmul.f32 1.0, %v5128
        %v5130 = vrcp.pop %v4842
        %v5131 = vmul.f32 %v4842, %v5130
        %v5132 = vsub.f32 1.0, %v5131
        %v5133 = vmul.f32 %v5130, %v5132
        %v5134 = vadd.f32 %v5130, %v5133
        %vm5135 = vweird.f32 %v4842
        %vm5136 = vweird.f32 %v5130
        %vm5137 = vmor %vm5135, %vm5136
        %v5138 = vsel %vm5137, %v5130, %v5134
        %v5139 = vand.u32 2147483647, %v4842
        %vm5140 = vcmp.eq.f32.partialorder %v5139, 8.507059e+37
        %v5141 = vand.u32 %v4842, 2147483648
        %v5142 = vor.u32 1.1754944e-38, %v5141
        %v5143 = vsel %vm5140, %v5142, %v5138
        %v5144 = vmul.f32 1.0, %v5143
        %v5145 = vrcp.pop %v4843
        %v5146 = vmul.f32 %v4843, %v5145
        %v5147 = vsub.f32 1.0, %v5146
        %v5148 = vmul.f32 %v5145, %v5147
        %v5149 = vadd.f32 %v5145, %v5148
        %vm5150 = vweird.f32 %v4843
        %vm5151 = vweird.f32 %v5145
        %vm5152 = vmor %vm5150, %vm5151
        %v5153 = vsel %vm5152, %v5145, %v5149
        %v5154 = vand.u32 2147483647, %v4843
        %vm5155 = vcmp.eq.f32.partialorder %v5154, 8.507059e+37
        %v5156 = vand.u32 %v4843, 2147483648
        %v5157 = vor.u32 1.1754944e-38, %v5156
        %v5158 = vsel %vm5155, %v5157, %v5153
        %v5159 = vmul.f32 1.0, %v5158
        %v5160 = vrcp.pop %v4844
        %v5161 = vmul.f32 %v4844, %v5160
        %v5162 = vsub.f32 1.0, %v5161
        %v5163 = vmul.f32 %v5160, %v5162
        %v5164 = vadd.f32 %v5160, %v5163
        %vm5165 = vweird.f32 %v4844
        %vm5166 = vweird.f32 %v5160
        %vm5167 = vmor %vm5165, %vm5166
        %v5168 = vsel %vm5167, %v5160, %v5164
        %v5169 = vand.u32 2147483647, %v4844
        %vm5170 = vcmp.eq.f32.partialorder %v5169, 8.507059e+37
        %v5171 = vand.u32 %v4844, 2147483648
        %v5172 = vor.u32 1.1754944e-38, %v5171
        %v5173 = vsel %vm5170, %v5172, %v5168
        %v5174 = vmul.f32 1.0, %v5173
        %v5175 = vrcp.pop %v4845
        %v5176 = vmul.f32 %v4845, %v5175
        %v5177 = vsub.f32 1.0, %v5176
        %v5178 = vmul.f32 %v5175, %v5177
        %v5179 = vadd.f32 %v5175, %v5178
        %vm5180 = vweird.f32 %v4845
        %vm5181 = vweird.f32 %v5175
        %vm5182 = vmor %vm5180, %vm5181
        %v5183 = vsel %vm5182, %v5175, %v5179
        %v5184 = vand.u32 2147483647, %v4845
        %vm5185 = vcmp.eq.f32.partialorder %v5184, 8.507059e+37
        %v5186 = vand.u32 %v4845, 2147483648
        %v5187 = vor.u32 1.1754944e-38, %v5186
        %v5188 = vsel %vm5185, %v5187, %v5183
        %v5189 = vmul.f32 1.0, %v5188
        %v5190 = vrcp.pop %v4846
        %v5191 = vmul.f32 %v4846, %v5190
        %v5192 = vsub.f32 1.0, %v5191
        %v5193 = vmul.f32 %v5190, %v5192
        %v5194 = vadd.f32 %v5190, %v5193
        %vm5195 = vweird.f32 %v4846
        %vm5196 = vweird.f32 %v5190
        %vm5197 = vmor %vm5195, %vm5196
        %v5198 = vsel %vm5197, %v5190, %v5194
        %v5199 = vand.u32 2147483647, %v4846
        %vm5200 = vcmp.eq.f32.partialorder %v5199, 8.507059e+37
        %v5201 = vand.u32 %v4846, 2147483648
        %v5202 = vor.u32 1.1754944e-38, %v5201
        %v5203 = vsel %vm5200, %v5202, %v5198
        %v5204 = vmul.f32 1.0, %v5203
        %v5205 = vrcp.pop %v4847
        %v5206 = vmul.f32 %v4847, %v5205
        %v5207 = vsub.f32 1.0, %v5206
        %v5208 = vmul.f32 %v5205, %v5207
        %v5209 = vadd.f32 %v5205, %v5208
        %vm5210 = vweird.f32 %v4847
        %vm5211 = vweird.f32 %v5205
        %vm5212 = vmor %vm5210, %vm5211
        %v5213 = vsel %vm5212, %v5205, %v5209
        %v5214 = vand.u32 2147483647, %v4847
        %vm5215 = vcmp.eq.f32.partialorder %v5214, 8.507059e+37
        %v5216 = vand.u32 %v4847, 2147483648
        %v5217 = vor.u32 1.1754944e-38, %v5216
        %v5218 = vsel %vm5215, %v5217, %v5213
        %v5219 = vmul.f32 1.0, %v5218
        %v5220 = vrcp.pop %v4848
        %v5221 = vmul.f32 %v4848, %v5220
        %v5222 = vsub.f32 1.0, %v5221
        %v5223 = vmul.f32 %v5220, %v5222
        %v5224 = vadd.f32 %v5220, %v5223
        %vm5225 = vweird.f32 %v4848
        %vm5226 = vweird.f32 %v5220
        %vm5227 = vmor %vm5225, %vm5226
        %v5228 = vsel %vm5227, %v5220, %v5224
        %v5229 = vand.u32 2147483647, %v4848
        %vm5230 = vcmp.eq.f32.partialorder %v5229, 8.507059e+37
        %v5231 = vand.u32 %v4848, 2147483648
        %v5232 = vor.u32 1.1754944e-38, %v5231
        %v5233 = vsel %vm5230, %v5232, %v5228
        %v5234 = vmul.f32 1.0, %v5233
        %v5235 = vrcp.pop %v4849
        %v5236 = vmul.f32 %v4849, %v5235
        %v5237 = vsub.f32 1.0, %v5236
        %v5238 = vmul.f32 %v5235, %v5237
        %v5239 = vadd.f32 %v5235, %v5238
        %vm5240 = vweird.f32 %v4849
        %vm5241 = vweird.f32 %v5235
        %vm5242 = vmor %vm5240, %vm5241
        %v5243 = vsel %vm5242, %v5235, %v5239
        %v5244 = vand.u32 2147483647, %v4849
        %vm5245 = vcmp.eq.f32.partialorder %v5244, 8.507059e+37
        %v5246 = vand.u32 %v4849, 2147483648
        %v5247 = vor.u32 1.1754944e-38, %v5246
        %v5248 = vsel %vm5245, %v5247, %v5243
        %v5249 = vmul.f32 1.0, %v5248
        %v5250 = vrcp.pop %v4850
        %v5251 = vmul.f32 %v4850, %v5250
        %v5252 = vsub.f32 1.0, %v5251
        %v5253 = vmul.f32 %v5250, %v5252
        %v5254 = vadd.f32 %v5250, %v5253
        %vm5255 = vweird.f32 %v4850
        %vm5256 = vweird.f32 %v5250
        %vm5257 = vmor %vm5255, %vm5256
        %v5258 = vsel %vm5257, %v5250, %v5254
        %v5259 = vand.u32 2147483647, %v4850
        %vm5260 = vcmp.eq.f32.partialorder %v5259, 8.507059e+37
        %v5261 = vand.u32 %v4850, 2147483648
        %v5262 = vor.u32 1.1754944e-38, %v5261
        %v5263 = vsel %vm5260, %v5262, %v5258
        %v5264 = vmul.f32 1.0, %v5263
        %v5265 = vrcp.pop %v4851
        %v5266 = vmul.f32 %v4851, %v5265
        %v5267 = vsub.f32 1.0, %v5266
        %v5268 = vmul.f32 %v5265, %v5267
        %v5269 = vadd.f32 %v5265, %v5268
        %vm5270 = vweird.f32 %v4851
        %vm5271 = vweird.f32 %v5265
        %vm5272 = vmor %vm5270, %vm5271
        %v5273 = vsel %vm5272, %v5265, %v5269
        %v5274 = vand.u32 2147483647, %v4851
        %vm5275 = vcmp.eq.f32.partialorder %v5274, 8.507059e+37
        %v5276 = vand.u32 %v4851, 2147483648
        %v5277 = vor.u32 1.1754944e-38, %v5276
        %v5278 = vsel %vm5275, %v5277, %v5273
        %v5279 = vmul.f32 1.0, %v5278
        %v5280 = vrcp.pop %v4852
        %v5281 = vmul.f32 %v4852, %v5280
        %v5282 = vsub.f32 1.0, %v5281
        %v5283 = vmul.f32 %v5280, %v5282
        %v5284 = vadd.f32 %v5280, %v5283
        %vm5285 = vweird.f32 %v4852
        %vm5286 = vweird.f32 %v5280
        %vm5287 = vmor %vm5285, %vm5286
        %v5288 = vsel %vm5287, %v5280, %v5284
        %v5289 = vand.u32 2147483647, %v4852
        %vm5290 = vcmp.eq.f32.partialorder %v5289, 8.507059e+37
        %v5291 = vand.u32 %v4852, 2147483648
        %v5292 = vor.u32 1.1754944e-38, %v5291
        %v5293 = vsel %vm5290, %v5292, %v5288
        %v5294 = vmul.f32 1.0, %v5293
        %v5295 = vrcp.pop %v4853
        %v5296 = vmul.f32 %v4853, %v5295
        %v5297 = vsub.f32 1.0, %v5296
        %v5298 = vmul.f32 %v5295, %v5297
        %v5299 = vadd.f32 %v5295, %v5298
        %vm5300 = vweird.f32 %v4853
        %vm5301 = vweird.f32 %v5295
        %vm5302 = vmor %vm5300, %vm5301
        %v5303 = vsel %vm5302, %v5295, %v5299
        %v5304 = vand.u32 2147483647, %v4853
        %vm5305 = vcmp.eq.f32.partialorder %v5304, 8.507059e+37
        %v5306 = vand.u32 %v4853, 2147483648
        %v5307 = vor.u32 1.1754944e-38, %v5306
        %v5308 = vsel %vm5305, %v5307, %v5303
        %v5309 = vmul.f32 1.0, %v5308
        %v5310 = vrcp.pop %v4854
        %v5311 = vmul.f32 %v4854, %v5310
        %v5312 = vsub.f32 1.0, %v5311
        %v5313 = vmul.f32 %v5310, %v5312
        %v5314 = vadd.f32 %v5310, %v5313
        %vm5315 = vweird.f32 %v4854
        %vm5316 = vweird.f32 %v5310
        %vm5317 = vmor %vm5315, %vm5316
        %v5318 = vsel %vm5317, %v5310, %v5314
        %v5319 = vand.u32 2147483647, %v4854
        %vm5320 = vcmp.eq.f32.partialorder %v5319, 8.507059e+37
        %v5321 = vand.u32 %v4854, 2147483648
        %v5322 = vor.u32 1.1754944e-38, %v5321
        %v5323 = vsel %vm5320, %v5322, %v5318
        %v5324 = vmul.f32 1.0, %v5323
        %v5325 = vrcp.pop %v4855
        %v5326 = vmul.f32 %v4855, %v5325
        %v5327 = vsub.f32 1.0, %v5326
        %v5328 = vmul.f32 %v5325, %v5327
        %v5329 = vadd.f32 %v5325, %v5328
        %vm5330 = vweird.f32 %v4855
        %vm5331 = vweird.f32 %v5325
        %vm5332 = vmor %vm5330, %vm5331
        %v5333 = vsel %vm5332, %v5325, %v5329
        %v5334 = vand.u32 2147483647, %v4855
        %vm5335 = vcmp.eq.f32.partialorder %v5334, 8.507059e+37
        %v5336 = vand.u32 %v4855, 2147483648
        %v5337 = vor.u32 1.1754944e-38, %v5336
        %v5338 = vsel %vm5335, %v5337, %v5333
        %v5339 = vmul.f32 1.0, %v5338
        %v5340 = vrcp.pop %v4856
        %v5341 = vmul.f32 %v4856, %v5340
        %v5342 = vsub.f32 1.0, %v5341
        %v5343 = vmul.f32 %v5340, %v5342
        %v5344 = vadd.f32 %v5340, %v5343
        %vm5345 = vweird.f32 %v4856
        %vm5346 = vweird.f32 %v5340
        %vm5347 = vmor %vm5345, %vm5346
        %v5348 = vsel %vm5347, %v5340, %v5344
        %v5349 = vand.u32 2147483647, %v4856
        %vm5350 = vcmp.eq.f32.partialorder %v5349, 8.507059e+37
        %v5351 = vand.u32 %v4856, 2147483648
        %v5352 = vor.u32 1.1754944e-38, %v5351
        %v5353 = vsel %vm5350, %v5352, %v5348
        %v5354 = vmul.f32 1.0, %v5353
        %v5355 = vrcp.pop %v4857
        %v5356 = vmul.f32 %v4857, %v5355
        %v5357 = vsub.f32 1.0, %v5356
        %v5358 = vmul.f32 %v5355, %v5357
        %v5359 = vadd.f32 %v5355, %v5358
        %vm5360 = vweird.f32 %v4857
        %vm5361 = vweird.f32 %v5355
        %vm5362 = vmor %vm5360, %vm5361
        %v5363 = vsel %vm5362, %v5355, %v5359
        %v5364 = vand.u32 2147483647, %v4857
        %vm5365 = vcmp.eq.f32.partialorder %v5364, 8.507059e+37
        %v5366 = vand.u32 %v4857, 2147483648
        %v5367 = vor.u32 1.1754944e-38, %v5366
        %v5368 = vsel %vm5365, %v5367, %v5363
        %v5369 = vmul.f32 1.0, %v5368
        %v5370 = vrcp.pop %v4858
        %v5371 = vmul.f32 %v4858, %v5370
        %v5372 = vsub.f32 1.0, %v5371
        %v5373 = vmul.f32 %v5370, %v5372
        %v5374 = vadd.f32 %v5370, %v5373
        %vm5375 = vweird.f32 %v4858
        %vm5376 = vweird.f32 %v5370
        %vm5377 = vmor %vm5375, %vm5376
        %v5378 = vsel %vm5377, %v5370, %v5374
        %v5379 = vand.u32 2147483647, %v4858
        %vm5380 = vcmp.eq.f32.partialorder %v5379, 8.507059e+37
        %v5381 = vand.u32 %v4858, 2147483648
        %v5382 = vor.u32 1.1754944e-38, %v5381
        %v5383 = vsel %vm5380, %v5382, %v5378
        %v5384 = vmul.f32 1.0, %v5383
        %v5385 = vrcp.pop %v4859
        %v5386 = vmul.f32 %v4859, %v5385
        %v5387 = vsub.f32 1.0, %v5386
        %v5388 = vmul.f32 %v5385, %v5387
        %v5389 = vadd.f32 %v5385, %v5388
        %vm5390 = vweird.f32 %v4859
        %vm5391 = vweird.f32 %v5385
        %vm5392 = vmor %vm5390, %vm5391
        %v5393 = vsel %vm5392, %v5385, %v5389
        %v5394 = vand.u32 2147483647, %v4859
        %vm5395 = vcmp.eq.f32.partialorder %v5394, 8.507059e+37
        %v5396 = vand.u32 %v4859, 2147483648
        %v5397 = vor.u32 1.1754944e-38, %v5396
        %v5398 = vsel %vm5395, %v5397, %v5393
        %v5399 = vmul.f32 1.0, %v5398
        %v5400 = vmul.f32 %v4680, %v4874
        %v5401 = vmul.f32 %v4681, %v4889
        %v5402 = vmul.f32 %v4682, %v4904
        %v5403 = vmul.f32 %v4683, %v4919
        %v5404 = vmul.f32 %v4684, %v4934
        %v5405 = vmul.f32 %v4685, %v4949
        %v5406 = vmul.f32 %v4686, %v4964
        %v5407 = vmul.f32 %v4687, %v4979
        %v5408 = vmul.f32 %v4688, %v4994
        %v5409 = vmul.f32 %v4689, %v5009
        %v5410 = vmul.f32 %v4690, %v5024
        %v5411 = vmul.f32 %v4691, %v5039
        %v5412 = vmul.f32 %v4692, %v5054
        %v5413 = vmul.f32 %v4693, %v5069
        %v5414 = vmul.f32 %v4694, %v5084
        %v5415 = vmul.f32 %v4695, %v5099
        %v5416 = vmul.f32 %v4696, %v5114
        %v5417 = vmul.f32 %v4697, %v5129
        %v5418 = vmul.f32 %v4698, %v5144
        %v5419 = vmul.f32 %v4699, %v5159
        %v5420 = vmul.f32 %v4700, %v5174
        %v5421 = vmul.f32 %v4701, %v5189
        %v5422 = vmul.f32 %v4702, %v5204
        %v5423 = vmul.f32 %v4703, %v5219
        %v5424 = vmul.f32 %v4704, %v5234
        %v5425 = vmul.f32 %v4705, %v5249
        %v5426 = vmul.f32 %v4706, %v5264
        %v5427 = vmul.f32 %v4707, %v5279
        %v5428 = vmul.f32 %v4708, %v5294
        %v5429 = vmul.f32 %v4709, %v5309
        %v5430 = vmul.f32 %v4710, %v5324
        %v5431 = vmul.f32 %v4711, %v5339
        %v5432 = vmul.f32 %v4712, %v5354
        %v5433 = vmul.f32 %v4713, %v5369
        %v5434 = vmul.f32 %v4714, %v5384
        %v5435 = vmul.f32 %v4715, %v5399
        %v5436 = vmul.f32 %v5400, %v2553
        %v5437 = vmul.f32 %v5401, %v2554
        %v5438 = vmul.f32 %v5402, %v2555
        %v5439 = vmul.f32 %v5403, %v2556
        %v5440 = vmul.f32 %v5404, %v2557
        %v5441 = vmul.f32 %v5405, %v2558
        %v5442 = vmul.f32 %v5406, %v2559
        %v5443 = vmul.f32 %v5407, %v2560
        %v5444 = vmul.f32 %v5408, %v2561
        %v5445 = vmul.f32 %v5409, %v2562
        %v5446 = vmul.f32 %v5410, %v2563
        %v5447 = vmul.f32 %v5411, %v2564
        %v5448 = vmul.f32 %v5412, %v2565
        %v5449 = vmul.f32 %v5413, %v2566
        %v5450 = vmul.f32 %v5414, %v2567
        %v5451 = vmul.f32 %v5415, %v2568
        %v5452 = vmul.f32 %v5416, %v2569
        %v5453 = vmul.f32 %v5417, %v2570
        %v5454 = vmul.f32 %v5418, %v2571
        %v5455 = vmul.f32 %v5419, %v2572
        %v5456 = vmul.f32 %v5420, %v2573
        %v5457 = vmul.f32 %v5421, %v2574
        %v5458 = vmul.f32 %v5422, %v2575
        %v5459 = vmul.f32 %v5423, %v2576
        %v5460 = vmul.f32 %v5424, %v2577
        %v5461 = vmul.f32 %v5425, %v2578
        %v5462 = vmul.f32 %v5426, %v2579
        %v5463 = vmul.f32 %v5427, %v2580
        %v5464 = vmul.f32 %v5428, %v2581
        %v5465 = vmul.f32 %v5429, %v2582
        %v5466 = vmul.f32 %v5430, %v2583
        %v5467 = vmul.f32 %v5431, %v2584
        %v5468 = vmul.f32 %v5432, %v2585
        %v5469 = vmul.f32 %v5433, %v2586
        %v5470 = vmul.f32 %v5434, %v2587
        %v5471 = vmul.f32 %v5435, %v2588
        %v5472 = vpack.c.bf16 %v5436, %v5436
        %v5473 = vpack.c.bf16 %v5437, %v5437
        %v5474 = vpack.c.bf16 %v5438, %v5438
        %v5475 = vpack.c.bf16 %v5439, %v5439
        %v5476 = vpack.c.bf16 %v5440, %v5440
        %v5477 = vpack.c.bf16 %v5441, %v5441
        %v5478 = vpack.c.bf16 %v5442, %v5442
        %v5479 = vpack.c.bf16 %v5443, %v5443
        %v5480 = vpack.c.bf16 %v5444, %v5444
        %v5481 = vpack.c.bf16 %v5445, %v5445
        %v5482 = vpack.c.bf16 %v5446, %v5446
        %v5483 = vpack.c.bf16 %v5447, %v5447
        %v5484 = vpack.c.bf16 %v5448, %v5448
        %v5485 = vpack.c.bf16 %v5449, %v5449
        %v5486 = vpack.c.bf16 %v5450, %v5450
        %v5487 = vpack.c.bf16 %v5451, %v5451
        %v5488 = vpack.c.bf16 %v5452, %v5452
        %v5489 = vpack.c.bf16 %v5453, %v5453
        %v5490 = vpack.c.bf16 %v5454, %v5454
        %v5491 = vpack.c.bf16 %v5455, %v5455
        %v5492 = vpack.c.bf16 %v5456, %v5456
        %v5493 = vpack.c.bf16 %v5457, %v5457
        %v5494 = vpack.c.bf16 %v5458, %v5458
        %v5495 = vpack.c.bf16 %v5459, %v5459
        %v5496 = vpack.c.bf16 %v5460, %v5460
        %v5497 = vpack.c.bf16 %v5461, %v5461
        %v5498 = vpack.c.bf16 %v5462, %v5462
        %v5499 = vpack.c.bf16 %v5463, %v5463
        %v5500 = vpack.c.bf16 %v5464, %v5464
        %v5501 = vpack.c.bf16 %v5465, %v5465
        %v5502 = vpack.c.bf16 %v5466, %v5466
        %v5503 = vpack.c.bf16 %v5467, %v5467
        %v5504 = vpack.c.bf16 %v5468, %v5468
        %v5505 = vpack.c.bf16 %v5469, %v5469
        %v5506 = vpack.c.bf16 %v5470, %v5470
        %v5507 = vpack.c.bf16 %v5471, %v5471
        %v5544 = vunpack.c.l.b16 %v5472
        %v5545 = vunpack.c.l.b16 %v5473
        %v5546 = vunpack.c.l.b16 %v5474
        %v5547 = vunpack.c.l.b16 %v5475
        %v5548 = vunpack.c.l.b16 %v5476
        %v5549 = vunpack.c.l.b16 %v5477
        %v5550 = vunpack.c.l.b16 %v5478
        %v5551 = vunpack.c.l.b16 %v5479
        %v5552 = vunpack.c.l.b16 %v5480
        %v5553 = vunpack.c.l.b16 %v5481
        %v5554 = vunpack.c.l.b16 %v5482
        %v5555 = vunpack.c.l.b16 %v5483
        %v5556 = vunpack.c.l.b16 %v5484
        %v5557 = vunpack.c.l.b16 %v5485
        %v5558 = vunpack.c.l.b16 %v5486
        %v5559 = vunpack.c.l.b16 %v5487
        %v5560 = vunpack.c.l.b16 %v5488
        %v5561 = vunpack.c.l.b16 %v5489
        %v5562 = vunpack.c.l.b16 %v5490
        %v5563 = vunpack.c.l.b16 %v5491
        %v5564 = vunpack.c.l.b16 %v5492
        %v5565 = vunpack.c.l.b16 %v5493
        %v5566 = vunpack.c.l.b16 %v5494
        %v5567 = vunpack.c.l.b16 %v5495
        %v5568 = vunpack.c.l.b16 %v5496
        %v5569 = vunpack.c.l.b16 %v5497
        %v5570 = vunpack.c.l.b16 %v5498
        %v5571 = vunpack.c.l.b16 %v5499
        %v5572 = vunpack.c.l.b16 %v5500
        %v5573 = vunpack.c.l.b16 %v5501
        %v5574 = vunpack.c.l.b16 %v5502
        %v5575 = vunpack.c.l.b16 %v5503
        %v5576 = vunpack.c.l.b16 %v5504
        %v5577 = vunpack.c.l.b16 %v5505
        %v5578 = vunpack.c.l.b16 %v5506
        %v5579 = vunpack.c.l.b16 %v5507
        %v5580 = vpack.c.b16 %v5545, %v5544
        %v5581 = vpack.c.b16 %v5547, %v5546
        %v5582 = vpack.c.b16 %v5549, %v5548
        %v5583 = vpack.c.b16 %v5551, %v5550
        %v5584 = vpack.c.b16 %v5553, %v5552
        %v5585 = vpack.c.b16 %v5555, %v5554
        %v5586 = vpack.c.b16 %v5557, %v5556
        %v5587 = vpack.c.b16 %v5559, %v5558
        %v5588 = vpack.c.b16 %v5561, %v5560
        %v5589 = vpack.c.b16 %v5563, %v5562
        %v5590 = vpack.c.b16 %v5565, %v5564
        %v5591 = vpack.c.b16 %v5567, %v5566
        %v5592 = vpack.c.b16 %v5569, %v5568
        %v5593 = vpack.c.b16 %v5571, %v5570
        %v5594 = vpack.c.b16 %v5573, %v5572
        %v5595 = vpack.c.b16 %v5575, %v5574
        %v5596 = vpack.c.b16 %v5577, %v5576
        %v5597 = vpack.c.b16 %v5579, %v5578
        %vm5598 = vsmask.f32 1280
        %v5600 = vshrl.u32 %v5580, 16
        %v5602 = vrot.slane %v5600, 6
        %v5603 = vshll.u32 %v5580, 16
        %v5605 = vrot.slane %v5603, 7
        %v5606 = vor.u32 %v5602, %v5605
        %v5608 = vshrl.u32 %v5581, 16
        %v5610 = vrot.slane %v5608, 6
        %v5611 = vshll.u32 %v5581, 16
        %v5613 = vrot.slane %v5611, 7
        %v5614 = vor.u32 %v5610, %v5613
        %v5615 = vsel %vm5598, %v5606, %v5614
        %v5617 = vshrl.u32 %v5582, 16
        %v5619 = vrot.slane %v5617, 6
        %v5620 = vshll.u32 %v5582, 16
        %v5622 = vrot.slane %v5620, 7
        %v5623 = vor.u32 %v5619, %v5622
        %v5624 = vsel %vm5598, %v5614, %v5623
        %v5626 = vshrl.u32 %v5583, 16
        %v5628 = vrot.slane %v5626, 6
        %v5629 = vshll.u32 %v5583, 16
        %v5631 = vrot.slane %v5629, 7
        %v5632 = vor.u32 %v5628, %v5631
        %v5633 = vsel %vm5598, %v5623, %v5632
        %v5635 = vshrl.u32 %v5584, 16
        %v5637 = vrot.slane %v5635, 6
        %v5638 = vshll.u32 %v5584, 16
        %v5640 = vrot.slane %v5638, 7
        %v5641 = vor.u32 %v5637, %v5640
        %v5642 = vsel %vm5598, %v5632, %v5641
        %v5644 = vshrl.u32 %v5585, 16
        %v5646 = vrot.slane %v5644, 6
        %v5647 = vshll.u32 %v5585, 16
        %v5649 = vrot.slane %v5647, 7
        %v5650 = vor.u32 %v5646, %v5649
        %v5651 = vsel %vm5598, %v5641, %v5650
        %v5653 = vshrl.u32 %v5586, 16
        %v5655 = vrot.slane %v5653, 6
        %v5656 = vshll.u32 %v5586, 16
        %v5658 = vrot.slane %v5656, 7
        %v5659 = vor.u32 %v5655, %v5658
        %v5660 = vsel %vm5598, %v5650, %v5659
        %v5662 = vshrl.u32 %v5587, 16
        %v5664 = vrot.slane %v5662, 6
        %v5665 = vshll.u32 %v5587, 16
        %v5667 = vrot.slane %v5665, 7
        %v5668 = vor.u32 %v5664, %v5667
        %v5669 = vsel %vm5598, %v5659, %v5668
        %v5671 = vshrl.u32 %v5588, 16
        %v5673 = vrot.slane %v5671, 6
        %v5674 = vshll.u32 %v5588, 16
        %v5676 = vrot.slane %v5674, 7
        %v5677 = vor.u32 %v5673, %v5676
        %v5678 = vsel %vm5598, %v5668, %v5677
        %v5680 = vshrl.u32 %v5589, 16
        %v5682 = vrot.slane %v5680, 6
        %v5683 = vshll.u32 %v5589, 16
        %v5685 = vrot.slane %v5683, 7
        %v5686 = vor.u32 %v5682, %v5685
        %v5687 = vsel %vm5598, %v5677, %v5686
        %v5689 = vshrl.u32 %v5590, 16
        %v5691 = vrot.slane %v5689, 6
        %v5692 = vshll.u32 %v5590, 16
        %v5694 = vrot.slane %v5692, 7
        %v5695 = vor.u32 %v5691, %v5694
        %v5696 = vsel %vm5598, %v5686, %v5695
        %v5698 = vshrl.u32 %v5591, 16
        %v5700 = vrot.slane %v5698, 6
        %v5701 = vshll.u32 %v5591, 16
        %v5703 = vrot.slane %v5701, 7
        %v5704 = vor.u32 %v5700, %v5703
        %v5705 = vsel %vm5598, %v5695, %v5704
        %v5707 = vshrl.u32 %v5592, 16
        %v5709 = vrot.slane %v5707, 6
        %v5710 = vshll.u32 %v5592, 16
        %v5712 = vrot.slane %v5710, 7
        %v5713 = vor.u32 %v5709, %v5712
        %v5714 = vsel %vm5598, %v5704, %v5713
        %v5716 = vshrl.u32 %v5593, 16
        %v5718 = vrot.slane %v5716, 6
        %v5719 = vshll.u32 %v5593, 16
        %v5721 = vrot.slane %v5719, 7
        %v5722 = vor.u32 %v5718, %v5721
        %v5723 = vsel %vm5598, %v5713, %v5722
        %v5725 = vshrl.u32 %v5594, 16
        %v5727 = vrot.slane %v5725, 6
        %v5728 = vshll.u32 %v5594, 16
        %v5730 = vrot.slane %v5728, 7
        %v5731 = vor.u32 %v5727, %v5730
        %v5732 = vsel %vm5598, %v5722, %v5731
        %v5734 = vshrl.u32 %v5595, 16
        %v5736 = vrot.slane %v5734, 6
        %v5737 = vshll.u32 %v5595, 16
        %v5739 = vrot.slane %v5737, 7
        %v5740 = vor.u32 %v5736, %v5739
        %v5741 = vsel %vm5598, %v5731, %v5740
        %v5743 = vshrl.u32 %v5596, 16
        %v5745 = vrot.slane %v5743, 6
        %v5746 = vshll.u32 %v5596, 16
        %v5748 = vrot.slane %v5746, 7
        %v5749 = vor.u32 %v5745, %v5748
        %v5750 = vsel %vm5598, %v5740, %v5749
        %v5752 = vshrl.u32 %v5597, 16
        %v5754 = vrot.slane %v5752, 6
        %v5755 = vshll.u32 %v5597, 16
        %v5757 = vrot.slane %v5755, 7
        %v5758 = vor.u32 %v5754, %v5757
        %v5759 = vsel %vm5598, %v5749, %v5758
        %vm5778 = vcmask 1041408
        %vm5779 = vmand %vm5778, %vm5598
        %v5780 = vsel %vm5779, 0, %v5606
        %v5781 = vsel %vm5779, %v5758, 0
        %v5782 = vld [vmem:[%s13] sm:$0x1]
        %v5783 = vld [vmem:[%s12] sm:$0xf]
        %v5784 = vld [vmem:[%s12 + $0x4] sm:$0xf]
        %v5785 = vld [vmem:[%s12 + $0x8] sm:$0xf]
        %v5786 = vld [vmem:[%s12 + $0xc] sm:$0xf]
        %v5787 = vld [vmem:[%s12 + $0x10] sm:$0xf]
        %v5788 = vld [vmem:[%s12 + $0x14] sm:$0xf]
        %v5789 = vld [vmem:[%s12 + $0x18] sm:$0xf]
        %v5790 = vld [vmem:[%s12 + $0x1c] sm:$0xf]
        %v5791 = vld [vmem:[%s12 + $0x20] sm:$0xf]
        %v5792 = vld [vmem:[%s12 + $0x24] sm:$0xf]
        %v5793 = vld [vmem:[%s12 + $0x28] sm:$0xf]
        %v5794 = vld [vmem:[%s12 + $0x2c] sm:$0xf]
        %v5795 = vld [vmem:[%s12 + $0x30] sm:$0xf]
        %v5796 = vld [vmem:[%s12 + $0x34] sm:$0xf]
        %v5797 = vld [vmem:[%s12 + $0x38] sm:$0xf]
        %v5798 = vld [vmem:[%s12 + $0x3c] sm:$0xf]
        %s5799 = scalar_lea.vmem %s12, 64
        %v5800 = vld [vmem:[%s5799] sm:$0xf]
        %v5801 = vld [vmem:[%s5799 + $0x4] sm:$0xf]
        %v5802 = vld [vmem:[%s5799 + $0x8] sm:$0xf]
        %v5803 = vld [vmem:[%s5799 + $0xc] sm:$0xf]
        %v5804 = vld [vmem:[%s5799 + $0x10] sm:$0xf]
        %v5805 = vld [vmem:[%s5799 + $0x14] sm:$0xf]
        %v5806 = vld [vmem:[%s5799 + $0x18] sm:$0xf]
        %v5807 = vld [vmem:[%s5799 + $0x1c] sm:$0xf]
        %v5808 = vld [vmem:[%s5799 + $0x20] sm:$0xf]
        %v5809 = vld [vmem:[%s5799 + $0x24] sm:$0xf]
        %v5810 = vld [vmem:[%s5799 + $0x28] sm:$0xf]
        %v5811 = vld [vmem:[%s5799 + $0x2c] sm:$0xf]
        %v5812 = vld [vmem:[%s5799 + $0x30] sm:$0xf]
        %v5813 = vld [vmem:[%s5799 + $0x34] sm:$0xf]
        %v5814 = vld [vmem:[%s5799 + $0x38] sm:$0xf]
        %v5815 = vld [vmem:[%s5799 + $0x3c] sm:$0xf]
        %v5817 = vshrl.u32 0, 16
        %v5819 = vshll.u32 0, 16
        %v5821 = vrot.slane %v5819, 1
        %v5822 = vor.u32 %v5817, %v5821
        %v5824 = vshll.u32 %v5780, 16
        %v5826 = vrot.slane %v5824, 1
        %v5827 = vsel %vm2612, %v5822, %v5826
        %v5828 = vshrl.u32 %v5780, 16
        %v5830 = vor.u32 %v5828, %v5826
        %v5832 = vshll.u32 %v5615, 16
        %v5834 = vrot.slane %v5832, 1
        %v5835 = vsel %vm2612, %v5830, %v5834
        %v5836 = vshrl.u32 %v5615, 16
        %v5838 = vor.u32 %v5836, %v5834
        %v5840 = vshll.u32 %v5624, 16
        %v5842 = vrot.slane %v5840, 1
        %v5843 = vsel %vm2612, %v5838, %v5842
        %v5844 = vshrl.u32 %v5624, 16
        %v5846 = vor.u32 %v5844, %v5842
        %v5848 = vshll.u32 %v5633, 16
        %v5850 = vrot.slane %v5848, 1
        %v5851 = vsel %vm2612, %v5846, %v5850
        %v5852 = vshrl.u32 %v5633, 16
        %v5854 = vor.u32 %v5852, %v5850
        %v5856 = vshll.u32 %v5642, 16
        %v5858 = vrot.slane %v5856, 1
        %v5859 = vsel %vm2612, %v5854, %v5858
        %v5860 = vshrl.u32 %v5642, 16
        %v5862 = vor.u32 %v5860, %v5858
        %v5864 = vshll.u32 %v5651, 16
        %v5866 = vrot.slane %v5864, 1
        %v5867 = vsel %vm2612, %v5862, %v5866
        %v5868 = vshrl.u32 %v5651, 16
        %v5870 = vor.u32 %v5868, %v5866
        %v5872 = vshll.u32 %v5660, 16
        %v5874 = vrot.slane %v5872, 1
        %v5875 = vsel %vm2612, %v5870, %v5874
        %v5876 = vshrl.u32 %v5660, 16
        %v5878 = vor.u32 %v5876, %v5874
        %v5880 = vshll.u32 %v5669, 16
        %v5882 = vrot.slane %v5880, 1
        %v5883 = vsel %vm2612, %v5878, %v5882
        %v5884 = vshrl.u32 %v5669, 16
        %v5886 = vor.u32 %v5884, %v5882
        %v5888 = vshll.u32 %v5678, 16
        %v5890 = vrot.slane %v5888, 1
        %v5891 = vsel %vm2612, %v5886, %v5890
        %v5892 = vshrl.u32 %v5678, 16
        %v5894 = vor.u32 %v5892, %v5890
        %v5896 = vshll.u32 %v5687, 16
        %v5898 = vrot.slane %v5896, 1
        %v5899 = vsel %vm2612, %v5894, %v5898
        %v5900 = vshrl.u32 %v5687, 16
        %v5902 = vor.u32 %v5900, %v5898
        %v5904 = vshll.u32 %v5696, 16
        %v5906 = vrot.slane %v5904, 1
        %v5907 = vsel %vm2612, %v5902, %v5906
        %v5908 = vshrl.u32 %v5696, 16
        %v5910 = vor.u32 %v5908, %v5906
        %v5912 = vshll.u32 %v5705, 16
        %v5914 = vrot.slane %v5912, 1
        %v5915 = vsel %vm2612, %v5910, %v5914
        %v5916 = vshrl.u32 %v5705, 16
        %v5918 = vor.u32 %v5916, %v5914
        %v5920 = vshll.u32 %v5714, 16
        %v5922 = vrot.slane %v5920, 1
        %v5923 = vsel %vm2612, %v5918, %v5922
        %v5924 = vshrl.u32 %v5714, 16
        %v5926 = vor.u32 %v5924, %v5922
        %v5928 = vshll.u32 %v5723, 16
        %v5930 = vrot.slane %v5928, 1
        %v5931 = vsel %vm2612, %v5926, %v5930
        %v5932 = vshrl.u32 %v5723, 16
        %v5934 = vor.u32 %v5932, %v5930
        %v5936 = vshll.u32 %v5732, 16
        %v5938 = vrot.slane %v5936, 1
        %v5939 = vsel %vm2612, %v5934, %v5938
        %v5940 = vshrl.u32 %v5732, 16
        %v5942 = vor.u32 %v5940, %v5938
        %v5944 = vshll.u32 %v5741, 16
        %v5946 = vrot.slane %v5944, 1
        %v5947 = vsel %vm2612, %v5942, %v5946
        %v5948 = vshrl.u32 %v5741, 16
        %v5950 = vor.u32 %v5948, %v5946
        %v5952 = vshll.u32 %v5750, 16
        %v5954 = vrot.slane %v5952, 1
        %v5955 = vsel %vm2612, %v5950, %v5954
        %v5956 = vshrl.u32 %v5750, 16
        %v5958 = vor.u32 %v5956, %v5954
        %v5960 = vshll.u32 %v5759, 16
        %v5962 = vrot.slane %v5960, 1
        %v5963 = vsel %vm2612, %v5958, %v5962
        %v5998 = vunpack.c.l.b16 %v5800
        %v5999 = vunpack.c.l.b16 %v5801
        %v6000 = vunpack.c.l.b16 %v5802
        %v6001 = vunpack.c.l.b16 %v5803
        %v6002 = vunpack.c.l.b16 %v5804
        %v6003 = vunpack.c.l.b16 %v5805
        %v6004 = vunpack.c.l.b16 %v5806
        %v6005 = vunpack.c.l.b16 %v5807
        %v6006 = vunpack.c.l.b16 %v5808
        %v6007 = vunpack.c.l.b16 %v5809
        %v6008 = vunpack.c.l.b16 %v5810
        %v6009 = vunpack.c.l.b16 %v5811
        %v6010 = vunpack.c.l.b16 %v5812
        %v6011 = vunpack.c.l.b16 %v5813
        %v6012 = vunpack.c.l.b16 %v5814
        %v6013 = vunpack.c.l.b16 %v5815
        %v6014 = vpack.c.b16 %v5999, %v5998
        %v6015 = vpack.c.b16 %v6001, %v6000
        %v6016 = vpack.c.b16 %v6003, %v6002
        %v6017 = vpack.c.b16 %v6005, %v6004
        %v6018 = vpack.c.b16 %v6007, %v6006
        %v6019 = vpack.c.b16 %v6009, %v6008
        %v6020 = vpack.c.b16 %v6011, %v6010
        %v6021 = vpack.c.b16 %v6013, %v6012
        %6030 = vmatpush.bf16.msra.mxu0 %v6021
        %6031 = vmatpush.bf16.msra.mxu0 %v6020
        %6032 = vmatpush.bf16.msra.mxu0 %v6019
        %6033 = vmatpush.bf16.msra.mxu0 %v6018
        %6034 = vmatpush.bf16.msra.mxu0 %v6017
        %6035 = vmatpush.bf16.msra.mxu0 %v6016
        %6036 = vmatpush.bf16.msra.mxu0 %v6015
        %6037 = vmatpush.bf16.msra.mxu0 %v6014
        %6038 = vmatmul.bf16.gmra.mxu0 %v5827
        %v6039 = vpop.f32.mrf.mxu0
        %v6040 = vadd.f32 0.0, %v6039
        %v6041 = vpop.f32.mrf.mxu0
        %v6042 = vadd.f32 0.0, %v6041
        %6043 = vmatmul.bf16.gmra.mxu0 %v5835
        %v6044 = vpop.f32.mrf.mxu0
        %v6045 = vadd.f32 0.0, %v6044
        %v6046 = vpop.f32.mrf.mxu0
        %v6047 = vadd.f32 0.0, %v6046
        %6048 = vmatmul.bf16.gmra.mxu0 %v5843
        %v6049 = vpop.f32.mrf.mxu0
        %v6050 = vadd.f32 0.0, %v6049
        %v6051 = vpop.f32.mrf.mxu0
        %v6052 = vadd.f32 0.0, %v6051
        %6053 = vmatmul.bf16.gmra.mxu0 %v5851
        %v6054 = vpop.f32.mrf.mxu0
        %v6055 = vadd.f32 0.0, %v6054
        %v6056 = vpop.f32.mrf.mxu0
        %v6057 = vadd.f32 0.0, %v6056
        %6058 = vmatmul.bf16.gmra.mxu0 %v5859
        %v6059 = vpop.f32.mrf.mxu0
        %v6060 = vadd.f32 0.0, %v6059
        %v6061 = vpop.f32.mrf.mxu0
        %v6062 = vadd.f32 0.0, %v6061
        %6063 = vmatmul.bf16.gmra.mxu0 %v5867
        %v6064 = vpop.f32.mrf.mxu0
        %v6065 = vadd.f32 0.0, %v6064
        %v6066 = vpop.f32.mrf.mxu0
        %v6067 = vadd.f32 0.0, %v6066
        %6068 = vmatmul.bf16.gmra.mxu0 %v5875
        %v6069 = vpop.f32.mrf.mxu0
        %v6070 = vadd.f32 0.0, %v6069
        %v6071 = vpop.f32.mrf.mxu0
        %v6072 = vadd.f32 0.0, %v6071
        %6073 = vmatmul.bf16.gmra.mxu0 %v5883
        %v6074 = vpop.f32.mrf.mxu0
        %v6075 = vadd.f32 0.0, %v6074
        %v6076 = vpop.f32.mrf.mxu0
        %v6077 = vadd.f32 0.0, %v6076
        %6078 = vmatmul.bf16.gmra.mxu0 %v5891
        %v6079 = vpop.f32.mrf.mxu0
        %v6080 = vadd.f32 0.0, %v6079
        %v6081 = vpop.f32.mrf.mxu0
        %v6082 = vadd.f32 0.0, %v6081
        %6083 = vmatmul.bf16.gmra.mxu0 %v5899
        %v6084 = vpop.f32.mrf.mxu0
        %v6085 = vadd.f32 0.0, %v6084
        %v6086 = vpop.f32.mrf.mxu0
        %v6087 = vadd.f32 0.0, %v6086
        %6088 = vmatmul.bf16.gmra.mxu0 %v5907
        %v6089 = vpop.f32.mrf.mxu0
        %v6090 = vadd.f32 0.0, %v6089
        %v6091 = vpop.f32.mrf.mxu0
        %v6092 = vadd.f32 0.0, %v6091
        %6093 = vmatmul.bf16.gmra.mxu0 %v5915
        %v6094 = vpop.f32.mrf.mxu0
        %v6095 = vadd.f32 0.0, %v6094
        %v6096 = vpop.f32.mrf.mxu0
        %v6097 = vadd.f32 0.0, %v6096
        %6098 = vmatmul.bf16.gmra.mxu0 %v5923
        %v6099 = vpop.f32.mrf.mxu0
        %v6100 = vadd.f32 0.0, %v6099
        %v6101 = vpop.f32.mrf.mxu0
        %v6102 = vadd.f32 0.0, %v6101
        %6103 = vmatmul.bf16.gmra.mxu0 %v5931
        %v6104 = vpop.f32.mrf.mxu0
        %v6105 = vadd.f32 0.0, %v6104
        %v6106 = vpop.f32.mrf.mxu0
        %v6107 = vadd.f32 0.0, %v6106
        %6108 = vmatmul.bf16.gmra.mxu0 %v5939
        %v6109 = vpop.f32.mrf.mxu0
        %v6110 = vadd.f32 0.0, %v6109
        %v6111 = vpop.f32.mrf.mxu0
        %v6112 = vadd.f32 0.0, %v6111
        %6113 = vmatmul.bf16.gmra.mxu0 %v5947
        %v6114 = vpop.f32.mrf.mxu0
        %v6115 = vadd.f32 0.0, %v6114
        %v6116 = vpop.f32.mrf.mxu0
        %v6117 = vadd.f32 0.0, %v6116
        %6118 = vmatmul.bf16.gmra.mxu0 %v5955
        %v6119 = vpop.f32.mrf.mxu0
        %v6120 = vadd.f32 0.0, %v6119
        %v6121 = vpop.f32.mrf.mxu0
        %v6122 = vadd.f32 0.0, %v6121
        %6123 = vmatmul.bf16.gmra.mxu0 %v5963
        %v6124 = vpop.f32.mrf.mxu0
        %v6125 = vadd.f32 0.0, %v6124
        %v6126 = vpop.f32.mrf.mxu0
        %v6127 = vadd.f32 0.0, %v6126
        %6128 = vdwg.mxu0
        %v6145 = vunpack.c.l.b16 %v5783
        %v6146 = vunpack.c.l.b16 %v5784
        %v6147 = vunpack.c.l.b16 %v5785
        %v6148 = vunpack.c.l.b16 %v5786
        %v6149 = vunpack.c.l.b16 %v5787
        %v6150 = vunpack.c.l.b16 %v5788
        %v6151 = vunpack.c.l.b16 %v5789
        %v6152 = vunpack.c.l.b16 %v5790
        %v6153 = vunpack.c.l.b16 %v5791
        %v6154 = vunpack.c.l.b16 %v5792
        %v6155 = vunpack.c.l.b16 %v5793
        %v6156 = vunpack.c.l.b16 %v5794
        %v6157 = vunpack.c.l.b16 %v5795
        %v6158 = vunpack.c.l.b16 %v5796
        %v6159 = vunpack.c.l.b16 %v5797
        %v6160 = vunpack.c.l.b16 %v5798
        %v6161 = vpack.c.b16 %v6146, %v6145
        %v6162 = vpack.c.b16 %v6148, %v6147
        %v6163 = vpack.c.b16 %v6150, %v6149
        %v6164 = vpack.c.b16 %v6152, %v6151
        %v6165 = vpack.c.b16 %v6154, %v6153
        %v6166 = vpack.c.b16 %v6156, %v6155
        %v6167 = vpack.c.b16 %v6158, %v6157
        %v6168 = vpack.c.b16 %v6160, %v6159
        %6177 = vmatpush.bf16.msra.mxu0 %v6168
        %6178 = vmatpush.bf16.msra.mxu0 %v6167
        %6179 = vmatpush.bf16.msra.mxu0 %v6166
        %6180 = vmatpush.bf16.msra.mxu0 %v6165
        %6181 = vmatpush.bf16.msra.mxu0 %v6164
        %6182 = vmatpush.bf16.msra.mxu0 %v6163
        %6183 = vmatpush.bf16.msra.mxu0 %v6162
        %6184 = vmatpush.bf16.msra.mxu0 %v6161
        %6185 = vmatmul.bf16.gmra.mxu0 0
        %v6186 = vpop.f32.mrf.mxu0
        %v6187 = vadd.f32 %v6040, %v6186
        %v6188 = vpop.f32.mrf.mxu0
        %v6189 = vadd.f32 %v6042, %v6188
        %6190 = vmatmul.bf16.gmra.mxu0 %v5780
        %v6191 = vpop.f32.mrf.mxu0
        %v6192 = vadd.f32 %v6045, %v6191
        %v6193 = vpop.f32.mrf.mxu0
        %v6194 = vadd.f32 %v6047, %v6193
        %6195 = vmatmul.bf16.gmra.mxu0 %v5615
        %v6196 = vpop.f32.mrf.mxu0
        %v6197 = vadd.f32 %v6050, %v6196
        %v6198 = vpop.f32.mrf.mxu0
        %v6199 = vadd.f32 %v6052, %v6198
        %6200 = vmatmul.bf16.gmra.mxu0 %v5624
        %v6201 = vpop.f32.mrf.mxu0
        %v6202 = vadd.f32 %v6055, %v6201
        %v6203 = vpop.f32.mrf.mxu0
        %v6204 = vadd.f32 %v6057, %v6203
        %6205 = vmatmul.bf16.gmra.mxu0 %v5633
        %v6206 = vpop.f32.mrf.mxu0
        %v6207 = vadd.f32 %v6060, %v6206
        %v6208 = vpop.f32.mrf.mxu0
        %v6209 = vadd.f32 %v6062, %v6208
        %6210 = vmatmul.bf16.gmra.mxu0 %v5642
        %v6211 = vpop.f32.mrf.mxu0
        %v6212 = vadd.f32 %v6065, %v6211
        %v6213 = vpop.f32.mrf.mxu0
        %v6214 = vadd.f32 %v6067, %v6213
        %6215 = vmatmul.bf16.gmra.mxu0 %v5651
        %v6216 = vpop.f32.mrf.mxu0
        %v6217 = vadd.f32 %v6070, %v6216
        %v6218 = vpop.f32.mrf.mxu0
        %v6219 = vadd.f32 %v6072, %v6218
        %6220 = vmatmul.bf16.gmra.mxu0 %v5660
        %v6221 = vpop.f32.mrf.mxu0
        %v6222 = vadd.f32 %v6075, %v6221
        %v6223 = vpop.f32.mrf.mxu0
        %v6224 = vadd.f32 %v6077, %v6223
        %6225 = vmatmul.bf16.gmra.mxu0 %v5669
        %v6226 = vpop.f32.mrf.mxu0
        %v6227 = vadd.f32 %v6080, %v6226
        %v6228 = vpop.f32.mrf.mxu0
        %v6229 = vadd.f32 %v6082, %v6228
        %6230 = vmatmul.bf16.gmra.mxu0 %v5678
        %v6231 = vpop.f32.mrf.mxu0
        %v6232 = vadd.f32 %v6085, %v6231
        %v6233 = vpop.f32.mrf.mxu0
        %v6234 = vadd.f32 %v6087, %v6233
        %6235 = vmatmul.bf16.gmra.mxu0 %v5687
        %v6236 = vpop.f32.mrf.mxu0
        %v6237 = vadd.f32 %v6090, %v6236
        %v6238 = vpop.f32.mrf.mxu0
        %v6239 = vadd.f32 %v6092, %v6238
        %6240 = vmatmul.bf16.gmra.mxu0 %v5696
        %v6241 = vpop.f32.mrf.mxu0
        %v6242 = vadd.f32 %v6095, %v6241
        %v6243 = vpop.f32.mrf.mxu0
        %v6244 = vadd.f32 %v6097, %v6243
        %6245 = vmatmul.bf16.gmra.mxu0 %v5705
        %v6246 = vpop.f32.mrf.mxu0
        %v6247 = vadd.f32 %v6100, %v6246
        %v6248 = vpop.f32.mrf.mxu0
        %v6249 = vadd.f32 %v6102, %v6248
        %6250 = vmatmul.bf16.gmra.mxu0 %v5714
        %v6251 = vpop.f32.mrf.mxu0
        %v6252 = vadd.f32 %v6105, %v6251
        %v6253 = vpop.f32.mrf.mxu0
        %v6254 = vadd.f32 %v6107, %v6253
        %6255 = vmatmul.bf16.gmra.mxu0 %v5723
        %v6256 = vpop.f32.mrf.mxu0
        %v6257 = vadd.f32 %v6110, %v6256
        %v6258 = vpop.f32.mrf.mxu0
        %v6259 = vadd.f32 %v6112, %v6258
        %6260 = vmatmul.bf16.gmra.mxu0 %v5732
        %v6261 = vpop.f32.mrf.mxu0
        %v6262 = vadd.f32 %v6115, %v6261
        %v6263 = vpop.f32.mrf.mxu0
        %v6264 = vadd.f32 %v6117, %v6263
        %6265 = vmatmul.bf16.gmra.mxu0 %v5741
        %v6266 = vpop.f32.mrf.mxu0
        %v6267 = vadd.f32 %v6120, %v6266
        %v6268 = vpop.f32.mrf.mxu0
        %v6269 = vadd.f32 %v6122, %v6268
        %6270 = vmatmul.bf16.gmra.mxu0 %v5750
        %v6271 = vpop.f32.mrf.mxu0
        %v6272 = vadd.f32 %v6125, %v6271
        %v6273 = vpop.f32.mrf.mxu0
        %v6274 = vadd.f32 %v6127, %v6273
        %6275 = vdwg.mxu0
        %s6276 = scalar_lea.vmem %s12, 128
        %v6277 = vld [vmem:[%s6276] sm:$0xf]
        %v6278 = vld [vmem:[%s6276 + $0x4] sm:$0xf]
        %v6279 = vld [vmem:[%s6276 + $0x8] sm:$0xf]
        %v6280 = vld [vmem:[%s6276 + $0xc] sm:$0xf]
        %v6281 = vld [vmem:[%s6276 + $0x10] sm:$0xf]
        %v6282 = vld [vmem:[%s6276 + $0x14] sm:$0xf]
        %v6283 = vld [vmem:[%s6276 + $0x18] sm:$0xf]
        %v6284 = vld [vmem:[%s6276 + $0x1c] sm:$0xf]
        %v6285 = vld [vmem:[%s6276 + $0x20] sm:$0xf]
        %v6286 = vld [vmem:[%s6276 + $0x24] sm:$0xf]
        %v6287 = vld [vmem:[%s6276 + $0x28] sm:$0xf]
        %v6288 = vld [vmem:[%s6276 + $0x2c] sm:$0xf]
        %v6289 = vld [vmem:[%s6276 + $0x30] sm:$0xf]
        %v6290 = vld [vmem:[%s6276 + $0x34] sm:$0xf]
        %v6291 = vld [vmem:[%s6276 + $0x38] sm:$0xf]
        %v6292 = vld [vmem:[%s6276 + $0x3c] sm:$0xf]
        %v6295 = vrot.slane 0, 1
        %v6296 = vrot.slane %v5780, 1
        %v6297 = vsel %vm3078, %v6295, %v6296
        %v6298 = vrot.slane %v5615, 1
        %v6299 = vsel %vm3078, %v6296, %v6298
        %v6300 = vrot.slane %v5624, 1
        %v6301 = vsel %vm3078, %v6298, %v6300
        %v6302 = vrot.slane %v5633, 1
        %v6303 = vsel %vm3078, %v6300, %v6302
        %v6304 = vrot.slane %v5642, 1
        %v6305 = vsel %vm3078, %v6302, %v6304
        %v6306 = vrot.slane %v5651, 1
        %v6307 = vsel %vm3078, %v6304, %v6306
        %v6308 = vrot.slane %v5660, 1
        %v6309 = vsel %vm3078, %v6306, %v6308
        %v6310 = vrot.slane %v5669, 1
        %v6311 = vsel %vm3078, %v6308, %v6310
        %v6312 = vrot.slane %v5678, 1
        %v6313 = vsel %vm3078, %v6310, %v6312
        %v6314 = vrot.slane %v5687, 1
        %v6315 = vsel %vm3078, %v6312, %v6314
        %v6316 = vrot.slane %v5696, 1
        %v6317 = vsel %vm3078, %v6314, %v6316
        %v6318 = vrot.slane %v5705, 1
        %v6319 = vsel %vm3078, %v6316, %v6318
        %v6320 = vrot.slane %v5714, 1
        %v6321 = vsel %vm3078, %v6318, %v6320
        %v6322 = vrot.slane %v5723, 1
        %v6323 = vsel %vm3078, %v6320, %v6322
        %v6324 = vrot.slane %v5732, 1
        %v6325 = vsel %vm3078, %v6322, %v6324
        %v6326 = vrot.slane %v5741, 1
        %v6327 = vsel %vm3078, %v6324, %v6326
        %v6328 = vrot.slane %v5750, 1
        %v6329 = vsel %vm3078, %v6326, %v6328
        %v6330 = vrot.slane %v5759, 1
        %v6331 = vsel %vm3078, %v6328, %v6330
        %v6366 = vunpack.c.l.b16 %v6277
        %v6367 = vunpack.c.l.b16 %v6278
        %v6368 = vunpack.c.l.b16 %v6279
        %v6369 = vunpack.c.l.b16 %v6280
        %v6370 = vunpack.c.l.b16 %v6281
        %v6371 = vunpack.c.l.b16 %v6282
        %v6372 = vunpack.c.l.b16 %v6283
        %v6373 = vunpack.c.l.b16 %v6284
        %v6374 = vunpack.c.l.b16 %v6285
        %v6375 = vunpack.c.l.b16 %v6286
        %v6376 = vunpack.c.l.b16 %v6287
        %v6377 = vunpack.c.l.b16 %v6288
        %v6378 = vunpack.c.l.b16 %v6289
        %v6379 = vunpack.c.l.b16 %v6290
        %v6380 = vunpack.c.l.b16 %v6291
        %v6381 = vunpack.c.l.b16 %v6292
        %v6382 = vpack.c.b16 %v6367, %v6366
        %v6383 = vpack.c.b16 %v6369, %v6368
        %v6384 = vpack.c.b16 %v6371, %v6370
        %v6385 = vpack.c.b16 %v6373, %v6372
        %v6386 = vpack.c.b16 %v6375, %v6374
        %v6387 = vpack.c.b16 %v6377, %v6376
        %v6388 = vpack.c.b16 %v6379, %v6378
        %v6389 = vpack.c.b16 %v6381, %v6380
        %6398 = vmatpush.bf16.msra.mxu0 %v6389
        %6399 = vmatpush.bf16.msra.mxu0 %v6388
        %6400 = vmatpush.bf16.msra.mxu0 %v6387
        %6401 = vmatpush.bf16.msra.mxu0 %v6386
        %6402 = vmatpush.bf16.msra.mxu0 %v6385
        %6403 = vmatpush.bf16.msra.mxu0 %v6384
        %6404 = vmatpush.bf16.msra.mxu0 %v6383
        %6405 = vmatpush.bf16.msra.mxu0 %v6382
        %6406 = vmatmul.bf16.gmra.mxu0 %v6297
        %v6407 = vpop.f32.mrf.mxu0
        %v6408 = vadd.f32 0.0, %v6407
        %v6409 = vpop.f32.mrf.mxu0
        %v6410 = vadd.f32 0.0, %v6409
        %6411 = vmatmul.bf16.gmra.mxu0 %v6299
        %v6412 = vpop.f32.mrf.mxu0
        %v6413 = vadd.f32 0.0, %v6412
        %v6414 = vpop.f32.mrf.mxu0
        %v6415 = vadd.f32 0.0, %v6414
        %6416 = vmatmul.bf16.gmra.mxu0 %v6301
        %v6417 = vpop.f32.mrf.mxu0
        %v6418 = vadd.f32 0.0, %v6417
        %v6419 = vpop.f32.mrf.mxu0
        %v6420 = vadd.f32 0.0, %v6419
        %6421 = vmatmul.bf16.gmra.mxu0 %v6303
        %v6422 = vpop.f32.mrf.mxu0
        %v6423 = vadd.f32 0.0, %v6422
        %v6424 = vpop.f32.mrf.mxu0
        %v6425 = vadd.f32 0.0, %v6424
        %6426 = vmatmul.bf16.gmra.mxu0 %v6305
        %v6427 = vpop.f32.mrf.mxu0
        %v6428 = vadd.f32 0.0, %v6427
        %v6429 = vpop.f32.mrf.mxu0
        %v6430 = vadd.f32 0.0, %v6429
        %6431 = vmatmul.bf16.gmra.mxu0 %v6307
        %v6432 = vpop.f32.mrf.mxu0
        %v6433 = vadd.f32 0.0, %v6432
        %v6434 = vpop.f32.mrf.mxu0
        %v6435 = vadd.f32 0.0, %v6434
        %6436 = vmatmul.bf16.gmra.mxu0 %v6309
        %v6437 = vpop.f32.mrf.mxu0
        %v6438 = vadd.f32 0.0, %v6437
        %v6439 = vpop.f32.mrf.mxu0
        %v6440 = vadd.f32 0.0, %v6439
        %6441 = vmatmul.bf16.gmra.mxu0 %v6311
        %v6442 = vpop.f32.mrf.mxu0
        %v6443 = vadd.f32 0.0, %v6442
        %v6444 = vpop.f32.mrf.mxu0
        %v6445 = vadd.f32 0.0, %v6444
        %6446 = vmatmul.bf16.gmra.mxu0 %v6313
        %v6447 = vpop.f32.mrf.mxu0
        %v6448 = vadd.f32 0.0, %v6447
        %v6449 = vpop.f32.mrf.mxu0
        %v6450 = vadd.f32 0.0, %v6449
        %6451 = vmatmul.bf16.gmra.mxu0 %v6315
        %v6452 = vpop.f32.mrf.mxu0
        %v6453 = vadd.f32 0.0, %v6452
        %v6454 = vpop.f32.mrf.mxu0
        %v6455 = vadd.f32 0.0, %v6454
        %6456 = vmatmul.bf16.gmra.mxu0 %v6317
        %v6457 = vpop.f32.mrf.mxu0
        %v6458 = vadd.f32 0.0, %v6457
        %v6459 = vpop.f32.mrf.mxu0
        %v6460 = vadd.f32 0.0, %v6459
        %6461 = vmatmul.bf16.gmra.mxu0 %v6319
        %v6462 = vpop.f32.mrf.mxu0
        %v6463 = vadd.f32 0.0, %v6462
        %v6464 = vpop.f32.mrf.mxu0
        %v6465 = vadd.f32 0.0, %v6464
        %6466 = vmatmul.bf16.gmra.mxu0 %v6321
        %v6467 = vpop.f32.mrf.mxu0
        %v6468 = vadd.f32 0.0, %v6467
        %v6469 = vpop.f32.mrf.mxu0
        %v6470 = vadd.f32 0.0, %v6469
        %6471 = vmatmul.bf16.gmra.mxu0 %v6323
        %v6472 = vpop.f32.mrf.mxu0
        %v6473 = vadd.f32 0.0, %v6472
        %v6474 = vpop.f32.mrf.mxu0
        %v6475 = vadd.f32 0.0, %v6474
        %6476 = vmatmul.bf16.gmra.mxu0 %v6325
        %v6477 = vpop.f32.mrf.mxu0
        %v6478 = vadd.f32 0.0, %v6477
        %v6479 = vpop.f32.mrf.mxu0
        %v6480 = vadd.f32 0.0, %v6479
        %6481 = vmatmul.bf16.gmra.mxu0 %v6327
        %v6482 = vpop.f32.mrf.mxu0
        %v6483 = vadd.f32 0.0, %v6482
        %v6484 = vpop.f32.mrf.mxu0
        %v6485 = vadd.f32 0.0, %v6484
        %6486 = vmatmul.bf16.gmra.mxu0 %v6329
        %v6487 = vpop.f32.mrf.mxu0
        %v6488 = vadd.f32 0.0, %v6487
        %v6489 = vpop.f32.mrf.mxu0
        %v6490 = vadd.f32 0.0, %v6489
        %6491 = vmatmul.bf16.gmra.mxu0 %v6331
        %v6492 = vpop.f32.mrf.mxu0
        %v6493 = vadd.f32 0.0, %v6492
        %v6494 = vpop.f32.mrf.mxu0
        %v6495 = vadd.f32 0.0, %v6494
        %6496 = vdwg.mxu0
        %v6497 = vadd.f32 %v6187, %v6408
        %v6498 = vadd.f32 %v6189, %v6410
        %v6499 = vadd.f32 %v6192, %v6413
        %v6500 = vadd.f32 %v6194, %v6415
        %v6501 = vadd.f32 %v6197, %v6418
        %v6502 = vadd.f32 %v6199, %v6420
        %v6503 = vadd.f32 %v6202, %v6423
        %v6504 = vadd.f32 %v6204, %v6425
        %v6505 = vadd.f32 %v6207, %v6428
        %v6506 = vadd.f32 %v6209, %v6430
        %v6507 = vadd.f32 %v6212, %v6433
        %v6508 = vadd.f32 %v6214, %v6435
        %v6509 = vadd.f32 %v6217, %v6438
        %v6510 = vadd.f32 %v6219, %v6440
        %v6511 = vadd.f32 %v6222, %v6443
        %v6512 = vadd.f32 %v6224, %v6445
        %v6513 = vadd.f32 %v6227, %v6448
        %v6514 = vadd.f32 %v6229, %v6450
        %v6515 = vadd.f32 %v6232, %v6453
        %v6516 = vadd.f32 %v6234, %v6455
        %v6517 = vadd.f32 %v6237, %v6458
        %v6518 = vadd.f32 %v6239, %v6460
        %v6519 = vadd.f32 %v6242, %v6463
        %v6520 = vadd.f32 %v6244, %v6465
        %v6521 = vadd.f32 %v6247, %v6468
        %v6522 = vadd.f32 %v6249, %v6470
        %v6523 = vadd.f32 %v6252, %v6473
        %v6524 = vadd.f32 %v6254, %v6475
        %v6525 = vadd.f32 %v6257, %v6478
        %v6526 = vadd.f32 %v6259, %v6480
        %v6527 = vadd.f32 %v6262, %v6483
        %v6528 = vadd.f32 %v6264, %v6485
        %v6529 = vadd.f32 %v6267, %v6488
        %v6530 = vadd.f32 %v6269, %v6490
        %v6531 = vadd.f32 %v6272, %v6493
        %v6532 = vadd.f32 %v6274, %v6495
        %s6533 = scalar_lea.vmem %s12, 192
        %v6534 = vld [vmem:[%s6533] sm:$0xf]
        %v6535 = vld [vmem:[%s6533 + $0x4] sm:$0xf]
        %v6536 = vld [vmem:[%s6533 + $0x8] sm:$0xf]
        %v6537 = vld [vmem:[%s6533 + $0xc] sm:$0xf]
        %v6538 = vld [vmem:[%s6533 + $0x10] sm:$0xf]
        %v6539 = vld [vmem:[%s6533 + $0x14] sm:$0xf]
        %v6540 = vld [vmem:[%s6533 + $0x18] sm:$0xf]
        %v6541 = vld [vmem:[%s6533 + $0x1c] sm:$0xf]
        %v6542 = vld [vmem:[%s6533 + $0x20] sm:$0xf]
        %v6543 = vld [vmem:[%s6533 + $0x24] sm:$0xf]
        %v6544 = vld [vmem:[%s6533 + $0x28] sm:$0xf]
        %v6545 = vld [vmem:[%s6533 + $0x2c] sm:$0xf]
        %v6546 = vld [vmem:[%s6533 + $0x30] sm:$0xf]
        %v6547 = vld [vmem:[%s6533 + $0x34] sm:$0xf]
        %v6548 = vld [vmem:[%s6533 + $0x38] sm:$0xf]
        %v6549 = vld [vmem:[%s6533 + $0x3c] sm:$0xf]
        %v6551 = vrot.slane %v5781, 1
        %v6552 = vsel %vm3078, %v6330, %v6551
        %v6570 = vunpack.c.l.b16 %v6534
        %v6571 = vunpack.c.l.b16 %v6535
        %v6572 = vunpack.c.l.b16 %v6536
        %v6573 = vunpack.c.l.b16 %v6537
        %v6574 = vunpack.c.l.b16 %v6538
        %v6575 = vunpack.c.l.b16 %v6539
        %v6576 = vunpack.c.l.b16 %v6540
        %v6577 = vunpack.c.l.b16 %v6541
        %v6578 = vunpack.c.l.b16 %v6542
        %v6579 = vunpack.c.l.b16 %v6543
        %v6580 = vunpack.c.l.b16 %v6544
        %v6581 = vunpack.c.l.b16 %v6545
        %v6582 = vunpack.c.l.b16 %v6546
        %v6583 = vunpack.c.l.b16 %v6547
        %v6584 = vunpack.c.l.b16 %v6548
        %v6585 = vunpack.c.l.b16 %v6549
        %v6586 = vpack.c.b16 %v6571, %v6570
        %v6587 = vpack.c.b16 %v6573, %v6572
        %v6588 = vpack.c.b16 %v6575, %v6574
        %v6589 = vpack.c.b16 %v6577, %v6576
        %v6590 = vpack.c.b16 %v6579, %v6578
        %v6591 = vpack.c.b16 %v6581, %v6580
        %v6592 = vpack.c.b16 %v6583, %v6582
        %v6593 = vpack.c.b16 %v6585, %v6584
        %6602 = vmatpush.bf16.msra.mxu0 %v6593
        %6603 = vmatpush.bf16.msra.mxu0 %v6592
        %6604 = vmatpush.bf16.msra.mxu0 %v6591
        %6605 = vmatpush.bf16.msra.mxu0 %v6590
        %6606 = vmatpush.bf16.msra.mxu0 %v6589
        %6607 = vmatpush.bf16.msra.mxu0 %v6588
        %6608 = vmatpush.bf16.msra.mxu0 %v6587
        %6609 = vmatpush.bf16.msra.mxu0 %v6586
        %6610 = vmatmul.bf16.gmra.mxu0 %v6299
        %v6611 = vpop.f32.mrf.mxu0
        %v6612 = vadd.f32 0.0, %v6611
        %v6613 = vpop.f32.mrf.mxu0
        %v6614 = vadd.f32 0.0, %v6613
        %6615 = vmatmul.bf16.gmra.mxu0 %v6301
        %v6616 = vpop.f32.mrf.mxu0
        %v6617 = vadd.f32 0.0, %v6616
        %v6618 = vpop.f32.mrf.mxu0
        %v6619 = vadd.f32 0.0, %v6618
        %6620 = vmatmul.bf16.gmra.mxu0 %v6303
        %v6621 = vpop.f32.mrf.mxu0
        %v6622 = vadd.f32 0.0, %v6621
        %v6623 = vpop.f32.mrf.mxu0
        %v6624 = vadd.f32 0.0, %v6623
        %6625 = vmatmul.bf16.gmra.mxu0 %v6305
        %v6626 = vpop.f32.mrf.mxu0
        %v6627 = vadd.f32 0.0, %v6626
        %v6628 = vpop.f32.mrf.mxu0
        %v6629 = vadd.f32 0.0, %v6628
        %6630 = vmatmul.bf16.gmra.mxu0 %v6307
        %v6631 = vpop.f32.mrf.mxu0
        %v6632 = vadd.f32 0.0, %v6631
        %v6633 = vpop.f32.mrf.mxu0
        %v6634 = vadd.f32 0.0, %v6633
        %6635 = vmatmul.bf16.gmra.mxu0 %v6309
        %v6636 = vpop.f32.mrf.mxu0
        %v6637 = vadd.f32 0.0, %v6636
        %v6638 = vpop.f32.mrf.mxu0
        %v6639 = vadd.f32 0.0, %v6638
        %6640 = vmatmul.bf16.gmra.mxu0 %v6311
        %v6641 = vpop.f32.mrf.mxu0
        %v6642 = vadd.f32 0.0, %v6641
        %v6643 = vpop.f32.mrf.mxu0
        %v6644 = vadd.f32 0.0, %v6643
        %6645 = vmatmul.bf16.gmra.mxu0 %v6313
        %v6646 = vpop.f32.mrf.mxu0
        %v6647 = vadd.f32 0.0, %v6646
        %v6648 = vpop.f32.mrf.mxu0
        %v6649 = vadd.f32 0.0, %v6648
        %6650 = vmatmul.bf16.gmra.mxu0 %v6315
        %v6651 = vpop.f32.mrf.mxu0
        %v6652 = vadd.f32 0.0, %v6651
        %v6653 = vpop.f32.mrf.mxu0
        %v6654 = vadd.f32 0.0, %v6653
        %6655 = vmatmul.bf16.gmra.mxu0 %v6317
        %v6656 = vpop.f32.mrf.mxu0
        %v6657 = vadd.f32 0.0, %v6656
        %v6658 = vpop.f32.mrf.mxu0
        %v6659 = vadd.f32 0.0, %v6658
        %6660 = vmatmul.bf16.gmra.mxu0 %v6319
        %v6661 = vpop.f32.mrf.mxu0
        %v6662 = vadd.f32 0.0, %v6661
        %v6663 = vpop.f32.mrf.mxu0
        %v6664 = vadd.f32 0.0, %v6663
        %6665 = vmatmul.bf16.gmra.mxu0 %v6321
        %v6666 = vpop.f32.mrf.mxu0
        %v6667 = vadd.f32 0.0, %v6666
        %v6668 = vpop.f32.mrf.mxu0
        %v6669 = vadd.f32 0.0, %v6668
        %6670 = vmatmul.bf16.gmra.mxu0 %v6323
        %v6671 = vpop.f32.mrf.mxu0
        %v6672 = vadd.f32 0.0, %v6671
        %v6673 = vpop.f32.mrf.mxu0
        %v6674 = vadd.f32 0.0, %v6673
        %6675 = vmatmul.bf16.gmra.mxu0 %v6325
        %v6676 = vpop.f32.mrf.mxu0
        %v6677 = vadd.f32 0.0, %v6676
        %v6678 = vpop.f32.mrf.mxu0
        %v6679 = vadd.f32 0.0, %v6678
        %6680 = vmatmul.bf16.gmra.mxu0 %v6327
        %v6681 = vpop.f32.mrf.mxu0
        %v6682 = vadd.f32 0.0, %v6681
        %v6683 = vpop.f32.mrf.mxu0
        %v6684 = vadd.f32 0.0, %v6683
        %6685 = vmatmul.bf16.gmra.mxu0 %v6329
        %v6686 = vpop.f32.mrf.mxu0
        %v6687 = vadd.f32 0.0, %v6686
        %v6688 = vpop.f32.mrf.mxu0
        %v6689 = vadd.f32 0.0, %v6688
        %6690 = vmatmul.bf16.gmra.mxu0 %v6331
        %v6691 = vpop.f32.mrf.mxu0
        %v6692 = vadd.f32 0.0, %v6691
        %v6693 = vpop.f32.mrf.mxu0
        %v6694 = vadd.f32 0.0, %v6693
        %6695 = vmatmul.bf16.gmra.mxu0 %v6552
        %v6696 = vpop.f32.mrf.mxu0
        %v6697 = vadd.f32 0.0, %v6696
        %v6698 = vpop.f32.mrf.mxu0
        %v6699 = vadd.f32 0.0, %v6698
        %6700 = vdwg.mxu0
        %v6701 = vadd.f32 %v6497, %v6612
        %v6702 = vadd.f32 %v6498, %v6614
        %v6703 = vadd.f32 %v6499, %v6617
        %v6704 = vadd.f32 %v6500, %v6619
        %v6705 = vadd.f32 %v6501, %v6622
        %v6706 = vadd.f32 %v6502, %v6624
        %v6707 = vadd.f32 %v6503, %v6627
        %v6708 = vadd.f32 %v6504, %v6629
        %v6709 = vadd.f32 %v6505, %v6632
        %v6710 = vadd.f32 %v6506, %v6634
        %v6711 = vadd.f32 %v6507, %v6637
        %v6712 = vadd.f32 %v6508, %v6639
        %v6713 = vadd.f32 %v6509, %v6642
        %v6714 = vadd.f32 %v6510, %v6644
        %v6715 = vadd.f32 %v6511, %v6647
        %v6716 = vadd.f32 %v6512, %v6649
        %v6717 = vadd.f32 %v6513, %v6652
        %v6718 = vadd.f32 %v6514, %v6654
        %v6719 = vadd.f32 %v6515, %v6657
        %v6720 = vadd.f32 %v6516, %v6659
        %v6721 = vadd.f32 %v6517, %v6662
        %v6722 = vadd.f32 %v6518, %v6664
        %v6723 = vadd.f32 %v6519, %v6667
        %v6724 = vadd.f32 %v6520, %v6669
        %v6725 = vadd.f32 %v6521, %v6672
        %v6726 = vadd.f32 %v6522, %v6674
        %v6727 = vadd.f32 %v6523, %v6677
        %v6728 = vadd.f32 %v6524, %v6679
        %v6729 = vadd.f32 %v6525, %v6682
        %v6730 = vadd.f32 %v6526, %v6684
        %v6731 = vadd.f32 %v6527, %v6687
        %v6732 = vadd.f32 %v6528, %v6689
        %v6733 = vadd.f32 %v6529, %v6692
        %v6734 = vadd.f32 %v6530, %v6694
        %v6735 = vadd.f32 %v6531, %v6697
        %v6736 = vadd.f32 %v6532, %v6699
        %s6737 = scalar_lea.vmem %s12, 256
        %v6738 = vld [vmem:[%s6737] sm:$0xf]
        %v6739 = vld [vmem:[%s6737 + $0x4] sm:$0xf]
        %v6740 = vld [vmem:[%s6737 + $0x8] sm:$0xf]
        %v6741 = vld [vmem:[%s6737 + $0xc] sm:$0xf]
        %v6742 = vld [vmem:[%s6737 + $0x10] sm:$0xf]
        %v6743 = vld [vmem:[%s6737 + $0x14] sm:$0xf]
        %v6744 = vld [vmem:[%s6737 + $0x18] sm:$0xf]
        %v6745 = vld [vmem:[%s6737 + $0x1c] sm:$0xf]
        %v6746 = vld [vmem:[%s6737 + $0x20] sm:$0xf]
        %v6747 = vld [vmem:[%s6737 + $0x24] sm:$0xf]
        %v6748 = vld [vmem:[%s6737 + $0x28] sm:$0xf]
        %v6749 = vld [vmem:[%s6737 + $0x2c] sm:$0xf]
        %v6750 = vld [vmem:[%s6737 + $0x30] sm:$0xf]
        %v6751 = vld [vmem:[%s6737 + $0x34] sm:$0xf]
        %v6752 = vld [vmem:[%s6737 + $0x38] sm:$0xf]
        %v6753 = vld [vmem:[%s6737 + $0x3c] sm:$0xf]
        %v6754 = vrot.slane %v5828, 1
        %v6755 = vrot.slane %v5824, 2
        %v6756 = vor.u32 %v6754, %v6755
        %v6757 = vrot.slane %v5836, 1
        %v6758 = vrot.slane %v5832, 2
        %v6759 = vor.u32 %v6757, %v6758
        %v6760 = vsel %vm3464, %v6756, %v6759
        %v6761 = vrot.slane %v5844, 1
        %v6762 = vrot.slane %v5840, 2
        %v6763 = vor.u32 %v6761, %v6762
        %v6764 = vsel %vm3464, %v6759, %v6763
        %v6765 = vrot.slane %v5852, 1
        %v6766 = vrot.slane %v5848, 2
        %v6767 = vor.u32 %v6765, %v6766
        %v6768 = vsel %vm3464, %v6763, %v6767
        %v6769 = vrot.slane %v5860, 1
        %v6770 = vrot.slane %v5856, 2
        %v6771 = vor.u32 %v6769, %v6770
        %v6772 = vsel %vm3464, %v6767, %v6771
        %v6773 = vrot.slane %v5868, 1
        %v6774 = vrot.slane %v5864, 2
        %v6775 = vor.u32 %v6773, %v6774
        %v6776 = vsel %vm3464, %v6771, %v6775
        %v6777 = vrot.slane %v5876, 1
        %v6778 = vrot.slane %v5872, 2
        %v6779 = vor.u32 %v6777, %v6778
        %v6780 = vsel %vm3464, %v6775, %v6779
        %v6781 = vrot.slane %v5884, 1
        %v6782 = vrot.slane %v5880, 2
        %v6783 = vor.u32 %v6781, %v6782
        %v6784 = vsel %vm3464, %v6779, %v6783
        %v6785 = vrot.slane %v5892, 1
        %v6786 = vrot.slane %v5888, 2
        %v6787 = vor.u32 %v6785, %v6786
        %v6788 = vsel %vm3464, %v6783, %v6787
        %v6789 = vrot.slane %v5900, 1
        %v6790 = vrot.slane %v5896, 2
        %v6791 = vor.u32 %v6789, %v6790
        %v6792 = vsel %vm3464, %v6787, %v6791
        %v6793 = vrot.slane %v5908, 1
        %v6794 = vrot.slane %v5904, 2
        %v6795 = vor.u32 %v6793, %v6794
        %v6796 = vsel %vm3464, %v6791, %v6795
        %v6797 = vrot.slane %v5916, 1
        %v6798 = vrot.slane %v5912, 2
        %v6799 = vor.u32 %v6797, %v6798
        %v6800 = vsel %vm3464, %v6795, %v6799
        %v6801 = vrot.slane %v5924, 1
        %v6802 = vrot.slane %v5920, 2
        %v6803 = vor.u32 %v6801, %v6802
        %v6804 = vsel %vm3464, %v6799, %v6803
        %v6805 = vrot.slane %v5932, 1
        %v6806 = vrot.slane %v5928, 2
        %v6807 = vor.u32 %v6805, %v6806
        %v6808 = vsel %vm3464, %v6803, %v6807
        %v6809 = vrot.slane %v5940, 1
        %v6810 = vrot.slane %v5936, 2
        %v6811 = vor.u32 %v6809, %v6810
        %v6812 = vsel %vm3464, %v6807, %v6811
        %v6813 = vrot.slane %v5948, 1
        %v6814 = vrot.slane %v5944, 2
        %v6815 = vor.u32 %v6813, %v6814
        %v6816 = vsel %vm3464, %v6811, %v6815
        %v6817 = vrot.slane %v5956, 1
        %v6818 = vrot.slane %v5952, 2
        %v6819 = vor.u32 %v6817, %v6818
        %v6820 = vsel %vm3464, %v6815, %v6819
        %v6821 = vshrl.u32 %v5759, 16
        %v6823 = vrot.slane %v6821, 1
        %v6824 = vrot.slane %v5960, 2
        %v6825 = vor.u32 %v6823, %v6824
        %v6826 = vsel %vm3464, %v6819, %v6825
        %v6828 = vshrl.u32 %v5781, 16
        %v6830 = vrot.slane %v6828, 1
        %v6831 = vshll.u32 %v5781, 16
        %v6833 = vrot.slane %v6831, 2
        %v6834 = vor.u32 %v6830, %v6833
        %v6835 = vsel %vm3464, %v6825, %v6834
        %v6870 = vunpack.c.l.b16 %v6738
        %v6871 = vunpack.c.l.b16 %v6739
        %v6872 = vunpack.c.l.b16 %v6740
        %v6873 = vunpack.c.l.b16 %v6741
        %v6874 = vunpack.c.l.b16 %v6742
        %v6875 = vunpack.c.l.b16 %v6743
        %v6876 = vunpack.c.l.b16 %v6744
        %v6877 = vunpack.c.l.b16 %v6745
        %v6878 = vunpack.c.l.b16 %v6746
        %v6879 = vunpack.c.l.b16 %v6747
        %v6880 = vunpack.c.l.b16 %v6748
        %v6881 = vunpack.c.l.b16 %v6749
        %v6882 = vunpack.c.l.b16 %v6750
        %v6883 = vunpack.c.l.b16 %v6751
        %v6884 = vunpack.c.l.b16 %v6752
        %v6885 = vunpack.c.l.b16 %v6753
        %v6886 = vpack.c.b16 %v6871, %v6870
        %v6887 = vpack.c.b16 %v6873, %v6872
        %v6888 = vpack.c.b16 %v6875, %v6874
        %v6889 = vpack.c.b16 %v6877, %v6876
        %v6890 = vpack.c.b16 %v6879, %v6878
        %v6891 = vpack.c.b16 %v6881, %v6880
        %v6892 = vpack.c.b16 %v6883, %v6882
        %v6893 = vpack.c.b16 %v6885, %v6884
        %6902 = vmatpush.bf16.msra.mxu0 %v6893
        %6903 = vmatpush.bf16.msra.mxu0 %v6892
        %6904 = vmatpush.bf16.msra.mxu0 %v6891
        %6905 = vmatpush.bf16.msra.mxu0 %v6890
        %6906 = vmatpush.bf16.msra.mxu0 %v6889
        %6907 = vmatpush.bf16.msra.mxu0 %v6888
        %6908 = vmatpush.bf16.msra.mxu0 %v6887
        %6909 = vmatpush.bf16.msra.mxu0 %v6886
        %6910 = vmatmul.bf16.gmra.mxu0 %v6760
        %v6911 = vpop.f32.mrf.mxu0
        %v6912 = vadd.f32 0.0, %v6911
        %v6913 = vpop.f32.mrf.mxu0
        %v6914 = vadd.f32 0.0, %v6913
        %6915 = vmatmul.bf16.gmra.mxu0 %v6764
        %v6916 = vpop.f32.mrf.mxu0
        %v6917 = vadd.f32 0.0, %v6916
        %v6918 = vpop.f32.mrf.mxu0
        %v6919 = vadd.f32 0.0, %v6918
        %6920 = vmatmul.bf16.gmra.mxu0 %v6768
        %v6921 = vpop.f32.mrf.mxu0
        %v6922 = vadd.f32 0.0, %v6921
        %v6923 = vpop.f32.mrf.mxu0
        %v6924 = vadd.f32 0.0, %v6923
        %6925 = vmatmul.bf16.gmra.mxu0 %v6772
        %v6926 = vpop.f32.mrf.mxu0
        %v6927 = vadd.f32 0.0, %v6926
        %v6928 = vpop.f32.mrf.mxu0
        %v6929 = vadd.f32 0.0, %v6928
        %6930 = vmatmul.bf16.gmra.mxu0 %v6776
        %v6931 = vpop.f32.mrf.mxu0
        %v6932 = vadd.f32 0.0, %v6931
        %v6933 = vpop.f32.mrf.mxu0
        %v6934 = vadd.f32 0.0, %v6933
        %6935 = vmatmul.bf16.gmra.mxu0 %v6780
        %v6936 = vpop.f32.mrf.mxu0
        %v6937 = vadd.f32 0.0, %v6936
        %v6938 = vpop.f32.mrf.mxu0
        %v6939 = vadd.f32 0.0, %v6938
        %6940 = vmatmul.bf16.gmra.mxu0 %v6784
        %v6941 = vpop.f32.mrf.mxu0
        %v6942 = vadd.f32 0.0, %v6941
        %v6943 = vpop.f32.mrf.mxu0
        %v6944 = vadd.f32 0.0, %v6943
        %6945 = vmatmul.bf16.gmra.mxu0 %v6788
        %v6946 = vpop.f32.mrf.mxu0
        %v6947 = vadd.f32 0.0, %v6946
        %v6948 = vpop.f32.mrf.mxu0
        %v6949 = vadd.f32 0.0, %v6948
        %6950 = vmatmul.bf16.gmra.mxu0 %v6792
        %v6951 = vpop.f32.mrf.mxu0
        %v6952 = vadd.f32 0.0, %v6951
        %v6953 = vpop.f32.mrf.mxu0
        %v6954 = vadd.f32 0.0, %v6953
        %6955 = vmatmul.bf16.gmra.mxu0 %v6796
        %v6956 = vpop.f32.mrf.mxu0
        %v6957 = vadd.f32 0.0, %v6956
        %v6958 = vpop.f32.mrf.mxu0
        %v6959 = vadd.f32 0.0, %v6958
        %6960 = vmatmul.bf16.gmra.mxu0 %v6800
        %v6961 = vpop.f32.mrf.mxu0
        %v6962 = vadd.f32 0.0, %v6961
        %v6963 = vpop.f32.mrf.mxu0
        %v6964 = vadd.f32 0.0, %v6963
        %6965 = vmatmul.bf16.gmra.mxu0 %v6804
        %v6966 = vpop.f32.mrf.mxu0
        %v6967 = vadd.f32 0.0, %v6966
        %v6968 = vpop.f32.mrf.mxu0
        %v6969 = vadd.f32 0.0, %v6968
        %6970 = vmatmul.bf16.gmra.mxu0 %v6808
        %v6971 = vpop.f32.mrf.mxu0
        %v6972 = vadd.f32 0.0, %v6971
        %v6973 = vpop.f32.mrf.mxu0
        %v6974 = vadd.f32 0.0, %v6973
        %6975 = vmatmul.bf16.gmra.mxu0 %v6812
        %v6976 = vpop.f32.mrf.mxu0
        %v6977 = vadd.f32 0.0, %v6976
        %v6978 = vpop.f32.mrf.mxu0
        %v6979 = vadd.f32 0.0, %v6978
        %6980 = vmatmul.bf16.gmra.mxu0 %v6816
        %v6981 = vpop.f32.mrf.mxu0
        %v6982 = vadd.f32 0.0, %v6981
        %v6983 = vpop.f32.mrf.mxu0
        %v6984 = vadd.f32 0.0, %v6983
        %6985 = vmatmul.bf16.gmra.mxu0 %v6820
        %v6986 = vpop.f32.mrf.mxu0
        %v6987 = vadd.f32 0.0, %v6986
        %v6988 = vpop.f32.mrf.mxu0
        %v6989 = vadd.f32 0.0, %v6988
        %6990 = vmatmul.bf16.gmra.mxu0 %v6826
        %v6991 = vpop.f32.mrf.mxu0
        %v6992 = vadd.f32 0.0, %v6991
        %v6993 = vpop.f32.mrf.mxu0
        %v6994 = vadd.f32 0.0, %v6993
        %6995 = vmatmul.bf16.gmra.mxu0 %v6835
        %v6996 = vpop.f32.mrf.mxu0
        %v6997 = vadd.f32 0.0, %v6996
        %v6998 = vpop.f32.mrf.mxu0
        %v6999 = vadd.f32 0.0, %v6998
        %7000 = vdwg.mxu0
        %v7001 = vadd.f32 %v6701, %v6912
        %v7002 = vadd.f32 %v6702, %v6914
        %v7003 = vadd.f32 %v6703, %v6917
        %v7004 = vadd.f32 %v6704, %v6919
        %v7005 = vadd.f32 %v6705, %v6922
        %v7006 = vadd.f32 %v6706, %v6924
        %v7007 = vadd.f32 %v6707, %v6927
        %v7008 = vadd.f32 %v6708, %v6929
        %v7009 = vadd.f32 %v6709, %v6932
        %v7010 = vadd.f32 %v6710, %v6934
        %v7011 = vadd.f32 %v6711, %v6937
        %v7012 = vadd.f32 %v6712, %v6939
        %v7013 = vadd.f32 %v6713, %v6942
        %v7014 = vadd.f32 %v6714, %v6944
        %v7015 = vadd.f32 %v6715, %v6947
        %v7016 = vadd.f32 %v6716, %v6949
        %v7017 = vadd.f32 %v6717, %v6952
        %v7018 = vadd.f32 %v6718, %v6954
        %v7019 = vadd.f32 %v6719, %v6957
        %v7020 = vadd.f32 %v6720, %v6959
        %v7021 = vadd.f32 %v6721, %v6962
        %v7022 = vadd.f32 %v6722, %v6964
        %v7023 = vadd.f32 %v6723, %v6967
        %v7024 = vadd.f32 %v6724, %v6969
        %v7025 = vadd.f32 %v6725, %v6972
        %v7026 = vadd.f32 %v6726, %v6974
        %v7027 = vadd.f32 %v6727, %v6977
        %v7028 = vadd.f32 %v6728, %v6979
        %v7029 = vadd.f32 %v6729, %v6982
        %v7030 = vadd.f32 %v6730, %v6984
        %v7031 = vadd.f32 %v6731, %v6987
        %v7032 = vadd.f32 %v6732, %v6989
        %v7033 = vadd.f32 %v6733, %v6992
        %v7034 = vadd.f32 %v6734, %v6994
        %v7035 = vadd.f32 %v6735, %v6997
        %v7036 = vadd.f32 %v6736, %v6999
        %s7037 = scalar_lea.vmem %s12, 320
        %v7038 = vld [vmem:[%s7037] sm:$0xf]
        %v7039 = vld [vmem:[%s7037 + $0x4] sm:$0xf]
        %v7040 = vld [vmem:[%s7037 + $0x8] sm:$0xf]
        %v7041 = vld [vmem:[%s7037 + $0xc] sm:$0xf]
        %v7042 = vld [vmem:[%s7037 + $0x10] sm:$0xf]
        %v7043 = vld [vmem:[%s7037 + $0x14] sm:$0xf]
        %v7044 = vld [vmem:[%s7037 + $0x18] sm:$0xf]
        %v7045 = vld [vmem:[%s7037 + $0x1c] sm:$0xf]
        %v7046 = vld [vmem:[%s7037 + $0x20] sm:$0xf]
        %v7047 = vld [vmem:[%s7037 + $0x24] sm:$0xf]
        %v7048 = vld [vmem:[%s7037 + $0x28] sm:$0xf]
        %v7049 = vld [vmem:[%s7037 + $0x2c] sm:$0xf]
        %v7050 = vld [vmem:[%s7037 + $0x30] sm:$0xf]
        %v7051 = vld [vmem:[%s7037 + $0x34] sm:$0xf]
        %v7052 = vld [vmem:[%s7037 + $0x38] sm:$0xf]
        %v7053 = vld [vmem:[%s7037 + $0x3c] sm:$0xf]
        %v7054 = vrot.slane %v5780, 2
        %v7055 = vrot.slane %v5615, 2
        %v7056 = vsel %vm3744, %v7054, %v7055
        %v7057 = vrot.slane %v5624, 2
        %v7058 = vsel %vm3744, %v7055, %v7057
        %v7059 = vrot.slane %v5633, 2
        %v7060 = vsel %vm3744, %v7057, %v7059
        %v7061 = vrot.slane %v5642, 2
        %v7062 = vsel %vm3744, %v7059, %v7061
        %v7063 = vrot.slane %v5651, 2
        %v7064 = vsel %vm3744, %v7061, %v7063
        %v7065 = vrot.slane %v5660, 2
        %v7066 = vsel %vm3744, %v7063, %v7065
        %v7067 = vrot.slane %v5669, 2
        %v7068 = vsel %vm3744, %v7065, %v7067
        %v7069 = vrot.slane %v5678, 2
        %v7070 = vsel %vm3744, %v7067, %v7069
        %v7071 = vrot.slane %v5687, 2
        %v7072 = vsel %vm3744, %v7069, %v7071
        %v7073 = vrot.slane %v5696, 2
        %v7074 = vsel %vm3744, %v7071, %v7073
        %v7075 = vrot.slane %v5705, 2
        %v7076 = vsel %vm3744, %v7073, %v7075
        %v7077 = vrot.slane %v5714, 2
        %v7078 = vsel %vm3744, %v7075, %v7077
        %v7079 = vrot.slane %v5723, 2
        %v7080 = vsel %vm3744, %v7077, %v7079
        %v7081 = vrot.slane %v5732, 2
        %v7082 = vsel %vm3744, %v7079, %v7081
        %v7083 = vrot.slane %v5741, 2
        %v7084 = vsel %vm3744, %v7081, %v7083
        %v7085 = vrot.slane %v5750, 2
        %v7086 = vsel %vm3744, %v7083, %v7085
        %v7087 = vrot.slane %v5759, 2
        %v7088 = vsel %vm3744, %v7085, %v7087
        %v7089 = vrot.slane %v5781, 2
        %v7090 = vsel %vm3744, %v7087, %v7089
        %v7125 = vunpack.c.l.b16 %v7038
        %v7126 = vunpack.c.l.b16 %v7039
        %v7127 = vunpack.c.l.b16 %v7040
        %v7128 = vunpack.c.l.b16 %v7041
        %v7129 = vunpack.c.l.b16 %v7042
        %v7130 = vunpack.c.l.b16 %v7043
        %v7131 = vunpack.c.l.b16 %v7044
        %v7132 = vunpack.c.l.b16 %v7045
        %v7133 = vunpack.c.l.b16 %v7046
        %v7134 = vunpack.c.l.b16 %v7047
        %v7135 = vunpack.c.l.b16 %v7048
        %v7136 = vunpack.c.l.b16 %v7049
        %v7137 = vunpack.c.l.b16 %v7050
        %v7138 = vunpack.c.l.b16 %v7051
        %v7139 = vunpack.c.l.b16 %v7052
        %v7140 = vunpack.c.l.b16 %v7053
        %v7141 = vpack.c.b16 %v7126, %v7125
        %v7142 = vpack.c.b16 %v7128, %v7127
        %v7143 = vpack.c.b16 %v7130, %v7129
        %v7144 = vpack.c.b16 %v7132, %v7131
        %v7145 = vpack.c.b16 %v7134, %v7133
        %v7146 = vpack.c.b16 %v7136, %v7135
        %v7147 = vpack.c.b16 %v7138, %v7137
        %v7148 = vpack.c.b16 %v7140, %v7139
        %7157 = vmatpush.bf16.msra.mxu0 %v7148
        %7158 = vmatpush.bf16.msra.mxu0 %v7147
        %7159 = vmatpush.bf16.msra.mxu0 %v7146
        %7160 = vmatpush.bf16.msra.mxu0 %v7145
        %7161 = vmatpush.bf16.msra.mxu0 %v7144
        %7162 = vmatpush.bf16.msra.mxu0 %v7143
        %7163 = vmatpush.bf16.msra.mxu0 %v7142
        %7164 = vmatpush.bf16.msra.mxu0 %v7141
        %7165 = vmatmul.bf16.gmra.mxu0 %v7056
        %v7166 = vpop.f32.mrf.mxu0
        %v7167 = vadd.f32 0.0, %v7166
        %v7168 = vpop.f32.mrf.mxu0
        %v7169 = vadd.f32 0.0, %v7168
        %7170 = vmatmul.bf16.gmra.mxu0 %v7058
        %v7171 = vpop.f32.mrf.mxu0
        %v7172 = vadd.f32 0.0, %v7171
        %v7173 = vpop.f32.mrf.mxu0
        %v7174 = vadd.f32 0.0, %v7173
        %7175 = vmatmul.bf16.gmra.mxu0 %v7060
        %v7176 = vpop.f32.mrf.mxu0
        %v7177 = vadd.f32 0.0, %v7176
        %v7178 = vpop.f32.mrf.mxu0
        %v7179 = vadd.f32 0.0, %v7178
        %7180 = vmatmul.bf16.gmra.mxu0 %v7062
        %v7181 = vpop.f32.mrf.mxu0
        %v7182 = vadd.f32 0.0, %v7181
        %v7183 = vpop.f32.mrf.mxu0
        %v7184 = vadd.f32 0.0, %v7183
        %7185 = vmatmul.bf16.gmra.mxu0 %v7064
        %v7186 = vpop.f32.mrf.mxu0
        %v7187 = vadd.f32 0.0, %v7186
        %v7188 = vpop.f32.mrf.mxu0
        %v7189 = vadd.f32 0.0, %v7188
        %7190 = vmatmul.bf16.gmra.mxu0 %v7066
        %v7191 = vpop.f32.mrf.mxu0
        %v7192 = vadd.f32 0.0, %v7191
        %v7193 = vpop.f32.mrf.mxu0
        %v7194 = vadd.f32 0.0, %v7193
        %7195 = vmatmul.bf16.gmra.mxu0 %v7068
        %v7196 = vpop.f32.mrf.mxu0
        %v7197 = vadd.f32 0.0, %v7196
        %v7198 = vpop.f32.mrf.mxu0
        %v7199 = vadd.f32 0.0, %v7198
        %7200 = vmatmul.bf16.gmra.mxu0 %v7070
        %v7201 = vpop.f32.mrf.mxu0
        %v7202 = vadd.f32 0.0, %v7201
        %v7203 = vpop.f32.mrf.mxu0
        %v7204 = vadd.f32 0.0, %v7203
        %7205 = vmatmul.bf16.gmra.mxu0 %v7072
        %v7206 = vpop.f32.mrf.mxu0
        %v7207 = vadd.f32 0.0, %v7206
        %v7208 = vpop.f32.mrf.mxu0
        %v7209 = vadd.f32 0.0, %v7208
        %7210 = vmatmul.bf16.gmra.mxu0 %v7074
        %v7211 = vpop.f32.mrf.mxu0
        %v7212 = vadd.f32 0.0, %v7211
        %v7213 = vpop.f32.mrf.mxu0
        %v7214 = vadd.f32 0.0, %v7213
        %7215 = vmatmul.bf16.gmra.mxu0 %v7076
        %v7216 = vpop.f32.mrf.mxu0
        %v7217 = vadd.f32 0.0, %v7216
        %v7218 = vpop.f32.mrf.mxu0
        %v7219 = vadd.f32 0.0, %v7218
        %7220 = vmatmul.bf16.gmra.mxu0 %v7078
        %v7221 = vpop.f32.mrf.mxu0
        %v7222 = vadd.f32 0.0, %v7221
        %v7223 = vpop.f32.mrf.mxu0
        %v7224 = vadd.f32 0.0, %v7223
        %7225 = vmatmul.bf16.gmra.mxu0 %v7080
        %v7226 = vpop.f32.mrf.mxu0
        %v7227 = vadd.f32 0.0, %v7226
        %v7228 = vpop.f32.mrf.mxu0
        %v7229 = vadd.f32 0.0, %v7228
        %7230 = vmatmul.bf16.gmra.mxu0 %v7082
        %v7231 = vpop.f32.mrf.mxu0
        %v7232 = vadd.f32 0.0, %v7231
        %v7233 = vpop.f32.mrf.mxu0
        %v7234 = vadd.f32 0.0, %v7233
        %7235 = vmatmul.bf16.gmra.mxu0 %v7084
        %v7236 = vpop.f32.mrf.mxu0
        %v7237 = vadd.f32 0.0, %v7236
        %v7238 = vpop.f32.mrf.mxu0
        %v7239 = vadd.f32 0.0, %v7238
        %7240 = vmatmul.bf16.gmra.mxu0 %v7086
        %v7241 = vpop.f32.mrf.mxu0
        %v7242 = vadd.f32 0.0, %v7241
        %v7243 = vpop.f32.mrf.mxu0
        %v7244 = vadd.f32 0.0, %v7243
        %7245 = vmatmul.bf16.gmra.mxu0 %v7088
        %v7246 = vpop.f32.mrf.mxu0
        %v7247 = vadd.f32 0.0, %v7246
        %v7248 = vpop.f32.mrf.mxu0
        %v7249 = vadd.f32 0.0, %v7248
        %7250 = vmatmul.bf16.gmra.mxu0 %v7090
        %v7251 = vpop.f32.mrf.mxu0
        %v7252 = vadd.f32 0.0, %v7251
        %v7253 = vpop.f32.mrf.mxu0
        %v7254 = vadd.f32 0.0, %v7253
        %7255 = vdwg.mxu0
        %v7256 = vadd.f32 %v7001, %v7167
        %v7257 = vadd.f32 %v7002, %v7169
        %v7258 = vadd.f32 %v7003, %v7172
        %v7259 = vadd.f32 %v7004, %v7174
        %v7260 = vadd.f32 %v7005, %v7177
        %v7261 = vadd.f32 %v7006, %v7179
        %v7262 = vadd.f32 %v7007, %v7182
        %v7263 = vadd.f32 %v7008, %v7184
        %v7264 = vadd.f32 %v7009, %v7187
        %v7265 = vadd.f32 %v7010, %v7189
        %v7266 = vadd.f32 %v7011, %v7192
        %v7267 = vadd.f32 %v7012, %v7194
        %v7268 = vadd.f32 %v7013, %v7197
        %v7269 = vadd.f32 %v7014, %v7199
        %v7270 = vadd.f32 %v7015, %v7202
        %v7271 = vadd.f32 %v7016, %v7204
        %v7272 = vadd.f32 %v7017, %v7207
        %v7273 = vadd.f32 %v7018, %v7209
        %v7274 = vadd.f32 %v7019, %v7212
        %v7275 = vadd.f32 %v7020, %v7214
        %v7276 = vadd.f32 %v7021, %v7217
        %v7277 = vadd.f32 %v7022, %v7219
        %v7278 = vadd.f32 %v7023, %v7222
        %v7279 = vadd.f32 %v7024, %v7224
        %v7280 = vadd.f32 %v7025, %v7227
        %v7281 = vadd.f32 %v7026, %v7229
        %v7282 = vadd.f32 %v7027, %v7232
        %v7283 = vadd.f32 %v7028, %v7234
        %v7284 = vadd.f32 %v7029, %v7237
        %v7285 = vadd.f32 %v7030, %v7239
        %v7286 = vadd.f32 %v7031, %v7242
        %v7287 = vadd.f32 %v7032, %v7244
        %v7288 = vadd.f32 %v7033, %v7247
        %v7289 = vadd.f32 %v7034, %v7249
        %v7290 = vadd.f32 %v7035, %v7252
        %v7291 = vadd.f32 %v7036, %v7254
        %s7292 = scalar_lea.vmem %s12, 384
        %v7293 = vld [vmem:[%s7292] sm:$0xf]
        %v7294 = vld [vmem:[%s7292 + $0x4] sm:$0xf]
        %v7295 = vld [vmem:[%s7292 + $0x8] sm:$0xf]
        %v7296 = vld [vmem:[%s7292 + $0xc] sm:$0xf]
        %v7297 = vld [vmem:[%s7292 + $0x10] sm:$0xf]
        %v7298 = vld [vmem:[%s7292 + $0x14] sm:$0xf]
        %v7299 = vld [vmem:[%s7292 + $0x18] sm:$0xf]
        %v7300 = vld [vmem:[%s7292 + $0x1c] sm:$0xf]
        %v7301 = vld [vmem:[%s7292 + $0x20] sm:$0xf]
        %v7302 = vld [vmem:[%s7292 + $0x24] sm:$0xf]
        %v7303 = vld [vmem:[%s7292 + $0x28] sm:$0xf]
        %v7304 = vld [vmem:[%s7292 + $0x2c] sm:$0xf]
        %v7305 = vld [vmem:[%s7292 + $0x30] sm:$0xf]
        %v7306 = vld [vmem:[%s7292 + $0x34] sm:$0xf]
        %v7307 = vld [vmem:[%s7292 + $0x38] sm:$0xf]
        %v7308 = vld [vmem:[%s7292 + $0x3c] sm:$0xf]
        %v7309 = vrot.slane 0, 2
        %v7310 = vsel %vm3744, %v7089, %v7309
        %v7328 = vunpack.c.l.b16 %v7293
        %v7329 = vunpack.c.l.b16 %v7294
        %v7330 = vunpack.c.l.b16 %v7295
        %v7331 = vunpack.c.l.b16 %v7296
        %v7332 = vunpack.c.l.b16 %v7297
        %v7333 = vunpack.c.l.b16 %v7298
        %v7334 = vunpack.c.l.b16 %v7299
        %v7335 = vunpack.c.l.b16 %v7300
        %v7336 = vunpack.c.l.b16 %v7301
        %v7337 = vunpack.c.l.b16 %v7302
        %v7338 = vunpack.c.l.b16 %v7303
        %v7339 = vunpack.c.l.b16 %v7304
        %v7340 = vunpack.c.l.b16 %v7305
        %v7341 = vunpack.c.l.b16 %v7306
        %v7342 = vunpack.c.l.b16 %v7307
        %v7343 = vunpack.c.l.b16 %v7308
        %v7344 = vpack.c.b16 %v7329, %v7328
        %v7345 = vpack.c.b16 %v7331, %v7330
        %v7346 = vpack.c.b16 %v7333, %v7332
        %v7347 = vpack.c.b16 %v7335, %v7334
        %v7348 = vpack.c.b16 %v7337, %v7336
        %v7349 = vpack.c.b16 %v7339, %v7338
        %v7350 = vpack.c.b16 %v7341, %v7340
        %v7351 = vpack.c.b16 %v7343, %v7342
        %7360 = vmatpush.bf16.msra.mxu0 %v7351
        %7361 = vmatpush.bf16.msra.mxu0 %v7350
        %7362 = vmatpush.bf16.msra.mxu0 %v7349
        %7363 = vmatpush.bf16.msra.mxu0 %v7348
        %7364 = vmatpush.bf16.msra.mxu0 %v7347
        %7365 = vmatpush.bf16.msra.mxu0 %v7346
        %7366 = vmatpush.bf16.msra.mxu0 %v7345
        %7367 = vmatpush.bf16.msra.mxu0 %v7344
        %7368 = vmatmul.bf16.gmra.mxu0 %v7058
        %v7369 = vpop.f32.mrf.mxu0
        %v7370 = vadd.f32 0.0, %v7369
        %v7371 = vpop.f32.mrf.mxu0
        %v7372 = vadd.f32 0.0, %v7371
        %7373 = vmatmul.bf16.gmra.mxu0 %v7060
        %v7374 = vpop.f32.mrf.mxu0
        %v7375 = vadd.f32 0.0, %v7374
        %v7376 = vpop.f32.mrf.mxu0
        %v7377 = vadd.f32 0.0, %v7376
        %7378 = vmatmul.bf16.gmra.mxu0 %v7062
        %v7379 = vpop.f32.mrf.mxu0
        %v7380 = vadd.f32 0.0, %v7379
        %v7381 = vpop.f32.mrf.mxu0
        %v7382 = vadd.f32 0.0, %v7381
        %7383 = vmatmul.bf16.gmra.mxu0 %v7064
        %v7384 = vpop.f32.mrf.mxu0
        %v7385 = vadd.f32 0.0, %v7384
        %v7386 = vpop.f32.mrf.mxu0
        %v7387 = vadd.f32 0.0, %v7386
        %7388 = vmatmul.bf16.gmra.mxu0 %v7066
        %v7389 = vpop.f32.mrf.mxu0
        %v7390 = vadd.f32 0.0, %v7389
        %v7391 = vpop.f32.mrf.mxu0
        %v7392 = vadd.f32 0.0, %v7391
        %7393 = vmatmul.bf16.gmra.mxu0 %v7068
        %v7394 = vpop.f32.mrf.mxu0
        %v7395 = vadd.f32 0.0, %v7394
        %v7396 = vpop.f32.mrf.mxu0
        %v7397 = vadd.f32 0.0, %v7396
        %7398 = vmatmul.bf16.gmra.mxu0 %v7070
        %v7399 = vpop.f32.mrf.mxu0
        %v7400 = vadd.f32 0.0, %v7399
        %v7401 = vpop.f32.mrf.mxu0
        %v7402 = vadd.f32 0.0, %v7401
        %7403 = vmatmul.bf16.gmra.mxu0 %v7072
        %v7404 = vpop.f32.mrf.mxu0
        %v7405 = vadd.f32 0.0, %v7404
        %v7406 = vpop.f32.mrf.mxu0
        %v7407 = vadd.f32 0.0, %v7406
        %7408 = vmatmul.bf16.gmra.mxu0 %v7074
        %v7409 = vpop.f32.mrf.mxu0
        %v7410 = vadd.f32 0.0, %v7409
        %v7411 = vpop.f32.mrf.mxu0
        %v7412 = vadd.f32 0.0, %v7411
        %7413 = vmatmul.bf16.gmra.mxu0 %v7076
        %v7414 = vpop.f32.mrf.mxu0
        %v7415 = vadd.f32 0.0, %v7414
        %v7416 = vpop.f32.mrf.mxu0
        %v7417 = vadd.f32 0.0, %v7416
        %7418 = vmatmul.bf16.gmra.mxu0 %v7078
        %v7419 = vpop.f32.mrf.mxu0
        %v7420 = vadd.f32 0.0, %v7419
        %v7421 = vpop.f32.mrf.mxu0
        %v7422 = vadd.f32 0.0, %v7421
        %7423 = vmatmul.bf16.gmra.mxu0 %v7080
        %v7424 = vpop.f32.mrf.mxu0
        %v7425 = vadd.f32 0.0, %v7424
        %v7426 = vpop.f32.mrf.mxu0
        %v7427 = vadd.f32 0.0, %v7426
        %7428 = vmatmul.bf16.gmra.mxu0 %v7082
        %v7429 = vpop.f32.mrf.mxu0
        %v7430 = vadd.f32 0.0, %v7429
        %v7431 = vpop.f32.mrf.mxu0
        %v7432 = vadd.f32 0.0, %v7431
        %7433 = vmatmul.bf16.gmra.mxu0 %v7084
        %v7434 = vpop.f32.mrf.mxu0
        %v7435 = vadd.f32 0.0, %v7434
        %v7436 = vpop.f32.mrf.mxu0
        %v7437 = vadd.f32 0.0, %v7436
        %7438 = vmatmul.bf16.gmra.mxu0 %v7086
        %v7439 = vpop.f32.mrf.mxu0
        %v7440 = vadd.f32 0.0, %v7439
        %v7441 = vpop.f32.mrf.mxu0
        %v7442 = vadd.f32 0.0, %v7441
        %7443 = vmatmul.bf16.gmra.mxu0 %v7088
        %v7444 = vpop.f32.mrf.mxu0
        %v7445 = vadd.f32 0.0, %v7444
        %v7446 = vpop.f32.mrf.mxu0
        %v7447 = vadd.f32 0.0, %v7446
        %7448 = vmatmul.bf16.gmra.mxu0 %v7090
        %v7449 = vpop.f32.mrf.mxu0
        %v7450 = vadd.f32 0.0, %v7449
        %v7451 = vpop.f32.mrf.mxu0
        %v7452 = vadd.f32 0.0, %v7451
        %7453 = vmatmul.bf16.gmra.mxu0 %v7310
        %v7454 = vpop.f32.mrf.mxu0
        %v7455 = vadd.f32 0.0, %v7454
        %v7456 = vpop.f32.mrf.mxu0
        %v7457 = vadd.f32 0.0, %v7456
        %7458 = vdwg.mxu0
        %v7459 = vadd.f32 %v7256, %v7370
        %v7460 = vadd.f32 %v7257, %v7372
        %v7461 = vadd.f32 %v7258, %v7375
        %v7462 = vadd.f32 %v7259, %v7377
        %v7463 = vadd.f32 %v7260, %v7380
        %v7464 = vadd.f32 %v7261, %v7382
        %v7465 = vadd.f32 %v7262, %v7385
        %v7466 = vadd.f32 %v7263, %v7387
        %v7467 = vadd.f32 %v7264, %v7390
        %v7468 = vadd.f32 %v7265, %v7392
        %v7469 = vadd.f32 %v7266, %v7395
        %v7470 = vadd.f32 %v7267, %v7397
        %v7471 = vadd.f32 %v7268, %v7400
        %v7472 = vadd.f32 %v7269, %v7402
        %v7473 = vadd.f32 %v7270, %v7405
        %v7474 = vadd.f32 %v7271, %v7407
        %v7475 = vadd.f32 %v7272, %v7410
        %v7476 = vadd.f32 %v7273, %v7412
        %v7477 = vadd.f32 %v7274, %v7415
        %v7478 = vadd.f32 %v7275, %v7417
        %v7479 = vadd.f32 %v7276, %v7420
        %v7480 = vadd.f32 %v7277, %v7422
        %v7481 = vadd.f32 %v7278, %v7425
        %v7482 = vadd.f32 %v7279, %v7427
        %v7483 = vadd.f32 %v7280, %v7430
        %v7484 = vadd.f32 %v7281, %v7432
        %v7485 = vadd.f32 %v7282, %v7435
        %v7486 = vadd.f32 %v7283, %v7437
        %v7487 = vadd.f32 %v7284, %v7440
        %v7488 = vadd.f32 %v7285, %v7442
        %v7489 = vadd.f32 %v7286, %v7445
        %v7490 = vadd.f32 %v7287, %v7447
        %v7491 = vadd.f32 %v7288, %v7450
        %v7492 = vadd.f32 %v7289, %v7452
        %v7493 = vadd.f32 %v7290, %v7455
        %v7494 = vadd.f32 %v7291, %v7457
        %s7495 = scalar_lea.vmem %s12, 448
        %v7496 = vld [vmem:[%s7495] sm:$0xf]
        %v7497 = vld [vmem:[%s7495 + $0x4] sm:$0xf]
        %v7498 = vld [vmem:[%s7495 + $0x8] sm:$0xf]
        %v7499 = vld [vmem:[%s7495 + $0xc] sm:$0xf]
        %v7500 = vld [vmem:[%s7495 + $0x10] sm:$0xf]
        %v7501 = vld [vmem:[%s7495 + $0x14] sm:$0xf]
        %v7502 = vld [vmem:[%s7495 + $0x18] sm:$0xf]
        %v7503 = vld [vmem:[%s7495 + $0x1c] sm:$0xf]
        %v7504 = vld [vmem:[%s7495 + $0x20] sm:$0xf]
        %v7505 = vld [vmem:[%s7495 + $0x24] sm:$0xf]
        %v7506 = vld [vmem:[%s7495 + $0x28] sm:$0xf]
        %v7507 = vld [vmem:[%s7495 + $0x2c] sm:$0xf]
        %v7508 = vld [vmem:[%s7495 + $0x30] sm:$0xf]
        %v7509 = vld [vmem:[%s7495 + $0x34] sm:$0xf]
        %v7510 = vld [vmem:[%s7495 + $0x38] sm:$0xf]
        %v7511 = vld [vmem:[%s7495 + $0x3c] sm:$0xf]
        %v7512 = vrot.slane %v5836, 2
        %v7513 = vrot.slane %v5832, 3
        %v7514 = vor.u32 %v7512, %v7513
        %v7515 = vrot.slane %v5844, 2
        %v7516 = vrot.slane %v5840, 3
        %v7517 = vor.u32 %v7515, %v7516
        %v7518 = vsel %vm4130, %v7514, %v7517
        %v7519 = vrot.slane %v5852, 2
        %v7520 = vrot.slane %v5848, 3
        %v7521 = vor.u32 %v7519, %v7520
        %v7522 = vsel %vm4130, %v7517, %v7521
        %v7523 = vrot.slane %v5860, 2
        %v7524 = vrot.slane %v5856, 3
        %v7525 = vor.u32 %v7523, %v7524
        %v7526 = vsel %vm4130, %v7521, %v7525
        %v7527 = vrot.slane %v5868, 2
        %v7528 = vrot.slane %v5864, 3
        %v7529 = vor.u32 %v7527, %v7528
        %v7530 = vsel %vm4130, %v7525, %v7529
        %v7531 = vrot.slane %v5876, 2
        %v7532 = vrot.slane %v5872, 3
        %v7533 = vor.u32 %v7531, %v7532
        %v7534 = vsel %vm4130, %v7529, %v7533
        %v7535 = vrot.slane %v5884, 2
        %v7536 = vrot.slane %v5880, 3
        %v7537 = vor.u32 %v7535, %v7536
        %v7538 = vsel %vm4130, %v7533, %v7537
        %v7539 = vrot.slane %v5892, 2
        %v7540 = vrot.slane %v5888, 3
        %v7541 = vor.u32 %v7539, %v7540
        %v7542 = vsel %vm4130, %v7537, %v7541
        %v7543 = vrot.slane %v5900, 2
        %v7544 = vrot.slane %v5896, 3
        %v7545 = vor.u32 %v7543, %v7544
        %v7546 = vsel %vm4130, %v7541, %v7545
        %v7547 = vrot.slane %v5908, 2
        %v7548 = vrot.slane %v5904, 3
        %v7549 = vor.u32 %v7547, %v7548
        %v7550 = vsel %vm4130, %v7545, %v7549
        %v7551 = vrot.slane %v5916, 2
        %v7552 = vrot.slane %v5912, 3
        %v7553 = vor.u32 %v7551, %v7552
        %v7554 = vsel %vm4130, %v7549, %v7553
        %v7555 = vrot.slane %v5924, 2
        %v7556 = vrot.slane %v5920, 3
        %v7557 = vor.u32 %v7555, %v7556
        %v7558 = vsel %vm4130, %v7553, %v7557
        %v7559 = vrot.slane %v5932, 2
        %v7560 = vrot.slane %v5928, 3
        %v7561 = vor.u32 %v7559, %v7560
        %v7562 = vsel %vm4130, %v7557, %v7561
        %v7563 = vrot.slane %v5940, 2
        %v7564 = vrot.slane %v5936, 3
        %v7565 = vor.u32 %v7563, %v7564
        %v7566 = vsel %vm4130, %v7561, %v7565
        %v7567 = vrot.slane %v5948, 2
        %v7568 = vrot.slane %v5944, 3
        %v7569 = vor.u32 %v7567, %v7568
        %v7570 = vsel %vm4130, %v7565, %v7569
        %v7571 = vrot.slane %v5956, 2
        %v7572 = vrot.slane %v5952, 3
        %v7573 = vor.u32 %v7571, %v7572
        %v7574 = vsel %vm4130, %v7569, %v7573
        %v7575 = vrot.slane %v6821, 2
        %v7576 = vrot.slane %v5960, 3
        %v7577 = vor.u32 %v7575, %v7576
        %v7578 = vsel %vm4130, %v7573, %v7577
        %v7579 = vrot.slane %v6828, 2
        %v7580 = vrot.slane %v6831, 3
        %v7581 = vor.u32 %v7579, %v7580
        %v7582 = vsel %vm4130, %v7577, %v7581
        %v7583 = vrot.slane %v5817, 2
        %v7584 = vrot.slane %v5819, 3
        %v7585 = vor.u32 %v7583, %v7584
        %v7586 = vsel %vm4130, %v7581, %v7585
        %v7621 = vunpack.c.l.b16 %v7496
        %v7622 = vunpack.c.l.b16 %v7497
        %v7623 = vunpack.c.l.b16 %v7498
        %v7624 = vunpack.c.l.b16 %v7499
        %v7625 = vunpack.c.l.b16 %v7500
        %v7626 = vunpack.c.l.b16 %v7501
        %v7627 = vunpack.c.l.b16 %v7502
        %v7628 = vunpack.c.l.b16 %v7503
        %v7629 = vunpack.c.l.b16 %v7504
        %v7630 = vunpack.c.l.b16 %v7505
        %v7631 = vunpack.c.l.b16 %v7506
        %v7632 = vunpack.c.l.b16 %v7507
        %v7633 = vunpack.c.l.b16 %v7508
        %v7634 = vunpack.c.l.b16 %v7509
        %v7635 = vunpack.c.l.b16 %v7510
        %v7636 = vunpack.c.l.b16 %v7511
        %v7637 = vpack.c.b16 %v7622, %v7621
        %v7638 = vpack.c.b16 %v7624, %v7623
        %v7639 = vpack.c.b16 %v7626, %v7625
        %v7640 = vpack.c.b16 %v7628, %v7627
        %v7641 = vpack.c.b16 %v7630, %v7629
        %v7642 = vpack.c.b16 %v7632, %v7631
        %v7643 = vpack.c.b16 %v7634, %v7633
        %v7644 = vpack.c.b16 %v7636, %v7635
        %7653 = vmatpush.bf16.msra.mxu0 %v7644
        %7654 = vmatpush.bf16.msra.mxu0 %v7643
        %7655 = vmatpush.bf16.msra.mxu0 %v7642
        %7656 = vmatpush.bf16.msra.mxu0 %v7641
        %7657 = vmatpush.bf16.msra.mxu0 %v7640
        %7658 = vmatpush.bf16.msra.mxu0 %v7639
        %7659 = vmatpush.bf16.msra.mxu0 %v7638
        %7660 = vmatpush.bf16.msra.mxu0 %v7637
        %7661 = vmatmul.bf16.gmra.mxu0 %v7518
        %v7662 = vpop.f32.mrf.mxu0
        %v7663 = vadd.f32 0.0, %v7662
        %v7664 = vpop.f32.mrf.mxu0
        %v7665 = vadd.f32 0.0, %v7664
        %7666 = vmatmul.bf16.gmra.mxu0 %v7522
        %v7667 = vpop.f32.mrf.mxu0
        %v7668 = vadd.f32 0.0, %v7667
        %v7669 = vpop.f32.mrf.mxu0
        %v7670 = vadd.f32 0.0, %v7669
        %7671 = vmatmul.bf16.gmra.mxu0 %v7526
        %v7672 = vpop.f32.mrf.mxu0
        %v7673 = vadd.f32 0.0, %v7672
        %v7674 = vpop.f32.mrf.mxu0
        %v7675 = vadd.f32 0.0, %v7674
        %7676 = vmatmul.bf16.gmra.mxu0 %v7530
        %v7677 = vpop.f32.mrf.mxu0
        %v7678 = vadd.f32 0.0, %v7677
        %v7679 = vpop.f32.mrf.mxu0
        %v7680 = vadd.f32 0.0, %v7679
        %7681 = vmatmul.bf16.gmra.mxu0 %v7534
        %v7682 = vpop.f32.mrf.mxu0
        %v7683 = vadd.f32 0.0, %v7682
        %v7684 = vpop.f32.mrf.mxu0
        %v7685 = vadd.f32 0.0, %v7684
        %7686 = vmatmul.bf16.gmra.mxu0 %v7538
        %v7687 = vpop.f32.mrf.mxu0
        %v7688 = vadd.f32 0.0, %v7687
        %v7689 = vpop.f32.mrf.mxu0
        %v7690 = vadd.f32 0.0, %v7689
        %7691 = vmatmul.bf16.gmra.mxu0 %v7542
        %v7692 = vpop.f32.mrf.mxu0
        %v7693 = vadd.f32 0.0, %v7692
        %v7694 = vpop.f32.mrf.mxu0
        %v7695 = vadd.f32 0.0, %v7694
        %7696 = vmatmul.bf16.gmra.mxu0 %v7546
        %v7697 = vpop.f32.mrf.mxu0
        %v7698 = vadd.f32 0.0, %v7697
        %v7699 = vpop.f32.mrf.mxu0
        %v7700 = vadd.f32 0.0, %v7699
        %7701 = vmatmul.bf16.gmra.mxu0 %v7550
        %v7702 = vpop.f32.mrf.mxu0
        %v7703 = vadd.f32 0.0, %v7702
        %v7704 = vpop.f32.mrf.mxu0
        %v7705 = vadd.f32 0.0, %v7704
        %7706 = vmatmul.bf16.gmra.mxu0 %v7554
        %v7707 = vpop.f32.mrf.mxu0
        %v7708 = vadd.f32 0.0, %v7707
        %v7709 = vpop.f32.mrf.mxu0
        %v7710 = vadd.f32 0.0, %v7709
        %7711 = vmatmul.bf16.gmra.mxu0 %v7558
        %v7712 = vpop.f32.mrf.mxu0
        %v7713 = vadd.f32 0.0, %v7712
        %v7714 = vpop.f32.mrf.mxu0
        %v7715 = vadd.f32 0.0, %v7714
        %7716 = vmatmul.bf16.gmra.mxu0 %v7562
        %v7717 = vpop.f32.mrf.mxu0
        %v7718 = vadd.f32 0.0, %v7717
        %v7719 = vpop.f32.mrf.mxu0
        %v7720 = vadd.f32 0.0, %v7719
        %7721 = vmatmul.bf16.gmra.mxu0 %v7566
        %v7722 = vpop.f32.mrf.mxu0
        %v7723 = vadd.f32 0.0, %v7722
        %v7724 = vpop.f32.mrf.mxu0
        %v7725 = vadd.f32 0.0, %v7724
        %7726 = vmatmul.bf16.gmra.mxu0 %v7570
        %v7727 = vpop.f32.mrf.mxu0
        %v7728 = vadd.f32 0.0, %v7727
        %v7729 = vpop.f32.mrf.mxu0
        %v7730 = vadd.f32 0.0, %v7729
        %7731 = vmatmul.bf16.gmra.mxu0 %v7574
        %v7732 = vpop.f32.mrf.mxu0
        %v7733 = vadd.f32 0.0, %v7732
        %v7734 = vpop.f32.mrf.mxu0
        %v7735 = vadd.f32 0.0, %v7734
        %7736 = vmatmul.bf16.gmra.mxu0 %v7578
        %v7737 = vpop.f32.mrf.mxu0
        %v7738 = vadd.f32 0.0, %v7737
        %v7739 = vpop.f32.mrf.mxu0
        %v7740 = vadd.f32 0.0, %v7739
        %7741 = vmatmul.bf16.gmra.mxu0 %v7582
        %v7742 = vpop.f32.mrf.mxu0
        %v7743 = vadd.f32 0.0, %v7742
        %v7744 = vpop.f32.mrf.mxu0
        %v7745 = vadd.f32 0.0, %v7744
        %7746 = vmatmul.bf16.gmra.mxu0 %v7586
        %v7747 = vpop.f32.mrf.mxu0
        %v7748 = vadd.f32 0.0, %v7747
        %v7749 = vpop.f32.mrf.mxu0
        %v7750 = vadd.f32 0.0, %v7749
        %7751 = vdwg.mxu0
        %v7752 = vadd.f32 %v7459, %v7663
        %v7753 = vadd.f32 %v7460, %v7665
        %v7754 = vadd.f32 %v7461, %v7668
        %v7755 = vadd.f32 %v7462, %v7670
        %v7756 = vadd.f32 %v7463, %v7673
        %v7757 = vadd.f32 %v7464, %v7675
        %v7758 = vadd.f32 %v7465, %v7678
        %v7759 = vadd.f32 %v7466, %v7680
        %v7760 = vadd.f32 %v7467, %v7683
        %v7761 = vadd.f32 %v7468, %v7685
        %v7762 = vadd.f32 %v7469, %v7688
        %v7763 = vadd.f32 %v7470, %v7690
        %v7764 = vadd.f32 %v7471, %v7693
        %v7765 = vadd.f32 %v7472, %v7695
        %v7766 = vadd.f32 %v7473, %v7698
        %v7767 = vadd.f32 %v7474, %v7700
        %v7768 = vadd.f32 %v7475, %v7703
        %v7769 = vadd.f32 %v7476, %v7705
        %v7770 = vadd.f32 %v7477, %v7708
        %v7771 = vadd.f32 %v7478, %v7710
        %v7772 = vadd.f32 %v7479, %v7713
        %v7773 = vadd.f32 %v7480, %v7715
        %v7774 = vadd.f32 %v7481, %v7718
        %v7775 = vadd.f32 %v7482, %v7720
        %v7776 = vadd.f32 %v7483, %v7723
        %v7777 = vadd.f32 %v7484, %v7725
        %v7778 = vadd.f32 %v7485, %v7728
        %v7779 = vadd.f32 %v7486, %v7730
        %v7780 = vadd.f32 %v7487, %v7733
        %v7781 = vadd.f32 %v7488, %v7735
        %v7782 = vadd.f32 %v7489, %v7738
        %v7783 = vadd.f32 %v7490, %v7740
        %v7784 = vadd.f32 %v7491, %v7743
        %v7785 = vadd.f32 %v7492, %v7745
        %v7786 = vadd.f32 %v7493, %v7748
        %v7787 = vadd.f32 %v7494, %v7750
        %s7788 = scalar_lea.vmem %s12, 512
        %v7789 = vld [vmem:[%s7788] sm:$0xf]
        %v7790 = vld [vmem:[%s7788 + $0x4] sm:$0xf]
        %v7791 = vld [vmem:[%s7788 + $0x8] sm:$0xf]
        %v7792 = vld [vmem:[%s7788 + $0xc] sm:$0xf]
        %v7793 = vld [vmem:[%s7788 + $0x10] sm:$0xf]
        %v7794 = vld [vmem:[%s7788 + $0x14] sm:$0xf]
        %v7795 = vld [vmem:[%s7788 + $0x18] sm:$0xf]
        %v7796 = vld [vmem:[%s7788 + $0x1c] sm:$0xf]
        %v7797 = vld [vmem:[%s7788 + $0x20] sm:$0xf]
        %v7798 = vld [vmem:[%s7788 + $0x24] sm:$0xf]
        %v7799 = vld [vmem:[%s7788 + $0x28] sm:$0xf]
        %v7800 = vld [vmem:[%s7788 + $0x2c] sm:$0xf]
        %v7801 = vld [vmem:[%s7788 + $0x30] sm:$0xf]
        %v7802 = vld [vmem:[%s7788 + $0x34] sm:$0xf]
        %v7803 = vld [vmem:[%s7788 + $0x38] sm:$0xf]
        %v7804 = vld [vmem:[%s7788 + $0x3c] sm:$0xf]
        %v7805 = vrot.slane %v5615, 3
        %v7806 = vrot.slane %v5624, 3
        %v7807 = vsel %vm4410, %v7805, %v7806
        %v7808 = vrot.slane %v5633, 3
        %v7809 = vsel %vm4410, %v7806, %v7808
        %v7810 = vrot.slane %v5642, 3
        %v7811 = vsel %vm4410, %v7808, %v7810
        %v7812 = vrot.slane %v5651, 3
        %v7813 = vsel %vm4410, %v7810, %v7812
        %v7814 = vrot.slane %v5660, 3
        %v7815 = vsel %vm4410, %v7812, %v7814
        %v7816 = vrot.slane %v5669, 3
        %v7817 = vsel %vm4410, %v7814, %v7816
        %v7818 = vrot.slane %v5678, 3
        %v7819 = vsel %vm4410, %v7816, %v7818
        %v7820 = vrot.slane %v5687, 3
        %v7821 = vsel %vm4410, %v7818, %v7820
        %v7822 = vrot.slane %v5696, 3
        %v7823 = vsel %vm4410, %v7820, %v7822
        %v7824 = vrot.slane %v5705, 3
        %v7825 = vsel %vm4410, %v7822, %v7824
        %v7826 = vrot.slane %v5714, 3
        %v7827 = vsel %vm4410, %v7824, %v7826
        %v7828 = vrot.slane %v5723, 3
        %v7829 = vsel %vm4410, %v7826, %v7828
        %v7830 = vrot.slane %v5732, 3
        %v7831 = vsel %vm4410, %v7828, %v7830
        %v7832 = vrot.slane %v5741, 3
        %v7833 = vsel %vm4410, %v7830, %v7832
        %v7834 = vrot.slane %v5750, 3
        %v7835 = vsel %vm4410, %v7832, %v7834
        %v7836 = vrot.slane %v5759, 3
        %v7837 = vsel %vm4410, %v7834, %v7836
        %v7838 = vrot.slane %v5781, 3
        %v7839 = vsel %vm4410, %v7836, %v7838
        %v7840 = vrot.slane 0, 3
        %v7841 = vsel %vm4410, %v7838, %v7840
        %v7876 = vunpack.c.l.b16 %v7789
        %v7877 = vunpack.c.l.b16 %v7790
        %v7878 = vunpack.c.l.b16 %v7791
        %v7879 = vunpack.c.l.b16 %v7792
        %v7880 = vunpack.c.l.b16 %v7793
        %v7881 = vunpack.c.l.b16 %v7794
        %v7882 = vunpack.c.l.b16 %v7795
        %v7883 = vunpack.c.l.b16 %v7796
        %v7884 = vunpack.c.l.b16 %v7797
        %v7885 = vunpack.c.l.b16 %v7798
        %v7886 = vunpack.c.l.b16 %v7799
        %v7887 = vunpack.c.l.b16 %v7800
        %v7888 = vunpack.c.l.b16 %v7801
        %v7889 = vunpack.c.l.b16 %v7802
        %v7890 = vunpack.c.l.b16 %v7803
        %v7891 = vunpack.c.l.b16 %v7804
        %v7892 = vpack.c.b16 %v7877, %v7876
        %v7893 = vpack.c.b16 %v7879, %v7878
        %v7894 = vpack.c.b16 %v7881, %v7880
        %v7895 = vpack.c.b16 %v7883, %v7882
        %v7896 = vpack.c.b16 %v7885, %v7884
        %v7897 = vpack.c.b16 %v7887, %v7886
        %v7898 = vpack.c.b16 %v7889, %v7888
        %v7899 = vpack.c.b16 %v7891, %v7890
        %7908 = vmatpush.bf16.msra.mxu0 %v7899
        %7909 = vmatpush.bf16.msra.mxu0 %v7898
        %7910 = vmatpush.bf16.msra.mxu0 %v7897
        %7911 = vmatpush.bf16.msra.mxu0 %v7896
        %7912 = vmatpush.bf16.msra.mxu0 %v7895
        %7913 = vmatpush.bf16.msra.mxu0 %v7894
        %7914 = vmatpush.bf16.msra.mxu0 %v7893
        %7915 = vmatpush.bf16.msra.mxu0 %v7892
        %7916 = vmatmul.bf16.gmra.mxu0 %v7807
        %v7917 = vpop.f32.mrf.mxu0
        %v7918 = vadd.f32 0.0, %v7917
        %v7919 = vpop.f32.mrf.mxu0
        %v7920 = vadd.f32 0.0, %v7919
        %7921 = vmatmul.bf16.gmra.mxu0 %v7809
        %v7922 = vpop.f32.mrf.mxu0
        %v7923 = vadd.f32 0.0, %v7922
        %v7924 = vpop.f32.mrf.mxu0
        %v7925 = vadd.f32 0.0, %v7924
        %7926 = vmatmul.bf16.gmra.mxu0 %v7811
        %v7927 = vpop.f32.mrf.mxu0
        %v7928 = vadd.f32 0.0, %v7927
        %v7929 = vpop.f32.mrf.mxu0
        %v7930 = vadd.f32 0.0, %v7929
        %7931 = vmatmul.bf16.gmra.mxu0 %v7813
        %v7932 = vpop.f32.mrf.mxu0
        %v7933 = vadd.f32 0.0, %v7932
        %v7934 = vpop.f32.mrf.mxu0
        %v7935 = vadd.f32 0.0, %v7934
        %7936 = vmatmul.bf16.gmra.mxu0 %v7815
        %v7937 = vpop.f32.mrf.mxu0
        %v7938 = vadd.f32 0.0, %v7937
        %v7939 = vpop.f32.mrf.mxu0
        %v7940 = vadd.f32 0.0, %v7939
        %7941 = vmatmul.bf16.gmra.mxu0 %v7817
        %v7942 = vpop.f32.mrf.mxu0
        %v7943 = vadd.f32 0.0, %v7942
        %v7944 = vpop.f32.mrf.mxu0
        %v7945 = vadd.f32 0.0, %v7944
        %7946 = vmatmul.bf16.gmra.mxu0 %v7819
        %v7947 = vpop.f32.mrf.mxu0
        %v7948 = vadd.f32 0.0, %v7947
        %v7949 = vpop.f32.mrf.mxu0
        %v7950 = vadd.f32 0.0, %v7949
        %7951 = vmatmul.bf16.gmra.mxu0 %v7821
        %v7952 = vpop.f32.mrf.mxu0
        %v7953 = vadd.f32 0.0, %v7952
        %v7954 = vpop.f32.mrf.mxu0
        %v7955 = vadd.f32 0.0, %v7954
        %7956 = vmatmul.bf16.gmra.mxu0 %v7823
        %v7957 = vpop.f32.mrf.mxu0
        %v7958 = vadd.f32 0.0, %v7957
        %v7959 = vpop.f32.mrf.mxu0
        %v7960 = vadd.f32 0.0, %v7959
        %7961 = vmatmul.bf16.gmra.mxu0 %v7825
        %v7962 = vpop.f32.mrf.mxu0
        %v7963 = vadd.f32 0.0, %v7962
        %v7964 = vpop.f32.mrf.mxu0
        %v7965 = vadd.f32 0.0, %v7964
        %7966 = vmatmul.bf16.gmra.mxu0 %v7827
        %v7967 = vpop.f32.mrf.mxu0
        %v7968 = vadd.f32 0.0, %v7967
        %v7969 = vpop.f32.mrf.mxu0
        %v7970 = vadd.f32 0.0, %v7969
        %7971 = vmatmul.bf16.gmra.mxu0 %v7829
        %v7972 = vpop.f32.mrf.mxu0
        %v7973 = vadd.f32 0.0, %v7972
        %v7974 = vpop.f32.mrf.mxu0
        %v7975 = vadd.f32 0.0, %v7974
        %7976 = vmatmul.bf16.gmra.mxu0 %v7831
        %v7977 = vpop.f32.mrf.mxu0
        %v7978 = vadd.f32 0.0, %v7977
        %v7979 = vpop.f32.mrf.mxu0
        %v7980 = vadd.f32 0.0, %v7979
        %7981 = vmatmul.bf16.gmra.mxu0 %v7833
        %v7982 = vpop.f32.mrf.mxu0
        %v7983 = vadd.f32 0.0, %v7982
        %v7984 = vpop.f32.mrf.mxu0
        %v7985 = vadd.f32 0.0, %v7984
        %7986 = vmatmul.bf16.gmra.mxu0 %v7835
        %v7987 = vpop.f32.mrf.mxu0
        %v7988 = vadd.f32 0.0, %v7987
        %v7989 = vpop.f32.mrf.mxu0
        %v7990 = vadd.f32 0.0, %v7989
        %7991 = vmatmul.bf16.gmra.mxu0 %v7837
        %v7992 = vpop.f32.mrf.mxu0
        %v7993 = vadd.f32 0.0, %v7992
        %v7994 = vpop.f32.mrf.mxu0
        %v7995 = vadd.f32 0.0, %v7994
        %7996 = vmatmul.bf16.gmra.mxu0 %v7839
        %v7997 = vpop.f32.mrf.mxu0
        %v7998 = vadd.f32 0.0, %v7997
        %v7999 = vpop.f32.mrf.mxu0
        %v8000 = vadd.f32 0.0, %v7999
        %8001 = vmatmul.bf16.gmra.mxu0 %v7841
        %v8002 = vpop.f32.mrf.mxu0
        %v8003 = vadd.f32 0.0, %v8002
        %v8004 = vpop.f32.mrf.mxu0
        %v8005 = vadd.f32 0.0, %v8004
        %8006 = vdwg.mxu0
        %v8007 = vadd.f32 %v7752, %v7918
        %v8008 = vadd.f32 %v7753, %v7920
        %v8009 = vadd.f32 %v7754, %v7923
        %v8010 = vadd.f32 %v7755, %v7925
        %v8011 = vadd.f32 %v7756, %v7928
        %v8012 = vadd.f32 %v7757, %v7930
        %v8013 = vadd.f32 %v7758, %v7933
        %v8014 = vadd.f32 %v7759, %v7935
        %v8015 = vadd.f32 %v7760, %v7938
        %v8016 = vadd.f32 %v7761, %v7940
        %v8017 = vadd.f32 %v7762, %v7943
        %v8018 = vadd.f32 %v7763, %v7945
        %v8019 = vadd.f32 %v7764, %v7948
        %v8020 = vadd.f32 %v7765, %v7950
        %v8021 = vadd.f32 %v7766, %v7953
        %v8022 = vadd.f32 %v7767, %v7955
        %v8023 = vadd.f32 %v7768, %v7958
        %v8024 = vadd.f32 %v7769, %v7960
        %v8025 = vadd.f32 %v7770, %v7963
        %v8026 = vadd.f32 %v7771, %v7965
        %v8027 = vadd.f32 %v7772, %v7968
        %v8028 = vadd.f32 %v7773, %v7970
        %v8029 = vadd.f32 %v7774, %v7973
        %v8030 = vadd.f32 %v7775, %v7975
        %v8031 = vadd.f32 %v7776, %v7978
        %v8032 = vadd.f32 %v7777, %v7980
        %v8033 = vadd.f32 %v7778, %v7983
        %v8034 = vadd.f32 %v7779, %v7985
        %v8035 = vadd.f32 %v7780, %v7988
        %v8036 = vadd.f32 %v7781, %v7990
        %v8037 = vadd.f32 %v7782, %v7993
        %v8038 = vadd.f32 %v7783, %v7995
        %v8039 = vadd.f32 %v7784, %v7998
        %v8040 = vadd.f32 %v7785, %v8000
        %v8041 = vadd.f32 %v7786, %v8003
        %v8042 = vadd.f32 %v7787, %v8005
        %v8044 = vperm.slane %v5782, 0
        %v8046 = vadd.f32 %v8007, %v8044
        %v8047 = vadd.f32 %v8008, %v8044
        %v8048 = vadd.f32 %v8009, %v8044
        %v8049 = vadd.f32 %v8010, %v8044
        %v8050 = vadd.f32 %v8011, %v8044
        %v8051 = vadd.f32 %v8012, %v8044
        %v8052 = vadd.f32 %v8013, %v8044
        %v8053 = vadd.f32 %v8014, %v8044
        %v8054 = vadd.f32 %v8015, %v8044
        %v8055 = vadd.f32 %v8016, %v8044
        %v8056 = vadd.f32 %v8017, %v8044
        %v8057 = vadd.f32 %v8018, %v8044
        %v8058 = vadd.f32 %v8019, %v8044
        %v8059 = vadd.f32 %v8020, %v8044
        %v8060 = vadd.f32 %v8021, %v8044
        %v8061 = vadd.f32 %v8022, %v8044
        %v8062 = vadd.f32 %v8023, %v8044
        %v8063 = vadd.f32 %v8024, %v8044
        %v8064 = vadd.f32 %v8025, %v8044
        %v8065 = vadd.f32 %v8026, %v8044
        %v8066 = vadd.f32 %v8027, %v8044
        %v8067 = vadd.f32 %v8028, %v8044
        %v8068 = vadd.f32 %v8029, %v8044
        %v8069 = vadd.f32 %v8030, %v8044
        %v8070 = vadd.f32 %v8031, %v8044
        %v8071 = vadd.f32 %v8032, %v8044
        %v8072 = vadd.f32 %v8033, %v8044
        %v8073 = vadd.f32 %v8034, %v8044
        %v8074 = vadd.f32 %v8035, %v8044
        %v8075 = vadd.f32 %v8036, %v8044
        %v8076 = vadd.f32 %v8037, %v8044
        %v8077 = vadd.f32 %v8038, %v8044
        %v8078 = vadd.f32 %v8039, %v8044
        %v8079 = vadd.f32 %v8040, %v8044
        %v8080 = vadd.f32 %v8041, %v8044
        %v8081 = vadd.f32 %v8042, %v8044
        %v8082 = vsub.f32 0.0, %v8046
        %v8083 = vsub.f32 0.0, %v8047
        %v8084 = vsub.f32 0.0, %v8048
        %v8085 = vsub.f32 0.0, %v8049
        %v8086 = vsub.f32 0.0, %v8050
        %v8087 = vsub.f32 0.0, %v8051
        %v8088 = vsub.f32 0.0, %v8052
        %v8089 = vsub.f32 0.0, %v8053
        %v8090 = vsub.f32 0.0, %v8054
        %v8091 = vsub.f32 0.0, %v8055
        %v8092 = vsub.f32 0.0, %v8056
        %v8093 = vsub.f32 0.0, %v8057
        %v8094 = vsub.f32 0.0, %v8058
        %v8095 = vsub.f32 0.0, %v8059
        %v8096 = vsub.f32 0.0, %v8060
        %v8097 = vsub.f32 0.0, %v8061
        %v8098 = vsub.f32 0.0, %v8062
        %v8099 = vsub.f32 0.0, %v8063
        %v8100 = vsub.f32 0.0, %v8064
        %v8101 = vsub.f32 0.0, %v8065
        %v8102 = vsub.f32 0.0, %v8066
        %v8103 = vsub.f32 0.0, %v8067
        %v8104 = vsub.f32 0.0, %v8068
        %v8105 = vsub.f32 0.0, %v8069
        %v8106 = vsub.f32 0.0, %v8070
        %v8107 = vsub.f32 0.0, %v8071
        %v8108 = vsub.f32 0.0, %v8072
        %v8109 = vsub.f32 0.0, %v8073
        %v8110 = vsub.f32 0.0, %v8074
        %v8111 = vsub.f32 0.0, %v8075
        %v8112 = vsub.f32 0.0, %v8076
        %v8113 = vsub.f32 0.0, %v8077
        %v8114 = vsub.f32 0.0, %v8078
        %v8115 = vsub.f32 0.0, %v8079
        %v8116 = vsub.f32 0.0, %v8080
        %v8117 = vsub.f32 0.0, %v8081
        %v8118 = vmul.f32 %v8082, 1.442695
        %v8119 = vpow.pop %v8118
        %v8120 = vmul.f32 %v8083, 1.442695
        %v8121 = vpow.pop %v8120
        %v8122 = vmul.f32 %v8084, 1.442695
        %v8123 = vpow.pop %v8122
        %v8124 = vmul.f32 %v8085, 1.442695
        %v8125 = vpow.pop %v8124
        %v8126 = vmul.f32 %v8086, 1.442695
        %v8127 = vpow.pop %v8126
        %v8128 = vmul.f32 %v8087, 1.442695
        %v8129 = vpow.pop %v8128
        %v8130 = vmul.f32 %v8088, 1.442695
        %v8131 = vpow.pop %v8130
        %v8132 = vmul.f32 %v8089, 1.442695
        %v8133 = vpow.pop %v8132
        %v8134 = vmul.f32 %v8090, 1.442695
        %v8135 = vpow.pop %v8134
        %v8136 = vmul.f32 %v8091, 1.442695
        %v8137 = vpow.pop %v8136
        %v8138 = vmul.f32 %v8092, 1.442695
        %v8139 = vpow.pop %v8138
        %v8140 = vmul.f32 %v8093, 1.442695
        %v8141 = vpow.pop %v8140
        %v8142 = vmul.f32 %v8094, 1.442695
        %v8143 = vpow.pop %v8142
        %v8144 = vmul.f32 %v8095, 1.442695
        %v8145 = vpow.pop %v8144
        %v8146 = vmul.f32 %v8096, 1.442695
        %v8147 = vpow.pop %v8146
        %v8148 = vmul.f32 %v8097, 1.442695
        %v8149 = vpow.pop %v8148
        %v8150 = vmul.f32 %v8098, 1.442695
        %v8151 = vpow.pop %v8150
        %v8152 = vmul.f32 %v8099, 1.442695
        %v8153 = vpow.pop %v8152
        %v8154 = vmul.f32 %v8100, 1.442695
        %v8155 = vpow.pop %v8154
        %v8156 = vmul.f32 %v8101, 1.442695
        %v8157 = vpow.pop %v8156
        %v8158 = vmul.f32 %v8102, 1.442695
        %v8159 = vpow.pop %v8158
        %v8160 = vmul.f32 %v8103, 1.442695
        %v8161 = vpow.pop %v8160
        %v8162 = vmul.f32 %v8104, 1.442695
        %v8163 = vpow.pop %v8162
        %v8164 = vmul.f32 %v8105, 1.442695
        %v8165 = vpow.pop %v8164
        %v8166 = vmul.f32 %v8106, 1.442695
        %v8167 = vpow.pop %v8166
        %v8168 = vmul.f32 %v8107, 1.442695
        %v8169 = vpow.pop %v8168
        %v8170 = vmul.f32 %v8108, 1.442695
        %v8171 = vpow.pop %v8170
        %v8172 = vmul.f32 %v8109, 1.442695
        %v8173 = vpow.pop %v8172
        %v8174 = vmul.f32 %v8110, 1.442695
        %v8175 = vpow.pop %v8174
        %v8176 = vmul.f32 %v8111, 1.442695
        %v8177 = vpow.pop %v8176
        %v8178 = vmul.f32 %v8112, 1.442695
        %v8179 = vpow.pop %v8178
        %v8180 = vmul.f32 %v8113, 1.442695
        %v8181 = vpow.pop %v8180
        %v8182 = vmul.f32 %v8114, 1.442695
        %v8183 = vpow.pop %v8182
        %v8184 = vmul.f32 %v8115, 1.442695
        %v8185 = vpow.pop %v8184
        %v8186 = vmul.f32 %v8116, 1.442695
        %v8187 = vpow.pop %v8186
        %v8188 = vmul.f32 %v8117, 1.442695
        %v8189 = vpow.pop %v8188
        %v8190 = vadd.f32 %v8119, 1.0
        %v8191 = vadd.f32 %v8121, 1.0
        %v8192 = vadd.f32 %v8123, 1.0
        %v8193 = vadd.f32 %v8125, 1.0
        %v8194 = vadd.f32 %v8127, 1.0
        %v8195 = vadd.f32 %v8129, 1.0
        %v8196 = vadd.f32 %v8131, 1.0
        %v8197 = vadd.f32 %v8133, 1.0
        %v8198 = vadd.f32 %v8135, 1.0
        %v8199 = vadd.f32 %v8137, 1.0
        %v8200 = vadd.f32 %v8139, 1.0
        %v8201 = vadd.f32 %v8141, 1.0
        %v8202 = vadd.f32 %v8143, 1.0
        %v8203 = vadd.f32 %v8145, 1.0
        %v8204 = vadd.f32 %v8147, 1.0
        %v8205 = vadd.f32 %v8149, 1.0
        %v8206 = vadd.f32 %v8151, 1.0
        %v8207 = vadd.f32 %v8153, 1.0
        %v8208 = vadd.f32 %v8155, 1.0
        %v8209 = vadd.f32 %v8157, 1.0
        %v8210 = vadd.f32 %v8159, 1.0
        %v8211 = vadd.f32 %v8161, 1.0
        %v8212 = vadd.f32 %v8163, 1.0
        %v8213 = vadd.f32 %v8165, 1.0
        %v8214 = vadd.f32 %v8167, 1.0
        %v8215 = vadd.f32 %v8169, 1.0
        %v8216 = vadd.f32 %v8171, 1.0
        %v8217 = vadd.f32 %v8173, 1.0
        %v8218 = vadd.f32 %v8175, 1.0
        %v8219 = vadd.f32 %v8177, 1.0
        %v8220 = vadd.f32 %v8179, 1.0
        %v8221 = vadd.f32 %v8181, 1.0
        %v8222 = vadd.f32 %v8183, 1.0
        %v8223 = vadd.f32 %v8185, 1.0
        %v8224 = vadd.f32 %v8187, 1.0
        %v8225 = vadd.f32 %v8189, 1.0
        %v8226 = vrcp.pop %v8190
        %v8227 = vmul.f32 %v8190, %v8226
        %v8228 = vsub.f32 1.0, %v8227
        %v8229 = vmul.f32 %v8226, %v8228
        %v8230 = vadd.f32 %v8226, %v8229
        %vm8231 = vweird.f32 %v8190
        %vm8232 = vweird.f32 %v8226
        %vm8233 = vmor %vm8231, %vm8232
        %v8234 = vsel %vm8233, %v8226, %v8230
        %v8235 = vand.u32 2147483647, %v8190
        %vm8236 = vcmp.eq.f32.partialorder %v8235, 8.507059e+37
        %v8237 = vand.u32 %v8190, 2147483648
        %v8238 = vor.u32 1.1754944e-38, %v8237
        %v8239 = vsel %vm8236, %v8238, %v8234
        %v8240 = vmul.f32 1.0, %v8239
        %v8241 = vrcp.pop %v8191
        %v8242 = vmul.f32 %v8191, %v8241
        %v8243 = vsub.f32 1.0, %v8242
        %v8244 = vmul.f32 %v8241, %v8243
        %v8245 = vadd.f32 %v8241, %v8244
        %vm8246 = vweird.f32 %v8191
        %vm8247 = vweird.f32 %v8241
        %vm8248 = vmor %vm8246, %vm8247
        %v8249 = vsel %vm8248, %v8241, %v8245
        %v8250 = vand.u32 2147483647, %v8191
        %vm8251 = vcmp.eq.f32.partialorder %v8250, 8.507059e+37
        %v8252 = vand.u32 %v8191, 2147483648
        %v8253 = vor.u32 1.1754944e-38, %v8252
        %v8254 = vsel %vm8251, %v8253, %v8249
        %v8255 = vmul.f32 1.0, %v8254
        %v8256 = vrcp.pop %v8192
        %v8257 = vmul.f32 %v8192, %v8256
        %v8258 = vsub.f32 1.0, %v8257
        %v8259 = vmul.f32 %v8256, %v8258
        %v8260 = vadd.f32 %v8256, %v8259
        %vm8261 = vweird.f32 %v8192
        %vm8262 = vweird.f32 %v8256
        %vm8263 = vmor %vm8261, %vm8262
        %v8264 = vsel %vm8263, %v8256, %v8260
        %v8265 = vand.u32 2147483647, %v8192
        %vm8266 = vcmp.eq.f32.partialorder %v8265, 8.507059e+37
        %v8267 = vand.u32 %v8192, 2147483648
        %v8268 = vor.u32 1.1754944e-38, %v8267
        %v8269 = vsel %vm8266, %v8268, %v8264
        %v8270 = vmul.f32 1.0, %v8269
        %v8271 = vrcp.pop %v8193
        %v8272 = vmul.f32 %v8193, %v8271
        %v8273 = vsub.f32 1.0, %v8272
        %v8274 = vmul.f32 %v8271, %v8273
        %v8275 = vadd.f32 %v8271, %v8274
        %vm8276 = vweird.f32 %v8193
        %vm8277 = vweird.f32 %v8271
        %vm8278 = vmor %vm8276, %vm8277
        %v8279 = vsel %vm8278, %v8271, %v8275
        %v8280 = vand.u32 2147483647, %v8193
        %vm8281 = vcmp.eq.f32.partialorder %v8280, 8.507059e+37
        %v8282 = vand.u32 %v8193, 2147483648
        %v8283 = vor.u32 1.1754944e-38, %v8282
        %v8284 = vsel %vm8281, %v8283, %v8279
        %v8285 = vmul.f32 1.0, %v8284
        %v8286 = vrcp.pop %v8194
        %v8287 = vmul.f32 %v8194, %v8286
        %v8288 = vsub.f32 1.0, %v8287
        %v8289 = vmul.f32 %v8286, %v8288
        %v8290 = vadd.f32 %v8286, %v8289
        %vm8291 = vweird.f32 %v8194
        %vm8292 = vweird.f32 %v8286
        %vm8293 = vmor %vm8291, %vm8292
        %v8294 = vsel %vm8293, %v8286, %v8290
        %v8295 = vand.u32 2147483647, %v8194
        %vm8296 = vcmp.eq.f32.partialorder %v8295, 8.507059e+37
        %v8297 = vand.u32 %v8194, 2147483648
        %v8298 = vor.u32 1.1754944e-38, %v8297
        %v8299 = vsel %vm8296, %v8298, %v8294
        %v8300 = vmul.f32 1.0, %v8299
        %v8301 = vrcp.pop %v8195
        %v8302 = vmul.f32 %v8195, %v8301
        %v8303 = vsub.f32 1.0, %v8302
        %v8304 = vmul.f32 %v8301, %v8303
        %v8305 = vadd.f32 %v8301, %v8304
        %vm8306 = vweird.f32 %v8195
        %vm8307 = vweird.f32 %v8301
        %vm8308 = vmor %vm8306, %vm8307
        %v8309 = vsel %vm8308, %v8301, %v8305
        %v8310 = vand.u32 2147483647, %v8195
        %vm8311 = vcmp.eq.f32.partialorder %v8310, 8.507059e+37
        %v8312 = vand.u32 %v8195, 2147483648
        %v8313 = vor.u32 1.1754944e-38, %v8312
        %v8314 = vsel %vm8311, %v8313, %v8309
        %v8315 = vmul.f32 1.0, %v8314
        %v8316 = vrcp.pop %v8196
        %v8317 = vmul.f32 %v8196, %v8316
        %v8318 = vsub.f32 1.0, %v8317
        %v8319 = vmul.f32 %v8316, %v8318
        %v8320 = vadd.f32 %v8316, %v8319
        %vm8321 = vweird.f32 %v8196
        %vm8322 = vweird.f32 %v8316
        %vm8323 = vmor %vm8321, %vm8322
        %v8324 = vsel %vm8323, %v8316, %v8320
        %v8325 = vand.u32 2147483647, %v8196
        %vm8326 = vcmp.eq.f32.partialorder %v8325, 8.507059e+37
        %v8327 = vand.u32 %v8196, 2147483648
        %v8328 = vor.u32 1.1754944e-38, %v8327
        %v8329 = vsel %vm8326, %v8328, %v8324
        %v8330 = vmul.f32 1.0, %v8329
        %v8331 = vrcp.pop %v8197
        %v8332 = vmul.f32 %v8197, %v8331
        %v8333 = vsub.f32 1.0, %v8332
        %v8334 = vmul.f32 %v8331, %v8333
        %v8335 = vadd.f32 %v8331, %v8334
        %vm8336 = vweird.f32 %v8197
        %vm8337 = vweird.f32 %v8331
        %vm8338 = vmor %vm8336, %vm8337
        %v8339 = vsel %vm8338, %v8331, %v8335
        %v8340 = vand.u32 2147483647, %v8197
        %vm8341 = vcmp.eq.f32.partialorder %v8340, 8.507059e+37
        %v8342 = vand.u32 %v8197, 2147483648
        %v8343 = vor.u32 1.1754944e-38, %v8342
        %v8344 = vsel %vm8341, %v8343, %v8339
        %v8345 = vmul.f32 1.0, %v8344
        %v8346 = vrcp.pop %v8198
        %v8347 = vmul.f32 %v8198, %v8346
        %v8348 = vsub.f32 1.0, %v8347
        %v8349 = vmul.f32 %v8346, %v8348
        %v8350 = vadd.f32 %v8346, %v8349
        %vm8351 = vweird.f32 %v8198
        %vm8352 = vweird.f32 %v8346
        %vm8353 = vmor %vm8351, %vm8352
        %v8354 = vsel %vm8353, %v8346, %v8350
        %v8355 = vand.u32 2147483647, %v8198
        %vm8356 = vcmp.eq.f32.partialorder %v8355, 8.507059e+37
        %v8357 = vand.u32 %v8198, 2147483648
        %v8358 = vor.u32 1.1754944e-38, %v8357
        %v8359 = vsel %vm8356, %v8358, %v8354
        %v8360 = vmul.f32 1.0, %v8359
        %v8361 = vrcp.pop %v8199
        %v8362 = vmul.f32 %v8199, %v8361
        %v8363 = vsub.f32 1.0, %v8362
        %v8364 = vmul.f32 %v8361, %v8363
        %v8365 = vadd.f32 %v8361, %v8364
        %vm8366 = vweird.f32 %v8199
        %vm8367 = vweird.f32 %v8361
        %vm8368 = vmor %vm8366, %vm8367
        %v8369 = vsel %vm8368, %v8361, %v8365
        %v8370 = vand.u32 2147483647, %v8199
        %vm8371 = vcmp.eq.f32.partialorder %v8370, 8.507059e+37
        %v8372 = vand.u32 %v8199, 2147483648
        %v8373 = vor.u32 1.1754944e-38, %v8372
        %v8374 = vsel %vm8371, %v8373, %v8369
        %v8375 = vmul.f32 1.0, %v8374
        %v8376 = vrcp.pop %v8200
        %v8377 = vmul.f32 %v8200, %v8376
        %v8378 = vsub.f32 1.0, %v8377
        %v8379 = vmul.f32 %v8376, %v8378
        %v8380 = vadd.f32 %v8376, %v8379
        %vm8381 = vweird.f32 %v8200
        %vm8382 = vweird.f32 %v8376
        %vm8383 = vmor %vm8381, %vm8382
        %v8384 = vsel %vm8383, %v8376, %v8380
        %v8385 = vand.u32 2147483647, %v8200
        %vm8386 = vcmp.eq.f32.partialorder %v8385, 8.507059e+37
        %v8387 = vand.u32 %v8200, 2147483648
        %v8388 = vor.u32 1.1754944e-38, %v8387
        %v8389 = vsel %vm8386, %v8388, %v8384
        %v8390 = vmul.f32 1.0, %v8389
        %v8391 = vrcp.pop %v8201
        %v8392 = vmul.f32 %v8201, %v8391
        %v8393 = vsub.f32 1.0, %v8392
        %v8394 = vmul.f32 %v8391, %v8393
        %v8395 = vadd.f32 %v8391, %v8394
        %vm8396 = vweird.f32 %v8201
        %vm8397 = vweird.f32 %v8391
        %vm8398 = vmor %vm8396, %vm8397
        %v8399 = vsel %vm8398, %v8391, %v8395
        %v8400 = vand.u32 2147483647, %v8201
        %vm8401 = vcmp.eq.f32.partialorder %v8400, 8.507059e+37
        %v8402 = vand.u32 %v8201, 2147483648
        %v8403 = vor.u32 1.1754944e-38, %v8402
        %v8404 = vsel %vm8401, %v8403, %v8399
        %v8405 = vmul.f32 1.0, %v8404
        %v8406 = vrcp.pop %v8202
        %v8407 = vmul.f32 %v8202, %v8406
        %v8408 = vsub.f32 1.0, %v8407
        %v8409 = vmul.f32 %v8406, %v8408
        %v8410 = vadd.f32 %v8406, %v8409
        %vm8411 = vweird.f32 %v8202
        %vm8412 = vweird.f32 %v8406
        %vm8413 = vmor %vm8411, %vm8412
        %v8414 = vsel %vm8413, %v8406, %v8410
        %v8415 = vand.u32 2147483647, %v8202
        %vm8416 = vcmp.eq.f32.partialorder %v8415, 8.507059e+37
        %v8417 = vand.u32 %v8202, 2147483648
        %v8418 = vor.u32 1.1754944e-38, %v8417
        %v8419 = vsel %vm8416, %v8418, %v8414
        %v8420 = vmul.f32 1.0, %v8419
        %v8421 = vrcp.pop %v8203
        %v8422 = vmul.f32 %v8203, %v8421
        %v8423 = vsub.f32 1.0, %v8422
        %v8424 = vmul.f32 %v8421, %v8423
        %v8425 = vadd.f32 %v8421, %v8424
        %vm8426 = vweird.f32 %v8203
        %vm8427 = vweird.f32 %v8421
        %vm8428 = vmor %vm8426, %vm8427
        %v8429 = vsel %vm8428, %v8421, %v8425
        %v8430 = vand.u32 2147483647, %v8203
        %vm8431 = vcmp.eq.f32.partialorder %v8430, 8.507059e+37
        %v8432 = vand.u32 %v8203, 2147483648
        %v8433 = vor.u32 1.1754944e-38, %v8432
        %v8434 = vsel %vm8431, %v8433, %v8429
        %v8435 = vmul.f32 1.0, %v8434
        %v8436 = vrcp.pop %v8204
        %v8437 = vmul.f32 %v8204, %v8436
        %v8438 = vsub.f32 1.0, %v8437
        %v8439 = vmul.f32 %v8436, %v8438
        %v8440 = vadd.f32 %v8436, %v8439
        %vm8441 = vweird.f32 %v8204
        %vm8442 = vweird.f32 %v8436
        %vm8443 = vmor %vm8441, %vm8442
        %v8444 = vsel %vm8443, %v8436, %v8440
        %v8445 = vand.u32 2147483647, %v8204
        %vm8446 = vcmp.eq.f32.partialorder %v8445, 8.507059e+37
        %v8447 = vand.u32 %v8204, 2147483648
        %v8448 = vor.u32 1.1754944e-38, %v8447
        %v8449 = vsel %vm8446, %v8448, %v8444
        %v8450 = vmul.f32 1.0, %v8449
        %v8451 = vrcp.pop %v8205
        %v8452 = vmul.f32 %v8205, %v8451
        %v8453 = vsub.f32 1.0, %v8452
        %v8454 = vmul.f32 %v8451, %v8453
        %v8455 = vadd.f32 %v8451, %v8454
        %vm8456 = vweird.f32 %v8205
        %vm8457 = vweird.f32 %v8451
        %vm8458 = vmor %vm8456, %vm8457
        %v8459 = vsel %vm8458, %v8451, %v8455
        %v8460 = vand.u32 2147483647, %v8205
        %vm8461 = vcmp.eq.f32.partialorder %v8460, 8.507059e+37
        %v8462 = vand.u32 %v8205, 2147483648
        %v8463 = vor.u32 1.1754944e-38, %v8462
        %v8464 = vsel %vm8461, %v8463, %v8459
        %v8465 = vmul.f32 1.0, %v8464
        %v8466 = vrcp.pop %v8206
        %v8467 = vmul.f32 %v8206, %v8466
        %v8468 = vsub.f32 1.0, %v8467
        %v8469 = vmul.f32 %v8466, %v8468
        %v8470 = vadd.f32 %v8466, %v8469
        %vm8471 = vweird.f32 %v8206
        %vm8472 = vweird.f32 %v8466
        %vm8473 = vmor %vm8471, %vm8472
        %v8474 = vsel %vm8473, %v8466, %v8470
        %v8475 = vand.u32 2147483647, %v8206
        %vm8476 = vcmp.eq.f32.partialorder %v8475, 8.507059e+37
        %v8477 = vand.u32 %v8206, 2147483648
        %v8478 = vor.u32 1.1754944e-38, %v8477
        %v8479 = vsel %vm8476, %v8478, %v8474
        %v8480 = vmul.f32 1.0, %v8479
        %v8481 = vrcp.pop %v8207
        %v8482 = vmul.f32 %v8207, %v8481
        %v8483 = vsub.f32 1.0, %v8482
        %v8484 = vmul.f32 %v8481, %v8483
        %v8485 = vadd.f32 %v8481, %v8484
        %vm8486 = vweird.f32 %v8207
        %vm8487 = vweird.f32 %v8481
        %vm8488 = vmor %vm8486, %vm8487
        %v8489 = vsel %vm8488, %v8481, %v8485
        %v8490 = vand.u32 2147483647, %v8207
        %vm8491 = vcmp.eq.f32.partialorder %v8490, 8.507059e+37
        %v8492 = vand.u32 %v8207, 2147483648
        %v8493 = vor.u32 1.1754944e-38, %v8492
        %v8494 = vsel %vm8491, %v8493, %v8489
        %v8495 = vmul.f32 1.0, %v8494
        %v8496 = vrcp.pop %v8208
        %v8497 = vmul.f32 %v8208, %v8496
        %v8498 = vsub.f32 1.0, %v8497
        %v8499 = vmul.f32 %v8496, %v8498
        %v8500 = vadd.f32 %v8496, %v8499
        %vm8501 = vweird.f32 %v8208
        %vm8502 = vweird.f32 %v8496
        %vm8503 = vmor %vm8501, %vm8502
        %v8504 = vsel %vm8503, %v8496, %v8500
        %v8505 = vand.u32 2147483647, %v8208
        %vm8506 = vcmp.eq.f32.partialorder %v8505, 8.507059e+37
        %v8507 = vand.u32 %v8208, 2147483648
        %v8508 = vor.u32 1.1754944e-38, %v8507
        %v8509 = vsel %vm8506, %v8508, %v8504
        %v8510 = vmul.f32 1.0, %v8509
        %v8511 = vrcp.pop %v8209
        %v8512 = vmul.f32 %v8209, %v8511
        %v8513 = vsub.f32 1.0, %v8512
        %v8514 = vmul.f32 %v8511, %v8513
        %v8515 = vadd.f32 %v8511, %v8514
        %vm8516 = vweird.f32 %v8209
        %vm8517 = vweird.f32 %v8511
        %vm8518 = vmor %vm8516, %vm8517
        %v8519 = vsel %vm8518, %v8511, %v8515
        %v8520 = vand.u32 2147483647, %v8209
        %vm8521 = vcmp.eq.f32.partialorder %v8520, 8.507059e+37
        %v8522 = vand.u32 %v8209, 2147483648
        %v8523 = vor.u32 1.1754944e-38, %v8522
        %v8524 = vsel %vm8521, %v8523, %v8519
        %v8525 = vmul.f32 1.0, %v8524
        %v8526 = vrcp.pop %v8210
        %v8527 = vmul.f32 %v8210, %v8526
        %v8528 = vsub.f32 1.0, %v8527
        %v8529 = vmul.f32 %v8526, %v8528
        %v8530 = vadd.f32 %v8526, %v8529
        %vm8531 = vweird.f32 %v8210
        %vm8532 = vweird.f32 %v8526
        %vm8533 = vmor %vm8531, %vm8532
        %v8534 = vsel %vm8533, %v8526, %v8530
        %v8535 = vand.u32 2147483647, %v8210
        %vm8536 = vcmp.eq.f32.partialorder %v8535, 8.507059e+37
        %v8537 = vand.u32 %v8210, 2147483648
        %v8538 = vor.u32 1.1754944e-38, %v8537
        %v8539 = vsel %vm8536, %v8538, %v8534
        %v8540 = vmul.f32 1.0, %v8539
        %v8541 = vrcp.pop %v8211
        %v8542 = vmul.f32 %v8211, %v8541
        %v8543 = vsub.f32 1.0, %v8542
        %v8544 = vmul.f32 %v8541, %v8543
        %v8545 = vadd.f32 %v8541, %v8544
        %vm8546 = vweird.f32 %v8211
        %vm8547 = vweird.f32 %v8541
        %vm8548 = vmor %vm8546, %vm8547
        %v8549 = vsel %vm8548, %v8541, %v8545
        %v8550 = vand.u32 2147483647, %v8211
        %vm8551 = vcmp.eq.f32.partialorder %v8550, 8.507059e+37
        %v8552 = vand.u32 %v8211, 2147483648
        %v8553 = vor.u32 1.1754944e-38, %v8552
        %v8554 = vsel %vm8551, %v8553, %v8549
        %v8555 = vmul.f32 1.0, %v8554
        %v8556 = vrcp.pop %v8212
        %v8557 = vmul.f32 %v8212, %v8556
        %v8558 = vsub.f32 1.0, %v8557
        %v8559 = vmul.f32 %v8556, %v8558
        %v8560 = vadd.f32 %v8556, %v8559
        %vm8561 = vweird.f32 %v8212
        %vm8562 = vweird.f32 %v8556
        %vm8563 = vmor %vm8561, %vm8562
        %v8564 = vsel %vm8563, %v8556, %v8560
        %v8565 = vand.u32 2147483647, %v8212
        %vm8566 = vcmp.eq.f32.partialorder %v8565, 8.507059e+37
        %v8567 = vand.u32 %v8212, 2147483648
        %v8568 = vor.u32 1.1754944e-38, %v8567
        %v8569 = vsel %vm8566, %v8568, %v8564
        %v8570 = vmul.f32 1.0, %v8569
        %v8571 = vrcp.pop %v8213
        %v8572 = vmul.f32 %v8213, %v8571
        %v8573 = vsub.f32 1.0, %v8572
        %v8574 = vmul.f32 %v8571, %v8573
        %v8575 = vadd.f32 %v8571, %v8574
        %vm8576 = vweird.f32 %v8213
        %vm8577 = vweird.f32 %v8571
        %vm8578 = vmor %vm8576, %vm8577
        %v8579 = vsel %vm8578, %v8571, %v8575
        %v8580 = vand.u32 2147483647, %v8213
        %vm8581 = vcmp.eq.f32.partialorder %v8580, 8.507059e+37
        %v8582 = vand.u32 %v8213, 2147483648
        %v8583 = vor.u32 1.1754944e-38, %v8582
        %v8584 = vsel %vm8581, %v8583, %v8579
        %v8585 = vmul.f32 1.0, %v8584
        %v8586 = vrcp.pop %v8214
        %v8587 = vmul.f32 %v8214, %v8586
        %v8588 = vsub.f32 1.0, %v8587
        %v8589 = vmul.f32 %v8586, %v8588
        %v8590 = vadd.f32 %v8586, %v8589
        %vm8591 = vweird.f32 %v8214
        %vm8592 = vweird.f32 %v8586
        %vm8593 = vmor %vm8591, %vm8592
        %v8594 = vsel %vm8593, %v8586, %v8590
        %v8595 = vand.u32 2147483647, %v8214
        %vm8596 = vcmp.eq.f32.partialorder %v8595, 8.507059e+37
        %v8597 = vand.u32 %v8214, 2147483648
        %v8598 = vor.u32 1.1754944e-38, %v8597
        %v8599 = vsel %vm8596, %v8598, %v8594
        %v8600 = vmul.f32 1.0, %v8599
        %v8601 = vrcp.pop %v8215
        %v8602 = vmul.f32 %v8215, %v8601
        %v8603 = vsub.f32 1.0, %v8602
        %v8604 = vmul.f32 %v8601, %v8603
        %v8605 = vadd.f32 %v8601, %v8604
        %vm8606 = vweird.f32 %v8215
        %vm8607 = vweird.f32 %v8601
        %vm8608 = vmor %vm8606, %vm8607
        %v8609 = vsel %vm8608, %v8601, %v8605
        %v8610 = vand.u32 2147483647, %v8215
        %vm8611 = vcmp.eq.f32.partialorder %v8610, 8.507059e+37
        %v8612 = vand.u32 %v8215, 2147483648
        %v8613 = vor.u32 1.1754944e-38, %v8612
        %v8614 = vsel %vm8611, %v8613, %v8609
        %v8615 = vmul.f32 1.0, %v8614
        %v8616 = vrcp.pop %v8216
        %v8617 = vmul.f32 %v8216, %v8616
        %v8618 = vsub.f32 1.0, %v8617
        %v8619 = vmul.f32 %v8616, %v8618
        %v8620 = vadd.f32 %v8616, %v8619
        %vm8621 = vweird.f32 %v8216
        %vm8622 = vweird.f32 %v8616
        %vm8623 = vmor %vm8621, %vm8622
        %v8624 = vsel %vm8623, %v8616, %v8620
        %v8625 = vand.u32 2147483647, %v8216
        %vm8626 = vcmp.eq.f32.partialorder %v8625, 8.507059e+37
        %v8627 = vand.u32 %v8216, 2147483648
        %v8628 = vor.u32 1.1754944e-38, %v8627
        %v8629 = vsel %vm8626, %v8628, %v8624
        %v8630 = vmul.f32 1.0, %v8629
        %v8631 = vrcp.pop %v8217
        %v8632 = vmul.f32 %v8217, %v8631
        %v8633 = vsub.f32 1.0, %v8632
        %v8634 = vmul.f32 %v8631, %v8633
        %v8635 = vadd.f32 %v8631, %v8634
        %vm8636 = vweird.f32 %v8217
        %vm8637 = vweird.f32 %v8631
        %vm8638 = vmor %vm8636, %vm8637
        %v8639 = vsel %vm8638, %v8631, %v8635
        %v8640 = vand.u32 2147483647, %v8217
        %vm8641 = vcmp.eq.f32.partialorder %v8640, 8.507059e+37
        %v8642 = vand.u32 %v8217, 2147483648
        %v8643 = vor.u32 1.1754944e-38, %v8642
        %v8644 = vsel %vm8641, %v8643, %v8639
        %v8645 = vmul.f32 1.0, %v8644
        %v8646 = vrcp.pop %v8218
        %v8647 = vmul.f32 %v8218, %v8646
        %v8648 = vsub.f32 1.0, %v8647
        %v8649 = vmul.f32 %v8646, %v8648
        %v8650 = vadd.f32 %v8646, %v8649
        %vm8651 = vweird.f32 %v8218
        %vm8652 = vweird.f32 %v8646
        %vm8653 = vmor %vm8651, %vm8652
        %v8654 = vsel %vm8653, %v8646, %v8650
        %v8655 = vand.u32 2147483647, %v8218
        %vm8656 = vcmp.eq.f32.partialorder %v8655, 8.507059e+37
        %v8657 = vand.u32 %v8218, 2147483648
        %v8658 = vor.u32 1.1754944e-38, %v8657
        %v8659 = vsel %vm8656, %v8658, %v8654
        %v8660 = vmul.f32 1.0, %v8659
        %v8661 = vrcp.pop %v8219
        %v8662 = vmul.f32 %v8219, %v8661
        %v8663 = vsub.f32 1.0, %v8662
        %v8664 = vmul.f32 %v8661, %v8663
        %v8665 = vadd.f32 %v8661, %v8664
        %vm8666 = vweird.f32 %v8219
        %vm8667 = vweird.f32 %v8661
        %vm8668 = vmor %vm8666, %vm8667
        %v8669 = vsel %vm8668, %v8661, %v8665
        %v8670 = vand.u32 2147483647, %v8219
        %vm8671 = vcmp.eq.f32.partialorder %v8670, 8.507059e+37
        %v8672 = vand.u32 %v8219, 2147483648
        %v8673 = vor.u32 1.1754944e-38, %v8672
        %v8674 = vsel %vm8671, %v8673, %v8669
        %v8675 = vmul.f32 1.0, %v8674
        %v8676 = vrcp.pop %v8220
        %v8677 = vmul.f32 %v8220, %v8676
        %v8678 = vsub.f32 1.0, %v8677
        %v8679 = vmul.f32 %v8676, %v8678
        %v8680 = vadd.f32 %v8676, %v8679
        %vm8681 = vweird.f32 %v8220
        %vm8682 = vweird.f32 %v8676
        %vm8683 = vmor %vm8681, %vm8682
        %v8684 = vsel %vm8683, %v8676, %v8680
        %v8685 = vand.u32 2147483647, %v8220
        %vm8686 = vcmp.eq.f32.partialorder %v8685, 8.507059e+37
        %v8687 = vand.u32 %v8220, 2147483648
        %v8688 = vor.u32 1.1754944e-38, %v8687
        %v8689 = vsel %vm8686, %v8688, %v8684
        %v8690 = vmul.f32 1.0, %v8689
        %v8691 = vrcp.pop %v8221
        %v8692 = vmul.f32 %v8221, %v8691
        %v8693 = vsub.f32 1.0, %v8692
        %v8694 = vmul.f32 %v8691, %v8693
        %v8695 = vadd.f32 %v8691, %v8694
        %vm8696 = vweird.f32 %v8221
        %vm8697 = vweird.f32 %v8691
        %vm8698 = vmor %vm8696, %vm8697
        %v8699 = vsel %vm8698, %v8691, %v8695
        %v8700 = vand.u32 2147483647, %v8221
        %vm8701 = vcmp.eq.f32.partialorder %v8700, 8.507059e+37
        %v8702 = vand.u32 %v8221, 2147483648
        %v8703 = vor.u32 1.1754944e-38, %v8702
        %v8704 = vsel %vm8701, %v8703, %v8699
        %v8705 = vmul.f32 1.0, %v8704
        %v8706 = vrcp.pop %v8222
        %v8707 = vmul.f32 %v8222, %v8706
        %v8708 = vsub.f32 1.0, %v8707
        %v8709 = vmul.f32 %v8706, %v8708
        %v8710 = vadd.f32 %v8706, %v8709
        %vm8711 = vweird.f32 %v8222
        %vm8712 = vweird.f32 %v8706
        %vm8713 = vmor %vm8711, %vm8712
        %v8714 = vsel %vm8713, %v8706, %v8710
        %v8715 = vand.u32 2147483647, %v8222
        %vm8716 = vcmp.eq.f32.partialorder %v8715, 8.507059e+37
        %v8717 = vand.u32 %v8222, 2147483648
        %v8718 = vor.u32 1.1754944e-38, %v8717
        %v8719 = vsel %vm8716, %v8718, %v8714
        %v8720 = vmul.f32 1.0, %v8719
        %v8721 = vrcp.pop %v8223
        %v8722 = vmul.f32 %v8223, %v8721
        %v8723 = vsub.f32 1.0, %v8722
        %v8724 = vmul.f32 %v8721, %v8723
        %v8725 = vadd.f32 %v8721, %v8724
        %vm8726 = vweird.f32 %v8223
        %vm8727 = vweird.f32 %v8721
        %vm8728 = vmor %vm8726, %vm8727
        %v8729 = vsel %vm8728, %v8721, %v8725
        %v8730 = vand.u32 2147483647, %v8223
        %vm8731 = vcmp.eq.f32.partialorder %v8730, 8.507059e+37
        %v8732 = vand.u32 %v8223, 2147483648
        %v8733 = vor.u32 1.1754944e-38, %v8732
        %v8734 = vsel %vm8731, %v8733, %v8729
        %v8735 = vmul.f32 1.0, %v8734
        %v8736 = vrcp.pop %v8224
        %v8737 = vmul.f32 %v8224, %v8736
        %v8738 = vsub.f32 1.0, %v8737
        %v8739 = vmul.f32 %v8736, %v8738
        %v8740 = vadd.f32 %v8736, %v8739
        %vm8741 = vweird.f32 %v8224
        %vm8742 = vweird.f32 %v8736
        %vm8743 = vmor %vm8741, %vm8742
        %v8744 = vsel %vm8743, %v8736, %v8740
        %v8745 = vand.u32 2147483647, %v8224
        %vm8746 = vcmp.eq.f32.partialorder %v8745, 8.507059e+37
        %v8747 = vand.u32 %v8224, 2147483648
        %v8748 = vor.u32 1.1754944e-38, %v8747
        %v8749 = vsel %vm8746, %v8748, %v8744
        %v8750 = vmul.f32 1.0, %v8749
        %v8751 = vrcp.pop %v8225
        %v8752 = vmul.f32 %v8225, %v8751
        %v8753 = vsub.f32 1.0, %v8752
        %v8754 = vmul.f32 %v8751, %v8753
        %v8755 = vadd.f32 %v8751, %v8754
        %vm8756 = vweird.f32 %v8225
        %vm8757 = vweird.f32 %v8751
        %vm8758 = vmor %vm8756, %vm8757
        %v8759 = vsel %vm8758, %v8751, %v8755
        %v8760 = vand.u32 2147483647, %v8225
        %vm8761 = vcmp.eq.f32.partialorder %v8760, 8.507059e+37
        %v8762 = vand.u32 %v8225, 2147483648
        %v8763 = vor.u32 1.1754944e-38, %v8762
        %v8764 = vsel %vm8761, %v8763, %v8759
        %v8765 = vmul.f32 1.0, %v8764
        %v8766 = vmul.f32 %v8046, %v8240
        %v8767 = vmul.f32 %v8047, %v8255
        %v8768 = vmul.f32 %v8048, %v8270
        %v8769 = vmul.f32 %v8049, %v8285
        %v8770 = vmul.f32 %v8050, %v8300
        %v8771 = vmul.f32 %v8051, %v8315
        %v8772 = vmul.f32 %v8052, %v8330
        %v8773 = vmul.f32 %v8053, %v8345
        %v8774 = vmul.f32 %v8054, %v8360
        %v8775 = vmul.f32 %v8055, %v8375
        %v8776 = vmul.f32 %v8056, %v8390
        %v8777 = vmul.f32 %v8057, %v8405
        %v8778 = vmul.f32 %v8058, %v8420
        %v8779 = vmul.f32 %v8059, %v8435
        %v8780 = vmul.f32 %v8060, %v8450
        %v8781 = vmul.f32 %v8061, %v8465
        %v8782 = vmul.f32 %v8062, %v8480
        %v8783 = vmul.f32 %v8063, %v8495
        %v8784 = vmul.f32 %v8064, %v8510
        %v8785 = vmul.f32 %v8065, %v8525
        %v8786 = vmul.f32 %v8066, %v8540
        %v8787 = vmul.f32 %v8067, %v8555
        %v8788 = vmul.f32 %v8068, %v8570
        %v8789 = vmul.f32 %v8069, %v8585
        %v8790 = vmul.f32 %v8070, %v8600
        %v8791 = vmul.f32 %v8071, %v8615
        %v8792 = vmul.f32 %v8072, %v8630
        %v8793 = vmul.f32 %v8073, %v8645
        %v8794 = vmul.f32 %v8074, %v8660
        %v8795 = vmul.f32 %v8075, %v8675
        %v8796 = vmul.f32 %v8076, %v8690
        %v8797 = vmul.f32 %v8077, %v8705
        %v8798 = vmul.f32 %v8078, %v8720
        %v8799 = vmul.f32 %v8079, %v8735
        %v8800 = vmul.f32 %v8080, %v8750
        %v8801 = vmul.f32 %v8081, %v8765
        %v8802 = vmul.f32 %v8766, %v2553
        %v8803 = vmul.f32 %v8767, %v2554
        %v8804 = vmul.f32 %v8768, %v2555
        %v8805 = vmul.f32 %v8769, %v2556
        %v8806 = vmul.f32 %v8770, %v2557
        %v8807 = vmul.f32 %v8771, %v2558
        %v8808 = vmul.f32 %v8772, %v2559
        %v8809 = vmul.f32 %v8773, %v2560
        %v8810 = vmul.f32 %v8774, %v2561
        %v8811 = vmul.f32 %v8775, %v2562
        %v8812 = vmul.f32 %v8776, %v2563
        %v8813 = vmul.f32 %v8777, %v2564
        %v8814 = vmul.f32 %v8778, %v2565
        %v8815 = vmul.f32 %v8779, %v2566
        %v8816 = vmul.f32 %v8780, %v2567
        %v8817 = vmul.f32 %v8781, %v2568
        %v8818 = vmul.f32 %v8782, %v2569
        %v8819 = vmul.f32 %v8783, %v2570
        %v8820 = vmul.f32 %v8784, %v2571
        %v8821 = vmul.f32 %v8785, %v2572
        %v8822 = vmul.f32 %v8786, %v2573
        %v8823 = vmul.f32 %v8787, %v2574
        %v8824 = vmul.f32 %v8788, %v2575
        %v8825 = vmul.f32 %v8789, %v2576
        %v8826 = vmul.f32 %v8790, %v2577
        %v8827 = vmul.f32 %v8791, %v2578
        %v8828 = vmul.f32 %v8792, %v2579
        %v8829 = vmul.f32 %v8793, %v2580
        %v8830 = vmul.f32 %v8794, %v2581
        %v8831 = vmul.f32 %v8795, %v2582
        %v8832 = vmul.f32 %v8796, %v2583
        %v8833 = vmul.f32 %v8797, %v2584
        %v8834 = vmul.f32 %v8798, %v2585
        %v8835 = vmul.f32 %v8799, %v2586
        %v8836 = vmul.f32 %v8800, %v2587
        %v8837 = vmul.f32 %v8801, %v2588
        %v8838 = vpack.c.bf16 %v8802, %v8802
        %v8839 = vpack.c.bf16 %v8803, %v8803
        %v8840 = vpack.c.bf16 %v8804, %v8804
        %v8841 = vpack.c.bf16 %v8805, %v8805
        %v8842 = vpack.c.bf16 %v8806, %v8806
        %v8843 = vpack.c.bf16 %v8807, %v8807
        %v8844 = vpack.c.bf16 %v8808, %v8808
        %v8845 = vpack.c.bf16 %v8809, %v8809
        %v8846 = vpack.c.bf16 %v8810, %v8810
        %v8847 = vpack.c.bf16 %v8811, %v8811
        %v8848 = vpack.c.bf16 %v8812, %v8812
        %v8849 = vpack.c.bf16 %v8813, %v8813
        %v8850 = vpack.c.bf16 %v8814, %v8814
        %v8851 = vpack.c.bf16 %v8815, %v8815
        %v8852 = vpack.c.bf16 %v8816, %v8816
        %v8853 = vpack.c.bf16 %v8817, %v8817
        %v8854 = vpack.c.bf16 %v8818, %v8818
        %v8855 = vpack.c.bf16 %v8819, %v8819
        %v8856 = vpack.c.bf16 %v8820, %v8820
        %v8857 = vpack.c.bf16 %v8821, %v8821
        %v8858 = vpack.c.bf16 %v8822, %v8822
        %v8859 = vpack.c.bf16 %v8823, %v8823
        %v8860 = vpack.c.bf16 %v8824, %v8824
        %v8861 = vpack.c.bf16 %v8825, %v8825
        %v8862 = vpack.c.bf16 %v8826, %v8826
        %v8863 = vpack.c.bf16 %v8827, %v8827
        %v8864 = vpack.c.bf16 %v8828, %v8828
        %v8865 = vpack.c.bf16 %v8829, %v8829
        %v8866 = vpack.c.bf16 %v8830, %v8830
        %v8867 = vpack.c.bf16 %v8831, %v8831
        %v8868 = vpack.c.bf16 %v8832, %v8832
        %v8869 = vpack.c.bf16 %v8833, %v8833
        %v8870 = vpack.c.bf16 %v8834, %v8834
        %v8871 = vpack.c.bf16 %v8835, %v8835
        %v8872 = vpack.c.bf16 %v8836, %v8836
        %v8873 = vpack.c.bf16 %v8837, %v8837
        %v8910 = vunpack.c.l.b16 %v8838
        %v8911 = vunpack.c.l.b16 %v8839
        %v8912 = vunpack.c.l.b16 %v8840
        %v8913 = vunpack.c.l.b16 %v8841
        %v8914 = vunpack.c.l.b16 %v8842
        %v8915 = vunpack.c.l.b16 %v8843
        %v8916 = vunpack.c.l.b16 %v8844
        %v8917 = vunpack.c.l.b16 %v8845
        %v8918 = vunpack.c.l.b16 %v8846
        %v8919 = vunpack.c.l.b16 %v8847
        %v8920 = vunpack.c.l.b16 %v8848
        %v8921 = vunpack.c.l.b16 %v8849
        %v8922 = vunpack.c.l.b16 %v8850
        %v8923 = vunpack.c.l.b16 %v8851
        %v8924 = vunpack.c.l.b16 %v8852
        %v8925 = vunpack.c.l.b16 %v8853
        %v8926 = vunpack.c.l.b16 %v8854
        %v8927 = vunpack.c.l.b16 %v8855
        %v8928 = vunpack.c.l.b16 %v8856
        %v8929 = vunpack.c.l.b16 %v8857
        %v8930 = vunpack.c.l.b16 %v8858
        %v8931 = vunpack.c.l.b16 %v8859
        %v8932 = vunpack.c.l.b16 %v8860
        %v8933 = vunpack.c.l.b16 %v8861
        %v8934 = vunpack.c.l.b16 %v8862
        %v8935 = vunpack.c.l.b16 %v8863
        %v8936 = vunpack.c.l.b16 %v8864
        %v8937 = vunpack.c.l.b16 %v8865
        %v8938 = vunpack.c.l.b16 %v8866
        %v8939 = vunpack.c.l.b16 %v8867
        %v8940 = vunpack.c.l.b16 %v8868
        %v8941 = vunpack.c.l.b16 %v8869
        %v8942 = vunpack.c.l.b16 %v8870
        %v8943 = vunpack.c.l.b16 %v8871
        %v8944 = vunpack.c.l.b16 %v8872
        %v8945 = vunpack.c.l.b16 %v8873
        %v8946 = vpack.c.b16 %v8911, %v8910
        %v8947 = vpack.c.b16 %v8913, %v8912
        %v8948 = vpack.c.b16 %v8915, %v8914
        %v8949 = vpack.c.b16 %v8917, %v8916
        %v8950 = vpack.c.b16 %v8919, %v8918
        %v8951 = vpack.c.b16 %v8921, %v8920
        %v8952 = vpack.c.b16 %v8923, %v8922
        %v8953 = vpack.c.b16 %v8925, %v8924
        %v8954 = vpack.c.b16 %v8927, %v8926
        %v8955 = vpack.c.b16 %v8929, %v8928
        %v8956 = vpack.c.b16 %v8931, %v8930
        %v8957 = vpack.c.b16 %v8933, %v8932
        %v8958 = vpack.c.b16 %v8935, %v8934
        %v8959 = vpack.c.b16 %v8937, %v8936
        %v8960 = vpack.c.b16 %v8939, %v8938
        %v8961 = vpack.c.b16 %v8941, %v8940
        %v8962 = vpack.c.b16 %v8943, %v8942
        %v8963 = vpack.c.b16 %v8945, %v8944
        %v8965 = vshrl.u32 %v8946, 16
        %v8967 = vrot.slane %v8965, 6
        %v8968 = vshll.u32 %v8946, 16
        %v8970 = vrot.slane %v8968, 7
        %v8971 = vor.u32 %v8967, %v8970
        %v8973 = vshrl.u32 %v8947, 16
        %v8975 = vrot.slane %v8973, 6
        %v8976 = vshll.u32 %v8947, 16
        %v8978 = vrot.slane %v8976, 7
        %v8979 = vor.u32 %v8975, %v8978
        %v8980 = vsel %vm5598, %v8971, %v8979
        %v8982 = vshrl.u32 %v8948, 16
        %v8984 = vrot.slane %v8982, 6
        %v8985 = vshll.u32 %v8948, 16
        %v8987 = vrot.slane %v8985, 7
        %v8988 = vor.u32 %v8984, %v8987
        %v8989 = vsel %vm5598, %v8979, %v8988
        %v8991 = vshrl.u32 %v8949, 16
        %v8993 = vrot.slane %v8991, 6
        %v8994 = vshll.u32 %v8949, 16
        %v8996 = vrot.slane %v8994, 7
        %v8997 = vor.u32 %v8993, %v8996
        %v8998 = vsel %vm5598, %v8988, %v8997
        %v9000 = vshrl.u32 %v8950, 16
        %v9002 = vrot.slane %v9000, 6
        %v9003 = vshll.u32 %v8950, 16
        %v9005 = vrot.slane %v9003, 7
        %v9006 = vor.u32 %v9002, %v9005
        %v9007 = vsel %vm5598, %v8997, %v9006
        %v9009 = vshrl.u32 %v8951, 16
        %v9011 = vrot.slane %v9009, 6
        %v9012 = vshll.u32 %v8951, 16
        %v9014 = vrot.slane %v9012, 7
        %v9015 = vor.u32 %v9011, %v9014
        %v9016 = vsel %vm5598, %v9006, %v9015
        %v9018 = vshrl.u32 %v8952, 16
        %v9020 = vrot.slane %v9018, 6
        %v9021 = vshll.u32 %v8952, 16
        %v9023 = vrot.slane %v9021, 7
        %v9024 = vor.u32 %v9020, %v9023
        %v9025 = vsel %vm5598, %v9015, %v9024
        %v9027 = vshrl.u32 %v8953, 16
        %v9029 = vrot.slane %v9027, 6
        %v9030 = vshll.u32 %v8953, 16
        %v9032 = vrot.slane %v9030, 7
        %v9033 = vor.u32 %v9029, %v9032
        %v9034 = vsel %vm5598, %v9024, %v9033
        %v9036 = vshrl.u32 %v8954, 16
        %v9038 = vrot.slane %v9036, 6
        %v9039 = vshll.u32 %v8954, 16
        %v9041 = vrot.slane %v9039, 7
        %v9042 = vor.u32 %v9038, %v9041
        %v9043 = vsel %vm5598, %v9033, %v9042
        %v9045 = vshrl.u32 %v8955, 16
        %v9047 = vrot.slane %v9045, 6
        %v9048 = vshll.u32 %v8955, 16
        %v9050 = vrot.slane %v9048, 7
        %v9051 = vor.u32 %v9047, %v9050
        %v9052 = vsel %vm5598, %v9042, %v9051
        %v9054 = vshrl.u32 %v8956, 16
        %v9056 = vrot.slane %v9054, 6
        %v9057 = vshll.u32 %v8956, 16
        %v9059 = vrot.slane %v9057, 7
        %v9060 = vor.u32 %v9056, %v9059
        %v9061 = vsel %vm5598, %v9051, %v9060
        %v9063 = vshrl.u32 %v8957, 16
        %v9065 = vrot.slane %v9063, 6
        %v9066 = vshll.u32 %v8957, 16
        %v9068 = vrot.slane %v9066, 7
        %v9069 = vor.u32 %v9065, %v9068
        %v9070 = vsel %vm5598, %v9060, %v9069
        %v9072 = vshrl.u32 %v8958, 16
        %v9074 = vrot.slane %v9072, 6
        %v9075 = vshll.u32 %v8958, 16
        %v9077 = vrot.slane %v9075, 7
        %v9078 = vor.u32 %v9074, %v9077
        %v9079 = vsel %vm5598, %v9069, %v9078
        %v9081 = vshrl.u32 %v8959, 16
        %v9083 = vrot.slane %v9081, 6
        %v9084 = vshll.u32 %v8959, 16
        %v9086 = vrot.slane %v9084, 7
        %v9087 = vor.u32 %v9083, %v9086
        %v9088 = vsel %vm5598, %v9078, %v9087
        %v9090 = vshrl.u32 %v8960, 16
        %v9092 = vrot.slane %v9090, 6
        %v9093 = vshll.u32 %v8960, 16
        %v9095 = vrot.slane %v9093, 7
        %v9096 = vor.u32 %v9092, %v9095
        %v9097 = vsel %vm5598, %v9087, %v9096
        %v9099 = vshrl.u32 %v8961, 16
        %v9101 = vrot.slane %v9099, 6
        %v9102 = vshll.u32 %v8961, 16
        %v9104 = vrot.slane %v9102, 7
        %v9105 = vor.u32 %v9101, %v9104
        %v9106 = vsel %vm5598, %v9096, %v9105
        %v9108 = vshrl.u32 %v8962, 16
        %v9110 = vrot.slane %v9108, 6
        %v9111 = vshll.u32 %v8962, 16
        %v9113 = vrot.slane %v9111, 7
        %v9114 = vor.u32 %v9110, %v9113
        %v9115 = vsel %vm5598, %v9105, %v9114
        %v9117 = vshrl.u32 %v8963, 16
        %v9119 = vrot.slane %v9117, 6
        %v9120 = vshll.u32 %v8963, 16
        %v9122 = vrot.slane %v9120, 7
        %v9123 = vor.u32 %v9119, %v9122
        %v9124 = vsel %vm5598, %v9114, %v9123
        %v9143 = vsel %vm5779, 0, %v8971
        %v9144 = vsel %vm5779, %v9123, 0
        %v9145 = vld [vmem:[%s15] sm:$0x1]
        %v9146 = vld [vmem:[%s14] sm:$0xf]
        %v9147 = vld [vmem:[%s14 + $0x4] sm:$0xf]
        %v9148 = vld [vmem:[%s14 + $0x8] sm:$0xf]
        %v9149 = vld [vmem:[%s14 + $0xc] sm:$0xf]
        %v9150 = vld [vmem:[%s14 + $0x10] sm:$0xf]
        %v9151 = vld [vmem:[%s14 + $0x14] sm:$0xf]
        %v9152 = vld [vmem:[%s14 + $0x18] sm:$0xf]
        %v9153 = vld [vmem:[%s14 + $0x1c] sm:$0xf]
        %v9154 = vld [vmem:[%s14 + $0x20] sm:$0xf]
        %v9155 = vld [vmem:[%s14 + $0x24] sm:$0xf]
        %v9156 = vld [vmem:[%s14 + $0x28] sm:$0xf]
        %v9157 = vld [vmem:[%s14 + $0x2c] sm:$0xf]
        %v9158 = vld [vmem:[%s14 + $0x30] sm:$0xf]
        %v9159 = vld [vmem:[%s14 + $0x34] sm:$0xf]
        %v9160 = vld [vmem:[%s14 + $0x38] sm:$0xf]
        %v9161 = vld [vmem:[%s14 + $0x3c] sm:$0xf]
        %s9162 = scalar_lea.vmem %s14, 64
        %v9163 = vld [vmem:[%s9162] sm:$0xf]
        %v9164 = vld [vmem:[%s9162 + $0x4] sm:$0xf]
        %v9165 = vld [vmem:[%s9162 + $0x8] sm:$0xf]
        %v9166 = vld [vmem:[%s9162 + $0xc] sm:$0xf]
        %v9167 = vld [vmem:[%s9162 + $0x10] sm:$0xf]
        %v9168 = vld [vmem:[%s9162 + $0x14] sm:$0xf]
        %v9169 = vld [vmem:[%s9162 + $0x18] sm:$0xf]
        %v9170 = vld [vmem:[%s9162 + $0x1c] sm:$0xf]
        %v9171 = vld [vmem:[%s9162 + $0x20] sm:$0xf]
        %v9172 = vld [vmem:[%s9162 + $0x24] sm:$0xf]
        %v9173 = vld [vmem:[%s9162 + $0x28] sm:$0xf]
        %v9174 = vld [vmem:[%s9162 + $0x2c] sm:$0xf]
        %v9175 = vld [vmem:[%s9162 + $0x30] sm:$0xf]
        %v9176 = vld [vmem:[%s9162 + $0x34] sm:$0xf]
        %v9177 = vld [vmem:[%s9162 + $0x38] sm:$0xf]
        %v9178 = vld [vmem:[%s9162 + $0x3c] sm:$0xf]
        %v9180 = vshll.u32 %v9143, 16
        %v9182 = vrot.slane %v9180, 1
        %v9183 = vsel %vm2612, %v5822, %v9182
        %v9184 = vshrl.u32 %v9143, 16
        %v9186 = vor.u32 %v9184, %v9182
        %v9188 = vshll.u32 %v8980, 16
        %v9190 = vrot.slane %v9188, 1
        %v9191 = vsel %vm2612, %v9186, %v9190
        %v9192 = vshrl.u32 %v8980, 16
        %v9194 = vor.u32 %v9192, %v9190
        %v9196 = vshll.u32 %v8989, 16
        %v9198 = vrot.slane %v9196, 1
        %v9199 = vsel %vm2612, %v9194, %v9198
        %v9200 = vshrl.u32 %v8989, 16
        %v9202 = vor.u32 %v9200, %v9198
        %v9204 = vshll.u32 %v8998, 16
        %v9206 = vrot.slane %v9204, 1
        %v9207 = vsel %vm2612, %v9202, %v9206
        %v9208 = vshrl.u32 %v8998, 16
        %v9210 = vor.u32 %v9208, %v9206
        %v9212 = vshll.u32 %v9007, 16
        %v9214 = vrot.slane %v9212, 1
        %v9215 = vsel %vm2612, %v9210, %v9214
        %v9216 = vshrl.u32 %v9007, 16
        %v9218 = vor.u32 %v9216, %v9214
        %v9220 = vshll.u32 %v9016, 16
        %v9222 = vrot.slane %v9220, 1
        %v9223 = vsel %vm2612, %v9218, %v9222
        %v9224 = vshrl.u32 %v9016, 16
        %v9226 = vor.u32 %v9224, %v9222
        %v9228 = vshll.u32 %v9025, 16
        %v9230 = vrot.slane %v9228, 1
        %v9231 = vsel %vm2612, %v9226, %v9230
        %v9232 = vshrl.u32 %v9025, 16
        %v9234 = vor.u32 %v9232, %v9230
        %v9236 = vshll.u32 %v9034, 16
        %v9238 = vrot.slane %v9236, 1
        %v9239 = vsel %vm2612, %v9234, %v9238
        %v9240 = vshrl.u32 %v9034, 16
        %v9242 = vor.u32 %v9240, %v9238
        %v9244 = vshll.u32 %v9043, 16
        %v9246 = vrot.slane %v9244, 1
        %v9247 = vsel %vm2612, %v9242, %v9246
        %v9248 = vshrl.u32 %v9043, 16
        %v9250 = vor.u32 %v9248, %v9246
        %v9252 = vshll.u32 %v9052, 16
        %v9254 = vrot.slane %v9252, 1
        %v9255 = vsel %vm2612, %v9250, %v9254
        %v9256 = vshrl.u32 %v9052, 16
        %v9258 = vor.u32 %v9256, %v9254
        %v9260 = vshll.u32 %v9061, 16
        %v9262 = vrot.slane %v9260, 1
        %v9263 = vsel %vm2612, %v9258, %v9262
        %v9264 = vshrl.u32 %v9061, 16
        %v9266 = vor.u32 %v9264, %v9262
        %v9268 = vshll.u32 %v9070, 16
        %v9270 = vrot.slane %v9268, 1
        %v9271 = vsel %vm2612, %v9266, %v9270
        %v9272 = vshrl.u32 %v9070, 16
        %v9274 = vor.u32 %v9272, %v9270
        %v9276 = vshll.u32 %v9079, 16
        %v9278 = vrot.slane %v9276, 1
        %v9279 = vsel %vm2612, %v9274, %v9278
        %v9280 = vshrl.u32 %v9079, 16
        %v9282 = vor.u32 %v9280, %v9278
        %v9284 = vshll.u32 %v9088, 16
        %v9286 = vrot.slane %v9284, 1
        %v9287 = vsel %vm2612, %v9282, %v9286
        %v9288 = vshrl.u32 %v9088, 16
        %v9290 = vor.u32 %v9288, %v9286
        %v9292 = vshll.u32 %v9097, 16
        %v9294 = vrot.slane %v9292, 1
        %v9295 = vsel %vm2612, %v9290, %v9294
        %v9296 = vshrl.u32 %v9097, 16
        %v9298 = vor.u32 %v9296, %v9294
        %v9300 = vshll.u32 %v9106, 16
        %v9302 = vrot.slane %v9300, 1
        %v9303 = vsel %vm2612, %v9298, %v9302
        %v9304 = vshrl.u32 %v9106, 16
        %v9306 = vor.u32 %v9304, %v9302
        %v9308 = vshll.u32 %v9115, 16
        %v9310 = vrot.slane %v9308, 1
        %v9311 = vsel %vm2612, %v9306, %v9310
        %v9312 = vshrl.u32 %v9115, 16
        %v9314 = vor.u32 %v9312, %v9310
        %v9316 = vshll.u32 %v9124, 16
        %v9318 = vrot.slane %v9316, 1
        %v9319 = vsel %vm2612, %v9314, %v9318
        %v9354 = vunpack.c.l.b16 %v9163
        %v9355 = vunpack.c.l.b16 %v9164
        %v9356 = vunpack.c.l.b16 %v9165
        %v9357 = vunpack.c.l.b16 %v9166
        %v9358 = vunpack.c.l.b16 %v9167
        %v9359 = vunpack.c.l.b16 %v9168
        %v9360 = vunpack.c.l.b16 %v9169
        %v9361 = vunpack.c.l.b16 %v9170
        %v9362 = vunpack.c.l.b16 %v9171
        %v9363 = vunpack.c.l.b16 %v9172
        %v9364 = vunpack.c.l.b16 %v9173
        %v9365 = vunpack.c.l.b16 %v9174
        %v9366 = vunpack.c.l.b16 %v9175
        %v9367 = vunpack.c.l.b16 %v9176
        %v9368 = vunpack.c.l.b16 %v9177
        %v9369 = vunpack.c.l.b16 %v9178
        %v9370 = vpack.c.b16 %v9355, %v9354
        %v9371 = vpack.c.b16 %v9357, %v9356
        %v9372 = vpack.c.b16 %v9359, %v9358
        %v9373 = vpack.c.b16 %v9361, %v9360
        %v9374 = vpack.c.b16 %v9363, %v9362
        %v9375 = vpack.c.b16 %v9365, %v9364
        %v9376 = vpack.c.b16 %v9367, %v9366
        %v9377 = vpack.c.b16 %v9369, %v9368
        %9386 = vmatpush.bf16.msra.mxu0 %v9377
        %9387 = vmatpush.bf16.msra.mxu0 %v9376
        %9388 = vmatpush.bf16.msra.mxu0 %v9375
        %9389 = vmatpush.bf16.msra.mxu0 %v9374
        %9390 = vmatpush.bf16.msra.mxu0 %v9373
        %9391 = vmatpush.bf16.msra.mxu0 %v9372
        %9392 = vmatpush.bf16.msra.mxu0 %v9371
        %9393 = vmatpush.bf16.msra.mxu0 %v9370
        %9394 = vmatmul.bf16.gmra.mxu0 %v9183
        %v9395 = vpop.f32.mrf.mxu0
        %v9396 = vadd.f32 0.0, %v9395
        %v9397 = vpop.f32.mrf.mxu0
        %v9398 = vadd.f32 0.0, %v9397
        %9399 = vmatmul.bf16.gmra.mxu0 %v9191
        %v9400 = vpop.f32.mrf.mxu0
        %v9401 = vadd.f32 0.0, %v9400
        %v9402 = vpop.f32.mrf.mxu0
        %v9403 = vadd.f32 0.0, %v9402
        %9404 = vmatmul.bf16.gmra.mxu0 %v9199
        %v9405 = vpop.f32.mrf.mxu0
        %v9406 = vadd.f32 0.0, %v9405
        %v9407 = vpop.f32.mrf.mxu0
        %v9408 = vadd.f32 0.0, %v9407
        %9409 = vmatmul.bf16.gmra.mxu0 %v9207
        %v9410 = vpop.f32.mrf.mxu0
        %v9411 = vadd.f32 0.0, %v9410
        %v9412 = vpop.f32.mrf.mxu0
        %v9413 = vadd.f32 0.0, %v9412
        %9414 = vmatmul.bf16.gmra.mxu0 %v9215
        %v9415 = vpop.f32.mrf.mxu0
        %v9416 = vadd.f32 0.0, %v9415
        %v9417 = vpop.f32.mrf.mxu0
        %v9418 = vadd.f32 0.0, %v9417
        %9419 = vmatmul.bf16.gmra.mxu0 %v9223
        %v9420 = vpop.f32.mrf.mxu0
        %v9421 = vadd.f32 0.0, %v9420
        %v9422 = vpop.f32.mrf.mxu0
        %v9423 = vadd.f32 0.0, %v9422
        %9424 = vmatmul.bf16.gmra.mxu0 %v9231
        %v9425 = vpop.f32.mrf.mxu0
        %v9426 = vadd.f32 0.0, %v9425
        %v9427 = vpop.f32.mrf.mxu0
        %v9428 = vadd.f32 0.0, %v9427
        %9429 = vmatmul.bf16.gmra.mxu0 %v9239
        %v9430 = vpop.f32.mrf.mxu0
        %v9431 = vadd.f32 0.0, %v9430
        %v9432 = vpop.f32.mrf.mxu0
        %v9433 = vadd.f32 0.0, %v9432
        %9434 = vmatmul.bf16.gmra.mxu0 %v9247
        %v9435 = vpop.f32.mrf.mxu0
        %v9436 = vadd.f32 0.0, %v9435
        %v9437 = vpop.f32.mrf.mxu0
        %v9438 = vadd.f32 0.0, %v9437
        %9439 = vmatmul.bf16.gmra.mxu0 %v9255
        %v9440 = vpop.f32.mrf.mxu0
        %v9441 = vadd.f32 0.0, %v9440
        %v9442 = vpop.f32.mrf.mxu0
        %v9443 = vadd.f32 0.0, %v9442
        %9444 = vmatmul.bf16.gmra.mxu0 %v9263
        %v9445 = vpop.f32.mrf.mxu0
        %v9446 = vadd.f32 0.0, %v9445
        %v9447 = vpop.f32.mrf.mxu0
        %v9448 = vadd.f32 0.0, %v9447
        %9449 = vmatmul.bf16.gmra.mxu0 %v9271
        %v9450 = vpop.f32.mrf.mxu0
        %v9451 = vadd.f32 0.0, %v9450
        %v9452 = vpop.f32.mrf.mxu0
        %v9453 = vadd.f32 0.0, %v9452
        %9454 = vmatmul.bf16.gmra.mxu0 %v9279
        %v9455 = vpop.f32.mrf.mxu0
        %v9456 = vadd.f32 0.0, %v9455
        %v9457 = vpop.f32.mrf.mxu0
        %v9458 = vadd.f32 0.0, %v9457
        %9459 = vmatmul.bf16.gmra.mxu0 %v9287
        %v9460 = vpop.f32.mrf.mxu0
        %v9461 = vadd.f32 0.0, %v9460
        %v9462 = vpop.f32.mrf.mxu0
        %v9463 = vadd.f32 0.0, %v9462
        %9464 = vmatmul.bf16.gmra.mxu0 %v9295
        %v9465 = vpop.f32.mrf.mxu0
        %v9466 = vadd.f32 0.0, %v9465
        %v9467 = vpop.f32.mrf.mxu0
        %v9468 = vadd.f32 0.0, %v9467
        %9469 = vmatmul.bf16.gmra.mxu0 %v9303
        %v9470 = vpop.f32.mrf.mxu0
        %v9471 = vadd.f32 0.0, %v9470
        %v9472 = vpop.f32.mrf.mxu0
        %v9473 = vadd.f32 0.0, %v9472
        %9474 = vmatmul.bf16.gmra.mxu0 %v9311
        %v9475 = vpop.f32.mrf.mxu0
        %v9476 = vadd.f32 0.0, %v9475
        %v9477 = vpop.f32.mrf.mxu0
        %v9478 = vadd.f32 0.0, %v9477
        %9479 = vmatmul.bf16.gmra.mxu0 %v9319
        %v9480 = vpop.f32.mrf.mxu0
        %v9481 = vadd.f32 0.0, %v9480
        %v9482 = vpop.f32.mrf.mxu0
        %v9483 = vadd.f32 0.0, %v9482
        %9484 = vdwg.mxu0
        %v9501 = vunpack.c.l.b16 %v9146
        %v9502 = vunpack.c.l.b16 %v9147
        %v9503 = vunpack.c.l.b16 %v9148
        %v9504 = vunpack.c.l.b16 %v9149
        %v9505 = vunpack.c.l.b16 %v9150
        %v9506 = vunpack.c.l.b16 %v9151
        %v9507 = vunpack.c.l.b16 %v9152
        %v9508 = vunpack.c.l.b16 %v9153
        %v9509 = vunpack.c.l.b16 %v9154
        %v9510 = vunpack.c.l.b16 %v9155
        %v9511 = vunpack.c.l.b16 %v9156
        %v9512 = vunpack.c.l.b16 %v9157
        %v9513 = vunpack.c.l.b16 %v9158
        %v9514 = vunpack.c.l.b16 %v9159
        %v9515 = vunpack.c.l.b16 %v9160
        %v9516 = vunpack.c.l.b16 %v9161
        %v9517 = vpack.c.b16 %v9502, %v9501
        %v9518 = vpack.c.b16 %v9504, %v9503
        %v9519 = vpack.c.b16 %v9506, %v9505
        %v9520 = vpack.c.b16 %v9508, %v9507
        %v9521 = vpack.c.b16 %v9510, %v9509
        %v9522 = vpack.c.b16 %v9512, %v9511
        %v9523 = vpack.c.b16 %v9514, %v9513
        %v9524 = vpack.c.b16 %v9516, %v9515
        %9533 = vmatpush.bf16.msra.mxu0 %v9524
        %9534 = vmatpush.bf16.msra.mxu0 %v9523
        %9535 = vmatpush.bf16.msra.mxu0 %v9522
        %9536 = vmatpush.bf16.msra.mxu0 %v9521
        %9537 = vmatpush.bf16.msra.mxu0 %v9520
        %9538 = vmatpush.bf16.msra.mxu0 %v9519
        %9539 = vmatpush.bf16.msra.mxu0 %v9518
        %9540 = vmatpush.bf16.msra.mxu0 %v9517
        %9541 = vmatmul.bf16.gmra.mxu0 0
        %v9542 = vpop.f32.mrf.mxu0
        %v9543 = vadd.f32 %v9396, %v9542
        %v9544 = vpop.f32.mrf.mxu0
        %v9545 = vadd.f32 %v9398, %v9544
        %9546 = vmatmul.bf16.gmra.mxu0 %v9143
        %v9547 = vpop.f32.mrf.mxu0
        %v9548 = vadd.f32 %v9401, %v9547
        %v9549 = vpop.f32.mrf.mxu0
        %v9550 = vadd.f32 %v9403, %v9549
        %9551 = vmatmul.bf16.gmra.mxu0 %v8980
        %v9552 = vpop.f32.mrf.mxu0
        %v9553 = vadd.f32 %v9406, %v9552
        %v9554 = vpop.f32.mrf.mxu0
        %v9555 = vadd.f32 %v9408, %v9554
        %9556 = vmatmul.bf16.gmra.mxu0 %v8989
        %v9557 = vpop.f32.mrf.mxu0
        %v9558 = vadd.f32 %v9411, %v9557
        %v9559 = vpop.f32.mrf.mxu0
        %v9560 = vadd.f32 %v9413, %v9559
        %9561 = vmatmul.bf16.gmra.mxu0 %v8998
        %v9562 = vpop.f32.mrf.mxu0
        %v9563 = vadd.f32 %v9416, %v9562
        %v9564 = vpop.f32.mrf.mxu0
        %v9565 = vadd.f32 %v9418, %v9564
        %9566 = vmatmul.bf16.gmra.mxu0 %v9007
        %v9567 = vpop.f32.mrf.mxu0
        %v9568 = vadd.f32 %v9421, %v9567
        %v9569 = vpop.f32.mrf.mxu0
        %v9570 = vadd.f32 %v9423, %v9569
        %9571 = vmatmul.bf16.gmra.mxu0 %v9016
        %v9572 = vpop.f32.mrf.mxu0
        %v9573 = vadd.f32 %v9426, %v9572
        %v9574 = vpop.f32.mrf.mxu0
        %v9575 = vadd.f32 %v9428, %v9574
        %9576 = vmatmul.bf16.gmra.mxu0 %v9025
        %v9577 = vpop.f32.mrf.mxu0
        %v9578 = vadd.f32 %v9431, %v9577
        %v9579 = vpop.f32.mrf.mxu0
        %v9580 = vadd.f32 %v9433, %v9579
        %9581 = vmatmul.bf16.gmra.mxu0 %v9034
        %v9582 = vpop.f32.mrf.mxu0
        %v9583 = vadd.f32 %v9436, %v9582
        %v9584 = vpop.f32.mrf.mxu0
        %v9585 = vadd.f32 %v9438, %v9584
        %9586 = vmatmul.bf16.gmra.mxu0 %v9043
        %v9587 = vpop.f32.mrf.mxu0
        %v9588 = vadd.f32 %v9441, %v9587
        %v9589 = vpop.f32.mrf.mxu0
        %v9590 = vadd.f32 %v9443, %v9589
        %9591 = vmatmul.bf16.gmra.mxu0 %v9052
        %v9592 = vpop.f32.mrf.mxu0
        %v9593 = vadd.f32 %v9446, %v9592
        %v9594 = vpop.f32.mrf.mxu0
        %v9595 = vadd.f32 %v9448, %v9594
        %9596 = vmatmul.bf16.gmra.mxu0 %v9061
        %v9597 = vpop.f32.mrf.mxu0
        %v9598 = vadd.f32 %v9451, %v9597
        %v9599 = vpop.f32.mrf.mxu0
        %v9600 = vadd.f32 %v9453, %v9599
        %9601 = vmatmul.bf16.gmra.mxu0 %v9070
        %v9602 = vpop.f32.mrf.mxu0
        %v9603 = vadd.f32 %v9456, %v9602
        %v9604 = vpop.f32.mrf.mxu0
        %v9605 = vadd.f32 %v9458, %v9604
        %9606 = vmatmul.bf16.gmra.mxu0 %v9079
        %v9607 = vpop.f32.mrf.mxu0
        %v9608 = vadd.f32 %v9461, %v9607
        %v9609 = vpop.f32.mrf.mxu0
        %v9610 = vadd.f32 %v9463, %v9609
        %9611 = vmatmul.bf16.gmra.mxu0 %v9088
        %v9612 = vpop.f32.mrf.mxu0
        %v9613 = vadd.f32 %v9466, %v9612
        %v9614 = vpop.f32.mrf.mxu0
        %v9615 = vadd.f32 %v9468, %v9614
        %9616 = vmatmul.bf16.gmra.mxu0 %v9097
        %v9617 = vpop.f32.mrf.mxu0
        %v9618 = vadd.f32 %v9471, %v9617
        %v9619 = vpop.f32.mrf.mxu0
        %v9620 = vadd.f32 %v9473, %v9619
        %9621 = vmatmul.bf16.gmra.mxu0 %v9106
        %v9622 = vpop.f32.mrf.mxu0
        %v9623 = vadd.f32 %v9476, %v9622
        %v9624 = vpop.f32.mrf.mxu0
        %v9625 = vadd.f32 %v9478, %v9624
        %9626 = vmatmul.bf16.gmra.mxu0 %v9115
        %v9627 = vpop.f32.mrf.mxu0
        %v9628 = vadd.f32 %v9481, %v9627
        %v9629 = vpop.f32.mrf.mxu0
        %v9630 = vadd.f32 %v9483, %v9629
        %9631 = vdwg.mxu0
        %s9632 = scalar_lea.vmem %s14, 128
        %v9633 = vld [vmem:[%s9632] sm:$0xf]
        %v9634 = vld [vmem:[%s9632 + $0x4] sm:$0xf]
        %v9635 = vld [vmem:[%s9632 + $0x8] sm:$0xf]
        %v9636 = vld [vmem:[%s9632 + $0xc] sm:$0xf]
        %v9637 = vld [vmem:[%s9632 + $0x10] sm:$0xf]
        %v9638 = vld [vmem:[%s9632 + $0x14] sm:$0xf]
        %v9639 = vld [vmem:[%s9632 + $0x18] sm:$0xf]
        %v9640 = vld [vmem:[%s9632 + $0x1c] sm:$0xf]
        %v9641 = vld [vmem:[%s9632 + $0x20] sm:$0xf]
        %v9642 = vld [vmem:[%s9632 + $0x24] sm:$0xf]
        %v9643 = vld [vmem:[%s9632 + $0x28] sm:$0xf]
        %v9644 = vld [vmem:[%s9632 + $0x2c] sm:$0xf]
        %v9645 = vld [vmem:[%s9632 + $0x30] sm:$0xf]
        %v9646 = vld [vmem:[%s9632 + $0x34] sm:$0xf]
        %v9647 = vld [vmem:[%s9632 + $0x38] sm:$0xf]
        %v9648 = vld [vmem:[%s9632 + $0x3c] sm:$0xf]
        %v9650 = vrot.slane %v9143, 1
        %v9651 = vsel %vm3078, %v6295, %v9650
        %v9652 = vrot.slane %v8980, 1
        %v9653 = vsel %vm3078, %v9650, %v9652
        %v9654 = vrot.slane %v8989, 1
        %v9655 = vsel %vm3078, %v9652, %v9654
        %v9656 = vrot.slane %v8998, 1
        %v9657 = vsel %vm3078, %v9654, %v9656
        %v9658 = vrot.slane %v9007, 1
        %v9659 = vsel %vm3078, %v9656, %v9658
        %v9660 = vrot.slane %v9016, 1
        %v9661 = vsel %vm3078, %v9658, %v9660
        %v9662 = vrot.slane %v9025, 1
        %v9663 = vsel %vm3078, %v9660, %v9662
        %v9664 = vrot.slane %v9034, 1
        %v9665 = vsel %vm3078, %v9662, %v9664
        %v9666 = vrot.slane %v9043, 1
        %v9667 = vsel %vm3078, %v9664, %v9666
        %v9668 = vrot.slane %v9052, 1
        %v9669 = vsel %vm3078, %v9666, %v9668
        %v9670 = vrot.slane %v9061, 1
        %v9671 = vsel %vm3078, %v9668, %v9670
        %v9672 = vrot.slane %v9070, 1
        %v9673 = vsel %vm3078, %v9670, %v9672
        %v9674 = vrot.slane %v9079, 1
        %v9675 = vsel %vm3078, %v9672, %v9674
        %v9676 = vrot.slane %v9088, 1
        %v9677 = vsel %vm3078, %v9674, %v9676
        %v9678 = vrot.slane %v9097, 1
        %v9679 = vsel %vm3078, %v9676, %v9678
        %v9680 = vrot.slane %v9106, 1
        %v9681 = vsel %vm3078, %v9678, %v9680
        %v9682 = vrot.slane %v9115, 1
        %v9683 = vsel %vm3078, %v9680, %v9682
        %v9684 = vrot.slane %v9124, 1
        %v9685 = vsel %vm3078, %v9682, %v9684
        %v9720 = vunpack.c.l.b16 %v9633
        %v9721 = vunpack.c.l.b16 %v9634
        %v9722 = vunpack.c.l.b16 %v9635
        %v9723 = vunpack.c.l.b16 %v9636
        %v9724 = vunpack.c.l.b16 %v9637
        %v9725 = vunpack.c.l.b16 %v9638
        %v9726 = vunpack.c.l.b16 %v9639
        %v9727 = vunpack.c.l.b16 %v9640
        %v9728 = vunpack.c.l.b16 %v9641
        %v9729 = vunpack.c.l.b16 %v9642
        %v9730 = vunpack.c.l.b16 %v9643
        %v9731 = vunpack.c.l.b16 %v9644
        %v9732 = vunpack.c.l.b16 %v9645
        %v9733 = vunpack.c.l.b16 %v9646
        %v9734 = vunpack.c.l.b16 %v9647
        %v9735 = vunpack.c.l.b16 %v9648
        %v9736 = vpack.c.b16 %v9721, %v9720
        %v9737 = vpack.c.b16 %v9723, %v9722
        %v9738 = vpack.c.b16 %v9725, %v9724
        %v9739 = vpack.c.b16 %v9727, %v9726
        %v9740 = vpack.c.b16 %v9729, %v9728
        %v9741 = vpack.c.b16 %v9731, %v9730
        %v9742 = vpack.c.b16 %v9733, %v9732
        %v9743 = vpack.c.b16 %v9735, %v9734
        %9752 = vmatpush.bf16.msra.mxu0 %v9743
        %9753 = vmatpush.bf16.msra.mxu0 %v9742
        %9754 = vmatpush.bf16.msra.mxu0 %v9741
        %9755 = vmatpush.bf16.msra.mxu0 %v9740
        %9756 = vmatpush.bf16.msra.mxu0 %v9739
        %9757 = vmatpush.bf16.msra.mxu0 %v9738
        %9758 = vmatpush.bf16.msra.mxu0 %v9737
        %9759 = vmatpush.bf16.msra.mxu0 %v9736
        %9760 = vmatmul.bf16.gmra.mxu0 %v9651
        %v9761 = vpop.f32.mrf.mxu0
        %v9762 = vadd.f32 0.0, %v9761
        %v9763 = vpop.f32.mrf.mxu0
        %v9764 = vadd.f32 0.0, %v9763
        %9765 = vmatmul.bf16.gmra.mxu0 %v9653
        %v9766 = vpop.f32.mrf.mxu0
        %v9767 = vadd.f32 0.0, %v9766
        %v9768 = vpop.f32.mrf.mxu0
        %v9769 = vadd.f32 0.0, %v9768
        %9770 = vmatmul.bf16.gmra.mxu0 %v9655
        %v9771 = vpop.f32.mrf.mxu0
        %v9772 = vadd.f32 0.0, %v9771
        %v9773 = vpop.f32.mrf.mxu0
        %v9774 = vadd.f32 0.0, %v9773
        %9775 = vmatmul.bf16.gmra.mxu0 %v9657
        %v9776 = vpop.f32.mrf.mxu0
        %v9777 = vadd.f32 0.0, %v9776
        %v9778 = vpop.f32.mrf.mxu0
        %v9779 = vadd.f32 0.0, %v9778
        %9780 = vmatmul.bf16.gmra.mxu0 %v9659
        %v9781 = vpop.f32.mrf.mxu0
        %v9782 = vadd.f32 0.0, %v9781
        %v9783 = vpop.f32.mrf.mxu0
        %v9784 = vadd.f32 0.0, %v9783
        %9785 = vmatmul.bf16.gmra.mxu0 %v9661
        %v9786 = vpop.f32.mrf.mxu0
        %v9787 = vadd.f32 0.0, %v9786
        %v9788 = vpop.f32.mrf.mxu0
        %v9789 = vadd.f32 0.0, %v9788
        %9790 = vmatmul.bf16.gmra.mxu0 %v9663
        %v9791 = vpop.f32.mrf.mxu0
        %v9792 = vadd.f32 0.0, %v9791
        %v9793 = vpop.f32.mrf.mxu0
        %v9794 = vadd.f32 0.0, %v9793
        %9795 = vmatmul.bf16.gmra.mxu0 %v9665
        %v9796 = vpop.f32.mrf.mxu0
        %v9797 = vadd.f32 0.0, %v9796
        %v9798 = vpop.f32.mrf.mxu0
        %v9799 = vadd.f32 0.0, %v9798
        %9800 = vmatmul.bf16.gmra.mxu0 %v9667
        %v9801 = vpop.f32.mrf.mxu0
        %v9802 = vadd.f32 0.0, %v9801
        %v9803 = vpop.f32.mrf.mxu0
        %v9804 = vadd.f32 0.0, %v9803
        %9805 = vmatmul.bf16.gmra.mxu0 %v9669
        %v9806 = vpop.f32.mrf.mxu0
        %v9807 = vadd.f32 0.0, %v9806
        %v9808 = vpop.f32.mrf.mxu0
        %v9809 = vadd.f32 0.0, %v9808
        %9810 = vmatmul.bf16.gmra.mxu0 %v9671
        %v9811 = vpop.f32.mrf.mxu0
        %v9812 = vadd.f32 0.0, %v9811
        %v9813 = vpop.f32.mrf.mxu0
        %v9814 = vadd.f32 0.0, %v9813
        %9815 = vmatmul.bf16.gmra.mxu0 %v9673
        %v9816 = vpop.f32.mrf.mxu0
        %v9817 = vadd.f32 0.0, %v9816
        %v9818 = vpop.f32.mrf.mxu0
        %v9819 = vadd.f32 0.0, %v9818
        %9820 = vmatmul.bf16.gmra.mxu0 %v9675
        %v9821 = vpop.f32.mrf.mxu0
        %v9822 = vadd.f32 0.0, %v9821
        %v9823 = vpop.f32.mrf.mxu0
        %v9824 = vadd.f32 0.0, %v9823
        %9825 = vmatmul.bf16.gmra.mxu0 %v9677
        %v9826 = vpop.f32.mrf.mxu0
        %v9827 = vadd.f32 0.0, %v9826
        %v9828 = vpop.f32.mrf.mxu0
        %v9829 = vadd.f32 0.0, %v9828
        %9830 = vmatmul.bf16.gmra.mxu0 %v9679
        %v9831 = vpop.f32.mrf.mxu0
        %v9832 = vadd.f32 0.0, %v9831
        %v9833 = vpop.f32.mrf.mxu0
        %v9834 = vadd.f32 0.0, %v9833
        %9835 = vmatmul.bf16.gmra.mxu0 %v9681
        %v9836 = vpop.f32.mrf.mxu0
        %v9837 = vadd.f32 0.0, %v9836
        %v9838 = vpop.f32.mrf.mxu0
        %v9839 = vadd.f32 0.0, %v9838
        %9840 = vmatmul.bf16.gmra.mxu0 %v9683
        %v9841 = vpop.f32.mrf.mxu0
        %v9842 = vadd.f32 0.0, %v9841
        %v9843 = vpop.f32.mrf.mxu0
        %v9844 = vadd.f32 0.0, %v9843
        %9845 = vmatmul.bf16.gmra.mxu0 %v9685
        %v9846 = vpop.f32.mrf.mxu0
        %v9847 = vadd.f32 0.0, %v9846
        %v9848 = vpop.f32.mrf.mxu0
        %v9849 = vadd.f32 0.0, %v9848
        %9850 = vdwg.mxu0
        %v9851 = vadd.f32 %v9543, %v9762
        %v9852 = vadd.f32 %v9545, %v9764
        %v9853 = vadd.f32 %v9548, %v9767
        %v9854 = vadd.f32 %v9550, %v9769
        %v9855 = vadd.f32 %v9553, %v9772
        %v9856 = vadd.f32 %v9555, %v9774
        %v9857 = vadd.f32 %v9558, %v9777
        %v9858 = vadd.f32 %v9560, %v9779
        %v9859 = vadd.f32 %v9563, %v9782
        %v9860 = vadd.f32 %v9565, %v9784
        %v9861 = vadd.f32 %v9568, %v9787
        %v9862 = vadd.f32 %v9570, %v9789
        %v9863 = vadd.f32 %v9573, %v9792
        %v9864 = vadd.f32 %v9575, %v9794
        %v9865 = vadd.f32 %v9578, %v9797
        %v9866 = vadd.f32 %v9580, %v9799
        %v9867 = vadd.f32 %v9583, %v9802
        %v9868 = vadd.f32 %v9585, %v9804
        %v9869 = vadd.f32 %v9588, %v9807
        %v9870 = vadd.f32 %v9590, %v9809
        %v9871 = vadd.f32 %v9593, %v9812
        %v9872 = vadd.f32 %v9595, %v9814
        %v9873 = vadd.f32 %v9598, %v9817
        %v9874 = vadd.f32 %v9600, %v9819
        %v9875 = vadd.f32 %v9603, %v9822
        %v9876 = vadd.f32 %v9605, %v9824
        %v9877 = vadd.f32 %v9608, %v9827
        %v9878 = vadd.f32 %v9610, %v9829
        %v9879 = vadd.f32 %v9613, %v9832
        %v9880 = vadd.f32 %v9615, %v9834
        %v9881 = vadd.f32 %v9618, %v9837
        %v9882 = vadd.f32 %v9620, %v9839
        %v9883 = vadd.f32 %v9623, %v9842
        %v9884 = vadd.f32 %v9625, %v9844
        %v9885 = vadd.f32 %v9628, %v9847
        %v9886 = vadd.f32 %v9630, %v9849
        %s9887 = scalar_lea.vmem %s14, 192
        %v9888 = vld [vmem:[%s9887] sm:$0xf]
        %v9889 = vld [vmem:[%s9887 + $0x4] sm:$0xf]
        %v9890 = vld [vmem:[%s9887 + $0x8] sm:$0xf]
        %v9891 = vld [vmem:[%s9887 + $0xc] sm:$0xf]
        %v9892 = vld [vmem:[%s9887 + $0x10] sm:$0xf]
        %v9893 = vld [vmem:[%s9887 + $0x14] sm:$0xf]
        %v9894 = vld [vmem:[%s9887 + $0x18] sm:$0xf]
        %v9895 = vld [vmem:[%s9887 + $0x1c] sm:$0xf]
        %v9896 = vld [vmem:[%s9887 + $0x20] sm:$0xf]
        %v9897 = vld [vmem:[%s9887 + $0x24] sm:$0xf]
        %v9898 = vld [vmem:[%s9887 + $0x28] sm:$0xf]
        %v9899 = vld [vmem:[%s9887 + $0x2c] sm:$0xf]
        %v9900 = vld [vmem:[%s9887 + $0x30] sm:$0xf]
        %v9901 = vld [vmem:[%s9887 + $0x34] sm:$0xf]
        %v9902 = vld [vmem:[%s9887 + $0x38] sm:$0xf]
        %v9903 = vld [vmem:[%s9887 + $0x3c] sm:$0xf]
        %v9905 = vrot.slane %v9144, 1
        %v9906 = vsel %vm3078, %v9684, %v9905
        %v9924 = vunpack.c.l.b16 %v9888
        %v9925 = vunpack.c.l.b16 %v9889
        %v9926 = vunpack.c.l.b16 %v9890
        %v9927 = vunpack.c.l.b16 %v9891
        %v9928 = vunpack.c.l.b16 %v9892
        %v9929 = vunpack.c.l.b16 %v9893
        %v9930 = vunpack.c.l.b16 %v9894
        %v9931 = vunpack.c.l.b16 %v9895
        %v9932 = vunpack.c.l.b16 %v9896
        %v9933 = vunpack.c.l.b16 %v9897
        %v9934 = vunpack.c.l.b16 %v9898
        %v9935 = vunpack.c.l.b16 %v9899
        %v9936 = vunpack.c.l.b16 %v9900
        %v9937 = vunpack.c.l.b16 %v9901
        %v9938 = vunpack.c.l.b16 %v9902
        %v9939 = vunpack.c.l.b16 %v9903
        %v9940 = vpack.c.b16 %v9925, %v9924
        %v9941 = vpack.c.b16 %v9927, %v9926
        %v9942 = vpack.c.b16 %v9929, %v9928
        %v9943 = vpack.c.b16 %v9931, %v9930
        %v9944 = vpack.c.b16 %v9933, %v9932
        %v9945 = vpack.c.b16 %v9935, %v9934
        %v9946 = vpack.c.b16 %v9937, %v9936
        %v9947 = vpack.c.b16 %v9939, %v9938
        %9956 = vmatpush.bf16.msra.mxu0 %v9947
        %9957 = vmatpush.bf16.msra.mxu0 %v9946
        %9958 = vmatpush.bf16.msra.mxu0 %v9945
        %9959 = vmatpush.bf16.msra.mxu0 %v9944
        %9960 = vmatpush.bf16.msra.mxu0 %v9943
        %9961 = vmatpush.bf16.msra.mxu0 %v9942
        %9962 = vmatpush.bf16.msra.mxu0 %v9941
        %9963 = vmatpush.bf16.msra.mxu0 %v9940
        %9964 = vmatmul.bf16.gmra.mxu0 %v9653
        %v9965 = vpop.f32.mrf.mxu0
        %v9966 = vadd.f32 0.0, %v9965
        %v9967 = vpop.f32.mrf.mxu0
        %v9968 = vadd.f32 0.0, %v9967
        %9969 = vmatmul.bf16.gmra.mxu0 %v9655
        %v9970 = vpop.f32.mrf.mxu0
        %v9971 = vadd.f32 0.0, %v9970
        %v9972 = vpop.f32.mrf.mxu0
        %v9973 = vadd.f32 0.0, %v9972
        %9974 = vmatmul.bf16.gmra.mxu0 %v9657
        %v9975 = vpop.f32.mrf.mxu0
        %v9976 = vadd.f32 0.0, %v9975
        %v9977 = vpop.f32.mrf.mxu0
        %v9978 = vadd.f32 0.0, %v9977
        %9979 = vmatmul.bf16.gmra.mxu0 %v9659
        %v9980 = vpop.f32.mrf.mxu0
        %v9981 = vadd.f32 0.0, %v9980
        %v9982 = vpop.f32.mrf.mxu0
        %v9983 = vadd.f32 0.0, %v9982
        %9984 = vmatmul.bf16.gmra.mxu0 %v9661
        %v9985 = vpop.f32.mrf.mxu0
        %v9986 = vadd.f32 0.0, %v9985
        %v9987 = vpop.f32.mrf.mxu0
        %v9988 = vadd.f32 0.0, %v9987
        %9989 = vmatmul.bf16.gmra.mxu0 %v9663
        %v9990 = vpop.f32.mrf.mxu0
        %v9991 = vadd.f32 0.0, %v9990
        %v9992 = vpop.f32.mrf.mxu0
        %v9993 = vadd.f32 0.0, %v9992
        %9994 = vmatmul.bf16.gmra.mxu0 %v9665
        %v9995 = vpop.f32.mrf.mxu0
        %v9996 = vadd.f32 0.0, %v9995
        %v9997 = vpop.f32.mrf.mxu0
        %v9998 = vadd.f32 0.0, %v9997
        %9999 = vmatmul.bf16.gmra.mxu0 %v9667
        %v10000 = vpop.f32.mrf.mxu0
        %v10001 = vadd.f32 0.0, %v10000
        %v10002 = vpop.f32.mrf.mxu0
        %v10003 = vadd.f32 0.0, %v10002
        %10004 = vmatmul.bf16.gmra.mxu0 %v9669
        %v10005 = vpop.f32.mrf.mxu0
        %v10006 = vadd.f32 0.0, %v10005
        %v10007 = vpop.f32.mrf.mxu0
        %v10008 = vadd.f32 0.0, %v10007
        %10009 = vmatmul.bf16.gmra.mxu0 %v9671
        %v10010 = vpop.f32.mrf.mxu0
        %v10011 = vadd.f32 0.0, %v10010
        %v10012 = vpop.f32.mrf.mxu0
        %v10013 = vadd.f32 0.0, %v10012
        %10014 = vmatmul.bf16.gmra.mxu0 %v9673
        %v10015 = vpop.f32.mrf.mxu0
        %v10016 = vadd.f32 0.0, %v10015
        %v10017 = vpop.f32.mrf.mxu0
        %v10018 = vadd.f32 0.0, %v10017
        %10019 = vmatmul.bf16.gmra.mxu0 %v9675
        %v10020 = vpop.f32.mrf.mxu0
        %v10021 = vadd.f32 0.0, %v10020
        %v10022 = vpop.f32.mrf.mxu0
        %v10023 = vadd.f32 0.0, %v10022
        %10024 = vmatmul.bf16.gmra.mxu0 %v9677
        %v10025 = vpop.f32.mrf.mxu0
        %v10026 = vadd.f32 0.0, %v10025
        %v10027 = vpop.f32.mrf.mxu0
        %v10028 = vadd.f32 0.0, %v10027
        %10029 = vmatmul.bf16.gmra.mxu0 %v9679
        %v10030 = vpop.f32.mrf.mxu0
        %v10031 = vadd.f32 0.0, %v10030
        %v10032 = vpop.f32.mrf.mxu0
        %v10033 = vadd.f32 0.0, %v10032
        %10034 = vmatmul.bf16.gmra.mxu0 %v9681
        %v10035 = vpop.f32.mrf.mxu0
        %v10036 = vadd.f32 0.0, %v10035
        %v10037 = vpop.f32.mrf.mxu0
        %v10038 = vadd.f32 0.0, %v10037
        %10039 = vmatmul.bf16.gmra.mxu0 %v9683
        %v10040 = vpop.f32.mrf.mxu0
        %v10041 = vadd.f32 0.0, %v10040
        %v10042 = vpop.f32.mrf.mxu0
        %v10043 = vadd.f32 0.0, %v10042
        %10044 = vmatmul.bf16.gmra.mxu0 %v9685
        %v10045 = vpop.f32.mrf.mxu0
        %v10046 = vadd.f32 0.0, %v10045
        %v10047 = vpop.f32.mrf.mxu0
        %v10048 = vadd.f32 0.0, %v10047
        %10049 = vmatmul.bf16.gmra.mxu0 %v9906
        %v10050 = vpop.f32.mrf.mxu0
        %v10051 = vadd.f32 0.0, %v10050
        %v10052 = vpop.f32.mrf.mxu0
        %v10053 = vadd.f32 0.0, %v10052
        %10054 = vdwg.mxu0
        %v10055 = vadd.f32 %v9851, %v9966
        %v10056 = vadd.f32 %v9852, %v9968
        %v10057 = vadd.f32 %v9853, %v9971
        %v10058 = vadd.f32 %v9854, %v9973
        %v10059 = vadd.f32 %v9855, %v9976
        %v10060 = vadd.f32 %v9856, %v9978
        %v10061 = vadd.f32 %v9857, %v9981
        %v10062 = vadd.f32 %v9858, %v9983
        %v10063 = vadd.f32 %v9859, %v9986
        %v10064 = vadd.f32 %v9860, %v9988
        %v10065 = vadd.f32 %v9861, %v9991
        %v10066 = vadd.f32 %v9862, %v9993
        %v10067 = vadd.f32 %v9863, %v9996
        %v10068 = vadd.f32 %v9864, %v9998
        %v10069 = vadd.f32 %v9865, %v10001
        %v10070 = vadd.f32 %v9866, %v10003
        %v10071 = vadd.f32 %v9867, %v10006
        %v10072 = vadd.f32 %v9868, %v10008
        %v10073 = vadd.f32 %v9869, %v10011
        %v10074 = vadd.f32 %v9870, %v10013
        %v10075 = vadd.f32 %v9871, %v10016
        %v10076 = vadd.f32 %v9872, %v10018
        %v10077 = vadd.f32 %v9873, %v10021
        %v10078 = vadd.f32 %v9874, %v10023
        %v10079 = vadd.f32 %v9875, %v10026
        %v10080 = vadd.f32 %v9876, %v10028
        %v10081 = vadd.f32 %v9877, %v10031
        %v10082 = vadd.f32 %v9878, %v10033
        %v10083 = vadd.f32 %v9879, %v10036
        %v10084 = vadd.f32 %v9880, %v10038
        %v10085 = vadd.f32 %v9881, %v10041
        %v10086 = vadd.f32 %v9882, %v10043
        %v10087 = vadd.f32 %v9883, %v10046
        %v10088 = vadd.f32 %v9884, %v10048
        %v10089 = vadd.f32 %v9885, %v10051
        %v10090 = vadd.f32 %v9886, %v10053
        %s10091 = scalar_lea.vmem %s14, 256
        %v10092 = vld [vmem:[%s10091] sm:$0xf]
        %v10093 = vld [vmem:[%s10091 + $0x4] sm:$0xf]
        %v10094 = vld [vmem:[%s10091 + $0x8] sm:$0xf]
        %v10095 = vld [vmem:[%s10091 + $0xc] sm:$0xf]
        %v10096 = vld [vmem:[%s10091 + $0x10] sm:$0xf]
        %v10097 = vld [vmem:[%s10091 + $0x14] sm:$0xf]
        %v10098 = vld [vmem:[%s10091 + $0x18] sm:$0xf]
        %v10099 = vld [vmem:[%s10091 + $0x1c] sm:$0xf]
        %v10100 = vld [vmem:[%s10091 + $0x20] sm:$0xf]
        %v10101 = vld [vmem:[%s10091 + $0x24] sm:$0xf]
        %v10102 = vld [vmem:[%s10091 + $0x28] sm:$0xf]
        %v10103 = vld [vmem:[%s10091 + $0x2c] sm:$0xf]
        %v10104 = vld [vmem:[%s10091 + $0x30] sm:$0xf]
        %v10105 = vld [vmem:[%s10091 + $0x34] sm:$0xf]
        %v10106 = vld [vmem:[%s10091 + $0x38] sm:$0xf]
        %v10107 = vld [vmem:[%s10091 + $0x3c] sm:$0xf]
        %v10108 = vrot.slane %v9184, 1
        %v10109 = vrot.slane %v9180, 2
        %v10110 = vor.u32 %v10108, %v10109
        %v10111 = vrot.slane %v9192, 1
        %v10112 = vrot.slane %v9188, 2
        %v10113 = vor.u32 %v10111, %v10112
        %v10114 = vsel %vm3464, %v10110, %v10113
        %v10115 = vrot.slane %v9200, 1
        %v10116 = vrot.slane %v9196, 2
        %v10117 = vor.u32 %v10115, %v10116
        %v10118 = vsel %vm3464, %v10113, %v10117
        %v10119 = vrot.slane %v9208, 1
        %v10120 = vrot.slane %v9204, 2
        %v10121 = vor.u32 %v10119, %v10120
        %v10122 = vsel %vm3464, %v10117, %v10121
        %v10123 = vrot.slane %v9216, 1
        %v10124 = vrot.slane %v9212, 2
        %v10125 = vor.u32 %v10123, %v10124
        %v10126 = vsel %vm3464, %v10121, %v10125
        %v10127 = vrot.slane %v9224, 1
        %v10128 = vrot.slane %v9220, 2
        %v10129 = vor.u32 %v10127, %v10128
        %v10130 = vsel %vm3464, %v10125, %v10129
        %v10131 = vrot.slane %v9232, 1
        %v10132 = vrot.slane %v9228, 2
        %v10133 = vor.u32 %v10131, %v10132
        %v10134 = vsel %vm3464, %v10129, %v10133
        %v10135 = vrot.slane %v9240, 1
        %v10136 = vrot.slane %v9236, 2
        %v10137 = vor.u32 %v10135, %v10136
        %v10138 = vsel %vm3464, %v10133, %v10137
        %v10139 = vrot.slane %v9248, 1
        %v10140 = vrot.slane %v9244, 2
        %v10141 = vor.u32 %v10139, %v10140
        %v10142 = vsel %vm3464, %v10137, %v10141
        %v10143 = vrot.slane %v9256, 1
        %v10144 = vrot.slane %v9252, 2
        %v10145 = vor.u32 %v10143, %v10144
        %v10146 = vsel %vm3464, %v10141, %v10145
        %v10147 = vrot.slane %v9264, 1
        %v10148 = vrot.slane %v9260, 2
        %v10149 = vor.u32 %v10147, %v10148
        %v10150 = vsel %vm3464, %v10145, %v10149
        %v10151 = vrot.slane %v9272, 1
        %v10152 = vrot.slane %v9268, 2
        %v10153 = vor.u32 %v10151, %v10152
        %v10154 = vsel %vm3464, %v10149, %v10153
        %v10155 = vrot.slane %v9280, 1
        %v10156 = vrot.slane %v9276, 2
        %v10157 = vor.u32 %v10155, %v10156
        %v10158 = vsel %vm3464, %v10153, %v10157
        %v10159 = vrot.slane %v9288, 1
        %v10160 = vrot.slane %v9284, 2
        %v10161 = vor.u32 %v10159, %v10160
        %v10162 = vsel %vm3464, %v10157, %v10161
        %v10163 = vrot.slane %v9296, 1
        %v10164 = vrot.slane %v9292, 2
        %v10165 = vor.u32 %v10163, %v10164
        %v10166 = vsel %vm3464, %v10161, %v10165
        %v10167 = vrot.slane %v9304, 1
        %v10168 = vrot.slane %v9300, 2
        %v10169 = vor.u32 %v10167, %v10168
        %v10170 = vsel %vm3464, %v10165, %v10169
        %v10171 = vrot.slane %v9312, 1
        %v10172 = vrot.slane %v9308, 2
        %v10173 = vor.u32 %v10171, %v10172
        %v10174 = vsel %vm3464, %v10169, %v10173
        %v10175 = vshrl.u32 %v9124, 16
        %v10177 = vrot.slane %v10175, 1
        %v10178 = vrot.slane %v9316, 2
        %v10179 = vor.u32 %v10177, %v10178
        %v10180 = vsel %vm3464, %v10173, %v10179
        %v10182 = vshrl.u32 %v9144, 16
        %v10184 = vrot.slane %v10182, 1
        %v10185 = vshll.u32 %v9144, 16
        %v10187 = vrot.slane %v10185, 2
        %v10188 = vor.u32 %v10184, %v10187
        %v10189 = vsel %vm3464, %v10179, %v10188
        %v10224 = vunpack.c.l.b16 %v10092
        %v10225 = vunpack.c.l.b16 %v10093
        %v10226 = vunpack.c.l.b16 %v10094
        %v10227 = vunpack.c.l.b16 %v10095
        %v10228 = vunpack.c.l.b16 %v10096
        %v10229 = vunpack.c.l.b16 %v10097
        %v10230 = vunpack.c.l.b16 %v10098
        %v10231 = vunpack.c.l.b16 %v10099
        %v10232 = vunpack.c.l.b16 %v10100
        %v10233 = vunpack.c.l.b16 %v10101
        %v10234 = vunpack.c.l.b16 %v10102
        %v10235 = vunpack.c.l.b16 %v10103
        %v10236 = vunpack.c.l.b16 %v10104
        %v10237 = vunpack.c.l.b16 %v10105
        %v10238 = vunpack.c.l.b16 %v10106
        %v10239 = vunpack.c.l.b16 %v10107
        %v10240 = vpack.c.b16 %v10225, %v10224
        %v10241 = vpack.c.b16 %v10227, %v10226
        %v10242 = vpack.c.b16 %v10229, %v10228
        %v10243 = vpack.c.b16 %v10231, %v10230
        %v10244 = vpack.c.b16 %v10233, %v10232
        %v10245 = vpack.c.b16 %v10235, %v10234
        %v10246 = vpack.c.b16 %v10237, %v10236
        %v10247 = vpack.c.b16 %v10239, %v10238
        %10256 = vmatpush.bf16.msra.mxu0 %v10247
        %10257 = vmatpush.bf16.msra.mxu0 %v10246
        %10258 = vmatpush.bf16.msra.mxu0 %v10245
        %10259 = vmatpush.bf16.msra.mxu0 %v10244
        %10260 = vmatpush.bf16.msra.mxu0 %v10243
        %10261 = vmatpush.bf16.msra.mxu0 %v10242
        %10262 = vmatpush.bf16.msra.mxu0 %v10241
        %10263 = vmatpush.bf16.msra.mxu0 %v10240
        %10264 = vmatmul.bf16.gmra.mxu0 %v10114
        %v10265 = vpop.f32.mrf.mxu0
        %v10266 = vadd.f32 0.0, %v10265
        %v10267 = vpop.f32.mrf.mxu0
        %v10268 = vadd.f32 0.0, %v10267
        %10269 = vmatmul.bf16.gmra.mxu0 %v10118
        %v10270 = vpop.f32.mrf.mxu0
        %v10271 = vadd.f32 0.0, %v10270
        %v10272 = vpop.f32.mrf.mxu0
        %v10273 = vadd.f32 0.0, %v10272
        %10274 = vmatmul.bf16.gmra.mxu0 %v10122
        %v10275 = vpop.f32.mrf.mxu0
        %v10276 = vadd.f32 0.0, %v10275
        %v10277 = vpop.f32.mrf.mxu0
        %v10278 = vadd.f32 0.0, %v10277
        %10279 = vmatmul.bf16.gmra.mxu0 %v10126
        %v10280 = vpop.f32.mrf.mxu0
        %v10281 = vadd.f32 0.0, %v10280
        %v10282 = vpop.f32.mrf.mxu0
        %v10283 = vadd.f32 0.0, %v10282
        %10284 = vmatmul.bf16.gmra.mxu0 %v10130
        %v10285 = vpop.f32.mrf.mxu0
        %v10286 = vadd.f32 0.0, %v10285
        %v10287 = vpop.f32.mrf.mxu0
        %v10288 = vadd.f32 0.0, %v10287
        %10289 = vmatmul.bf16.gmra.mxu0 %v10134
        %v10290 = vpop.f32.mrf.mxu0
        %v10291 = vadd.f32 0.0, %v10290
        %v10292 = vpop.f32.mrf.mxu0
        %v10293 = vadd.f32 0.0, %v10292
        %10294 = vmatmul.bf16.gmra.mxu0 %v10138
        %v10295 = vpop.f32.mrf.mxu0
        %v10296 = vadd.f32 0.0, %v10295
        %v10297 = vpop.f32.mrf.mxu0
        %v10298 = vadd.f32 0.0, %v10297
        %10299 = vmatmul.bf16.gmra.mxu0 %v10142
        %v10300 = vpop.f32.mrf.mxu0
        %v10301 = vadd.f32 0.0, %v10300
        %v10302 = vpop.f32.mrf.mxu0
        %v10303 = vadd.f32 0.0, %v10302
        %10304 = vmatmul.bf16.gmra.mxu0 %v10146
        %v10305 = vpop.f32.mrf.mxu0
        %v10306 = vadd.f32 0.0, %v10305
        %v10307 = vpop.f32.mrf.mxu0
        %v10308 = vadd.f32 0.0, %v10307
        %10309 = vmatmul.bf16.gmra.mxu0 %v10150
        %v10310 = vpop.f32.mrf.mxu0
        %v10311 = vadd.f32 0.0, %v10310
        %v10312 = vpop.f32.mrf.mxu0
        %v10313 = vadd.f32 0.0, %v10312
        %10314 = vmatmul.bf16.gmra.mxu0 %v10154
        %v10315 = vpop.f32.mrf.mxu0
        %v10316 = vadd.f32 0.0, %v10315
        %v10317 = vpop.f32.mrf.mxu0
        %v10318 = vadd.f32 0.0, %v10317
        %10319 = vmatmul.bf16.gmra.mxu0 %v10158
        %v10320 = vpop.f32.mrf.mxu0
        %v10321 = vadd.f32 0.0, %v10320
        %v10322 = vpop.f32.mrf.mxu0
        %v10323 = vadd.f32 0.0, %v10322
        %10324 = vmatmul.bf16.gmra.mxu0 %v10162
        %v10325 = vpop.f32.mrf.mxu0
        %v10326 = vadd.f32 0.0, %v10325
        %v10327 = vpop.f32.mrf.mxu0
        %v10328 = vadd.f32 0.0, %v10327
        %10329 = vmatmul.bf16.gmra.mxu0 %v10166
        %v10330 = vpop.f32.mrf.mxu0
        %v10331 = vadd.f32 0.0, %v10330
        %v10332 = vpop.f32.mrf.mxu0
        %v10333 = vadd.f32 0.0, %v10332
        %10334 = vmatmul.bf16.gmra.mxu0 %v10170
        %v10335 = vpop.f32.mrf.mxu0
        %v10336 = vadd.f32 0.0, %v10335
        %v10337 = vpop.f32.mrf.mxu0
        %v10338 = vadd.f32 0.0, %v10337
        %10339 = vmatmul.bf16.gmra.mxu0 %v10174
        %v10340 = vpop.f32.mrf.mxu0
        %v10341 = vadd.f32 0.0, %v10340
        %v10342 = vpop.f32.mrf.mxu0
        %v10343 = vadd.f32 0.0, %v10342
        %10344 = vmatmul.bf16.gmra.mxu0 %v10180
        %v10345 = vpop.f32.mrf.mxu0
        %v10346 = vadd.f32 0.0, %v10345
        %v10347 = vpop.f32.mrf.mxu0
        %v10348 = vadd.f32 0.0, %v10347
        %10349 = vmatmul.bf16.gmra.mxu0 %v10189
        %v10350 = vpop.f32.mrf.mxu0
        %v10351 = vadd.f32 0.0, %v10350
        %v10352 = vpop.f32.mrf.mxu0
        %v10353 = vadd.f32 0.0, %v10352
        %10354 = vdwg.mxu0
        %v10355 = vadd.f32 %v10055, %v10266
        %v10356 = vadd.f32 %v10056, %v10268
        %v10357 = vadd.f32 %v10057, %v10271
        %v10358 = vadd.f32 %v10058, %v10273
        %v10359 = vadd.f32 %v10059, %v10276
        %v10360 = vadd.f32 %v10060, %v10278
        %v10361 = vadd.f32 %v10061, %v10281
        %v10362 = vadd.f32 %v10062, %v10283
        %v10363 = vadd.f32 %v10063, %v10286
        %v10364 = vadd.f32 %v10064, %v10288
        %v10365 = vadd.f32 %v10065, %v10291
        %v10366 = vadd.f32 %v10066, %v10293
        %v10367 = vadd.f32 %v10067, %v10296
        %v10368 = vadd.f32 %v10068, %v10298
        %v10369 = vadd.f32 %v10069, %v10301
        %v10370 = vadd.f32 %v10070, %v10303
        %v10371 = vadd.f32 %v10071, %v10306
        %v10372 = vadd.f32 %v10072, %v10308
        %v10373 = vadd.f32 %v10073, %v10311
        %v10374 = vadd.f32 %v10074, %v10313
        %v10375 = vadd.f32 %v10075, %v10316
        %v10376 = vadd.f32 %v10076, %v10318
        %v10377 = vadd.f32 %v10077, %v10321
        %v10378 = vadd.f32 %v10078, %v10323
        %v10379 = vadd.f32 %v10079, %v10326
        %v10380 = vadd.f32 %v10080, %v10328
        %v10381 = vadd.f32 %v10081, %v10331
        %v10382 = vadd.f32 %v10082, %v10333
        %v10383 = vadd.f32 %v10083, %v10336
        %v10384 = vadd.f32 %v10084, %v10338
        %v10385 = vadd.f32 %v10085, %v10341
        %v10386 = vadd.f32 %v10086, %v10343
        %v10387 = vadd.f32 %v10087, %v10346
        %v10388 = vadd.f32 %v10088, %v10348
        %v10389 = vadd.f32 %v10089, %v10351
        %v10390 = vadd.f32 %v10090, %v10353
        %s10391 = scalar_lea.vmem %s14, 320
        %v10392 = vld [vmem:[%s10391] sm:$0xf]
        %v10393 = vld [vmem:[%s10391 + $0x4] sm:$0xf]
        %v10394 = vld [vmem:[%s10391 + $0x8] sm:$0xf]
        %v10395 = vld [vmem:[%s10391 + $0xc] sm:$0xf]
        %v10396 = vld [vmem:[%s10391 + $0x10] sm:$0xf]
        %v10397 = vld [vmem:[%s10391 + $0x14] sm:$0xf]
        %v10398 = vld [vmem:[%s10391 + $0x18] sm:$0xf]
        %v10399 = vld [vmem:[%s10391 + $0x1c] sm:$0xf]
        %v10400 = vld [vmem:[%s10391 + $0x20] sm:$0xf]
        %v10401 = vld [vmem:[%s10391 + $0x24] sm:$0xf]
        %v10402 = vld [vmem:[%s10391 + $0x28] sm:$0xf]
        %v10403 = vld [vmem:[%s10391 + $0x2c] sm:$0xf]
        %v10404 = vld [vmem:[%s10391 + $0x30] sm:$0xf]
        %v10405 = vld [vmem:[%s10391 + $0x34] sm:$0xf]
        %v10406 = vld [vmem:[%s10391 + $0x38] sm:$0xf]
        %v10407 = vld [vmem:[%s10391 + $0x3c] sm:$0xf]
        %v10408 = vrot.slane %v9143, 2
        %v10409 = vrot.slane %v8980, 2
        %v10410 = vsel %vm3744, %v10408, %v10409
        %v10411 = vrot.slane %v8989, 2
        %v10412 = vsel %vm3744, %v10409, %v10411
        %v10413 = vrot.slane %v8998, 2
        %v10414 = vsel %vm3744, %v10411, %v10413
        %v10415 = vrot.slane %v9007, 2
        %v10416 = vsel %vm3744, %v10413, %v10415
        %v10417 = vrot.slane %v9016, 2
        %v10418 = vsel %vm3744, %v10415, %v10417
        %v10419 = vrot.slane %v9025, 2
        %v10420 = vsel %vm3744, %v10417, %v10419
        %v10421 = vrot.slane %v9034, 2
        %v10422 = vsel %vm3744, %v10419, %v10421
        %v10423 = vrot.slane %v9043, 2
        %v10424 = vsel %vm3744, %v10421, %v10423
        %v10425 = vrot.slane %v9052, 2
        %v10426 = vsel %vm3744, %v10423, %v10425
        %v10427 = vrot.slane %v9061, 2
        %v10428 = vsel %vm3744, %v10425, %v10427
        %v10429 = vrot.slane %v9070, 2
        %v10430 = vsel %vm3744, %v10427, %v10429
        %v10431 = vrot.slane %v9079, 2
        %v10432 = vsel %vm3744, %v10429, %v10431
        %v10433 = vrot.slane %v9088, 2
        %v10434 = vsel %vm3744, %v10431, %v10433
        %v10435 = vrot.slane %v9097, 2
        %v10436 = vsel %vm3744, %v10433, %v10435
        %v10437 = vrot.slane %v9106, 2
        %v10438 = vsel %vm3744, %v10435, %v10437
        %v10439 = vrot.slane %v9115, 2
        %v10440 = vsel %vm3744, %v10437, %v10439
        %v10441 = vrot.slane %v9124, 2
        %v10442 = vsel %vm3744, %v10439, %v10441
        %v10443 = vrot.slane %v9144, 2
        %v10444 = vsel %vm3744, %v10441, %v10443
        %v10479 = vunpack.c.l.b16 %v10392
        %v10480 = vunpack.c.l.b16 %v10393
        %v10481 = vunpack.c.l.b16 %v10394
        %v10482 = vunpack.c.l.b16 %v10395
        %v10483 = vunpack.c.l.b16 %v10396
        %v10484 = vunpack.c.l.b16 %v10397
        %v10485 = vunpack.c.l.b16 %v10398
        %v10486 = vunpack.c.l.b16 %v10399
        %v10487 = vunpack.c.l.b16 %v10400
        %v10488 = vunpack.c.l.b16 %v10401
        %v10489 = vunpack.c.l.b16 %v10402
        %v10490 = vunpack.c.l.b16 %v10403
        %v10491 = vunpack.c.l.b16 %v10404
        %v10492 = vunpack.c.l.b16 %v10405
        %v10493 = vunpack.c.l.b16 %v10406
        %v10494 = vunpack.c.l.b16 %v10407
        %v10495 = vpack.c.b16 %v10480, %v10479
        %v10496 = vpack.c.b16 %v10482, %v10481
        %v10497 = vpack.c.b16 %v10484, %v10483
        %v10498 = vpack.c.b16 %v10486, %v10485
        %v10499 = vpack.c.b16 %v10488, %v10487
        %v10500 = vpack.c.b16 %v10490, %v10489
        %v10501 = vpack.c.b16 %v10492, %v10491
        %v10502 = vpack.c.b16 %v10494, %v10493
        %10511 = vmatpush.bf16.msra.mxu0 %v10502
        %10512 = vmatpush.bf16.msra.mxu0 %v10501
        %10513 = vmatpush.bf16.msra.mxu0 %v10500
        %10514 = vmatpush.bf16.msra.mxu0 %v10499
        %10515 = vmatpush.bf16.msra.mxu0 %v10498
        %10516 = vmatpush.bf16.msra.mxu0 %v10497
        %10517 = vmatpush.bf16.msra.mxu0 %v10496
        %10518 = vmatpush.bf16.msra.mxu0 %v10495
        %10519 = vmatmul.bf16.gmra.mxu0 %v10410
        %v10520 = vpop.f32.mrf.mxu0
        %v10521 = vadd.f32 0.0, %v10520
        %v10522 = vpop.f32.mrf.mxu0
        %v10523 = vadd.f32 0.0, %v10522
        %10524 = vmatmul.bf16.gmra.mxu0 %v10412
        %v10525 = vpop.f32.mrf.mxu0
        %v10526 = vadd.f32 0.0, %v10525
        %v10527 = vpop.f32.mrf.mxu0
        %v10528 = vadd.f32 0.0, %v10527
        %10529 = vmatmul.bf16.gmra.mxu0 %v10414
        %v10530 = vpop.f32.mrf.mxu0
        %v10531 = vadd.f32 0.0, %v10530
        %v10532 = vpop.f32.mrf.mxu0
        %v10533 = vadd.f32 0.0, %v10532
        %10534 = vmatmul.bf16.gmra.mxu0 %v10416
        %v10535 = vpop.f32.mrf.mxu0
        %v10536 = vadd.f32 0.0, %v10535
        %v10537 = vpop.f32.mrf.mxu0
        %v10538 = vadd.f32 0.0, %v10537
        %10539 = vmatmul.bf16.gmra.mxu0 %v10418
        %v10540 = vpop.f32.mrf.mxu0
        %v10541 = vadd.f32 0.0, %v10540
        %v10542 = vpop.f32.mrf.mxu0
        %v10543 = vadd.f32 0.0, %v10542
        %10544 = vmatmul.bf16.gmra.mxu0 %v10420
        %v10545 = vpop.f32.mrf.mxu0
        %v10546 = vadd.f32 0.0, %v10545
        %v10547 = vpop.f32.mrf.mxu0
        %v10548 = vadd.f32 0.0, %v10547
        %10549 = vmatmul.bf16.gmra.mxu0 %v10422
        %v10550 = vpop.f32.mrf.mxu0
        %v10551 = vadd.f32 0.0, %v10550
        %v10552 = vpop.f32.mrf.mxu0
        %v10553 = vadd.f32 0.0, %v10552
        %10554 = vmatmul.bf16.gmra.mxu0 %v10424
        %v10555 = vpop.f32.mrf.mxu0
        %v10556 = vadd.f32 0.0, %v10555
        %v10557 = vpop.f32.mrf.mxu0
        %v10558 = vadd.f32 0.0, %v10557
        %10559 = vmatmul.bf16.gmra.mxu0 %v10426
        %v10560 = vpop.f32.mrf.mxu0
        %v10561 = vadd.f32 0.0, %v10560
        %v10562 = vpop.f32.mrf.mxu0
        %v10563 = vadd.f32 0.0, %v10562
        %10564 = vmatmul.bf16.gmra.mxu0 %v10428
        %v10565 = vpop.f32.mrf.mxu0
        %v10566 = vadd.f32 0.0, %v10565
        %v10567 = vpop.f32.mrf.mxu0
        %v10568 = vadd.f32 0.0, %v10567
        %10569 = vmatmul.bf16.gmra.mxu0 %v10430
        %v10570 = vpop.f32.mrf.mxu0
        %v10571 = vadd.f32 0.0, %v10570
        %v10572 = vpop.f32.mrf.mxu0
        %v10573 = vadd.f32 0.0, %v10572
        %10574 = vmatmul.bf16.gmra.mxu0 %v10432
        %v10575 = vpop.f32.mrf.mxu0
        %v10576 = vadd.f32 0.0, %v10575
        %v10577 = vpop.f32.mrf.mxu0
        %v10578 = vadd.f32 0.0, %v10577
        %10579 = vmatmul.bf16.gmra.mxu0 %v10434
        %v10580 = vpop.f32.mrf.mxu0
        %v10581 = vadd.f32 0.0, %v10580
        %v10582 = vpop.f32.mrf.mxu0
        %v10583 = vadd.f32 0.0, %v10582
        %10584 = vmatmul.bf16.gmra.mxu0 %v10436
        %v10585 = vpop.f32.mrf.mxu0
        %v10586 = vadd.f32 0.0, %v10585
        %v10587 = vpop.f32.mrf.mxu0
        %v10588 = vadd.f32 0.0, %v10587
        %10589 = vmatmul.bf16.gmra.mxu0 %v10438
        %v10590 = vpop.f32.mrf.mxu0
        %v10591 = vadd.f32 0.0, %v10590
        %v10592 = vpop.f32.mrf.mxu0
        %v10593 = vadd.f32 0.0, %v10592
        %10594 = vmatmul.bf16.gmra.mxu0 %v10440
        %v10595 = vpop.f32.mrf.mxu0
        %v10596 = vadd.f32 0.0, %v10595
        %v10597 = vpop.f32.mrf.mxu0
        %v10598 = vadd.f32 0.0, %v10597
        %10599 = vmatmul.bf16.gmra.mxu0 %v10442
        %v10600 = vpop.f32.mrf.mxu0
        %v10601 = vadd.f32 0.0, %v10600
        %v10602 = vpop.f32.mrf.mxu0
        %v10603 = vadd.f32 0.0, %v10602
        %10604 = vmatmul.bf16.gmra.mxu0 %v10444
        %v10605 = vpop.f32.mrf.mxu0
        %v10606 = vadd.f32 0.0, %v10605
        %v10607 = vpop.f32.mrf.mxu0
        %v10608 = vadd.f32 0.0, %v10607
        %10609 = vdwg.mxu0
        %v10610 = vadd.f32 %v10355, %v10521
        %v10611 = vadd.f32 %v10356, %v10523
        %v10612 = vadd.f32 %v10357, %v10526
        %v10613 = vadd.f32 %v10358, %v10528
        %v10614 = vadd.f32 %v10359, %v10531
        %v10615 = vadd.f32 %v10360, %v10533
        %v10616 = vadd.f32 %v10361, %v10536
        %v10617 = vadd.f32 %v10362, %v10538
        %v10618 = vadd.f32 %v10363, %v10541
        %v10619 = vadd.f32 %v10364, %v10543
        %v10620 = vadd.f32 %v10365, %v10546
        %v10621 = vadd.f32 %v10366, %v10548
        %v10622 = vadd.f32 %v10367, %v10551
        %v10623 = vadd.f32 %v10368, %v10553
        %v10624 = vadd.f32 %v10369, %v10556
        %v10625 = vadd.f32 %v10370, %v10558
        %v10626 = vadd.f32 %v10371, %v10561
        %v10627 = vadd.f32 %v10372, %v10563
        %v10628 = vadd.f32 %v10373, %v10566
        %v10629 = vadd.f32 %v10374, %v10568
        %v10630 = vadd.f32 %v10375, %v10571
        %v10631 = vadd.f32 %v10376, %v10573
        %v10632 = vadd.f32 %v10377, %v10576
        %v10633 = vadd.f32 %v10378, %v10578
        %v10634 = vadd.f32 %v10379, %v10581
        %v10635 = vadd.f32 %v10380, %v10583
        %v10636 = vadd.f32 %v10381, %v10586
        %v10637 = vadd.f32 %v10382, %v10588
        %v10638 = vadd.f32 %v10383, %v10591
        %v10639 = vadd.f32 %v10384, %v10593
        %v10640 = vadd.f32 %v10385, %v10596
        %v10641 = vadd.f32 %v10386, %v10598
        %v10642 = vadd.f32 %v10387, %v10601
        %v10643 = vadd.f32 %v10388, %v10603
        %v10644 = vadd.f32 %v10389, %v10606
        %v10645 = vadd.f32 %v10390, %v10608
        %s10646 = scalar_lea.vmem %s14, 384
        %v10647 = vld [vmem:[%s10646] sm:$0xf]
        %v10648 = vld [vmem:[%s10646 + $0x4] sm:$0xf]
        %v10649 = vld [vmem:[%s10646 + $0x8] sm:$0xf]
        %v10650 = vld [vmem:[%s10646 + $0xc] sm:$0xf]
        %v10651 = vld [vmem:[%s10646 + $0x10] sm:$0xf]
        %v10652 = vld [vmem:[%s10646 + $0x14] sm:$0xf]
        %v10653 = vld [vmem:[%s10646 + $0x18] sm:$0xf]
        %v10654 = vld [vmem:[%s10646 + $0x1c] sm:$0xf]
        %v10655 = vld [vmem:[%s10646 + $0x20] sm:$0xf]
        %v10656 = vld [vmem:[%s10646 + $0x24] sm:$0xf]
        %v10657 = vld [vmem:[%s10646 + $0x28] sm:$0xf]
        %v10658 = vld [vmem:[%s10646 + $0x2c] sm:$0xf]
        %v10659 = vld [vmem:[%s10646 + $0x30] sm:$0xf]
        %v10660 = vld [vmem:[%s10646 + $0x34] sm:$0xf]
        %v10661 = vld [vmem:[%s10646 + $0x38] sm:$0xf]
        %v10662 = vld [vmem:[%s10646 + $0x3c] sm:$0xf]
        %v10663 = vsel %vm3744, %v10443, %v7309
        %v10681 = vunpack.c.l.b16 %v10647
        %v10682 = vunpack.c.l.b16 %v10648
        %v10683 = vunpack.c.l.b16 %v10649
        %v10684 = vunpack.c.l.b16 %v10650
        %v10685 = vunpack.c.l.b16 %v10651
        %v10686 = vunpack.c.l.b16 %v10652
        %v10687 = vunpack.c.l.b16 %v10653
        %v10688 = vunpack.c.l.b16 %v10654
        %v10689 = vunpack.c.l.b16 %v10655
        %v10690 = vunpack.c.l.b16 %v10656
        %v10691 = vunpack.c.l.b16 %v10657
        %v10692 = vunpack.c.l.b16 %v10658
        %v10693 = vunpack.c.l.b16 %v10659
        %v10694 = vunpack.c.l.b16 %v10660
        %v10695 = vunpack.c.l.b16 %v10661
        %v10696 = vunpack.c.l.b16 %v10662
        %v10697 = vpack.c.b16 %v10682, %v10681
        %v10698 = vpack.c.b16 %v10684, %v10683
        %v10699 = vpack.c.b16 %v10686, %v10685
        %v10700 = vpack.c.b16 %v10688, %v10687
        %v10701 = vpack.c.b16 %v10690, %v10689
        %v10702 = vpack.c.b16 %v10692, %v10691
        %v10703 = vpack.c.b16 %v10694, %v10693
        %v10704 = vpack.c.b16 %v10696, %v10695
        %10713 = vmatpush.bf16.msra.mxu0 %v10704
        %10714 = vmatpush.bf16.msra.mxu0 %v10703
        %10715 = vmatpush.bf16.msra.mxu0 %v10702
        %10716 = vmatpush.bf16.msra.mxu0 %v10701
        %10717 = vmatpush.bf16.msra.mxu0 %v10700
        %10718 = vmatpush.bf16.msra.mxu0 %v10699
        %10719 = vmatpush.bf16.msra.mxu0 %v10698
        %10720 = vmatpush.bf16.msra.mxu0 %v10697
        %10721 = vmatmul.bf16.gmra.mxu0 %v10412
        %v10722 = vpop.f32.mrf.mxu0
        %v10723 = vadd.f32 0.0, %v10722
        %v10724 = vpop.f32.mrf.mxu0
        %v10725 = vadd.f32 0.0, %v10724
        %10726 = vmatmul.bf16.gmra.mxu0 %v10414
        %v10727 = vpop.f32.mrf.mxu0
        %v10728 = vadd.f32 0.0, %v10727
        %v10729 = vpop.f32.mrf.mxu0
        %v10730 = vadd.f32 0.0, %v10729
        %10731 = vmatmul.bf16.gmra.mxu0 %v10416
        %v10732 = vpop.f32.mrf.mxu0
        %v10733 = vadd.f32 0.0, %v10732
        %v10734 = vpop.f32.mrf.mxu0
        %v10735 = vadd.f32 0.0, %v10734
        %10736 = vmatmul.bf16.gmra.mxu0 %v10418
        %v10737 = vpop.f32.mrf.mxu0
        %v10738 = vadd.f32 0.0, %v10737
        %v10739 = vpop.f32.mrf.mxu0
        %v10740 = vadd.f32 0.0, %v10739
        %10741 = vmatmul.bf16.gmra.mxu0 %v10420
        %v10742 = vpop.f32.mrf.mxu0
        %v10743 = vadd.f32 0.0, %v10742
        %v10744 = vpop.f32.mrf.mxu0
        %v10745 = vadd.f32 0.0, %v10744
        %10746 = vmatmul.bf16.gmra.mxu0 %v10422
        %v10747 = vpop.f32.mrf.mxu0
        %v10748 = vadd.f32 0.0, %v10747
        %v10749 = vpop.f32.mrf.mxu0
        %v10750 = vadd.f32 0.0, %v10749
        %10751 = vmatmul.bf16.gmra.mxu0 %v10424
        %v10752 = vpop.f32.mrf.mxu0
        %v10753 = vadd.f32 0.0, %v10752
        %v10754 = vpop.f32.mrf.mxu0
        %v10755 = vadd.f32 0.0, %v10754
        %10756 = vmatmul.bf16.gmra.mxu0 %v10426
        %v10757 = vpop.f32.mrf.mxu0
        %v10758 = vadd.f32 0.0, %v10757
        %v10759 = vpop.f32.mrf.mxu0
        %v10760 = vadd.f32 0.0, %v10759
        %10761 = vmatmul.bf16.gmra.mxu0 %v10428
        %v10762 = vpop.f32.mrf.mxu0
        %v10763 = vadd.f32 0.0, %v10762
        %v10764 = vpop.f32.mrf.mxu0
        %v10765 = vadd.f32 0.0, %v10764
        %10766 = vmatmul.bf16.gmra.mxu0 %v10430
        %v10767 = vpop.f32.mrf.mxu0
        %v10768 = vadd.f32 0.0, %v10767
        %v10769 = vpop.f32.mrf.mxu0
        %v10770 = vadd.f32 0.0, %v10769
        %10771 = vmatmul.bf16.gmra.mxu0 %v10432
        %v10772 = vpop.f32.mrf.mxu0
        %v10773 = vadd.f32 0.0, %v10772
        %v10774 = vpop.f32.mrf.mxu0
        %v10775 = vadd.f32 0.0, %v10774
        %10776 = vmatmul.bf16.gmra.mxu0 %v10434
        %v10777 = vpop.f32.mrf.mxu0
        %v10778 = vadd.f32 0.0, %v10777
        %v10779 = vpop.f32.mrf.mxu0
        %v10780 = vadd.f32 0.0, %v10779
        %10781 = vmatmul.bf16.gmra.mxu0 %v10436
        %v10782 = vpop.f32.mrf.mxu0
        %v10783 = vadd.f32 0.0, %v10782
        %v10784 = vpop.f32.mrf.mxu0
        %v10785 = vadd.f32 0.0, %v10784
        %10786 = vmatmul.bf16.gmra.mxu0 %v10438
        %v10787 = vpop.f32.mrf.mxu0
        %v10788 = vadd.f32 0.0, %v10787
        %v10789 = vpop.f32.mrf.mxu0
        %v10790 = vadd.f32 0.0, %v10789
        %10791 = vmatmul.bf16.gmra.mxu0 %v10440
        %v10792 = vpop.f32.mrf.mxu0
        %v10793 = vadd.f32 0.0, %v10792
        %v10794 = vpop.f32.mrf.mxu0
        %v10795 = vadd.f32 0.0, %v10794
        %10796 = vmatmul.bf16.gmra.mxu0 %v10442
        %v10797 = vpop.f32.mrf.mxu0
        %v10798 = vadd.f32 0.0, %v10797
        %v10799 = vpop.f32.mrf.mxu0
        %v10800 = vadd.f32 0.0, %v10799
        %10801 = vmatmul.bf16.gmra.mxu0 %v10444
        %v10802 = vpop.f32.mrf.mxu0
        %v10803 = vadd.f32 0.0, %v10802
        %v10804 = vpop.f32.mrf.mxu0
        %v10805 = vadd.f32 0.0, %v10804
        %10806 = vmatmul.bf16.gmra.mxu0 %v10663
        %v10807 = vpop.f32.mrf.mxu0
        %v10808 = vadd.f32 0.0, %v10807
        %v10809 = vpop.f32.mrf.mxu0
        %v10810 = vadd.f32 0.0, %v10809
        %10811 = vdwg.mxu0
        %v10812 = vadd.f32 %v10610, %v10723
        %v10813 = vadd.f32 %v10611, %v10725
        %v10814 = vadd.f32 %v10612, %v10728
        %v10815 = vadd.f32 %v10613, %v10730
        %v10816 = vadd.f32 %v10614, %v10733
        %v10817 = vadd.f32 %v10615, %v10735
        %v10818 = vadd.f32 %v10616, %v10738
        %v10819 = vadd.f32 %v10617, %v10740
        %v10820 = vadd.f32 %v10618, %v10743
        %v10821 = vadd.f32 %v10619, %v10745
        %v10822 = vadd.f32 %v10620, %v10748
        %v10823 = vadd.f32 %v10621, %v10750
        %v10824 = vadd.f32 %v10622, %v10753
        %v10825 = vadd.f32 %v10623, %v10755
        %v10826 = vadd.f32 %v10624, %v10758
        %v10827 = vadd.f32 %v10625, %v10760
        %v10828 = vadd.f32 %v10626, %v10763
        %v10829 = vadd.f32 %v10627, %v10765
        %v10830 = vadd.f32 %v10628, %v10768
        %v10831 = vadd.f32 %v10629, %v10770
        %v10832 = vadd.f32 %v10630, %v10773
        %v10833 = vadd.f32 %v10631, %v10775
        %v10834 = vadd.f32 %v10632, %v10778
        %v10835 = vadd.f32 %v10633, %v10780
        %v10836 = vadd.f32 %v10634, %v10783
        %v10837 = vadd.f32 %v10635, %v10785
        %v10838 = vadd.f32 %v10636, %v10788
        %v10839 = vadd.f32 %v10637, %v10790
        %v10840 = vadd.f32 %v10638, %v10793
        %v10841 = vadd.f32 %v10639, %v10795
        %v10842 = vadd.f32 %v10640, %v10798
        %v10843 = vadd.f32 %v10641, %v10800
        %v10844 = vadd.f32 %v10642, %v10803
        %v10845 = vadd.f32 %v10643, %v10805
        %v10846 = vadd.f32 %v10644, %v10808
        %v10847 = vadd.f32 %v10645, %v10810
        %s10848 = scalar_lea.vmem %s14, 448
        %v10849 = vld [vmem:[%s10848] sm:$0xf]
        %v10850 = vld [vmem:[%s10848 + $0x4] sm:$0xf]
        %v10851 = vld [vmem:[%s10848 + $0x8] sm:$0xf]
        %v10852 = vld [vmem:[%s10848 + $0xc] sm:$0xf]
        %v10853 = vld [vmem:[%s10848 + $0x10] sm:$0xf]
        %v10854 = vld [vmem:[%s10848 + $0x14] sm:$0xf]
        %v10855 = vld [vmem:[%s10848 + $0x18] sm:$0xf]
        %v10856 = vld [vmem:[%s10848 + $0x1c] sm:$0xf]
        %v10857 = vld [vmem:[%s10848 + $0x20] sm:$0xf]
        %v10858 = vld [vmem:[%s10848 + $0x24] sm:$0xf]
        %v10859 = vld [vmem:[%s10848 + $0x28] sm:$0xf]
        %v10860 = vld [vmem:[%s10848 + $0x2c] sm:$0xf]
        %v10861 = vld [vmem:[%s10848 + $0x30] sm:$0xf]
        %v10862 = vld [vmem:[%s10848 + $0x34] sm:$0xf]
        %v10863 = vld [vmem:[%s10848 + $0x38] sm:$0xf]
        %v10864 = vld [vmem:[%s10848 + $0x3c] sm:$0xf]
        %v10865 = vrot.slane %v9192, 2
        %v10866 = vrot.slane %v9188, 3
        %v10867 = vor.u32 %v10865, %v10866
        %v10868 = vrot.slane %v9200, 2
        %v10869 = vrot.slane %v9196, 3
        %v10870 = vor.u32 %v10868, %v10869
        %v10871 = vsel %vm4130, %v10867, %v10870
        %v10872 = vrot.slane %v9208, 2
        %v10873 = vrot.slane %v9204, 3
        %v10874 = vor.u32 %v10872, %v10873
        %v10875 = vsel %vm4130, %v10870, %v10874
        %v10876 = vrot.slane %v9216, 2
        %v10877 = vrot.slane %v9212, 3
        %v10878 = vor.u32 %v10876, %v10877
        %v10879 = vsel %vm4130, %v10874, %v10878
        %v10880 = vrot.slane %v9224, 2
        %v10881 = vrot.slane %v9220, 3
        %v10882 = vor.u32 %v10880, %v10881
        %v10883 = vsel %vm4130, %v10878, %v10882
        %v10884 = vrot.slane %v9232, 2
        %v10885 = vrot.slane %v9228, 3
        %v10886 = vor.u32 %v10884, %v10885
        %v10887 = vsel %vm4130, %v10882, %v10886
        %v10888 = vrot.slane %v9240, 2
        %v10889 = vrot.slane %v9236, 3
        %v10890 = vor.u32 %v10888, %v10889
        %v10891 = vsel %vm4130, %v10886, %v10890
        %v10892 = vrot.slane %v9248, 2
        %v10893 = vrot.slane %v9244, 3
        %v10894 = vor.u32 %v10892, %v10893
        %v10895 = vsel %vm4130, %v10890, %v10894
        %v10896 = vrot.slane %v9256, 2
        %v10897 = vrot.slane %v9252, 3
        %v10898 = vor.u32 %v10896, %v10897
        %v10899 = vsel %vm4130, %v10894, %v10898
        %v10900 = vrot.slane %v9264, 2
        %v10901 = vrot.slane %v9260, 3
        %v10902 = vor.u32 %v10900, %v10901
        %v10903 = vsel %vm4130, %v10898, %v10902
        %v10904 = vrot.slane %v9272, 2
        %v10905 = vrot.slane %v9268, 3
        %v10906 = vor.u32 %v10904, %v10905
        %v10907 = vsel %vm4130, %v10902, %v10906
        %v10908 = vrot.slane %v9280, 2
        %v10909 = vrot.slane %v9276, 3
        %v10910 = vor.u32 %v10908, %v10909
        %v10911 = vsel %vm4130, %v10906, %v10910
        %v10912 = vrot.slane %v9288, 2
        %v10913 = vrot.slane %v9284, 3
        %v10914 = vor.u32 %v10912, %v10913
        %v10915 = vsel %vm4130, %v10910, %v10914
        %v10916 = vrot.slane %v9296, 2
        %v10917 = vrot.slane %v9292, 3
        %v10918 = vor.u32 %v10916, %v10917
        %v10919 = vsel %vm4130, %v10914, %v10918
        %v10920 = vrot.slane %v9304, 2
        %v10921 = vrot.slane %v9300, 3
        %v10922 = vor.u32 %v10920, %v10921
        %v10923 = vsel %vm4130, %v10918, %v10922
        %v10924 = vrot.slane %v9312, 2
        %v10925 = vrot.slane %v9308, 3
        %v10926 = vor.u32 %v10924, %v10925
        %v10927 = vsel %vm4130, %v10922, %v10926
        %v10928 = vrot.slane %v10175, 2
        %v10929 = vrot.slane %v9316, 3
        %v10930 = vor.u32 %v10928, %v10929
        %v10931 = vsel %vm4130, %v10926, %v10930
        %v10932 = vrot.slane %v10182, 2
        %v10933 = vrot.slane %v10185, 3
        %v10934 = vor.u32 %v10932, %v10933
        %v10935 = vsel %vm4130, %v10930, %v10934
        %v10936 = vsel %vm4130, %v10934, %v7585
        %v10971 = vunpack.c.l.b16 %v10849
        %v10972 = vunpack.c.l.b16 %v10850
        %v10973 = vunpack.c.l.b16 %v10851
        %v10974 = vunpack.c.l.b16 %v10852
        %v10975 = vunpack.c.l.b16 %v10853
        %v10976 = vunpack.c.l.b16 %v10854
        %v10977 = vunpack.c.l.b16 %v10855
        %v10978 = vunpack.c.l.b16 %v10856
        %v10979 = vunpack.c.l.b16 %v10857
        %v10980 = vunpack.c.l.b16 %v10858
        %v10981 = vunpack.c.l.b16 %v10859
        %v10982 = vunpack.c.l.b16 %v10860
        %v10983 = vunpack.c.l.b16 %v10861
        %v10984 = vunpack.c.l.b16 %v10862
        %v10985 = vunpack.c.l.b16 %v10863
        %v10986 = vunpack.c.l.b16 %v10864
        %v10987 = vpack.c.b16 %v10972, %v10971
        %v10988 = vpack.c.b16 %v10974, %v10973
        %v10989 = vpack.c.b16 %v10976, %v10975
        %v10990 = vpack.c.b16 %v10978, %v10977
        %v10991 = vpack.c.b16 %v10980, %v10979
        %v10992 = vpack.c.b16 %v10982, %v10981
        %v10993 = vpack.c.b16 %v10984, %v10983
        %v10994 = vpack.c.b16 %v10986, %v10985
        %11003 = vmatpush.bf16.msra.mxu0 %v10994
        %11004 = vmatpush.bf16.msra.mxu0 %v10993
        %11005 = vmatpush.bf16.msra.mxu0 %v10992
        %11006 = vmatpush.bf16.msra.mxu0 %v10991
        %11007 = vmatpush.bf16.msra.mxu0 %v10990
        %11008 = vmatpush.bf16.msra.mxu0 %v10989
        %11009 = vmatpush.bf16.msra.mxu0 %v10988
        %11010 = vmatpush.bf16.msra.mxu0 %v10987
        %11011 = vmatmul.bf16.gmra.mxu0 %v10871
        %v11012 = vpop.f32.mrf.mxu0
        %v11013 = vadd.f32 0.0, %v11012
        %v11014 = vpop.f32.mrf.mxu0
        %v11015 = vadd.f32 0.0, %v11014
        %11016 = vmatmul.bf16.gmra.mxu0 %v10875
        %v11017 = vpop.f32.mrf.mxu0
        %v11018 = vadd.f32 0.0, %v11017
        %v11019 = vpop.f32.mrf.mxu0
        %v11020 = vadd.f32 0.0, %v11019
        %11021 = vmatmul.bf16.gmra.mxu0 %v10879
        %v11022 = vpop.f32.mrf.mxu0
        %v11023 = vadd.f32 0.0, %v11022
        %v11024 = vpop.f32.mrf.mxu0
        %v11025 = vadd.f32 0.0, %v11024
        %11026 = vmatmul.bf16.gmra.mxu0 %v10883
        %v11027 = vpop.f32.mrf.mxu0
        %v11028 = vadd.f32 0.0, %v11027
        %v11029 = vpop.f32.mrf.mxu0
        %v11030 = vadd.f32 0.0, %v11029
        %11031 = vmatmul.bf16.gmra.mxu0 %v10887
        %v11032 = vpop.f32.mrf.mxu0
        %v11033 = vadd.f32 0.0, %v11032
        %v11034 = vpop.f32.mrf.mxu0
        %v11035 = vadd.f32 0.0, %v11034
        %11036 = vmatmul.bf16.gmra.mxu0 %v10891
        %v11037 = vpop.f32.mrf.mxu0
        %v11038 = vadd.f32 0.0, %v11037
        %v11039 = vpop.f32.mrf.mxu0
        %v11040 = vadd.f32 0.0, %v11039
        %11041 = vmatmul.bf16.gmra.mxu0 %v10895
        %v11042 = vpop.f32.mrf.mxu0
        %v11043 = vadd.f32 0.0, %v11042
        %v11044 = vpop.f32.mrf.mxu0
        %v11045 = vadd.f32 0.0, %v11044
        %11046 = vmatmul.bf16.gmra.mxu0 %v10899
        %v11047 = vpop.f32.mrf.mxu0
        %v11048 = vadd.f32 0.0, %v11047
        %v11049 = vpop.f32.mrf.mxu0
        %v11050 = vadd.f32 0.0, %v11049
        %11051 = vmatmul.bf16.gmra.mxu0 %v10903
        %v11052 = vpop.f32.mrf.mxu0
        %v11053 = vadd.f32 0.0, %v11052
        %v11054 = vpop.f32.mrf.mxu0
        %v11055 = vadd.f32 0.0, %v11054
        %11056 = vmatmul.bf16.gmra.mxu0 %v10907
        %v11057 = vpop.f32.mrf.mxu0
        %v11058 = vadd.f32 0.0, %v11057
        %v11059 = vpop.f32.mrf.mxu0
        %v11060 = vadd.f32 0.0, %v11059
        %11061 = vmatmul.bf16.gmra.mxu0 %v10911
        %v11062 = vpop.f32.mrf.mxu0
        %v11063 = vadd.f32 0.0, %v11062
        %v11064 = vpop.f32.mrf.mxu0
        %v11065 = vadd.f32 0.0, %v11064
        %11066 = vmatmul.bf16.gmra.mxu0 %v10915
        %v11067 = vpop.f32.mrf.mxu0
        %v11068 = vadd.f32 0.0, %v11067
        %v11069 = vpop.f32.mrf.mxu0
        %v11070 = vadd.f32 0.0, %v11069
        %11071 = vmatmul.bf16.gmra.mxu0 %v10919
        %v11072 = vpop.f32.mrf.mxu0
        %v11073 = vadd.f32 0.0, %v11072
        %v11074 = vpop.f32.mrf.mxu0
        %v11075 = vadd.f32 0.0, %v11074
        %11076 = vmatmul.bf16.gmra.mxu0 %v10923
        %v11077 = vpop.f32.mrf.mxu0
        %v11078 = vadd.f32 0.0, %v11077
        %v11079 = vpop.f32.mrf.mxu0
        %v11080 = vadd.f32 0.0, %v11079
        %11081 = vmatmul.bf16.gmra.mxu0 %v10927
        %v11082 = vpop.f32.mrf.mxu0
        %v11083 = vadd.f32 0.0, %v11082
        %v11084 = vpop.f32.mrf.mxu0
        %v11085 = vadd.f32 0.0, %v11084
        %11086 = vmatmul.bf16.gmra.mxu0 %v10931
        %v11087 = vpop.f32.mrf.mxu0
        %v11088 = vadd.f32 0.0, %v11087
        %v11089 = vpop.f32.mrf.mxu0
        %v11090 = vadd.f32 0.0, %v11089
        %11091 = vmatmul.bf16.gmra.mxu0 %v10935
        %v11092 = vpop.f32.mrf.mxu0
        %v11093 = vadd.f32 0.0, %v11092
        %v11094 = vpop.f32.mrf.mxu0
        %v11095 = vadd.f32 0.0, %v11094
        %11096 = vmatmul.bf16.gmra.mxu0 %v10936
        %v11097 = vpop.f32.mrf.mxu0
        %v11098 = vadd.f32 0.0, %v11097
        %v11099 = vpop.f32.mrf.mxu0
        %v11100 = vadd.f32 0.0, %v11099
        %11101 = vdwg.mxu0
        %v11102 = vadd.f32 %v10812, %v11013
        %v11103 = vadd.f32 %v10813, %v11015
        %v11104 = vadd.f32 %v10814, %v11018
        %v11105 = vadd.f32 %v10815, %v11020
        %v11106 = vadd.f32 %v10816, %v11023
        %v11107 = vadd.f32 %v10817, %v11025
        %v11108 = vadd.f32 %v10818, %v11028
        %v11109 = vadd.f32 %v10819, %v11030
        %v11110 = vadd.f32 %v10820, %v11033
        %v11111 = vadd.f32 %v10821, %v11035
        %v11112 = vadd.f32 %v10822, %v11038
        %v11113 = vadd.f32 %v10823, %v11040
        %v11114 = vadd.f32 %v10824, %v11043
        %v11115 = vadd.f32 %v10825, %v11045
        %v11116 = vadd.f32 %v10826, %v11048
        %v11117 = vadd.f32 %v10827, %v11050
        %v11118 = vadd.f32 %v10828, %v11053
        %v11119 = vadd.f32 %v10829, %v11055
        %v11120 = vadd.f32 %v10830, %v11058
        %v11121 = vadd.f32 %v10831, %v11060
        %v11122 = vadd.f32 %v10832, %v11063
        %v11123 = vadd.f32 %v10833, %v11065
        %v11124 = vadd.f32 %v10834, %v11068
        %v11125 = vadd.f32 %v10835, %v11070
        %v11126 = vadd.f32 %v10836, %v11073
        %v11127 = vadd.f32 %v10837, %v11075
        %v11128 = vadd.f32 %v10838, %v11078
        %v11129 = vadd.f32 %v10839, %v11080
        %v11130 = vadd.f32 %v10840, %v11083
        %v11131 = vadd.f32 %v10841, %v11085
        %v11132 = vadd.f32 %v10842, %v11088
        %v11133 = vadd.f32 %v10843, %v11090
        %v11134 = vadd.f32 %v10844, %v11093
        %v11135 = vadd.f32 %v10845, %v11095
        %v11136 = vadd.f32 %v10846, %v11098
        %v11137 = vadd.f32 %v10847, %v11100
        %s11138 = scalar_lea.vmem %s14, 512
        %v11139 = vld [vmem:[%s11138] sm:$0xf]
        %v11140 = vld [vmem:[%s11138 + $0x4] sm:$0xf]
        %v11141 = vld [vmem:[%s11138 + $0x8] sm:$0xf]
        %v11142 = vld [vmem:[%s11138 + $0xc] sm:$0xf]
        %v11143 = vld [vmem:[%s11138 + $0x10] sm:$0xf]
        %v11144 = vld [vmem:[%s11138 + $0x14] sm:$0xf]
        %v11145 = vld [vmem:[%s11138 + $0x18] sm:$0xf]
        %v11146 = vld [vmem:[%s11138 + $0x1c] sm:$0xf]
        %v11147 = vld [vmem:[%s11138 + $0x20] sm:$0xf]
        %v11148 = vld [vmem:[%s11138 + $0x24] sm:$0xf]
        %v11149 = vld [vmem:[%s11138 + $0x28] sm:$0xf]
        %v11150 = vld [vmem:[%s11138 + $0x2c] sm:$0xf]
        %v11151 = vld [vmem:[%s11138 + $0x30] sm:$0xf]
        %v11152 = vld [vmem:[%s11138 + $0x34] sm:$0xf]
        %v11153 = vld [vmem:[%s11138 + $0x38] sm:$0xf]
        %v11154 = vld [vmem:[%s11138 + $0x3c] sm:$0xf]
        %v11155 = vrot.slane %v8980, 3
        %v11156 = vrot.slane %v8989, 3
        %v11157 = vsel %vm4410, %v11155, %v11156
        %v11158 = vrot.slane %v8998, 3
        %v11159 = vsel %vm4410, %v11156, %v11158
        %v11160 = vrot.slane %v9007, 3
        %v11161 = vsel %vm4410, %v11158, %v11160
        %v11162 = vrot.slane %v9016, 3
        %v11163 = vsel %vm4410, %v11160, %v11162
        %v11164 = vrot.slane %v9025, 3
        %v11165 = vsel %vm4410, %v11162, %v11164
        %v11166 = vrot.slane %v9034, 3
        %v11167 = vsel %vm4410, %v11164, %v11166
        %v11168 = vrot.slane %v9043, 3
        %v11169 = vsel %vm4410, %v11166, %v11168
        %v11170 = vrot.slane %v9052, 3
        %v11171 = vsel %vm4410, %v11168, %v11170
        %v11172 = vrot.slane %v9061, 3
        %v11173 = vsel %vm4410, %v11170, %v11172
        %v11174 = vrot.slane %v9070, 3
        %v11175 = vsel %vm4410, %v11172, %v11174
        %v11176 = vrot.slane %v9079, 3
        %v11177 = vsel %vm4410, %v11174, %v11176
        %v11178 = vrot.slane %v9088, 3
        %v11179 = vsel %vm4410, %v11176, %v11178
        %v11180 = vrot.slane %v9097, 3
        %v11181 = vsel %vm4410, %v11178, %v11180
        %v11182 = vrot.slane %v9106, 3
        %v11183 = vsel %vm4410, %v11180, %v11182
        %v11184 = vrot.slane %v9115, 3
        %v11185 = vsel %vm4410, %v11182, %v11184
        %v11186 = vrot.slane %v9124, 3
        %v11187 = vsel %vm4410, %v11184, %v11186
        %v11188 = vrot.slane %v9144, 3
        %v11189 = vsel %vm4410, %v11186, %v11188
        %v11190 = vsel %vm4410, %v11188, %v7840
        %v11225 = vunpack.c.l.b16 %v11139
        %v11226 = vunpack.c.l.b16 %v11140
        %v11227 = vunpack.c.l.b16 %v11141
        %v11228 = vunpack.c.l.b16 %v11142
        %v11229 = vunpack.c.l.b16 %v11143
        %v11230 = vunpack.c.l.b16 %v11144
        %v11231 = vunpack.c.l.b16 %v11145
        %v11232 = vunpack.c.l.b16 %v11146
        %v11233 = vunpack.c.l.b16 %v11147
        %v11234 = vunpack.c.l.b16 %v11148
        %v11235 = vunpack.c.l.b16 %v11149
        %v11236 = vunpack.c.l.b16 %v11150
        %v11237 = vunpack.c.l.b16 %v11151
        %v11238 = vunpack.c.l.b16 %v11152
        %v11239 = vunpack.c.l.b16 %v11153
        %v11240 = vunpack.c.l.b16 %v11154
        %v11241 = vpack.c.b16 %v11226, %v11225
        %v11242 = vpack.c.b16 %v11228, %v11227
        %v11243 = vpack.c.b16 %v11230, %v11229
        %v11244 = vpack.c.b16 %v11232, %v11231
        %v11245 = vpack.c.b16 %v11234, %v11233
        %v11246 = vpack.c.b16 %v11236, %v11235
        %v11247 = vpack.c.b16 %v11238, %v11237
        %v11248 = vpack.c.b16 %v11240, %v11239
        %11257 = vmatpush.bf16.msra.mxu0 %v11248
        %11258 = vmatpush.bf16.msra.mxu0 %v11247
        %11259 = vmatpush.bf16.msra.mxu0 %v11246
        %11260 = vmatpush.bf16.msra.mxu0 %v11245
        %11261 = vmatpush.bf16.msra.mxu0 %v11244
        %11262 = vmatpush.bf16.msra.mxu0 %v11243
        %11263 = vmatpush.bf16.msra.mxu0 %v11242
        %11264 = vmatpush.bf16.msra.mxu0 %v11241
        %11265 = vmatmul.bf16.gmra.mxu0 %v11157
        %v11266 = vpop.f32.mrf.mxu0
        %v11267 = vadd.f32 0.0, %v11266
        %v11268 = vpop.f32.mrf.mxu0
        %v11269 = vadd.f32 0.0, %v11268
        %11270 = vmatmul.bf16.gmra.mxu0 %v11159
        %v11271 = vpop.f32.mrf.mxu0
        %v11272 = vadd.f32 0.0, %v11271
        %v11273 = vpop.f32.mrf.mxu0
        %v11274 = vadd.f32 0.0, %v11273
        %11275 = vmatmul.bf16.gmra.mxu0 %v11161
        %v11276 = vpop.f32.mrf.mxu0
        %v11277 = vadd.f32 0.0, %v11276
        %v11278 = vpop.f32.mrf.mxu0
        %v11279 = vadd.f32 0.0, %v11278
        %11280 = vmatmul.bf16.gmra.mxu0 %v11163
        %v11281 = vpop.f32.mrf.mxu0
        %v11282 = vadd.f32 0.0, %v11281
        %v11283 = vpop.f32.mrf.mxu0
        %v11284 = vadd.f32 0.0, %v11283
        %11285 = vmatmul.bf16.gmra.mxu0 %v11165
        %v11286 = vpop.f32.mrf.mxu0
        %v11287 = vadd.f32 0.0, %v11286
        %v11288 = vpop.f32.mrf.mxu0
        %v11289 = vadd.f32 0.0, %v11288
        %11290 = vmatmul.bf16.gmra.mxu0 %v11167
        %v11291 = vpop.f32.mrf.mxu0
        %v11292 = vadd.f32 0.0, %v11291
        %v11293 = vpop.f32.mrf.mxu0
        %v11294 = vadd.f32 0.0, %v11293
        %11295 = vmatmul.bf16.gmra.mxu0 %v11169
        %v11296 = vpop.f32.mrf.mxu0
        %v11297 = vadd.f32 0.0, %v11296
        %v11298 = vpop.f32.mrf.mxu0
        %v11299 = vadd.f32 0.0, %v11298
        %11300 = vmatmul.bf16.gmra.mxu0 %v11171
        %v11301 = vpop.f32.mrf.mxu0
        %v11302 = vadd.f32 0.0, %v11301
        %v11303 = vpop.f32.mrf.mxu0
        %v11304 = vadd.f32 0.0, %v11303
        %11305 = vmatmul.bf16.gmra.mxu0 %v11173
        %v11306 = vpop.f32.mrf.mxu0
        %v11307 = vadd.f32 0.0, %v11306
        %v11308 = vpop.f32.mrf.mxu0
        %v11309 = vadd.f32 0.0, %v11308
        %11310 = vmatmul.bf16.gmra.mxu0 %v11175
        %v11311 = vpop.f32.mrf.mxu0
        %v11312 = vadd.f32 0.0, %v11311
        %v11313 = vpop.f32.mrf.mxu0
        %v11314 = vadd.f32 0.0, %v11313
        %11315 = vmatmul.bf16.gmra.mxu0 %v11177
        %v11316 = vpop.f32.mrf.mxu0
        %v11317 = vadd.f32 0.0, %v11316
        %v11318 = vpop.f32.mrf.mxu0
        %v11319 = vadd.f32 0.0, %v11318
        %11320 = vmatmul.bf16.gmra.mxu0 %v11179
        %v11321 = vpop.f32.mrf.mxu0
        %v11322 = vadd.f32 0.0, %v11321
        %v11323 = vpop.f32.mrf.mxu0
        %v11324 = vadd.f32 0.0, %v11323
        %11325 = vmatmul.bf16.gmra.mxu0 %v11181
        %v11326 = vpop.f32.mrf.mxu0
        %v11327 = vadd.f32 0.0, %v11326
        %v11328 = vpop.f32.mrf.mxu0
        %v11329 = vadd.f32 0.0, %v11328
        %11330 = vmatmul.bf16.gmra.mxu0 %v11183
        %v11331 = vpop.f32.mrf.mxu0
        %v11332 = vadd.f32 0.0, %v11331
        %v11333 = vpop.f32.mrf.mxu0
        %v11334 = vadd.f32 0.0, %v11333
        %11335 = vmatmul.bf16.gmra.mxu0 %v11185
        %v11336 = vpop.f32.mrf.mxu0
        %v11337 = vadd.f32 0.0, %v11336
        %v11338 = vpop.f32.mrf.mxu0
        %v11339 = vadd.f32 0.0, %v11338
        %11340 = vmatmul.bf16.gmra.mxu0 %v11187
        %v11341 = vpop.f32.mrf.mxu0
        %v11342 = vadd.f32 0.0, %v11341
        %v11343 = vpop.f32.mrf.mxu0
        %v11344 = vadd.f32 0.0, %v11343
        %11345 = vmatmul.bf16.gmra.mxu0 %v11189
        %v11346 = vpop.f32.mrf.mxu0
        %v11347 = vadd.f32 0.0, %v11346
        %v11348 = vpop.f32.mrf.mxu0
        %v11349 = vadd.f32 0.0, %v11348
        %11350 = vmatmul.bf16.gmra.mxu0 %v11190
        %v11351 = vpop.f32.mrf.mxu0
        %v11352 = vadd.f32 0.0, %v11351
        %v11353 = vpop.f32.mrf.mxu0
        %v11354 = vadd.f32 0.0, %v11353
        %11355 = vdwg.mxu0
        %v11356 = vadd.f32 %v11102, %v11267
        %v11357 = vadd.f32 %v11103, %v11269
        %v11358 = vadd.f32 %v11104, %v11272
        %v11359 = vadd.f32 %v11105, %v11274
        %v11360 = vadd.f32 %v11106, %v11277
        %v11361 = vadd.f32 %v11107, %v11279
        %v11362 = vadd.f32 %v11108, %v11282
        %v11363 = vadd.f32 %v11109, %v11284
        %v11364 = vadd.f32 %v11110, %v11287
        %v11365 = vadd.f32 %v11111, %v11289
        %v11366 = vadd.f32 %v11112, %v11292
        %v11367 = vadd.f32 %v11113, %v11294
        %v11368 = vadd.f32 %v11114, %v11297
        %v11369 = vadd.f32 %v11115, %v11299
        %v11370 = vadd.f32 %v11116, %v11302
        %v11371 = vadd.f32 %v11117, %v11304
        %v11372 = vadd.f32 %v11118, %v11307
        %v11373 = vadd.f32 %v11119, %v11309
        %v11374 = vadd.f32 %v11120, %v11312
        %v11375 = vadd.f32 %v11121, %v11314
        %v11376 = vadd.f32 %v11122, %v11317
        %v11377 = vadd.f32 %v11123, %v11319
        %v11378 = vadd.f32 %v11124, %v11322
        %v11379 = vadd.f32 %v11125, %v11324
        %v11380 = vadd.f32 %v11126, %v11327
        %v11381 = vadd.f32 %v11127, %v11329
        %v11382 = vadd.f32 %v11128, %v11332
        %v11383 = vadd.f32 %v11129, %v11334
        %v11384 = vadd.f32 %v11130, %v11337
        %v11385 = vadd.f32 %v11131, %v11339
        %v11386 = vadd.f32 %v11132, %v11342
        %v11387 = vadd.f32 %v11133, %v11344
        %v11388 = vadd.f32 %v11134, %v11347
        %v11389 = vadd.f32 %v11135, %v11349
        %v11390 = vadd.f32 %v11136, %v11352
        %v11391 = vadd.f32 %v11137, %v11354
        %v11393 = vperm.slane %v9145, 0
        %v11395 = vadd.f32 %v11356, %v11393
        %v11396 = vadd.f32 %v11357, %v11393
        %v11397 = vadd.f32 %v11358, %v11393
        %v11398 = vadd.f32 %v11359, %v11393
        %v11399 = vadd.f32 %v11360, %v11393
        %v11400 = vadd.f32 %v11361, %v11393
        %v11401 = vadd.f32 %v11362, %v11393
        %v11402 = vadd.f32 %v11363, %v11393
        %v11403 = vadd.f32 %v11364, %v11393
        %v11404 = vadd.f32 %v11365, %v11393
        %v11405 = vadd.f32 %v11366, %v11393
        %v11406 = vadd.f32 %v11367, %v11393
        %v11407 = vadd.f32 %v11368, %v11393
        %v11408 = vadd.f32 %v11369, %v11393
        %v11409 = vadd.f32 %v11370, %v11393
        %v11410 = vadd.f32 %v11371, %v11393
        %v11411 = vadd.f32 %v11372, %v11393
        %v11412 = vadd.f32 %v11373, %v11393
        %v11413 = vadd.f32 %v11374, %v11393
        %v11414 = vadd.f32 %v11375, %v11393
        %v11415 = vadd.f32 %v11376, %v11393
        %v11416 = vadd.f32 %v11377, %v11393
        %v11417 = vadd.f32 %v11378, %v11393
        %v11418 = vadd.f32 %v11379, %v11393
        %v11419 = vadd.f32 %v11380, %v11393
        %v11420 = vadd.f32 %v11381, %v11393
        %v11421 = vadd.f32 %v11382, %v11393
        %v11422 = vadd.f32 %v11383, %v11393
        %v11423 = vadd.f32 %v11384, %v11393
        %v11424 = vadd.f32 %v11385, %v11393
        %v11425 = vadd.f32 %v11386, %v11393
        %v11426 = vadd.f32 %v11387, %v11393
        %v11427 = vadd.f32 %v11388, %v11393
        %v11428 = vadd.f32 %v11389, %v11393
        %v11429 = vadd.f32 %v11390, %v11393
        %v11430 = vadd.f32 %v11391, %v11393
        %vm11467 = vcmask 1042432
        %v11468 = vrot.slane %v11395, 5
        %v11469 = vrot.slane %v11396, 5
        %v11470 = vsel %vm11467, %v11468, %v11469
        %v11471 = vrot.slane %v11397, 5
        %v11472 = vsel %vm11467, %v11469, %v11471
        %v11473 = vrot.slane %v11398, 5
        %v11474 = vsel %vm11467, %v11471, %v11473
        %v11475 = vrot.slane %v11399, 5
        %v11476 = vsel %vm11467, %v11473, %v11475
        %v11477 = vrot.slane %v11400, 5
        %v11478 = vsel %vm11467, %v11475, %v11477
        %v11479 = vrot.slane %v11401, 5
        %v11480 = vsel %vm11467, %v11477, %v11479
        %v11481 = vrot.slane %v11402, 5
        %v11482 = vsel %vm11467, %v11479, %v11481
        %v11483 = vrot.slane %v11403, 5
        %v11484 = vsel %vm11467, %v11481, %v11483
        %v11485 = vrot.slane %v11404, 5
        %v11486 = vsel %vm11467, %v11483, %v11485
        %v11487 = vrot.slane %v11405, 5
        %v11488 = vsel %vm11467, %v11485, %v11487
        %v11489 = vrot.slane %v11406, 5
        %v11490 = vsel %vm11467, %v11487, %v11489
        %v11491 = vrot.slane %v11407, 5
        %v11492 = vsel %vm11467, %v11489, %v11491
        %v11493 = vrot.slane %v11408, 5
        %v11494 = vsel %vm11467, %v11491, %v11493
        %v11495 = vrot.slane %v11409, 5
        %v11496 = vsel %vm11467, %v11493, %v11495
        %v11497 = vrot.slane %v11410, 5
        %v11498 = vsel %vm11467, %v11495, %v11497
        %v11499 = vrot.slane %v11411, 5
        %v11500 = vsel %vm11467, %v11497, %v11499
        %v11501 = vrot.slane %v11412, 5
        %v11502 = vsel %vm11467, %v11499, %v11501
        %v11503 = vrot.slane %v11413, 5
        %v11504 = vsel %vm11467, %v11501, %v11503
        %v11505 = vrot.slane %v11414, 5
        %v11506 = vsel %vm11467, %v11503, %v11505
        %v11507 = vrot.slane %v11415, 5
        %v11508 = vsel %vm11467, %v11505, %v11507
        %v11509 = vrot.slane %v11416, 5
        %v11510 = vsel %vm11467, %v11507, %v11509
        %v11511 = vrot.slane %v11417, 5
        %v11512 = vsel %vm11467, %v11509, %v11511
        %v11513 = vrot.slane %v11418, 5
        %v11514 = vsel %vm11467, %v11511, %v11513
        %v11515 = vrot.slane %v11419, 5
        %v11516 = vsel %vm11467, %v11513, %v11515
        %v11517 = vrot.slane %v11420, 5
        %v11518 = vsel %vm11467, %v11515, %v11517
        %v11519 = vrot.slane %v11421, 5
        %v11520 = vsel %vm11467, %v11517, %v11519
        %v11521 = vrot.slane %v11422, 5
        %v11522 = vsel %vm11467, %v11519, %v11521
        %v11523 = vrot.slane %v11423, 5
        %v11524 = vsel %vm11467, %v11521, %v11523
        %v11525 = vrot.slane %v11424, 5
        %v11526 = vsel %vm11467, %v11523, %v11525
        %v11527 = vrot.slane %v11425, 5
        %v11528 = vsel %vm11467, %v11525, %v11527
        %v11529 = vrot.slane %v11426, 5
        %v11530 = vsel %vm11467, %v11527, %v11529
        %v11531 = vrot.slane %v11427, 5
        %v11532 = vsel %vm11467, %v11529, %v11531
        %v11533 = vrot.slane %v11428, 5
        %v11534 = vsel %vm11467, %v11531, %v11533
        %v11535 = vrot.slane %v11429, 5
        %v11536 = vsel %vm11467, %v11533, %v11535
        %v11537 = vrot.slane %v11430, 5
        %v11538 = vsel %vm11467, %v11535, %v11537
        %v11576 = vsub.f32 %v1004, %v11468
        %v11577 = vsub.f32 %v1005, %v11470
        %v11578 = vsub.f32 %v1006, %v11472
        %v11579 = vsub.f32 %v1007, %v11474
        %v11580 = vsub.f32 %v1008, %v11476
        %v11581 = vsub.f32 %v1009, %v11478
        %v11582 = vsub.f32 %v1010, %v11480
        %v11583 = vsub.f32 %v1011, %v11482
        %v11584 = vsub.f32 %v1012, %v11484
        %v11585 = vsub.f32 %v1013, %v11486
        %v11586 = vsub.f32 %v1014, %v11488
        %v11587 = vsub.f32 %v1015, %v11490
        %v11588 = vsub.f32 %v1016, %v11492
        %v11589 = vsub.f32 %v1017, %v11494
        %v11590 = vsub.f32 %v1018, %v11496
        %v11591 = vsub.f32 %v1019, %v11498
        %v11592 = vsub.f32 %v1020, %v11500
        %v11593 = vsub.f32 %v1021, %v11502
        %v11594 = vsub.f32 %v1022, %v11504
        %v11595 = vsub.f32 %v1023, %v11506
        %v11596 = vsub.f32 %v1024, %v11508
        %v11597 = vsub.f32 %v1025, %v11510
        %v11598 = vsub.f32 %v1026, %v11512
        %v11599 = vsub.f32 %v1027, %v11514
        %v11600 = vsub.f32 %v1028, %v11516
        %v11601 = vsub.f32 %v1029, %v11518
        %v11602 = vsub.f32 %v1030, %v11520
        %v11603 = vsub.f32 %v1031, %v11522
        %v11604 = vsub.f32 %v1032, %v11524
        %v11605 = vsub.f32 %v1033, %v11526
        %v11606 = vsub.f32 %v1034, %v11528
        %v11607 = vsub.f32 %v1035, %v11530
        %v11608 = vsub.f32 %v1036, %v11532
        %v11609 = vsub.f32 %v1037, %v11534
        %v11610 = vsub.f32 %v1038, %v11536
        %v11611 = vsub.f32 %v1039, %v11538
        %v11612 = vsub.f32 %v1040, %v11537
        %v11649 = vrot.slane %v2553, 5
        %v11650 = vrot.slane %v2554, 5
        %v11651 = vsel %vm11467, %v11649, %v11650
        %v11652 = vrot.slane %v2555, 5
        %v11653 = vsel %vm11467, %v11650, %v11652
        %v11654 = vrot.slane %v2556, 5
        %v11655 = vsel %vm11467, %v11652, %v11654
        %v11656 = vrot.slane %v2557, 5
        %v11657 = vsel %vm11467, %v11654, %v11656
        %v11658 = vrot.slane %v2558, 5
        %v11659 = vsel %vm11467, %v11656, %v11658
        %v11660 = vrot.slane %v2559, 5
        %v11661 = vsel %vm11467, %v11658, %v11660
        %v11662 = vrot.slane %v2560, 5
        %v11663 = vsel %vm11467, %v11660, %v11662
        %v11664 = vrot.slane %v2561, 5
        %v11665 = vsel %vm11467, %v11662, %v11664
        %v11666 = vrot.slane %v2562, 5
        %v11667 = vsel %vm11467, %v11664, %v11666
        %v11668 = vrot.slane %v2563, 5
        %v11669 = vsel %vm11467, %v11666, %v11668
        %v11670 = vrot.slane %v2564, 5
        %v11671 = vsel %vm11467, %v11668, %v11670
        %v11672 = vrot.slane %v2565, 5
        %v11673 = vsel %vm11467, %v11670, %v11672
        %v11674 = vrot.slane %v2566, 5
        %v11675 = vsel %vm11467, %v11672, %v11674
        %v11676 = vrot.slane %v2567, 5
        %v11677 = vsel %vm11467, %v11674, %v11676
        %v11678 = vrot.slane %v2568, 5
        %v11679 = vsel %vm11467, %v11676, %v11678
        %v11680 = vrot.slane %v2569, 5
        %v11681 = vsel %vm11467, %v11678, %v11680
        %v11682 = vrot.slane %v2570, 5
        %v11683 = vsel %vm11467, %v11680, %v11682
        %v11684 = vrot.slane %v2571, 5
        %v11685 = vsel %vm11467, %v11682, %v11684
        %v11686 = vrot.slane %v2572, 5
        %v11687 = vsel %vm11467, %v11684, %v11686
        %v11688 = vrot.slane %v2573, 5
        %v11689 = vsel %vm11467, %v11686, %v11688
        %v11690 = vrot.slane %v2574, 5
        %v11691 = vsel %vm11467, %v11688, %v11690
        %v11692 = vrot.slane %v2575, 5
        %v11693 = vsel %vm11467, %v11690, %v11692
        %v11694 = vrot.slane %v2576, 5
        %v11695 = vsel %vm11467, %v11692, %v11694
        %v11696 = vrot.slane %v2577, 5
        %v11697 = vsel %vm11467, %v11694, %v11696
        %v11698 = vrot.slane %v2578, 5
        %v11699 = vsel %vm11467, %v11696, %v11698
        %v11700 = vrot.slane %v2579, 5
        %v11701 = vsel %vm11467, %v11698, %v11700
        %v11702 = vrot.slane %v2580, 5
        %v11703 = vsel %vm11467, %v11700, %v11702
        %v11704 = vrot.slane %v2581, 5
        %v11705 = vsel %vm11467, %v11702, %v11704
        %v11706 = vrot.slane %v2582, 5
        %v11707 = vsel %vm11467, %v11704, %v11706
        %v11708 = vrot.slane %v2583, 5
        %v11709 = vsel %vm11467, %v11706, %v11708
        %v11710 = vrot.slane %v2584, 5
        %v11711 = vsel %vm11467, %v11708, %v11710
        %v11712 = vrot.slane %v2585, 5
        %v11713 = vsel %vm11467, %v11710, %v11712
        %v11714 = vrot.slane %v2586, 5
        %v11715 = vsel %vm11467, %v11712, %v11714
        %v11716 = vrot.slane %v2587, 5
        %v11717 = vsel %vm11467, %v11714, %v11716
        %v11718 = vrot.slane %v2588, 5
        %v11719 = vsel %vm11467, %v11716, %v11718
        %v11757 = vmul.f32 %v11576, %v11649
        %v11758 = vmul.f32 %v11577, %v11651
        %v11759 = vmul.f32 %v11578, %v11653
        %v11760 = vmul.f32 %v11579, %v11655
        %v11761 = vmul.f32 %v11580, %v11657
        %v11762 = vmul.f32 %v11581, %v11659
        %v11763 = vmul.f32 %v11582, %v11661
        %v11764 = vmul.f32 %v11583, %v11663
        %v11765 = vmul.f32 %v11584, %v11665
        %v11766 = vmul.f32 %v11585, %v11667
        %v11767 = vmul.f32 %v11586, %v11669
        %v11768 = vmul.f32 %v11587, %v11671
        %v11769 = vmul.f32 %v11588, %v11673
        %v11770 = vmul.f32 %v11589, %v11675
        %v11771 = vmul.f32 %v11590, %v11677
        %v11772 = vmul.f32 %v11591, %v11679
        %v11773 = vmul.f32 %v11592, %v11681
        %v11774 = vmul.f32 %v11593, %v11683
        %v11775 = vmul.f32 %v11594, %v11685
        %v11776 = vmul.f32 %v11595, %v11687
        %v11777 = vmul.f32 %v11596, %v11689
        %v11778 = vmul.f32 %v11597, %v11691
        %v11779 = vmul.f32 %v11598, %v11693
        %v11780 = vmul.f32 %v11599, %v11695
        %v11781 = vmul.f32 %v11600, %v11697
        %v11782 = vmul.f32 %v11601, %v11699
        %v11783 = vmul.f32 %v11602, %v11701
        %v11784 = vmul.f32 %v11603, %v11703
        %v11785 = vmul.f32 %v11604, %v11705
        %v11786 = vmul.f32 %v11605, %v11707
        %v11787 = vmul.f32 %v11606, %v11709
        %v11788 = vmul.f32 %v11607, %v11711
        %v11789 = vmul.f32 %v11608, %v11713
        %v11790 = vmul.f32 %v11609, %v11715
        %v11791 = vmul.f32 %v11610, %v11717
        %v11792 = vmul.f32 %v11611, %v11719
        %v11793 = vmul.f32 %v11612, %v11718
        %v11794 = vmul.f32 %v11757, %v11757
        %v11795 = vmul.f32 %v11758, %v11758
        %v11796 = vmul.f32 %v11759, %v11759
        %v11797 = vmul.f32 %v11760, %v11760
        %v11798 = vmul.f32 %v11761, %v11761
        %v11799 = vmul.f32 %v11762, %v11762
        %v11800 = vmul.f32 %v11763, %v11763
        %v11801 = vmul.f32 %v11764, %v11764
        %v11802 = vmul.f32 %v11765, %v11765
        %v11803 = vmul.f32 %v11766, %v11766
        %v11804 = vmul.f32 %v11767, %v11767
        %v11805 = vmul.f32 %v11768, %v11768
        %v11806 = vmul.f32 %v11769, %v11769
        %v11807 = vmul.f32 %v11770, %v11770
        %v11808 = vmul.f32 %v11771, %v11771
        %v11809 = vmul.f32 %v11772, %v11772
        %v11810 = vmul.f32 %v11773, %v11773
        %v11811 = vmul.f32 %v11774, %v11774
        %v11812 = vmul.f32 %v11775, %v11775
        %v11813 = vmul.f32 %v11776, %v11776
        %v11814 = vmul.f32 %v11777, %v11777
        %v11815 = vmul.f32 %v11778, %v11778
        %v11816 = vmul.f32 %v11779, %v11779
        %v11817 = vmul.f32 %v11780, %v11780
        %v11818 = vmul.f32 %v11781, %v11781
        %v11819 = vmul.f32 %v11782, %v11782
        %v11820 = vmul.f32 %v11783, %v11783
        %v11821 = vmul.f32 %v11784, %v11784
        %v11822 = vmul.f32 %v11785, %v11785
        %v11823 = vmul.f32 %v11786, %v11786
        %v11824 = vmul.f32 %v11787, %v11787
        %v11825 = vmul.f32 %v11788, %v11788
        %v11826 = vmul.f32 %v11789, %v11789
        %v11827 = vmul.f32 %v11790, %v11790
        %v11828 = vmul.f32 %v11791, %v11791
        %v11829 = vmul.f32 %v11792, %v11792
        %v11830 = vmul.f32 %v11793, %v11793
        %vm11868 = vcmask 1044480
        %v11869 = vrot.slane %v11794, 3
        %v11870 = vrot.slane %v11795, 3
        %v11871 = vsel %vm11868, %v11869, %v11870
        %v11872 = vrot.slane %v11796, 3
        %v11873 = vsel %vm11868, %v11870, %v11872
        %v11874 = vrot.slane %v11797, 3
        %v11875 = vsel %vm11868, %v11872, %v11874
        %v11876 = vrot.slane %v11798, 3
        %v11877 = vsel %vm11868, %v11874, %v11876
        %v11878 = vrot.slane %v11799, 3
        %v11879 = vsel %vm11868, %v11876, %v11878
        %v11880 = vrot.slane %v11800, 3
        %v11881 = vsel %vm11868, %v11878, %v11880
        %v11882 = vrot.slane %v11801, 3
        %v11883 = vsel %vm11868, %v11880, %v11882
        %v11884 = vrot.slane %v11802, 3
        %v11885 = vsel %vm11868, %v11882, %v11884
        %v11886 = vrot.slane %v11803, 3
        %v11887 = vsel %vm11868, %v11884, %v11886
        %v11888 = vrot.slane %v11804, 3
        %v11889 = vsel %vm11868, %v11886, %v11888
        %v11890 = vrot.slane %v11805, 3
        %v11891 = vsel %vm11868, %v11888, %v11890
        %v11892 = vrot.slane %v11806, 3
        %v11893 = vsel %vm11868, %v11890, %v11892
        %v11894 = vrot.slane %v11807, 3
        %v11895 = vsel %vm11868, %v11892, %v11894
        %v11896 = vrot.slane %v11808, 3
        %v11897 = vsel %vm11868, %v11894, %v11896
        %v11898 = vrot.slane %v11809, 3
        %v11899 = vsel %vm11868, %v11896, %v11898
        %v11900 = vrot.slane %v11810, 3
        %v11901 = vsel %vm11868, %v11898, %v11900
        %v11902 = vrot.slane %v11811, 3
        %v11903 = vsel %vm11868, %v11900, %v11902
        %v11904 = vrot.slane %v11812, 3
        %v11905 = vsel %vm11868, %v11902, %v11904
        %v11906 = vrot.slane %v11813, 3
        %v11907 = vsel %vm11868, %v11904, %v11906
        %v11908 = vrot.slane %v11814, 3
        %v11909 = vsel %vm11868, %v11906, %v11908
        %v11910 = vrot.slane %v11815, 3
        %v11911 = vsel %vm11868, %v11908, %v11910
        %v11912 = vrot.slane %v11816, 3
        %v11913 = vsel %vm11868, %v11910, %v11912
        %v11914 = vrot.slane %v11817, 3
        %v11915 = vsel %vm11868, %v11912, %v11914
        %v11916 = vrot.slane %v11818, 3
        %v11917 = vsel %vm11868, %v11914, %v11916
        %v11918 = vrot.slane %v11819, 3
        %v11919 = vsel %vm11868, %v11916, %v11918
        %v11920 = vrot.slane %v11820, 3
        %v11921 = vsel %vm11868, %v11918, %v11920
        %v11922 = vrot.slane %v11821, 3
        %v11923 = vsel %vm11868, %v11920, %v11922
        %v11924 = vrot.slane %v11822, 3
        %v11925 = vsel %vm11868, %v11922, %v11924
        %v11926 = vrot.slane %v11823, 3
        %v11927 = vsel %vm11868, %v11924, %v11926
        %v11928 = vrot.slane %v11824, 3
        %v11929 = vsel %vm11868, %v11926, %v11928
        %v11930 = vrot.slane %v11825, 3
        %v11931 = vsel %vm11868, %v11928, %v11930
        %v11932 = vrot.slane %v11826, 3
        %v11933 = vsel %vm11868, %v11930, %v11932
        %v11934 = vrot.slane %v11827, 3
        %v11935 = vsel %vm11868, %v11932, %v11934
        %v11936 = vrot.slane %v11828, 3
        %v11937 = vsel %vm11868, %v11934, %v11936
        %v11938 = vrot.slane %v11829, 3
        %v11939 = vsel %vm11868, %v11936, %v11938
        %v11940 = vrot.slane %v11830, 3
        %v11941 = vsel %vm11868, %v11938, %v11940
        %v11978 = vsel %vm2761, %v11871, 0.0
        %v11979 = vsel %vm2761, %v11873, 0.0
        %v11980 = vadd.f32 %v11978, %v11979
        %v11981 = vsel %vm2761, %v11875, 0.0
        %v11982 = vadd.f32 %v11980, %v11981
        %v11983 = vsel %vm2761, %v11877, 0.0
        %v11984 = vadd.f32 %v11982, %v11983
        %v11985 = vsel %vm2761, %v11879, 0.0
        %v11986 = vadd.f32 %v11984, %v11985
        %v11987 = vsel %vm2761, %v11881, 0.0
        %v11988 = vadd.f32 %v11986, %v11987
        %v11989 = vsel %vm2761, %v11883, 0.0
        %v11990 = vadd.f32 %v11988, %v11989
        %v11991 = vsel %vm2761, %v11885, 0.0
        %v11992 = vadd.f32 %v11990, %v11991
        %v11993 = vsel %vm2761, %v11887, 0.0
        %v11994 = vadd.f32 %v11992, %v11993
        %v11995 = vsel %vm2761, %v11889, 0.0
        %v11996 = vadd.f32 %v11994, %v11995
        %v11997 = vsel %vm2761, %v11891, 0.0
        %v11998 = vadd.f32 %v11996, %v11997
        %v11999 = vsel %vm2761, %v11893, 0.0
        %v12000 = vadd.f32 %v11998, %v11999
        %v12001 = vsel %vm2761, %v11895, 0.0
        %v12002 = vadd.f32 %v12000, %v12001
        %v12003 = vsel %vm2761, %v11897, 0.0
        %v12004 = vadd.f32 %v12002, %v12003
        %v12005 = vsel %vm2761, %v11899, 0.0
        %v12006 = vadd.f32 %v12004, %v12005
        %v12007 = vsel %vm2761, %v11901, 0.0
        %v12008 = vadd.f32 %v12006, %v12007
        %v12009 = vsel %vm2761, %v11903, 0.0
        %v12010 = vadd.f32 %v12008, %v12009
        %v12011 = vsel %vm2761, %v11905, 0.0
        %v12012 = vadd.f32 %v12010, %v12011
        %v12013 = vsel %vm2761, %v11907, 0.0
        %v12014 = vadd.f32 %v12012, %v12013
        %v12015 = vsel %vm2761, %v11909, 0.0
        %v12016 = vadd.f32 %v12014, %v12015
        %v12017 = vsel %vm2761, %v11911, 0.0
        %v12018 = vadd.f32 %v12016, %v12017
        %v12019 = vsel %vm2761, %v11913, 0.0
        %v12020 = vadd.f32 %v12018, %v12019
        %v12021 = vsel %vm2761, %v11915, 0.0
        %v12022 = vadd.f32 %v12020, %v12021
        %v12023 = vsel %vm2761, %v11917, 0.0
        %v12024 = vadd.f32 %v12022, %v12023
        %v12025 = vsel %vm2761, %v11919, 0.0
        %v12026 = vadd.f32 %v12024, %v12025
        %v12027 = vsel %vm2761, %v11921, 0.0
        %v12028 = vadd.f32 %v12026, %v12027
        %v12029 = vsel %vm2761, %v11923, 0.0
        %v12030 = vadd.f32 %v12028, %v12029
        %v12031 = vsel %vm2761, %v11925, 0.0
        %v12032 = vadd.f32 %v12030, %v12031
        %v12033 = vsel %vm2761, %v11927, 0.0
        %v12034 = vadd.f32 %v12032, %v12033
        %v12035 = vsel %vm2761, %v11929, 0.0
        %v12036 = vadd.f32 %v12034, %v12035
        %v12037 = vsel %vm2761, %v11931, 0.0
        %v12038 = vadd.f32 %v12036, %v12037
        %v12039 = vsel %vm2761, %v11933, 0.0
        %v12040 = vadd.f32 %v12038, %v12039
        %v12041 = vsel %vm2761, %v11935, 0.0
        %v12042 = vadd.f32 %v12040, %v12041
        %v12043 = vsel %vm2761, %v11937, 0.0
        %v12044 = vadd.f32 %v12042, %v12043
        %v12045 = vsel %vm2761, %v11939, 0.0
        %v12046 = vadd.f32 %v12044, %v12045
        %v12047 = vsel %vm2761, %v11941, 0.0
        %v12048 = vadd.f32 %v12046, %v12047
        %12049 = vadd.xlane.f32.xlu0 %v12048
        %v12050 = vpop.xlane.xlu0 %12049
        %v12051 = vrot.slane %v12050, 4
        %v12052 = vadd.f32 %v12050, %v12051
        %v12053 = vrot.slane %v12052, 2
        %v12054 = vadd.f32 %v12052, %v12053
        %v12055 = vrot.slane %v12054, 1
        %v12056 = vadd.f32 %v12054, %v12055
        %s12057 = vtos %v12056
        %s12058 = sld [smem:[#allocation2]]
        %s12059 = sadd.f32 %s12058, %s12057
        %s12060 = scalar_lea.smem [#allocation2], 0
        %12061 = sst [smem:[%s12060]] %s12059
        %p12062 = scmp.eq.s32.totalorder %s30, 1
        // Predicated region
        $region97: #{forward.1} parent=83 // pred_check
          %p12063 = pneg %p12062
        $region98: #{forward.1} parent=83 // pred_check_branch
          %12065 = sbr.rel (%p12063) target = $region100
        $region99: #{forward.1} parent=83 // pred_region
          %s12066 = sld [smem:[#allocation2]]
          %s12067 = smul.f32 %s12066, 0.00048828125
          %s12068 = scalar_lea.smem [#allocation8], 0
          %12069 = sst [smem:[%s12068]] %s12067
        $region100: #{forward.1} parent=83 // pred_fallthru
          _
        // Predicated region
        $region101: #{forward.1} parent=83 // pred_check
          %p12070 = pneg %p399
        $region102: #{forward.1} parent=83 // pred_check_branch
          %12072 = sbr.rel (%p12070) target = $region104
        $region103: #{forward.1} parent=83 // pred_region
          %12074 = vsyncadd [#allocation4], 0
          %s12076 = sshll.u32 %s16, 4
          %s12077 = int_to_ptr.hbm [resolvable:$true] %s12076
          %12079 = dma.smem_to_hbm [#allocation8], 16, %s12077, [#allocation4]
        $region104: #{forward.1} parent=83 // pred_fallthru
          _
        // Predicated region
        $region105: #{forward.1} parent=83 // pred_check
          %p12080 = pneg %p399
        $region106: #{forward.1} parent=83 // pred_check_branch
          %12082 = sbr.rel (%p12080) target = $region108
        $region107: #{forward.1} parent=83 // pred_region
          %12084 = dma.done [#allocation4], 16
        $region108: #{forward.1} parent=83 // pred_fallthru
          _
        %12085 = sfence
      $region84: #{forward.1} parent=5 // pred_fallthru
        _
      %p12086 = scmp.le.s32.totalorder 2, %s25
      // Predicated region
      $region109: #{forward.1} parent=5 // pred_check
        %p12087 = pneg %p12086
      $region110: #{forward.1} parent=5 // pred_check_branch
        %12089 = sbr.rel (%p12087) target = $region112
      $region111: #{forward.1} parent=5 // pred_region
        %s12090 = ssub.s32 %s25, 2
      $region112: #{forward.1} parent=5 // pred_fallthru
        _
    $region6: #{forward.1} parent=1 // loop_footer
      %s29 = sadd.s32 1, %s25
    $region7: #{forward.1} parent=1 // loop_footer_branch
      %24 = sbr.rel target = $region3
    $region8: #{forward.1} parent=1 // loop_exit
      _
    %12091 = vsyncpa [#allocation4], 1
    %s12092 = scalar_lea.sflag [#allocation4], 1
    %12093 = vsyncpa %s12092, 1
    %12094 = vsyncpa [#allocation5], 1
    %s12095 = scalar_lea.sflag [#allocation5], 1
    %12096 = vsyncpa %s12095, 1
    %12097 = vsyncpa [#allocation7], 1

</llo_original>
